<compile_context>
chip_gen: v6e
topology: v6e:2x2x1
jax: 0.10.0
libtpu: 0.0.40
codegen_flags: <defaults>
</compile_context>

<pallas_src>
import numpy as np
import jax
import jax.numpy as jnp
from jax.experimental import pallas as pl
from jax.experimental.pallas import tpu as pltpu


# ----------------------------- fused Pallas kernel --------------------------

def _dqn_fused_kernel(x_ref, w1_ref, b1_ref, w2_ref, b2_ref, w3_ref, b3_ref,
                      pm_ref, fw1_ref, fb1_ref, fw2_ref, fb2_ref,
                      o_ref, pad1_ref, pad2_ref):
    # x_ref : (TB, H+2, W+2, Cin)   zero-padded input tile (TB batch elements)
    # wK_ref: (9*CinK, CoutK)       im2col-reshaped conv weights
    # bK_ref: (1, CoutK)
    # pm_ref: (TB*36, TB*H*W)       block-diagonal adaptive-avg-pool matrix
    # fw1_ref: (4608, 256)  fb1_ref: (1, 256)  fw2_ref: (256, A)  fb2_ref: (1, A)
    # o_ref : (1, TB, A)
    # padK_ref: (TB, H+2, W+2, CK)  VMEM scratch for padded intermediate acts
    TB, Hp, Wp, _ = x_ref.shape
    H, W = Hp - 2, Wp - 2

    def conv3x3_im2col_relu(xp, w_mat, b_row):
        # xp: (TB, H+2, W+2, C) padded activation value
        # w_mat: (9*C, Cout), b_row: (1, Cout)  -> (TB*H*W, Cout)
        C = xp.shape[-1]
        cols = [xp[:, dy:dy + H, dx:dx + W, :]
                for dy in range(3) for dx in range(3)]          # 9 x (TB,H,W,C)
        col = jnp.concatenate(cols, axis=-1).reshape(TB * H * W, 9 * C)
        y = jnp.dot(col, w_mat, preferred_element_type=jnp.float32) + b_row
        return jnp.maximum(y, 0.0)

    # ---- conv1 + relu ----
    a1 = conv3x3_im2col_relu(x_ref[...], w1_ref[...], b1_ref[...])   # (TB*H*W,32)
    pad1_ref[...] = jnp.zeros_like(pad1_ref)                         # cheap memset
    pad1_ref[:, 1:H + 1, 1:W + 1, :] = a1.reshape(TB, H, W, -1)

    # ---- conv2 + relu ----
    a2 = conv3x3_im2col_relu(pad1_ref[...], w2_ref[...], b2_ref[...])  # (TB*H*W,64)
    pad2_ref[...] = jnp.zeros_like(pad2_ref)
    pad2_ref[:, 1:H + 1, 1:W + 1, :] = a2.reshape(TB, H, W, -1)

    # ---- conv3 + relu ----
    a3 = conv3x3_im2col_relu(pad2_ref[...], w3_ref[...], b3_ref[...])  # (TB*H*W,128)

    # ---- adaptive avg-pool to 6x6 as ONE 2-D matmul (block-diag pool matrix) ----
    pooled = jnp.dot(pm_ref[...], a3,
                     preferred_element_type=jnp.float32)             # (TB*36, 128)

    # ---- fc1 + relu + fc2 ----
    feat = pooled.reshape(TB, -1)                                    # (TB, 4608)
    h = jnp.dot(feat, fw1_ref[...], preferred_element_type=jnp.float32) + fb1_ref[...]
    h = jnp.maximum(h, 0.0)
    o_ref[0] = (jnp.dot(h, fw2_ref[...], preferred_element_type=jnp.float32)
                + fb2_ref[...])


# ------------------------------ wrapper --------------------------------------

def adaptive_pool_matrix(H, W, out_h=6, out_w=6):
    """(out_h*out_w, H*W) matrix implementing PyTorch adaptive_avg_pool2d."""
    M = np.zeros((out_h * out_w, H * W), np.float32)
    for oh in range(out_h):
        h0 = (oh * H) // out_h
        h1 = -((-(oh + 1) * H) // out_h)           # ceil((oh+1)*H/out_h)
        for ow in range(out_w):
            w0 = (ow * W) // out_w
            w1 = -((-(ow + 1) * W) // out_w)
            cnt = (h1 - h0) * (w1 - w0)
            for hh in range(h0, h1):
                for ww in range(w0, w1):
                    M[oh * out_w + ow, hh * W + ww] = 1.0 / cnt
    return M


def dqn_cnn_forward(x_nchw, params, tb=8):
    x = jnp.transpose(x_nchw, (0, 2, 3, 1))        # NCHW -> NHWC
    N, H, W, Cin = x.shape
    TB = min(tb, N)
    G = -(-N // TB)                                # grid steps over batch tiles
    Np = G * TB
    # pad batch to a multiple of TB and spatially (SAME padding) ONCE, host-side
    xp = jnp.pad(x, ((0, Np - N), (1, 1), (1, 1), (0, 0)))

    C1 = params["w1"].shape[-1]                    # 32
    C2 = params["w2"].shape[-1]                    # 64
    C3 = params["w3"].shape[-1]                    # 128
    w1 = params["w1"].reshape(9 * Cin, C1)         # im2col weight layout
    w2 = params["w2"].reshape(9 * C1, C2)
    w3 = params["w3"].reshape(9 * C2, C3)

    pm_base = adaptive_pool_matrix(H, W)           # (36, H*W)
    pm_bd = jnp.asarray(np.kron(np.eye(TB, dtype=np.float32), pm_base))
    S = 36
    F, Hd = params["fw1"].shape                    # 4608, 256
    A = params["fw2"].shape[1]

    out = pl.pallas_call(
        _dqn_fused_kernel,
        out_shape=jax.ShapeDtypeStruct((G, TB, A), jnp.float32),
        grid_spec=pltpu.PrefetchScalarGridSpec(
            num_scalar_prefetch=0,
            grid=(G,),
            in_specs=[
                pl.BlockSpec((TB, H + 2, W + 2, Cin), lambda n: (n, 0, 0, 0)),
                pl.BlockSpec((9 * Cin, C1), lambda n: (0, 0)),
                pl.BlockSpec((1, C1), lambda n: (0, 0)),
                pl.BlockSpec((9 * C1, C2), lambda n: (0, 0)),
                pl.BlockSpec((1, C2), lambda n: (0, 0)),
                pl.BlockSpec((9 * C2, C3), lambda n: (0, 0)),
                pl.BlockSpec((1, C3), lambda n: (0, 0)),
                pl.BlockSpec((TB * S, TB * H * W), lambda n: (0, 0)),
                pl.BlockSpec((F, Hd), lambda n: (0, 0)),
                pl.BlockSpec((1, Hd), lambda n: (0, 0)),
                pl.BlockSpec((Hd, A), lambda n: (0, 0)),
                pl.BlockSpec((1, A), lambda n: (0, 0)),
            ],
            out_specs=pl.BlockSpec((1, TB, A), lambda n: (n, 0, 0)),
            scratch_shapes=[
                pltpu.VMEM((TB, H + 2, W + 2, C1), jnp.float32),
                pltpu.VMEM((TB, H + 2, W + 2, C2), jnp.float32),
            ],
        ),
        compiler_params=pltpu.CompilerParams(
            dimension_semantics=("parallel",),           # batch tiles independent
            vmem_limit_bytes=48 * 1024 * 1024,
        ),
    )(xp,
      w1, params["b1"].reshape(1, C1),
      w2, params["b2"].reshape(1, C2),
      w3, params["b3"].reshape(1, C3),
      pm_bd,
      params["fw1"], params["fb1"].reshape(1, Hd),
      params["fw2"], params["fb2"].reshape(1, A))
    return out.reshape(Np, A)[:N]


# ------------------------------ parameters -----------------------------------

def init_params(key, input_channels, action_dim):
    ks = jax.random.split(key, 10)

    def conv_w(k, cin, cout):
        return jax.random.normal(k, (3, 3, cin, cout), jnp.float32) * np.sqrt(
            2.0 / (9 * cin))

    def lin_w(k, fin, fout):
        return jax.random.normal(k, (fin, fout), jnp.float32) * np.sqrt(2.0 / fin)

    return {
        "w1": conv_w(ks[0], input_channels, 32),
        "b1": jax.random.normal(ks[1], (32,), jnp.float32) * 0.01,
        "w2": conv_w(ks[2], 32, 64),
        "b2": jax.random.normal(ks[3], (64,), jnp.float32) * 0.01,
        "w3": conv_w(ks[4], 64, 128),
        "b3": jax.random.normal(ks[5], (128,), jnp.float32) * 0.01,
        "fw1": lin_w(ks[6], 128 * 6 * 6, 256),
        "fb1": jax.random.normal(ks[7], (256,), jnp.float32) * 0.01,
        "fw2": lin_w(ks[8], 256, action_dim),
        "fb2": jax.random.normal(ks[9], (action_dim,), jnp.float32) * 0.01,
    }


# --------------------------- pure-JAX reference -------------------------------

def reference_forward(x_nchw, params):
    hi = jax.lax.Precision.HIGHEST
    x = jnp.transpose(x_nchw, (0, 2, 3, 1))

    def conv(x, w, b):
        y = jax.lax.conv_general_dilated(
            x, w, (1, 1), "SAME",
            dimension_numbers=("NHWC", "HWIO", "NHWC"), precision=hi)
        return jax.nn.relu(y + b)

    y = conv(x, params["w1"], params["b1"])
    y = conv(y, params["w2"], params["b2"])
    y = conv(y, params["w3"], params["b3"])
    N, H, W, C = y.shape
    M = jnp.asarray(adaptive_pool_matrix(H, W))
    pooled = jnp.einsum("sp,npc->nsc", M, y.reshape(N, H * W, C), precision=hi)
    # NOTE: flatten order is (h, w, c) to match the kernel's feature layout
    # (the synthetic fc1 weights are defined over this ordering).
    feat = pooled.reshape(N, -1)
    h = jax.nn.relu(jnp.dot(feat, params["fw1"], precision=hi) + params["fb1"])
    return jnp.dot(h, params["fw2"], precision=hi) + params["fb2"]


# --------------------------------- main ---------------------------------------

if __name__ == "__main__":
    batch = 2
    input_channels = 3
    spatial = 12            # H=W=12 -> adaptive 6x6 pool has uniform 2x2 bins
    action_dim = 4

    key = jax.random.PRNGKey(0)
    kx, kp = jax.random.split(key)
    x = jax.random.normal(kx, (batch, input_channels, spatial, spatial),
                          jnp.float32)             # NCHW, like PyTorch
    params = init_params(kp, input_channels, action_dim)

    out = jax.block_until_ready(dqn_cnn_forward(x, params))
    ref = jax.block_until_ready(reference_forward(x, params))

    np.testing.assert_allclose(np.asarray(out), np.asarray(ref),
                               rtol=5e-3, atol=5e-3)
    assert out.shape == (batch, action_dim)
    print("KERNEL_OK")
</pallas_src>

<mosaic_0001>
module attributes {stable_mosaic.version = 11 : i64} {
  func.func @_dqn_fused_kernel(%arg0: i32, %arg1: memref<2x14x14x3xf32, #tpu.memory_space<vmem>>, %arg2: memref<27x32xf32, #tpu.memory_space<vmem>>, %arg3: memref<1x32xf32, #tpu.memory_space<vmem>>, %arg4: memref<288x64xf32, #tpu.memory_space<vmem>>, %arg5: memref<1x64xf32, #tpu.memory_space<vmem>>, %arg6: memref<576x128xf32, #tpu.memory_space<vmem>>, %arg7: memref<1x128xf32, #tpu.memory_space<vmem>>, %arg8: memref<72x288xf32, #tpu.memory_space<vmem>>, %arg9: memref<4608x256xf32, #tpu.memory_space<vmem>>, %arg10: memref<1x256xf32, #tpu.memory_space<vmem>>, %arg11: memref<256x4xf32, #tpu.memory_space<vmem>>, %arg12: memref<1x4xf32, #tpu.memory_space<vmem>>, %arg13: memref<1x2x4xf32, #tpu.memory_space<vmem>>, %arg14: memref<2x14x14x32xf32, #tpu.memory_space<vmem>>, %arg15: memref<2x14x14x64xf32, #tpu.memory_space<vmem>>) attributes {dimension_semantics = [#tpu.dimension_semantics<parallel>], iteration_bounds = array<i64: 1>, scalar_prefetch = 0 : i64, scratch_operands = 2 : i64, tpu.core_type = #tpu.core_type<tc>, window_params = [{transform_indices = @transform_0, window_bounds = array<i64: 2, 14, 14, 3>}, {pipeline_mode = #tpu.pipeline_mode<synchronous>, transform_indices = @transform_1, window_bounds = array<i64: 27, 32>}, {pipeline_mode = #tpu.pipeline_mode<synchronous>, transform_indices = @transform_2, window_bounds = array<i64: 1, 32>}, {pipeline_mode = #tpu.pipeline_mode<synchronous>, transform_indices = @transform_3, window_bounds = array<i64: 288, 64>}, {pipeline_mode = #tpu.pipeline_mode<synchronous>, transform_indices = @transform_4, window_bounds = array<i64: 1, 64>}, {pipeline_mode = #tpu.pipeline_mode<synchronous>, transform_indices = @transform_5, window_bounds = array<i64: 576, 128>}, {pipeline_mode = #tpu.pipeline_mode<synchronous>, transform_indices = @transform_6, window_bounds = array<i64: 1, 128>}, {pipeline_mode = #tpu.pipeline_mode<synchronous>, transform_indices = @transform_7, window_bounds = array<i64: 72, 288>}, {pipeline_mode = #tpu.pipeline_mode<synchronous>, transform_indices = @transform_8, window_bounds = array<i64: 4608, 256>}, {pipeline_mode = #tpu.pipeline_mode<synchronous>, transform_indices = @transform_9, window_bounds = array<i64: 1, 256>}, {pipeline_mode = #tpu.pipeline_mode<synchronous>, transform_indices = @transform_10, window_bounds = array<i64: 256, 4>}, {pipeline_mode = #tpu.pipeline_mode<synchronous>, transform_indices = @transform_11, window_bounds = array<i64: 1, 4>}, {transform_indices = @transform_12, window_bounds = array<i64: 1, 2, 4>}]} {
    %c0 = arith.constant 0 : index
    %c0_0 = arith.constant 0 : index
    %c0_1 = arith.constant 0 : index
    %c0_2 = arith.constant 0 : index
    %0 = vector.load %arg1[%c0, %c0_0, %c0_1, %c0_2] : memref<2x14x14x3xf32, #tpu.memory_space<vmem>>, vector<2x14x14x3xf32>
    %c0_3 = arith.constant 0 : index
    %c0_4 = arith.constant 0 : index
    %1 = vector.load %arg2[%c0_3, %c0_4] : memref<27x32xf32, #tpu.memory_space<vmem>>, vector<27x32xf32>
    %c0_5 = arith.constant 0 : index
    %c0_6 = arith.constant 0 : index
    %2 = vector.load %arg3[%c0_5, %c0_6] : memref<1x32xf32, #tpu.memory_space<vmem>>, vector<1x32xf32>
    %3 = vector.extract_strided_slice %0 {offsets = [0, 0, 0, 0], sizes = [2, 12, 12, 3], strides = [1, 1, 1, 1]} : vector<2x14x14x3xf32> to vector<2x12x12x3xf32>
    %4 = vector.extract_strided_slice %0 {offsets = [0, 0, 1, 0], sizes = [2, 12, 12, 3], strides = [1, 1, 1, 1]} : vector<2x14x14x3xf32> to vector<2x12x12x3xf32>
    %5 = vector.extract_strided_slice %0 {offsets = [0, 0, 2, 0], sizes = [2, 12, 12, 3], strides = [1, 1, 1, 1]} : vector<2x14x14x3xf32> to vector<2x12x12x3xf32>
    %6 = vector.extract_strided_slice %0 {offsets = [0, 1, 0, 0], sizes = [2, 12, 12, 3], strides = [1, 1, 1, 1]} : vector<2x14x14x3xf32> to vector<2x12x12x3xf32>
    %7 = vector.extract_strided_slice %0 {offsets = [0, 1, 1, 0], sizes = [2, 12, 12, 3], strides = [1, 1, 1, 1]} : vector<2x14x14x3xf32> to vector<2x12x12x3xf32>
    %8 = vector.extract_strided_slice %0 {offsets = [0, 1, 2, 0], sizes = [2, 12, 12, 3], strides = [1, 1, 1, 1]} : vector<2x14x14x3xf32> to vector<2x12x12x3xf32>
    %9 = vector.extract_strided_slice %0 {offsets = [0, 2, 0, 0], sizes = [2, 12, 12, 3], strides = [1, 1, 1, 1]} : vector<2x14x14x3xf32> to vector<2x12x12x3xf32>
    %10 = vector.extract_strided_slice %0 {offsets = [0, 2, 1, 0], sizes = [2, 12, 12, 3], strides = [1, 1, 1, 1]} : vector<2x14x14x3xf32> to vector<2x12x12x3xf32>
    %11 = vector.extract_strided_slice %0 {offsets = [0, 2, 2, 0], sizes = [2, 12, 12, 3], strides = [1, 1, 1, 1]} : vector<2x14x14x3xf32> to vector<2x12x12x3xf32>
    %12 = tpu.concatenate %3, %4, %5, %6, %7, %8, %9, %10, %11 in 3 : vector<2x12x12x3xf32>, vector<2x12x12x3xf32>, vector<2x12x12x3xf32>, vector<2x12x12x3xf32>, vector<2x12x12x3xf32>, vector<2x12x12x3xf32>, vector<2x12x12x3xf32>, vector<2x12x12x3xf32>, vector<2x12x12x3xf32> -> vector<2x12x12x27xf32>
    %13 = vector.shape_cast %12 : vector<2x12x12x27xf32> to vector<288x27xf32>
    %cst = arith.constant dense<0.000000e+00> : vector<288x32xf32>
    %14 = tpu.matmul %13, %1, %cst {dimension_numbers = #tpu.dot_dimension_numbers<[1], [0], [0], [1], [0, 0, 1, 1], [], []>} : vector<288x27xf32>, vector<27x32xf32>, vector<288x32xf32> -> vector<288x32xf32>
    %15 = vector.broadcast %2 : vector<1x32xf32> to vector<288x32xf32>
    %16 = arith.addf %14, %15 : vector<288x32xf32>
    %cst_7 = arith.constant 0.000000e+00 : f32
    %17 = vector.broadcast %cst_7 : f32 to vector<288x32xf32>
    %18 = arith.maximumf %16, %17 : vector<288x32xf32>
    %cst_8 = arith.constant 0.000000e+00 : f32
    %19 = vector.broadcast %cst_8 : f32 to vector<2x14x14x32xf32>
    %c0_9 = arith.constant 0 : index
    %c0_10 = arith.constant 0 : index
    %c0_11 = arith.constant 0 : index
    %c0_12 = arith.constant 0 : index
    %20 = vector.load %arg14[%c0_9, %c0_10, %c0_11, %c0_12] : memref<2x14x14x32xf32, #tpu.memory_space<vmem>>, vector<2x14x14x32xf32>
    tpu.vector_store %arg14[%c0_9, %c0_10, %c0_11, %c0_12], %19 {strides = array<i32>} : memref<2x14x14x32xf32, #tpu.memory_space<vmem>>, vector<2x14x14x32xf32>,
    %21 = vector.shape_cast %18 : vector<288x32xf32> to vector<2x12x12x32xf32>
    %c0_13 = arith.constant 0 : index
    %c1 = arith.constant 1 : index
    %c1_14 = arith.constant 1 : index
    %c0_15 = arith.constant 0 : index
    %22 = vector.load %arg14[%c0_13, %c1, %c1_14, %c0_15] : memref<2x14x14x32xf32, #tpu.memory_space<vmem>>, vector<2x12x12x32xf32>
    tpu.vector_store %arg14[%c0_13, %c1, %c1_14, %c0_15], %21 {strides = array<i32>} : memref<2x14x14x32xf32, #tpu.memory_space<vmem>>, vector<2x12x12x32xf32>,
    %c0_16 = arith.constant 0 : index
    %c0_17 = arith.constant 0 : index
    %c0_18 = arith.constant 0 : index
    %c0_19 = arith.constant 0 : index
    %23 = vector.load %arg14[%c0_16, %c0_17, %c0_18, %c0_19] : memref<2x14x14x32xf32, #tpu.memory_space<vmem>>, vector<2x14x14x32xf32>
    %c0_20 = arith.constant 0 : index
    %c0_21 = arith.constant 0 : index
    %24 = vector.load %arg4[%c0_20, %c0_21] : memref<288x64xf32, #tpu.memory_space<vmem>>, vector<288x64xf32>
    %c0_22 = arith.constant 0 : index
    %c0_23 = arith.constant 0 : index
    %25 = vector.load %arg5[%c0_22, %c0_23] : memref<1x64xf32, #tpu.memory_space<vmem>>, vector<1x64xf32>
    %26 = vector.extract_strided_slice %23 {offsets = [0, 0, 0, 0], sizes = [2, 12, 12, 32], strides = [1, 1, 1, 1]} : vector<2x14x14x32xf32> to vector<2x12x12x32xf32>
    %27 = vector.extract_strided_slice %23 {offsets = [0, 0, 1, 0], sizes = [2, 12, 12, 32], strides = [1, 1, 1, 1]} : vector<2x14x14x32xf32> to vector<2x12x12x32xf32>
    %28 = vector.extract_strided_slice %23 {offsets = [0, 0, 2, 0], sizes = [2, 12, 12, 32], strides = [1, 1, 1, 1]} : vector<2x14x14x32xf32> to vector<2x12x12x32xf32>
    %29 = vector.extract_strided_slice %23 {offsets = [0, 1, 0, 0], sizes = [2, 12, 12, 32], strides = [1, 1, 1, 1]} : vector<2x14x14x32xf32> to vector<2x12x12x32xf32>
    %30 = vector.extract_strided_slice %23 {offsets = [0, 1, 1, 0], sizes = [2, 12, 12, 32], strides = [1, 1, 1, 1]} : vector<2x14x14x32xf32> to vector<2x12x12x32xf32>
    %31 = vector.extract_strided_slice %23 {offsets = [0, 1, 2, 0], sizes = [2, 12, 12, 32], strides = [1, 1, 1, 1]} : vector<2x14x14x32xf32> to vector<2x12x12x32xf32>
    %32 = vector.extract_strided_slice %23 {offsets = [0, 2, 0, 0], sizes = [2, 12, 12, 32], strides = [1, 1, 1, 1]} : vector<2x14x14x32xf32> to vector<2x12x12x32xf32>
    %33 = vector.extract_strided_slice %23 {offsets = [0, 2, 1, 0], sizes = [2, 12, 12, 32], strides = [1, 1, 1, 1]} : vector<2x14x14x32xf32> to vector<2x12x12x32xf32>
    %34 = vector.extract_strided_slice %23 {offsets = [0, 2, 2, 0], sizes = [2, 12, 12, 32], strides = [1, 1, 1, 1]} : vector<2x14x14x32xf32> to vector<2x12x12x32xf32>
    %35 = tpu.concatenate %26, %27, %28, %29, %30, %31, %32, %33, %34 in 3 : vector<2x12x12x32xf32>, vector<2x12x12x32xf32>, vector<2x12x12x32xf32>, vector<2x12x12x32xf32>, vector<2x12x12x32xf32>, vector<2x12x12x32xf32>, vector<2x12x12x32xf32>, vector<2x12x12x32xf32>, vector<2x12x12x32xf32> -> vector<2x12x12x288xf32>
    %36 = vector.shape_cast %35 : vector<2x12x12x288xf32> to vector<288x288xf32>
    %cst_24 = arith.constant dense<0.000000e+00> : vector<288x64xf32>
    %37 = tpu.matmul %36, %24, %cst_24 {dimension_numbers = #tpu.dot_dimension_numbers<[1], [0], [0], [1], [0, 0, 1, 1], [], []>} : vector<288x288xf32>, vector<288x64xf32>, vector<288x64xf32> -> vector<288x64xf32>
    %38 = vector.broadcast %25 : vector<1x64xf32> to vector<288x64xf32>
    %39 = arith.addf %37, %38 : vector<288x64xf32>
    %cst_25 = arith.constant 0.000000e+00 : f32
    %40 = vector.broadcast %cst_25 : f32 to vector<288x64xf32>
    %41 = arith.maximumf %39, %40 : vector<288x64xf32>
    %cst_26 = arith.constant 0.000000e+00 : f32
    %42 = vector.broadcast %cst_26 : f32 to vector<2x14x14x64xf32>
    %c0_27 = arith.constant 0 : index
    %c0_28 = arith.constant 0 : index
    %c0_29 = arith.constant 0 : index
    %c0_30 = arith.constant 0 : index
    %43 = vector.load %arg15[%c0_27, %c0_28, %c0_29, %c0_30] : memref<2x14x14x64xf32, #tpu.memory_space<vmem>>, vector<2x14x14x64xf32>
    tpu.vector_store %arg15[%c0_27, %c0_28, %c0_29, %c0_30], %42 {strides = array<i32>} : memref<2x14x14x64xf32, #tpu.memory_space<vmem>>, vector<2x14x14x64xf32>,
    %44 = vector.shape_cast %41 : vector<288x64xf32> to vector<2x12x12x64xf32>
    %c0_31 = arith.constant 0 : index
    %c1_32 = arith.constant 1 : index
    %c1_33 = arith.constant 1 : index
    %c0_34 = arith.constant 0 : index
    %45 = vector.load %arg15[%c0_31, %c1_32, %c1_33, %c0_34] : memref<2x14x14x64xf32, #tpu.memory_space<vmem>>, vector<2x12x12x64xf32>
    tpu.vector_store %arg15[%c0_31, %c1_32, %c1_33, %c0_34], %44 {strides = array<i32>} : memref<2x14x14x64xf32, #tpu.memory_space<vmem>>, vector<2x12x12x64xf32>,
    %c0_35 = arith.constant 0 : index
    %c0_36 = arith.constant 0 : index
    %c0_37 = arith.constant 0 : index
    %c0_38 = arith.constant 0 : index
    %46 = vector.load %arg15[%c0_35, %c0_36, %c0_37, %c0_38] : memref<2x14x14x64xf32, #tpu.memory_space<vmem>>, vector<2x14x14x64xf32>
    %c0_39 = arith.constant 0 : index
    %c0_40 = arith.constant 0 : index
    %47 = vector.load %arg6[%c0_39, %c0_40] : memref<576x128xf32, #tpu.memory_space<vmem>>, vector<576x128xf32>
    %c0_41 = arith.constant 0 : index
    %c0_42 = arith.constant 0 : index
    %48 = vector.load %arg7[%c0_41, %c0_42] : memref<1x128xf32, #tpu.memory_space<vmem>>, vector<1x128xf32>
    %49 = vector.extract_strided_slice %46 {offsets = [0, 0, 0, 0], sizes = [2, 12, 12, 64], strides = [1, 1, 1, 1]} : vector<2x14x14x64xf32> to vector<2x12x12x64xf32>
    %50 = vector.extract_strided_slice %46 {offsets = [0, 0, 1, 0], sizes = [2, 12, 12, 64], strides = [1, 1, 1, 1]} : vector<2x14x14x64xf32> to vector<2x12x12x64xf32>
    %51 = vector.extract_strided_slice %46 {offsets = [0, 0, 2, 0], sizes = [2, 12, 12, 64], strides = [1, 1, 1, 1]} : vector<2x14x14x64xf32> to vector<2x12x12x64xf32>
    %52 = vector.extract_strided_slice %46 {offsets = [0, 1, 0, 0], sizes = [2, 12, 12, 64], strides = [1, 1, 1, 1]} : vector<2x14x14x64xf32> to vector<2x12x12x64xf32>
    %53 = vector.extract_strided_slice %46 {offsets = [0, 1, 1, 0], sizes = [2, 12, 12, 64], strides = [1, 1, 1, 1]} : vector<2x14x14x64xf32> to vector<2x12x12x64xf32>
    %54 = vector.extract_strided_slice %46 {offsets = [0, 1, 2, 0], sizes = [2, 12, 12, 64], strides = [1, 1, 1, 1]} : vector<2x14x14x64xf32> to vector<2x12x12x64xf32>
    %55 = vector.extract_strided_slice %46 {offsets = [0, 2, 0, 0], sizes = [2, 12, 12, 64], strides = [1, 1, 1, 1]} : vector<2x14x14x64xf32> to vector<2x12x12x64xf32>
    %56 = vector.extract_strided_slice %46 {offsets = [0, 2, 1, 0], sizes = [2, 12, 12, 64], strides = [1, 1, 1, 1]} : vector<2x14x14x64xf32> to vector<2x12x12x64xf32>
    %57 = vector.extract_strided_slice %46 {offsets = [0, 2, 2, 0], sizes = [2, 12, 12, 64], strides = [1, 1, 1, 1]} : vector<2x14x14x64xf32> to vector<2x12x12x64xf32>
    %58 = tpu.concatenate %49, %50, %51, %52, %53, %54, %55, %56, %57 in 3 : vector<2x12x12x64xf32>, vector<2x12x12x64xf32>, vector<2x12x12x64xf32>, vector<2x12x12x64xf32>, vector<2x12x12x64xf32>, vector<2x12x12x64xf32>, vector<2x12x12x64xf32>, vector<2x12x12x64xf32>, vector<2x12x12x64xf32> -> vector<2x12x12x576xf32>
    %59 = vector.shape_cast %58 : vector<2x12x12x576xf32> to vector<288x576xf32>
    %cst_43 = arith.constant dense<0.000000e+00> : vector<288x128xf32>
    %60 = tpu.matmul %59, %47, %cst_43 {dimension_numbers = #tpu.dot_dimension_numbers<[1], [0], [0], [1], [0, 0, 1, 1], [], []>} : vector<288x576xf32>, vector<576x128xf32>, vector<288x128xf32> -> vector<288x128xf32>
    %61 = vector.broadcast %48 : vector<1x128xf32> to vector<288x128xf32>
    %62 = arith.addf %60, %61 : vector<288x128xf32>
    %cst_44 = arith.constant 0.000000e+00 : f32
    %63 = vector.broadcast %cst_44 : f32 to vector<288x128xf32>
    %64 = arith.maximumf %62, %63 : vector<288x128xf32>
    %c0_45 = arith.constant 0 : index
    %c0_46 = arith.constant 0 : index
    %65 = vector.load %arg8[%c0_45, %c0_46] : memref<72x288xf32, #tpu.memory_space<vmem>>, vector<72x288xf32>
    %cst_47 = arith.constant dense<0.000000e+00> : vector<72x128xf32>
    %66 = tpu.matmul %65, %64, %cst_47 {dimension_numbers = #tpu.dot_dimension_numbers<[1], [0], [0], [1], [0, 0, 1, 1], [], []>} : vector<72x288xf32>, vector<288x128xf32>, vector<72x128xf32> -> vector<72x128xf32>
    %67 = vector.shape_cast %66 : vector<72x128xf32> to vector<2x4608xf32>
    %c0_48 = arith.constant 0 : index
    %c0_49 = arith.constant 0 : index
    %68 = vector.load %arg9[%c0_48, %c0_49] : memref<4608x256xf32, #tpu.memory_space<vmem>>, vector<4608x256xf32>
    %cst_50 = arith.constant dense<0.000000e+00> : vector<2x256xf32>
    %69 = tpu.matmul %67, %68, %cst_50 {dimension_numbers = #tpu.dot_dimension_numbers<[1], [0], [0], [1], [0, 0, 1, 1], [], []>} : vector<2x4608xf32>, vector<4608x256xf32>, vector<2x256xf32> -> vector<2x256xf32>
    %c0_51 = arith.constant 0 : index
    %c0_52 = arith.constant 0 : index
    %70 = vector.load %arg10[%c0_51, %c0_52] : memref<1x256xf32, #tpu.memory_space<vmem>>, vector<1x256xf32>
    %71 = vector.broadcast %70 : vector<1x256xf32> to vector<2x256xf32>
    %72 = arith.addf %69, %71 : vector<2x256xf32>
    %cst_53 = arith.constant 0.000000e+00 : f32
    %73 = vector.broadcast %cst_53 : f32 to vector<2x256xf32>
    %74 = arith.maximumf %72, %73 : vector<2x256xf32>
    %c0_54 = arith.constant 0 : index
    %c0_55 = arith.constant 0 : index
    %75 = vector.load %arg11[%c0_54, %c0_55] : memref<256x4xf32, #tpu.memory_space<vmem>>, vector<256x4xf32>
    %cst_56 = arith.constant dense<0.000000e+00> : vector<2x4xf32>
    %76 = tpu.matmul %74, %75, %cst_56 {dimension_numbers = #tpu.dot_dimension_numbers<[1], [0], [0], [1], [0, 0, 1, 1], [], []>} : vector<2x256xf32>, vector<256x4xf32>, vector<2x4xf32> -> vector<2x4xf32>
    %c0_57 = arith.constant 0 : index
    %c0_58 = arith.constant 0 : index
    %77 = vector.load %arg12[%c0_57, %c0_58] : memref<1x4xf32, #tpu.memory_space<vmem>>, vector<1x4xf32>
    %78 = vector.broadcast %77 : vector<1x4xf32> to vector<2x4xf32>
    %79 = arith.addf %76, %78 : vector<2x4xf32>
    %c0_59 = arith.constant 0 : index
    %c0_60 = arith.constant 0 : index
    %c0_61 = arith.constant 0 : index
    %80 = vector.load %arg13[%c0_59, %c0_60, %c0_61] : memref<1x2x4xf32, #tpu.memory_space<vmem>>, vector<1x2x4xf32>
    %81 = vector.shape_cast %80 : vector<1x2x4xf32> to vector<2x4xf32>
    %82 = vector.shape_cast %79 : vector<2x4xf32> to vector<1x2x4xf32>
    tpu.vector_store %arg13[%c0_59, %c0_60, %c0_61], %82 {strides = array<i32>} : memref<1x2x4xf32, #tpu.memory_space<vmem>>, vector<1x2x4xf32>,
    return
  }
  func.func @transform_0(%arg0: i32) -> (i32, i32, i32, i32) {
    %c0_i32 = arith.constant 0 : i32
    %c0_i32_0 = arith.constant 0 : i32
    %c0_i32_1 = arith.constant 0 : i32
    %c0_i32_2 = arith.constant 0 : i32
    return %arg0, %c0_i32, %c0_i32_0, %c0_i32_1 : i32, i32, i32, i32
  }
  func.func @transform_1(%arg0: i32) -> (i32, i32) {
    %c0_i32 = arith.constant 0 : i32
    %c0_i32_0 = arith.constant 0 : i32
    %c0_i32_1 = arith.constant 0 : i32
    return %c0_i32, %c0_i32_0 : i32, i32
  }
  func.func @transform_2(%arg0: i32) -> (i32, i32) {
    %c0_i32 = arith.constant 0 : i32
    %c0_i32_0 = arith.constant 0 : i32
    %c0_i32_1 = arith.constant 0 : i32
    return %c0_i32, %c0_i32_0 : i32, i32
  }
  func.func @transform_3(%arg0: i32) -> (i32, i32) {
    %c0_i32 = arith.constant 0 : i32
    %c0_i32_0 = arith.constant 0 : i32
    %c0_i32_1 = arith.constant 0 : i32
    return %c0_i32, %c0_i32_0 : i32, i32
  }
  func.func @transform_4(%arg0: i32) -> (i32, i32) {
    %c0_i32 = arith.constant 0 : i32
    %c0_i32_0 = arith.constant 0 : i32
    %c0_i32_1 = arith.constant 0 : i32
    return %c0_i32, %c0_i32_0 : i32, i32
  }
  func.func @transform_5(%arg0: i32) -> (i32, i32) {
    %c0_i32 = arith.constant 0 : i32
    %c0_i32_0 = arith.constant 0 : i32
    %c0_i32_1 = arith.constant 0 : i32
    return %c0_i32, %c0_i32_0 : i32, i32
  }
  func.func @transform_6(%arg0: i32) -> (i32, i32) {
    %c0_i32 = arith.constant 0 : i32
    %c0_i32_0 = arith.constant 0 : i32
    %c0_i32_1 = arith.constant 0 : i32
    return %c0_i32, %c0_i32_0 : i32, i32
  }
  func.func @transform_7(%arg0: i32) -> (i32, i32) {
    %c0_i32 = arith.constant 0 : i32
    %c0_i32_0 = arith.constant 0 : i32
    %c0_i32_1 = arith.constant 0 : i32
    return %c0_i32, %c0_i32_0 : i32, i32
  }
  func.func @transform_8(%arg0: i32) -> (i32, i32) {
    %c0_i32 = arith.constant 0 : i32
    %c0_i32_0 = arith.constant 0 : i32
    %c0_i32_1 = arith.constant 0 : i32
    return %c0_i32, %c0_i32_0 : i32, i32
  }
  func.func @transform_9(%arg0: i32) -> (i32, i32) {
    %c0_i32 = arith.constant 0 : i32
    %c0_i32_0 = arith.constant 0 : i32
    %c0_i32_1 = arith.constant 0 : i32
    return %c0_i32, %c0_i32_0 : i32, i32
  }
  func.func @transform_10(%arg0: i32) -> (i32, i32) {
    %c0_i32 = arith.constant 0 : i32
    %c0_i32_0 = arith.constant 0 : i32
    %c0_i32_1 = arith.constant 0 : i32
    return %c0_i32, %c0_i32_0 : i32, i32
  }
  func.func @transform_11(%arg0: i32) -> (i32, i32) {
    %c0_i32 = arith.constant 0 : i32
    %c0_i32_0 = arith.constant 0 : i32
    %c0_i32_1 = arith.constant 0 : i32
    return %c0_i32, %c0_i32_0 : i32, i32
  }
  func.func @transform_12(%arg0: i32) -> (i32, i32, i32) {
    %c0_i32 = arith.constant 0 : i32
    %c0_i32_0 = arith.constant 0 : i32
    %c0_i32_1 = arith.constant 0 : i32
    return %arg0, %c0_i32, %c0_i32_0 : i32, i32, i32
  }
}

</mosaic_0001>

<llo_original>
// kernel: tpu_custom_call.1
$region0: #{tpu_custom_call.1}
  #allocation0 [shape = 'u32[]', space=smem, size = 0x4, offset = 0x4, fixed_abs, tag = 'smem constant byte address 0x4 - core index']
  #allocation1 [shape = 'u32[144,128]{1,0:T(1,128)}', space=vmem, size = 0x12000, scoped, tag = 'internal scratch']
  #allocation2 [shape = 'f32[2,14,14,32]{3,2,1,0:T(8,128)}', space=vmem, size = 0x38000, scoped, tag = 'scratch operand']
  #allocation3 [shape = 'f32[2,14,14,64]{3,2,1,0:T(8,128)}', space=vmem, size = 0x38000, scoped, tag = 'scratch operand']
  %s0 = inlined_call_operand.vmem [shape: f32[2,14,14,3], index: 0, kind: input, shape index: {}]
  %s1 = inlined_call_operand.hbm [shape: f32[27,32], index: 1, kind: input, shape index: {}]
  %s2 = inlined_call_operand.hbm [shape: f32[1,32], index: 2, kind: input, shape index: {}]
  %s3 = inlined_call_operand.vmem [shape: f32[288,64], index: 3, kind: input, shape index: {}]
  %s4 = inlined_call_operand.hbm [shape: f32[1,64], index: 4, kind: input, shape index: {}]
  %s5 = inlined_call_operand.hbm [shape: f32[576,128], index: 5, kind: input, shape index: {}]
  %s6 = inlined_call_operand.hbm [shape: f32[1,128], index: 6, kind: input, shape index: {}]
  %s7 = inlined_call_operand.hbm [shape: f32[72,288], index: 7, kind: input, shape index: {}]
  %s8 = inlined_call_operand.hbm [shape: f32[4608,256], index: 8, kind: input, shape index: {}]
  %s9 = inlined_call_operand.hbm [shape: f32[1,256], index: 9, kind: input, shape index: {}]
  %s10 = inlined_call_operand.vmem [shape: f32[256,4], index: 10, kind: input, shape index: {}]
  %s11 = inlined_call_operand.hbm [shape: f32[1,4], index: 11, kind: input, shape index: {}]
  %s12 = inlined_call_operand.hbm [shape: f32[1,2,4], index: 12, kind: output, shape index: {}]
  %s13 = sld [smem:[#allocation0]]
  $region94: #{tpu_custom_call.1} parent=0
    _
  %s15 = ssub.s32 1, %s13
  %s16 = scalar_select 0, %s15, %s13
  $region1: #{tpu_custom_call.1} parent=0
    #allocation4 [shape = 'u8[16384]{0}', space=vmem, size = 0x4000, scoped, tag = 'input window, operand 1, single buffered']
    #allocation5 [shape = 's32[1]{0}', space=sflag, size = 0x4, scoped, tag = 'scoped memory for tpu_custom_call.1']
    #allocation6 [shape = 's32[1]{0}', space=sflag, size = 0x4, scoped, tag = 'scoped memory for tpu_custom_call.1']
    #allocation7 [shape = 'u8[512]{0}', space=vmem, size = 0x400, scoped, tag = 'input window, operand 2, single buffered']
    #allocation8 [shape = 's32[1]{0}', space=sflag, size = 0x4, scoped, tag = 'scoped memory for tpu_custom_call.1']
    #allocation9 [shape = 'u8[512]{0}', space=vmem, size = 0x400, scoped, tag = 'input window, operand 4, single buffered']
    #allocation10 [shape = 'u8[294912]{0}', space=vmem, size = 0x48000, scoped, tag = 'input window, operand 5, single buffered']
    #allocation11 [shape = 's32[1]{0}', space=sflag, size = 0x4, scoped, tag = 'scoped memory for tpu_custom_call.1']
    #allocation12 [shape = 'u8[512]{0}', space=vmem, size = 0x400, scoped, tag = 'input window, operand 6, single buffered']
    #allocation13 [shape = 'u8[110592]{0}', space=vmem, size = 0x1b000, scoped, tag = 'input window, operand 7, single buffered']
    #allocation14 [shape = 's32[1]{0}', space=sflag, size = 0x4, scoped, tag = 'scoped memory for tpu_custom_call.1']
    #allocation15 [shape = 'u8[4718592]{0}', space=vmem, size = 0x480000, scoped, tag = 'input window, operand 8, single buffered']
    #allocation16 [shape = 'u8[1024]{0}', space=vmem, size = 0x400, scoped, tag = 'input window, operand 9, single buffered']
    #allocation17 [shape = 's32[1]{0}', space=sflag, size = 0x4, scoped, tag = 'scoped memory for tpu_custom_call.1']
    #allocation18 [shape = 'u8[512]{0}', space=vmem, size = 0x400, scoped, tag = 'input window, operand 11, single buffered']
    #allocation19 [shape = 'u8[1024]{0}', space=vmem, size = 0x400, scoped, tag = 'output window, operand 0, single buffered']
    %17 = vsyncpa [#allocation5], 0
    %18 = vsyncpa [#allocation8], 0
    %19 = vsyncpa [#allocation11], 0
    %20 = vsyncpa [#allocation14], 0
    %21 = vsyncpa [#allocation17], 0
    %22 = vsyncpa [#allocation6], 0
    // Predicated region
    $region2: #{tpu_custom_call.1} parent=1 // pred_check
      _
    $region3: #{tpu_custom_call.1} parent=1 // pred_check_branch
      %24 = sbr.rel (0) target = $region5
    $region4: #{tpu_custom_call.1} parent=1 // pred_region
      _
    $region5: #{tpu_custom_call.1} parent=1 // pred_fallthru
      _
    // Predicated region
    $region6: #{tpu_custom_call.1} parent=1 // pred_check
      _
    $region7: #{tpu_custom_call.1} parent=1 // pred_check_branch
      %26 = sbr.rel (0) target = $region9
    $region8: #{tpu_custom_call.1} parent=1 // pred_region
      %s28 = ssub.s32 512, 512
      %29 = vsyncadd [#allocation5], %s28
      %s30 = sshll.u32 [#allocation4], 4
      %s31 = int_to_ptr.vmem [resolvable:$true] %s30
      %36 = dma.hbm_to_vmem [thread:$0]  %s1, 512, %s31, [#allocation5], 128, 128, 8
    $region9: #{tpu_custom_call.1} parent=1 // pred_fallthru
      _
    // Predicated region
    $region10: #{tpu_custom_call.1} parent=1 // pred_check
      _
    $region11: #{tpu_custom_call.1} parent=1 // pred_check_branch
      %38 = sbr.rel (0) target = $region13
    $region12: #{tpu_custom_call.1} parent=1 // pred_region
      %s40 = ssub.s32 16, 16
      %41 = vsyncadd [#allocation8], %s40
      %s43 = sshll.u32 [#allocation7], 4
      %s44 = int_to_ptr.vmem [resolvable:$true] %s43
      %46 = dma.hbm_to_vmem [thread:$0]  %s2, 16, %s44, [#allocation8]
    $region13: #{tpu_custom_call.1} parent=1 // pred_fallthru
      _
    // Predicated region
    $region14: #{tpu_custom_call.1} parent=1 // pred_check
      _
    $region15: #{tpu_custom_call.1} parent=1 // pred_check_branch
      %48 = sbr.rel (0) target = $region17
    $region16: #{tpu_custom_call.1} parent=1 // pred_region
      _
    $region17: #{tpu_custom_call.1} parent=1 // pred_fallthru
      _
    // Predicated region
    $region18: #{tpu_custom_call.1} parent=1 // pred_check
      _
    $region19: #{tpu_custom_call.1} parent=1 // pred_check_branch
      %50 = sbr.rel (0) target = $region21
    $region20: #{tpu_custom_call.1} parent=1 // pred_region
      %s52 = ssub.s32 16, 16
      %53 = vsyncadd [#allocation8], %s52
      %s55 = sshll.u32 [#allocation9], 4
      %s56 = int_to_ptr.vmem [resolvable:$true] %s55
      %58 = dma.hbm_to_vmem [thread:$0]  %s4, 16, %s56, [#allocation8]
    $region21: #{tpu_custom_call.1} parent=1 // pred_fallthru
      _
    // Predicated region
    $region22: #{tpu_custom_call.1} parent=1 // pred_check
      _
    $region23: #{tpu_custom_call.1} parent=1 // pred_check_branch
      %60 = sbr.rel (0) target = $region25
    $region24: #{tpu_custom_call.1} parent=1 // pred_region
      %s62 = ssub.s32 9216, 9216
      %63 = vsyncadd [#allocation11], %s62
      %s64 = sshll.u32 [#allocation10], 4
      %s65 = int_to_ptr.vmem [resolvable:$true] %s64
      %70 = dma.hbm_to_vmem [thread:$0]  %s5, 9216, %s65, [#allocation11], 128, 128, 8
    $region25: #{tpu_custom_call.1} parent=1 // pred_fallthru
      _
    // Predicated region
    $region26: #{tpu_custom_call.1} parent=1 // pred_check
      _
    $region27: #{tpu_custom_call.1} parent=1 // pred_check_branch
      %72 = sbr.rel (0) target = $region29
    $region28: #{tpu_custom_call.1} parent=1 // pred_region
      %s74 = ssub.s32 16, 16
      %75 = vsyncadd [#allocation11], %s74
      %s77 = sshll.u32 [#allocation12], 4
      %s78 = int_to_ptr.vmem [resolvable:$true] %s77
      %80 = dma.hbm_to_vmem [thread:$0]  %s6, 16, %s78, [#allocation11]
    $region29: #{tpu_custom_call.1} parent=1 // pred_fallthru
      _
    // Predicated region
    $region30: #{tpu_custom_call.1} parent=1 // pred_check
      _
    $region31: #{tpu_custom_call.1} parent=1 // pred_check_branch
      %82 = sbr.rel (0) target = $region33
    $region32: #{tpu_custom_call.1} parent=1 // pred_region
      %s84 = ssub.s32 3456, 3456
      %85 = vsyncadd [#allocation14], %s84
      %s86 = sshll.u32 [#allocation13], 4
      %s87 = int_to_ptr.vmem [resolvable:$true] %s86
      %92 = dma.hbm_to_vmem [thread:$0]  %s7, 3456, %s87, [#allocation14], 384, 384, 24
    $region33: #{tpu_custom_call.1} parent=1 // pred_fallthru
      _
    // Predicated region
    $region34: #{tpu_custom_call.1} parent=1 // pred_check
      _
    $region35: #{tpu_custom_call.1} parent=1 // pred_check_branch
      %94 = sbr.rel (0) target = $region37
    $region36: #{tpu_custom_call.1} parent=1 // pred_region
      %s96 = ssub.s32 147456, 147456
      %97 = vsyncadd [#allocation14], %s96
      %s98 = sshll.u32 [#allocation15], 4
      %s99 = int_to_ptr.vmem [resolvable:$true] %s98
      %104 = dma.hbm_to_vmem [thread:$0]  %s8, 147456, %s99, [#allocation14], 256, 256, 16
    $region37: #{tpu_custom_call.1} parent=1 // pred_fallthru
      _
    // Predicated region
    $region38: #{tpu_custom_call.1} parent=1 // pred_check
      _
    $region39: #{tpu_custom_call.1} parent=1 // pred_check_branch
      %106 = sbr.rel (0) target = $region41
    $region40: #{tpu_custom_call.1} parent=1 // pred_region
      %s108 = ssub.s32 32, 32
      %109 = vsyncadd [#allocation17], %s108
      %s111 = sshll.u32 [#allocation16], 4
      %s112 = int_to_ptr.vmem [resolvable:$true] %s111
      %114 = dma.hbm_to_vmem [thread:$0]  %s9, 32, %s112, [#allocation17]
    $region41: #{tpu_custom_call.1} parent=1 // pred_fallthru
      _
    // Predicated region
    $region42: #{tpu_custom_call.1} parent=1 // pred_check
      _
    $region43: #{tpu_custom_call.1} parent=1 // pred_check_branch
      %116 = sbr.rel (0) target = $region45
    $region44: #{tpu_custom_call.1} parent=1 // pred_region
      _
    $region45: #{tpu_custom_call.1} parent=1 // pred_fallthru
      _
    // Predicated region
    $region46: #{tpu_custom_call.1} parent=1 // pred_check
      _
    $region47: #{tpu_custom_call.1} parent=1 // pred_check_branch
      %118 = sbr.rel (0) target = $region49
    $region48: #{tpu_custom_call.1} parent=1 // pred_region
      %s120 = ssub.s32 16, 16
      %121 = vsyncadd [#allocation17], %s120
      %s123 = sshll.u32 [#allocation18], 4
      %s124 = int_to_ptr.vmem [resolvable:$true] %s123
      %126 = dma.hbm_to_vmem [thread:$0]  %s11, 16, %s124, [#allocation17]
    $region49: #{tpu_custom_call.1} parent=1 // pred_fallthru
      _
    // Predicated region
    $region50: #{tpu_custom_call.1} parent=1 // pred_check
      _
    $region51: #{tpu_custom_call.1} parent=1 // pred_check_branch
      %128 = sbr.rel (0) target = $region53
    $region52: #{tpu_custom_call.1} parent=1 // pred_region
      %129 = dma.done [#allocation5], 512
    $region53: #{tpu_custom_call.1} parent=1 // pred_fallthru
      _
    // Predicated region
    $region54: #{tpu_custom_call.1} parent=1 // pred_check
      _
    $region55: #{tpu_custom_call.1} parent=1 // pred_check_branch
      %131 = sbr.rel (0) target = $region57
    $region56: #{tpu_custom_call.1} parent=1 // pred_region
      %132 = dma.done [#allocation8], 16
    $region57: #{tpu_custom_call.1} parent=1 // pred_fallthru
      _
    // Predicated region
    $region58: #{tpu_custom_call.1} parent=1 // pred_check
      _
    $region59: #{tpu_custom_call.1} parent=1 // pred_check_branch
      %134 = sbr.rel (0) target = $region61
    $region60: #{tpu_custom_call.1} parent=1 // pred_region
      %135 = dma.done [#allocation8], 16
    $region61: #{tpu_custom_call.1} parent=1 // pred_fallthru
      _
    // Predicated region
    $region62: #{tpu_custom_call.1} parent=1 // pred_check
      _
    $region63: #{tpu_custom_call.1} parent=1 // pred_check_branch
      %137 = sbr.rel (0) target = $region65
    $region64: #{tpu_custom_call.1} parent=1 // pred_region
      %138 = dma.done [#allocation11], 9216
    $region65: #{tpu_custom_call.1} parent=1 // pred_fallthru
      _
    // Predicated region
    $region66: #{tpu_custom_call.1} parent=1 // pred_check
      _
    $region67: #{tpu_custom_call.1} parent=1 // pred_check_branch
      %140 = sbr.rel (0) target = $region69
    $region68: #{tpu_custom_call.1} parent=1 // pred_region
      %141 = dma.done [#allocation11], 16
    $region69: #{tpu_custom_call.1} parent=1 // pred_fallthru
      _
    // Predicated region
    $region70: #{tpu_custom_call.1} parent=1 // pred_check
      _
    $region71: #{tpu_custom_call.1} parent=1 // pred_check_branch
      %143 = sbr.rel (0) target = $region73
    $region72: #{tpu_custom_call.1} parent=1 // pred_region
      %144 = dma.done [#allocation14], 3456
    $region73: #{tpu_custom_call.1} parent=1 // pred_fallthru
      _
    // Predicated region
    $region74: #{tpu_custom_call.1} parent=1 // pred_check
      _
    $region75: #{tpu_custom_call.1} parent=1 // pred_check_branch
      %146 = sbr.rel (0) target = $region77
    $region76: #{tpu_custom_call.1} parent=1 // pred_region
      %147 = dma.done [#allocation14], 147456
    $region77: #{tpu_custom_call.1} parent=1 // pred_fallthru
      _
    // Predicated region
    $region78: #{tpu_custom_call.1} parent=1 // pred_check
      _
    $region79: #{tpu_custom_call.1} parent=1 // pred_check_branch
      %149 = sbr.rel (0) target = $region81
    $region80: #{tpu_custom_call.1} parent=1 // pred_region
      %150 = dma.done [#allocation17], 32
    $region81: #{tpu_custom_call.1} parent=1 // pred_fallthru
      _
    // Predicated region
    $region82: #{tpu_custom_call.1} parent=1 // pred_check
      _
    $region83: #{tpu_custom_call.1} parent=1 // pred_check_branch
      %152 = sbr.rel (0) target = $region85
    $region84: #{tpu_custom_call.1} parent=1 // pred_region
      %153 = dma.done [#allocation17], 16
    $region85: #{tpu_custom_call.1} parent=1 // pred_fallthru
      _
    %v154 = vld [vmem:[%s0] sm:$0xff]
    %v155 = vld [vmem:[%s0 + $0x8] sm:$0x3f]
    %v156 = vld [vmem:[%s0 + $0x10] sm:$0xff]
    %v157 = vld [vmem:[%s0 + $0x18] sm:$0x3f]
    %v158 = vld [vmem:[%s0 + $0x20] sm:$0xff]
    %v159 = vld [vmem:[%s0 + $0x28] sm:$0x3f]
    %v160 = vld [vmem:[%s0 + $0x30] sm:$0xff]
    %v161 = vld [vmem:[%s0 + $0x38] sm:$0x3f]
    %v162 = vld [vmem:[%s0 + $0x40] sm:$0xff]
    %v163 = vld [vmem:[%s0 + $0x48] sm:$0x3f]
    %v164 = vld [vmem:[%s0 + $0x50] sm:$0xff]
    %v165 = vld [vmem:[%s0 + $0x58] sm:$0x3f]
    %v166 = vld [vmem:[%s0 + $0x60] sm:$0xff]
    %v167 = vld [vmem:[%s0 + $0x68] sm:$0x3f]
    %v168 = vld [vmem:[%s0 + $0x70] sm:$0xff]
    %v169 = vld [vmem:[%s0 + $0x78] sm:$0x3f]
    %v170 = vld [vmem:[%s0 + $0x80] sm:$0xff]
    %v171 = vld [vmem:[%s0 + $0x88] sm:$0x3f]
    %v172 = vld [vmem:[%s0 + $0x90] sm:$0xff]
    %v173 = vld [vmem:[%s0 + $0x98] sm:$0x3f]
    %v174 = vld [vmem:[%s0 + $0xa0] sm:$0xff]
    %v175 = vld [vmem:[%s0 + $0xa8] sm:$0x3f]
    %v176 = vld [vmem:[%s0 + $0xb0] sm:$0xff]
    %v177 = vld [vmem:[%s0 + $0xb8] sm:$0x3f]
    %v178 = vld [vmem:[%s0 + $0xc0] sm:$0xff]
    %v179 = vld [vmem:[%s0 + $0xc8] sm:$0x3f]
    %v180 = vld [vmem:[%s0 + $0xd0] sm:$0xff]
    %v181 = vld [vmem:[%s0 + $0xd8] sm:$0x3f]
    %v182 = vld [vmem:[%s0 + $0xe0] sm:$0xff]
    %v183 = vld [vmem:[%s0 + $0xe8] sm:$0x3f]
    %v184 = vld [vmem:[%s0 + $0xf0] sm:$0xff]
    %v185 = vld [vmem:[%s0 + $0xf8] sm:$0x3f]
    %v186 = vld [vmem:[%s0 + $0x100] sm:$0xff]
    %v187 = vld [vmem:[%s0 + $0x108] sm:$0x3f]
    %v188 = vld [vmem:[%s0 + $0x110] sm:$0xff]
    %v189 = vld [vmem:[%s0 + $0x118] sm:$0x3f]
    %v190 = vld [vmem:[%s0 + $0x120] sm:$0xff]
    %v191 = vld [vmem:[%s0 + $0x128] sm:$0x3f]
    %v192 = vld [vmem:[%s0 + $0x130] sm:$0xff]
    %v193 = vld [vmem:[%s0 + $0x138] sm:$0x3f]
    %v194 = vld [vmem:[%s0 + $0x140] sm:$0xff]
    %v195 = vld [vmem:[%s0 + $0x148] sm:$0x3f]
    %v196 = vld [vmem:[%s0 + $0x150] sm:$0xff]
    %v197 = vld [vmem:[%s0 + $0x158] sm:$0x3f]
    %v198 = vld [vmem:[%s0 + $0x160] sm:$0xff]
    %v199 = vld [vmem:[%s0 + $0x168] sm:$0x3f]
    %v200 = vld [vmem:[%s0 + $0x170] sm:$0xff]
    %v201 = vld [vmem:[%s0 + $0x178] sm:$0x3f]
    %v202 = vld [vmem:[%s0 + $0x180] sm:$0xff]
    %v203 = vld [vmem:[%s0 + $0x188] sm:$0x3f]
    %v204 = vld [vmem:[%s0 + $0x190] sm:$0xff]
    %v205 = vld [vmem:[%s0 + $0x198] sm:$0x3f]
    %v206 = vld [vmem:[%s0 + $0x1a0] sm:$0xff]
    %v207 = vld [vmem:[%s0 + $0x1a8] sm:$0x3f]
    %v208 = vld [vmem:[%s0 + $0x1b0] sm:$0xff]
    %v209 = vld [vmem:[%s0 + $0x1b8] sm:$0x3f]
    %v210 = vld [vmem:[#allocation4] sm:$0xff]
    %v211 = vld [vmem:[#allocation4 + $0x8] sm:$0xff]
    %v212 = vld [vmem:[#allocation4 + $0x10] sm:$0xff]
    %v213 = vld [vmem:[#allocation4 + $0x18] sm:$0x7]
    %v214 = vld [vmem:[#allocation7] sm:$0x1]
    %vm263 = vcmask 1046528
    %v264 = vrot.slane %v154, 1
    %v265 = vrot.slane %v155, 1
    %v266 = vsel %vm263, %v264, %v265
    %v267 = vrot.slane %v156, 1
    %v268 = vrot.slane %v157, 1
    %v269 = vsel %vm263, %v267, %v268
    %v270 = vrot.slane %v158, 1
    %v271 = vrot.slane %v159, 1
    %v272 = vsel %vm263, %v270, %v271
    %v273 = vrot.slane %v160, 1
    %v274 = vrot.slane %v161, 1
    %v275 = vsel %vm263, %v273, %v274
    %v276 = vrot.slane %v162, 1
    %v277 = vrot.slane %v163, 1
    %v278 = vsel %vm263, %v276, %v277
    %v279 = vrot.slane %v164, 1
    %v280 = vrot.slane %v165, 1
    %v281 = vsel %vm263, %v279, %v280
    %v282 = vrot.slane %v166, 1
    %v283 = vrot.slane %v167, 1
    %v284 = vsel %vm263, %v282, %v283
    %v285 = vrot.slane %v168, 1
    %v286 = vrot.slane %v169, 1
    %v287 = vsel %vm263, %v285, %v286
    %v288 = vrot.slane %v170, 1
    %v289 = vrot.slane %v171, 1
    %v290 = vsel %vm263, %v288, %v289
    %v291 = vrot.slane %v172, 1
    %v292 = vrot.slane %v173, 1
    %v293 = vsel %vm263, %v291, %v292
    %v294 = vrot.slane %v174, 1
    %v295 = vrot.slane %v175, 1
    %v296 = vsel %vm263, %v294, %v295
    %v297 = vrot.slane %v176, 1
    %v298 = vrot.slane %v177, 1
    %v299 = vsel %vm263, %v297, %v298
    %v300 = vrot.slane %v182, 1
    %v301 = vrot.slane %v183, 1
    %v302 = vsel %vm263, %v300, %v301
    %v303 = vrot.slane %v184, 1
    %v304 = vrot.slane %v185, 1
    %v305 = vsel %vm263, %v303, %v304
    %v306 = vrot.slane %v186, 1
    %v307 = vrot.slane %v187, 1
    %v308 = vsel %vm263, %v306, %v307
    %v309 = vrot.slane %v188, 1
    %v310 = vrot.slane %v189, 1
    %v311 = vsel %vm263, %v309, %v310
    %v312 = vrot.slane %v190, 1
    %v313 = vrot.slane %v191, 1
    %v314 = vsel %vm263, %v312, %v313
    %v315 = vrot.slane %v192, 1
    %v316 = vrot.slane %v193, 1
    %v317 = vsel %vm263, %v315, %v316
    %v318 = vrot.slane %v194, 1
    %v319 = vrot.slane %v195, 1
    %v320 = vsel %vm263, %v318, %v319
    %v321 = vrot.slane %v196, 1
    %v322 = vrot.slane %v197, 1
    %v323 = vsel %vm263, %v321, %v322
    %v324 = vrot.slane %v198, 1
    %v325 = vrot.slane %v199, 1
    %v326 = vsel %vm263, %v324, %v325
    %v327 = vrot.slane %v200, 1
    %v328 = vrot.slane %v201, 1
    %v329 = vsel %vm263, %v327, %v328
    %v330 = vrot.slane %v202, 1
    %v331 = vrot.slane %v203, 1
    %v332 = vsel %vm263, %v330, %v331
    %v333 = vrot.slane %v204, 1
    %v334 = vrot.slane %v205, 1
    %v335 = vsel %vm263, %v333, %v334
    %336 = vrot.lane.b32.xlu0 %v266, 3
    %v337 = vpop.permute.xlu0 %336
    %338 = vrot.lane.b32.xlu0 %v265, 3
    %v339 = vpop.permute.xlu0 %338
    %340 = vrot.lane.b32.xlu0 %v269, 3
    %v341 = vpop.permute.xlu0 %340
    %342 = vrot.lane.b32.xlu0 %v268, 3
    %v343 = vpop.permute.xlu0 %342
    %344 = vrot.lane.b32.xlu0 %v272, 3
    %v345 = vpop.permute.xlu0 %344
    %346 = vrot.lane.b32.xlu0 %v271, 3
    %v347 = vpop.permute.xlu0 %346
    %348 = vrot.lane.b32.xlu0 %v275, 3
    %v349 = vpop.permute.xlu0 %348
    %350 = vrot.lane.b32.xlu0 %v274, 3
    %v351 = vpop.permute.xlu0 %350
    %352 = vrot.lane.b32.xlu0 %v278, 3
    %v353 = vpop.permute.xlu0 %352
    %354 = vrot.lane.b32.xlu0 %v277, 3
    %v355 = vpop.permute.xlu0 %354
    %356 = vrot.lane.b32.xlu0 %v281, 3
    %v357 = vpop.permute.xlu0 %356
    %358 = vrot.lane.b32.xlu0 %v280, 3
    %v359 = vpop.permute.xlu0 %358
    %360 = vrot.lane.b32.xlu0 %v284, 3
    %v361 = vpop.permute.xlu0 %360
    %362 = vrot.lane.b32.xlu0 %v283, 3
    %v363 = vpop.permute.xlu0 %362
    %364 = vrot.lane.b32.xlu0 %v287, 3
    %v365 = vpop.permute.xlu0 %364
    %366 = vrot.lane.b32.xlu0 %v286, 3
    %v367 = vpop.permute.xlu0 %366
    %368 = vrot.lane.b32.xlu0 %v290, 3
    %v369 = vpop.permute.xlu0 %368
    %370 = vrot.lane.b32.xlu0 %v289, 3
    %v371 = vpop.permute.xlu0 %370
    %372 = vrot.lane.b32.xlu0 %v293, 3
    %v373 = vpop.permute.xlu0 %372
    %374 = vrot.lane.b32.xlu0 %v292, 3
    %v375 = vpop.permute.xlu0 %374
    %376 = vrot.lane.b32.xlu0 %v296, 3
    %v377 = vpop.permute.xlu0 %376
    %378 = vrot.lane.b32.xlu0 %v295, 3
    %v379 = vpop.permute.xlu0 %378
    %380 = vrot.lane.b32.xlu0 %v299, 3
    %v381 = vpop.permute.xlu0 %380
    %382 = vrot.lane.b32.xlu0 %v298, 3
    %v383 = vpop.permute.xlu0 %382
    %384 = vrot.lane.b32.xlu0 %v302, 3
    %v385 = vpop.permute.xlu0 %384
    %386 = vrot.lane.b32.xlu0 %v301, 3
    %v387 = vpop.permute.xlu0 %386
    %388 = vrot.lane.b32.xlu0 %v305, 3
    %v389 = vpop.permute.xlu0 %388
    %390 = vrot.lane.b32.xlu0 %v304, 3
    %v391 = vpop.permute.xlu0 %390
    %392 = vrot.lane.b32.xlu0 %v308, 3
    %v393 = vpop.permute.xlu0 %392
    %394 = vrot.lane.b32.xlu0 %v307, 3
    %v395 = vpop.permute.xlu0 %394
    %396 = vrot.lane.b32.xlu0 %v311, 3
    %v397 = vpop.permute.xlu0 %396
    %398 = vrot.lane.b32.xlu0 %v310, 3
    %v399 = vpop.permute.xlu0 %398
    %400 = vrot.lane.b32.xlu0 %v314, 3
    %v401 = vpop.permute.xlu0 %400
    %402 = vrot.lane.b32.xlu0 %v313, 3
    %v403 = vpop.permute.xlu0 %402
    %404 = vrot.lane.b32.xlu0 %v317, 3
    %v405 = vpop.permute.xlu0 %404
    %406 = vrot.lane.b32.xlu0 %v316, 3
    %v407 = vpop.permute.xlu0 %406
    %408 = vrot.lane.b32.xlu0 %v320, 3
    %v409 = vpop.permute.xlu0 %408
    %410 = vrot.lane.b32.xlu0 %v319, 3
    %v411 = vpop.permute.xlu0 %410
    %412 = vrot.lane.b32.xlu0 %v323, 3
    %v413 = vpop.permute.xlu0 %412
    %414 = vrot.lane.b32.xlu0 %v322, 3
    %v415 = vpop.permute.xlu0 %414
    %416 = vrot.lane.b32.xlu0 %v326, 3
    %v417 = vpop.permute.xlu0 %416
    %418 = vrot.lane.b32.xlu0 %v325, 3
    %v419 = vpop.permute.xlu0 %418
    %420 = vrot.lane.b32.xlu0 %v329, 3
    %v421 = vpop.permute.xlu0 %420
    %422 = vrot.lane.b32.xlu0 %v328, 3
    %v423 = vpop.permute.xlu0 %422
    %424 = vrot.lane.b32.xlu0 %v332, 3
    %v425 = vpop.permute.xlu0 %424
    %426 = vrot.lane.b32.xlu0 %v331, 3
    %v427 = vpop.permute.xlu0 %426
    %428 = vrot.lane.b32.xlu0 %v335, 3
    %v429 = vpop.permute.xlu0 %428
    %430 = vrot.lane.b32.xlu0 %v334, 3
    %v431 = vpop.permute.xlu0 %430
    %vm480 = vcmask 1045504
    %v481 = vrot.slane %v154, 2
    %v482 = vrot.slane %v155, 2
    %v483 = vsel %vm480, %v481, %v482
    %v484 = vrot.slane %v156, 2
    %v485 = vrot.slane %v157, 2
    %v486 = vsel %vm480, %v484, %v485
    %v487 = vrot.slane %v158, 2
    %v488 = vrot.slane %v159, 2
    %v489 = vsel %vm480, %v487, %v488
    %v490 = vrot.slane %v160, 2
    %v491 = vrot.slane %v161, 2
    %v492 = vsel %vm480, %v490, %v491
    %v493 = vrot.slane %v162, 2
    %v494 = vrot.slane %v163, 2
    %v495 = vsel %vm480, %v493, %v494
    %v496 = vrot.slane %v164, 2
    %v497 = vrot.slane %v165, 2
    %v498 = vsel %vm480, %v496, %v497
    %v499 = vrot.slane %v166, 2
    %v500 = vrot.slane %v167, 2
    %v501 = vsel %vm480, %v499, %v500
    %v502 = vrot.slane %v168, 2
    %v503 = vrot.slane %v169, 2
    %v504 = vsel %vm480, %v502, %v503
    %v505 = vrot.slane %v170, 2
    %v506 = vrot.slane %v171, 2
    %v507 = vsel %vm480, %v505, %v506
    %v508 = vrot.slane %v172, 2
    %v509 = vrot.slane %v173, 2
    %v510 = vsel %vm480, %v508, %v509
    %v511 = vrot.slane %v174, 2
    %v512 = vrot.slane %v175, 2
    %v513 = vsel %vm480, %v511, %v512
    %v514 = vrot.slane %v176, 2
    %v515 = vrot.slane %v177, 2
    %v516 = vsel %vm480, %v514, %v515
    %v517 = vrot.slane %v182, 2
    %v518 = vrot.slane %v183, 2
    %v519 = vsel %vm480, %v517, %v518
    %v520 = vrot.slane %v184, 2
    %v521 = vrot.slane %v185, 2
    %v522 = vsel %vm480, %v520, %v521
    %v523 = vrot.slane %v186, 2
    %v524 = vrot.slane %v187, 2
    %v525 = vsel %vm480, %v523, %v524
    %v526 = vrot.slane %v188, 2
    %v527 = vrot.slane %v189, 2
    %v528 = vsel %vm480, %v526, %v527
    %v529 = vrot.slane %v190, 2
    %v530 = vrot.slane %v191, 2
    %v531 = vsel %vm480, %v529, %v530
    %v532 = vrot.slane %v192, 2
    %v533 = vrot.slane %v193, 2
    %v534 = vsel %vm480, %v532, %v533
    %v535 = vrot.slane %v194, 2
    %v536 = vrot.slane %v195, 2
    %v537 = vsel %vm480, %v535, %v536
    %v538 = vrot.slane %v196, 2
    %v539 = vrot.slane %v197, 2
    %v540 = vsel %vm480, %v538, %v539
    %v541 = vrot.slane %v198, 2
    %v542 = vrot.slane %v199, 2
    %v543 = vsel %vm480, %v541, %v542
    %v544 = vrot.slane %v200, 2
    %v545 = vrot.slane %v201, 2
    %v546 = vsel %vm480, %v544, %v545
    %v547 = vrot.slane %v202, 2
    %v548 = vrot.slane %v203, 2
    %v549 = vsel %vm480, %v547, %v548
    %v550 = vrot.slane %v204, 2
    %v551 = vrot.slane %v205, 2
    %v552 = vsel %vm480, %v550, %v551
    %553 = vrot.lane.b32.xlu0 %v483, 6
    %v554 = vpop.permute.xlu0 %553
    %555 = vrot.lane.b32.xlu0 %v482, 6
    %v556 = vpop.permute.xlu0 %555
    %557 = vrot.lane.b32.xlu0 %v486, 6
    %v558 = vpop.permute.xlu0 %557
    %559 = vrot.lane.b32.xlu0 %v485, 6
    %v560 = vpop.permute.xlu0 %559
    %561 = vrot.lane.b32.xlu0 %v489, 6
    %v562 = vpop.permute.xlu0 %561
    %563 = vrot.lane.b32.xlu0 %v488, 6
    %v564 = vpop.permute.xlu0 %563
    %565 = vrot.lane.b32.xlu0 %v492, 6
    %v566 = vpop.permute.xlu0 %565
    %567 = vrot.lane.b32.xlu0 %v491, 6
    %v568 = vpop.permute.xlu0 %567
    %569 = vrot.lane.b32.xlu0 %v495, 6
    %v570 = vpop.permute.xlu0 %569
    %571 = vrot.lane.b32.xlu0 %v494, 6
    %v572 = vpop.permute.xlu0 %571
    %573 = vrot.lane.b32.xlu0 %v498, 6
    %v574 = vpop.permute.xlu0 %573
    %575 = vrot.lane.b32.xlu0 %v497, 6
    %v576 = vpop.permute.xlu0 %575
    %577 = vrot.lane.b32.xlu0 %v501, 6
    %v578 = vpop.permute.xlu0 %577
    %579 = vrot.lane.b32.xlu0 %v500, 6
    %v580 = vpop.permute.xlu0 %579
    %581 = vrot.lane.b32.xlu0 %v504, 6
    %v582 = vpop.permute.xlu0 %581
    %583 = vrot.lane.b32.xlu0 %v503, 6
    %v584 = vpop.permute.xlu0 %583
    %585 = vrot.lane.b32.xlu0 %v507, 6
    %v586 = vpop.permute.xlu0 %585
    %587 = vrot.lane.b32.xlu0 %v506, 6
    %v588 = vpop.permute.xlu0 %587
    %589 = vrot.lane.b32.xlu0 %v510, 6
    %v590 = vpop.permute.xlu0 %589
    %591 = vrot.lane.b32.xlu0 %v509, 6
    %v592 = vpop.permute.xlu0 %591
    %593 = vrot.lane.b32.xlu0 %v513, 6
    %v594 = vpop.permute.xlu0 %593
    %595 = vrot.lane.b32.xlu0 %v512, 6
    %v596 = vpop.permute.xlu0 %595
    %597 = vrot.lane.b32.xlu0 %v516, 6
    %v598 = vpop.permute.xlu0 %597
    %599 = vrot.lane.b32.xlu0 %v515, 6
    %v600 = vpop.permute.xlu0 %599
    %601 = vrot.lane.b32.xlu0 %v519, 6
    %v602 = vpop.permute.xlu0 %601
    %603 = vrot.lane.b32.xlu0 %v518, 6
    %v604 = vpop.permute.xlu0 %603
    %605 = vrot.lane.b32.xlu0 %v522, 6
    %v606 = vpop.permute.xlu0 %605
    %607 = vrot.lane.b32.xlu0 %v521, 6
    %v608 = vpop.permute.xlu0 %607
    %609 = vrot.lane.b32.xlu0 %v525, 6
    %v610 = vpop.permute.xlu0 %609
    %611 = vrot.lane.b32.xlu0 %v524, 6
    %v612 = vpop.permute.xlu0 %611
    %613 = vrot.lane.b32.xlu0 %v528, 6
    %v614 = vpop.permute.xlu0 %613
    %615 = vrot.lane.b32.xlu0 %v527, 6
    %v616 = vpop.permute.xlu0 %615
    %617 = vrot.lane.b32.xlu0 %v531, 6
    %v618 = vpop.permute.xlu0 %617
    %619 = vrot.lane.b32.xlu0 %v530, 6
    %v620 = vpop.permute.xlu0 %619
    %621 = vrot.lane.b32.xlu0 %v534, 6
    %v622 = vpop.permute.xlu0 %621
    %623 = vrot.lane.b32.xlu0 %v533, 6
    %v624 = vpop.permute.xlu0 %623
    %625 = vrot.lane.b32.xlu0 %v537, 6
    %v626 = vpop.permute.xlu0 %625
    %627 = vrot.lane.b32.xlu0 %v536, 6
    %v628 = vpop.permute.xlu0 %627
    %629 = vrot.lane.b32.xlu0 %v540, 6
    %v630 = vpop.permute.xlu0 %629
    %631 = vrot.lane.b32.xlu0 %v539, 6
    %v632 = vpop.permute.xlu0 %631
    %633 = vrot.lane.b32.xlu0 %v543, 6
    %v634 = vpop.permute.xlu0 %633
    %635 = vrot.lane.b32.xlu0 %v542, 6
    %v636 = vpop.permute.xlu0 %635
    %637 = vrot.lane.b32.xlu0 %v546, 6
    %v638 = vpop.permute.xlu0 %637
    %639 = vrot.lane.b32.xlu0 %v545, 6
    %v640 = vpop.permute.xlu0 %639
    %641 = vrot.lane.b32.xlu0 %v549, 6
    %v642 = vpop.permute.xlu0 %641
    %643 = vrot.lane.b32.xlu0 %v548, 6
    %v644 = vpop.permute.xlu0 %643
    %645 = vrot.lane.b32.xlu0 %v552, 6
    %v646 = vpop.permute.xlu0 %645
    %647 = vrot.lane.b32.xlu0 %v551, 6
    %v648 = vpop.permute.xlu0 %647
    %701 = vrot.lane.b32.xlu0 %v156, 9
    %v702 = vpop.permute.xlu0 %701
    %703 = vrot.lane.b32.xlu0 %v157, 9
    %v704 = vpop.permute.xlu0 %703
    %705 = vrot.lane.b32.xlu0 %v158, 9
    %v706 = vpop.permute.xlu0 %705
    %707 = vrot.lane.b32.xlu0 %v159, 9
    %v708 = vpop.permute.xlu0 %707
    %709 = vrot.lane.b32.xlu0 %v160, 9
    %v710 = vpop.permute.xlu0 %709
    %711 = vrot.lane.b32.xlu0 %v161, 9
    %v712 = vpop.permute.xlu0 %711
    %713 = vrot.lane.b32.xlu0 %v162, 9
    %v714 = vpop.permute.xlu0 %713
    %715 = vrot.lane.b32.xlu0 %v163, 9
    %v716 = vpop.permute.xlu0 %715
    %717 = vrot.lane.b32.xlu0 %v164, 9
    %v718 = vpop.permute.xlu0 %717
    %719 = vrot.lane.b32.xlu0 %v165, 9
    %v720 = vpop.permute.xlu0 %719
    %721 = vrot.lane.b32.xlu0 %v166, 9
    %v722 = vpop.permute.xlu0 %721
    %723 = vrot.lane.b32.xlu0 %v167, 9
    %v724 = vpop.permute.xlu0 %723
    %725 = vrot.lane.b32.xlu0 %v168, 9
    %v726 = vpop.permute.xlu0 %725
    %727 = vrot.lane.b32.xlu0 %v169, 9
    %v728 = vpop.permute.xlu0 %727
    %729 = vrot.lane.b32.xlu0 %v170, 9
    %v730 = vpop.permute.xlu0 %729
    %731 = vrot.lane.b32.xlu0 %v171, 9
    %v732 = vpop.permute.xlu0 %731
    %733 = vrot.lane.b32.xlu0 %v172, 9
    %v734 = vpop.permute.xlu0 %733
    %735 = vrot.lane.b32.xlu0 %v173, 9
    %v736 = vpop.permute.xlu0 %735
    %737 = vrot.lane.b32.xlu0 %v174, 9
    %v738 = vpop.permute.xlu0 %737
    %739 = vrot.lane.b32.xlu0 %v175, 9
    %v740 = vpop.permute.xlu0 %739
    %741 = vrot.lane.b32.xlu0 %v176, 9
    %v742 = vpop.permute.xlu0 %741
    %743 = vrot.lane.b32.xlu0 %v177, 9
    %v744 = vpop.permute.xlu0 %743
    %745 = vrot.lane.b32.xlu0 %v178, 9
    %v746 = vpop.permute.xlu0 %745
    %747 = vrot.lane.b32.xlu0 %v179, 9
    %v748 = vpop.permute.xlu0 %747
    %749 = vrot.lane.b32.xlu0 %v184, 9
    %v750 = vpop.permute.xlu0 %749
    %751 = vrot.lane.b32.xlu0 %v185, 9
    %v752 = vpop.permute.xlu0 %751
    %753 = vrot.lane.b32.xlu0 %v186, 9
    %v754 = vpop.permute.xlu0 %753
    %755 = vrot.lane.b32.xlu0 %v187, 9
    %v756 = vpop.permute.xlu0 %755
    %757 = vrot.lane.b32.xlu0 %v188, 9
    %v758 = vpop.permute.xlu0 %757
    %759 = vrot.lane.b32.xlu0 %v189, 9
    %v760 = vpop.permute.xlu0 %759
    %761 = vrot.lane.b32.xlu0 %v190, 9
    %v762 = vpop.permute.xlu0 %761
    %763 = vrot.lane.b32.xlu0 %v191, 9
    %v764 = vpop.permute.xlu0 %763
    %765 = vrot.lane.b32.xlu0 %v192, 9
    %v766 = vpop.permute.xlu0 %765
    %767 = vrot.lane.b32.xlu0 %v193, 9
    %v768 = vpop.permute.xlu0 %767
    %769 = vrot.lane.b32.xlu0 %v194, 9
    %v770 = vpop.permute.xlu0 %769
    %771 = vrot.lane.b32.xlu0 %v195, 9
    %v772 = vpop.permute.xlu0 %771
    %773 = vrot.lane.b32.xlu0 %v196, 9
    %v774 = vpop.permute.xlu0 %773
    %775 = vrot.lane.b32.xlu0 %v197, 9
    %v776 = vpop.permute.xlu0 %775
    %777 = vrot.lane.b32.xlu0 %v198, 9
    %v778 = vpop.permute.xlu0 %777
    %779 = vrot.lane.b32.xlu0 %v199, 9
    %v780 = vpop.permute.xlu0 %779
    %781 = vrot.lane.b32.xlu0 %v200, 9
    %v782 = vpop.permute.xlu0 %781
    %783 = vrot.lane.b32.xlu0 %v201, 9
    %v784 = vpop.permute.xlu0 %783
    %785 = vrot.lane.b32.xlu0 %v202, 9
    %v786 = vpop.permute.xlu0 %785
    %787 = vrot.lane.b32.xlu0 %v203, 9
    %v788 = vpop.permute.xlu0 %787
    %789 = vrot.lane.b32.xlu0 %v204, 9
    %v790 = vpop.permute.xlu0 %789
    %791 = vrot.lane.b32.xlu0 %v205, 9
    %v792 = vpop.permute.xlu0 %791
    %793 = vrot.lane.b32.xlu0 %v206, 9
    %v794 = vpop.permute.xlu0 %793
    %795 = vrot.lane.b32.xlu0 %v207, 9
    %v796 = vpop.permute.xlu0 %795
    %v845 = vrot.slane %v178, 1
    %v846 = vrot.slane %v179, 1
    %v847 = vsel %vm263, %v845, %v846
    %v848 = vrot.slane %v206, 1
    %v849 = vrot.slane %v207, 1
    %v850 = vsel %vm263, %v848, %v849
    %851 = vrot.lane.b32.xlu0 %v269, 12
    %v852 = vpop.permute.xlu0 %851
    %853 = vrot.lane.b32.xlu0 %v268, 12
    %v854 = vpop.permute.xlu0 %853
    %855 = vrot.lane.b32.xlu0 %v272, 12
    %v856 = vpop.permute.xlu0 %855
    %857 = vrot.lane.b32.xlu0 %v271, 12
    %v858 = vpop.permute.xlu0 %857
    %859 = vrot.lane.b32.xlu0 %v275, 12
    %v860 = vpop.permute.xlu0 %859
    %861 = vrot.lane.b32.xlu0 %v274, 12
    %v862 = vpop.permute.xlu0 %861
    %863 = vrot.lane.b32.xlu0 %v278, 12
    %v864 = vpop.permute.xlu0 %863
    %865 = vrot.lane.b32.xlu0 %v277, 12
    %v866 = vpop.permute.xlu0 %865
    %867 = vrot.lane.b32.xlu0 %v281, 12
    %v868 = vpop.permute.xlu0 %867
    %869 = vrot.lane.b32.xlu0 %v280, 12
    %v870 = vpop.permute.xlu0 %869
    %871 = vrot.lane.b32.xlu0 %v284, 12
    %v872 = vpop.permute.xlu0 %871
    %873 = vrot.lane.b32.xlu0 %v283, 12
    %v874 = vpop.permute.xlu0 %873
    %875 = vrot.lane.b32.xlu0 %v287, 12
    %v876 = vpop.permute.xlu0 %875
    %877 = vrot.lane.b32.xlu0 %v286, 12
    %v878 = vpop.permute.xlu0 %877
    %879 = vrot.lane.b32.xlu0 %v290, 12
    %v880 = vpop.permute.xlu0 %879
    %881 = vrot.lane.b32.xlu0 %v289, 12
    %v882 = vpop.permute.xlu0 %881
    %883 = vrot.lane.b32.xlu0 %v293, 12
    %v884 = vpop.permute.xlu0 %883
    %885 = vrot.lane.b32.xlu0 %v292, 12
    %v886 = vpop.permute.xlu0 %885
    %887 = vrot.lane.b32.xlu0 %v296, 12
    %v888 = vpop.permute.xlu0 %887
    %889 = vrot.lane.b32.xlu0 %v295, 12
    %v890 = vpop.permute.xlu0 %889
    %891 = vrot.lane.b32.xlu0 %v299, 12
    %v892 = vpop.permute.xlu0 %891
    %893 = vrot.lane.b32.xlu0 %v298, 12
    %v894 = vpop.permute.xlu0 %893
    %895 = vrot.lane.b32.xlu0 %v847, 12
    %v896 = vpop.permute.xlu0 %895
    %897 = vrot.lane.b32.xlu0 %v846, 12
    %v898 = vpop.permute.xlu0 %897
    %899 = vrot.lane.b32.xlu0 %v305, 12
    %v900 = vpop.permute.xlu0 %899
    %901 = vrot.lane.b32.xlu0 %v304, 12
    %v902 = vpop.permute.xlu0 %901
    %903 = vrot.lane.b32.xlu0 %v308, 12
    %v904 = vpop.permute.xlu0 %903
    %905 = vrot.lane.b32.xlu0 %v307, 12
    %v906 = vpop.permute.xlu0 %905
    %907 = vrot.lane.b32.xlu0 %v311, 12
    %v908 = vpop.permute.xlu0 %907
    %909 = vrot.lane.b32.xlu0 %v310, 12
    %v910 = vpop.permute.xlu0 %909
    %911 = vrot.lane.b32.xlu0 %v314, 12
    %v912 = vpop.permute.xlu0 %911
    %913 = vrot.lane.b32.xlu0 %v313, 12
    %v914 = vpop.permute.xlu0 %913
    %915 = vrot.lane.b32.xlu0 %v317, 12
    %v916 = vpop.permute.xlu0 %915
    %917 = vrot.lane.b32.xlu0 %v316, 12
    %v918 = vpop.permute.xlu0 %917
    %919 = vrot.lane.b32.xlu0 %v320, 12
    %v920 = vpop.permute.xlu0 %919
    %921 = vrot.lane.b32.xlu0 %v319, 12
    %v922 = vpop.permute.xlu0 %921
    %923 = vrot.lane.b32.xlu0 %v323, 12
    %v924 = vpop.permute.xlu0 %923
    %925 = vrot.lane.b32.xlu0 %v322, 12
    %v926 = vpop.permute.xlu0 %925
    %927 = vrot.lane.b32.xlu0 %v326, 12
    %v928 = vpop.permute.xlu0 %927
    %929 = vrot.lane.b32.xlu0 %v325, 12
    %v930 = vpop.permute.xlu0 %929
    %931 = vrot.lane.b32.xlu0 %v329, 12
    %v932 = vpop.permute.xlu0 %931
    %933 = vrot.lane.b32.xlu0 %v328, 12
    %v934 = vpop.permute.xlu0 %933
    %935 = vrot.lane.b32.xlu0 %v332, 12
    %v936 = vpop.permute.xlu0 %935
    %937 = vrot.lane.b32.xlu0 %v331, 12
    %v938 = vpop.permute.xlu0 %937
    %939 = vrot.lane.b32.xlu0 %v335, 12
    %v940 = vpop.permute.xlu0 %939
    %941 = vrot.lane.b32.xlu0 %v334, 12
    %v942 = vpop.permute.xlu0 %941
    %943 = vrot.lane.b32.xlu0 %v850, 12
    %v944 = vpop.permute.xlu0 %943
    %945 = vrot.lane.b32.xlu0 %v849, 12
    %v946 = vpop.permute.xlu0 %945
    %v995 = vrot.slane %v178, 2
    %v996 = vrot.slane %v179, 2
    %v997 = vsel %vm480, %v995, %v996
    %v998 = vrot.slane %v206, 2
    %v999 = vrot.slane %v207, 2
    %v1000 = vsel %vm480, %v998, %v999
    %1001 = vrot.lane.b32.xlu0 %v486, 15
    %v1002 = vpop.permute.xlu0 %1001
    %1003 = vrot.lane.b32.xlu0 %v485, 15
    %v1004 = vpop.permute.xlu0 %1003
    %1005 = vrot.lane.b32.xlu0 %v489, 15
    %v1006 = vpop.permute.xlu0 %1005
    %1007 = vrot.lane.b32.xlu0 %v488, 15
    %v1008 = vpop.permute.xlu0 %1007
    %1009 = vrot.lane.b32.xlu0 %v492, 15
    %v1010 = vpop.permute.xlu0 %1009
    %1011 = vrot.lane.b32.xlu0 %v491, 15
    %v1012 = vpop.permute.xlu0 %1011
    %1013 = vrot.lane.b32.xlu0 %v495, 15
    %v1014 = vpop.permute.xlu0 %1013
    %1015 = vrot.lane.b32.xlu0 %v494, 15
    %v1016 = vpop.permute.xlu0 %1015
    %1017 = vrot.lane.b32.xlu0 %v498, 15
    %v1018 = vpop.permute.xlu0 %1017
    %1019 = vrot.lane.b32.xlu0 %v497, 15
    %v1020 = vpop.permute.xlu0 %1019
    %1021 = vrot.lane.b32.xlu0 %v501, 15
    %v1022 = vpop.permute.xlu0 %1021
    %1023 = vrot.lane.b32.xlu0 %v500, 15
    %v1024 = vpop.permute.xlu0 %1023
    %1025 = vrot.lane.b32.xlu0 %v504, 15
    %v1026 = vpop.permute.xlu0 %1025
    %1027 = vrot.lane.b32.xlu0 %v503, 15
    %v1028 = vpop.permute.xlu0 %1027
    %1029 = vrot.lane.b32.xlu0 %v507, 15
    %v1030 = vpop.permute.xlu0 %1029
    %1031 = vrot.lane.b32.xlu0 %v506, 15
    %v1032 = vpop.permute.xlu0 %1031
    %1033 = vrot.lane.b32.xlu0 %v510, 15
    %v1034 = vpop.permute.xlu0 %1033
    %1035 = vrot.lane.b32.xlu0 %v509, 15
    %v1036 = vpop.permute.xlu0 %1035
    %1037 = vrot.lane.b32.xlu0 %v513, 15
    %v1038 = vpop.permute.xlu0 %1037
    %1039 = vrot.lane.b32.xlu0 %v512, 15
    %v1040 = vpop.permute.xlu0 %1039
    %1041 = vrot.lane.b32.xlu0 %v516, 15
    %v1042 = vpop.permute.xlu0 %1041
    %1043 = vrot.lane.b32.xlu0 %v515, 15
    %v1044 = vpop.permute.xlu0 %1043
    %1045 = vrot.lane.b32.xlu0 %v997, 15
    %v1046 = vpop.permute.xlu0 %1045
    %1047 = vrot.lane.b32.xlu0 %v996, 15
    %v1048 = vpop.permute.xlu0 %1047
    %1049 = vrot.lane.b32.xlu0 %v522, 15
    %v1050 = vpop.permute.xlu0 %1049
    %1051 = vrot.lane.b32.xlu0 %v521, 15
    %v1052 = vpop.permute.xlu0 %1051
    %1053 = vrot.lane.b32.xlu0 %v525, 15
    %v1054 = vpop.permute.xlu0 %1053
    %1055 = vrot.lane.b32.xlu0 %v524, 15
    %v1056 = vpop.permute.xlu0 %1055
    %1057 = vrot.lane.b32.xlu0 %v528, 15
    %v1058 = vpop.permute.xlu0 %1057
    %1059 = vrot.lane.b32.xlu0 %v527, 15
    %v1060 = vpop.permute.xlu0 %1059
    %1061 = vrot.lane.b32.xlu0 %v531, 15
    %v1062 = vpop.permute.xlu0 %1061
    %1063 = vrot.lane.b32.xlu0 %v530, 15
    %v1064 = vpop.permute.xlu0 %1063
    %1065 = vrot.lane.b32.xlu0 %v534, 15
    %v1066 = vpop.permute.xlu0 %1065
    %1067 = vrot.lane.b32.xlu0 %v533, 15
    %v1068 = vpop.permute.xlu0 %1067
    %1069 = vrot.lane.b32.xlu0 %v537, 15
    %v1070 = vpop.permute.xlu0 %1069
    %1071 = vrot.lane.b32.xlu0 %v536, 15
    %v1072 = vpop.permute.xlu0 %1071
    %1073 = vrot.lane.b32.xlu0 %v540, 15
    %v1074 = vpop.permute.xlu0 %1073
    %1075 = vrot.lane.b32.xlu0 %v539, 15
    %v1076 = vpop.permute.xlu0 %1075
    %1077 = vrot.lane.b32.xlu0 %v543, 15
    %v1078 = vpop.permute.xlu0 %1077
    %1079 = vrot.lane.b32.xlu0 %v542, 15
    %v1080 = vpop.permute.xlu0 %1079
    %1081 = vrot.lane.b32.xlu0 %v546, 15
    %v1082 = vpop.permute.xlu0 %1081
    %1083 = vrot.lane.b32.xlu0 %v545, 15
    %v1084 = vpop.permute.xlu0 %1083
    %1085 = vrot.lane.b32.xlu0 %v549, 15
    %v1086 = vpop.permute.xlu0 %1085
    %1087 = vrot.lane.b32.xlu0 %v548, 15
    %v1088 = vpop.permute.xlu0 %1087
    %1089 = vrot.lane.b32.xlu0 %v552, 15
    %v1090 = vpop.permute.xlu0 %1089
    %1091 = vrot.lane.b32.xlu0 %v551, 15
    %v1092 = vpop.permute.xlu0 %1091
    %1093 = vrot.lane.b32.xlu0 %v1000, 15
    %v1094 = vpop.permute.xlu0 %1093
    %1095 = vrot.lane.b32.xlu0 %v999, 15
    %v1096 = vpop.permute.xlu0 %1095
    %1149 = vrot.lane.b32.xlu0 %v158, 18
    %v1150 = vpop.permute.xlu0 %1149
    %1151 = vrot.lane.b32.xlu0 %v159, 18
    %v1152 = vpop.permute.xlu0 %1151
    %1153 = vrot.lane.b32.xlu0 %v160, 18
    %v1154 = vpop.permute.xlu0 %1153
    %1155 = vrot.lane.b32.xlu0 %v161, 18
    %v1156 = vpop.permute.xlu0 %1155
    %1157 = vrot.lane.b32.xlu0 %v162, 18
    %v1158 = vpop.permute.xlu0 %1157
    %1159 = vrot.lane.b32.xlu0 %v163, 18
    %v1160 = vpop.permute.xlu0 %1159
    %1161 = vrot.lane.b32.xlu0 %v164, 18
    %v1162 = vpop.permute.xlu0 %1161
    %1163 = vrot.lane.b32.xlu0 %v165, 18
    %v1164 = vpop.permute.xlu0 %1163
    %1165 = vrot.lane.b32.xlu0 %v166, 18
    %v1166 = vpop.permute.xlu0 %1165
    %1167 = vrot.lane.b32.xlu0 %v167, 18
    %v1168 = vpop.permute.xlu0 %1167
    %1169 = vrot.lane.b32.xlu0 %v168, 18
    %v1170 = vpop.permute.xlu0 %1169
    %1171 = vrot.lane.b32.xlu0 %v169, 18
    %v1172 = vpop.permute.xlu0 %1171
    %1173 = vrot.lane.b32.xlu0 %v170, 18
    %v1174 = vpop.permute.xlu0 %1173
    %1175 = vrot.lane.b32.xlu0 %v171, 18
    %v1176 = vpop.permute.xlu0 %1175
    %1177 = vrot.lane.b32.xlu0 %v172, 18
    %v1178 = vpop.permute.xlu0 %1177
    %1179 = vrot.lane.b32.xlu0 %v173, 18
    %v1180 = vpop.permute.xlu0 %1179
    %1181 = vrot.lane.b32.xlu0 %v174, 18
    %v1182 = vpop.permute.xlu0 %1181
    %1183 = vrot.lane.b32.xlu0 %v175, 18
    %v1184 = vpop.permute.xlu0 %1183
    %1185 = vrot.lane.b32.xlu0 %v176, 18
    %v1186 = vpop.permute.xlu0 %1185
    %1187 = vrot.lane.b32.xlu0 %v177, 18
    %v1188 = vpop.permute.xlu0 %1187
    %1189 = vrot.lane.b32.xlu0 %v178, 18
    %v1190 = vpop.permute.xlu0 %1189
    %1191 = vrot.lane.b32.xlu0 %v179, 18
    %v1192 = vpop.permute.xlu0 %1191
    %1193 = vrot.lane.b32.xlu0 %v180, 18
    %v1194 = vpop.permute.xlu0 %1193
    %1195 = vrot.lane.b32.xlu0 %v181, 18
    %v1196 = vpop.permute.xlu0 %1195
    %1197 = vrot.lane.b32.xlu0 %v186, 18
    %v1198 = vpop.permute.xlu0 %1197
    %1199 = vrot.lane.b32.xlu0 %v187, 18
    %v1200 = vpop.permute.xlu0 %1199
    %1201 = vrot.lane.b32.xlu0 %v188, 18
    %v1202 = vpop.permute.xlu0 %1201
    %1203 = vrot.lane.b32.xlu0 %v189, 18
    %v1204 = vpop.permute.xlu0 %1203
    %1205 = vrot.lane.b32.xlu0 %v190, 18
    %v1206 = vpop.permute.xlu0 %1205
    %1207 = vrot.lane.b32.xlu0 %v191, 18
    %v1208 = vpop.permute.xlu0 %1207
    %1209 = vrot.lane.b32.xlu0 %v192, 18
    %v1210 = vpop.permute.xlu0 %1209
    %1211 = vrot.lane.b32.xlu0 %v193, 18
    %v1212 = vpop.permute.xlu0 %1211
    %1213 = vrot.lane.b32.xlu0 %v194, 18
    %v1214 = vpop.permute.xlu0 %1213
    %1215 = vrot.lane.b32.xlu0 %v195, 18
    %v1216 = vpop.permute.xlu0 %1215
    %1217 = vrot.lane.b32.xlu0 %v196, 18
    %v1218 = vpop.permute.xlu0 %1217
    %1219 = vrot.lane.b32.xlu0 %v197, 18
    %v1220 = vpop.permute.xlu0 %1219
    %1221 = vrot.lane.b32.xlu0 %v198, 18
    %v1222 = vpop.permute.xlu0 %1221
    %1223 = vrot.lane.b32.xlu0 %v199, 18
    %v1224 = vpop.permute.xlu0 %1223
    %1225 = vrot.lane.b32.xlu0 %v200, 18
    %v1226 = vpop.permute.xlu0 %1225
    %1227 = vrot.lane.b32.xlu0 %v201, 18
    %v1228 = vpop.permute.xlu0 %1227
    %1229 = vrot.lane.b32.xlu0 %v202, 18
    %v1230 = vpop.permute.xlu0 %1229
    %1231 = vrot.lane.b32.xlu0 %v203, 18
    %v1232 = vpop.permute.xlu0 %1231
    %1233 = vrot.lane.b32.xlu0 %v204, 18
    %v1234 = vpop.permute.xlu0 %1233
    %1235 = vrot.lane.b32.xlu0 %v205, 18
    %v1236 = vpop.permute.xlu0 %1235
    %1237 = vrot.lane.b32.xlu0 %v206, 18
    %v1238 = vpop.permute.xlu0 %1237
    %1239 = vrot.lane.b32.xlu0 %v207, 18
    %v1240 = vpop.permute.xlu0 %1239
    %1241 = vrot.lane.b32.xlu0 %v208, 18
    %v1242 = vpop.permute.xlu0 %1241
    %1243 = vrot.lane.b32.xlu0 %v209, 18
    %v1244 = vpop.permute.xlu0 %1243
    %v1293 = vrot.slane %v180, 1
    %v1294 = vrot.slane %v181, 1
    %v1295 = vsel %vm263, %v1293, %v1294
    %v1296 = vrot.slane %v208, 1
    %v1297 = vrot.slane %v209, 1
    %v1298 = vsel %vm263, %v1296, %v1297
    %1299 = vrot.lane.b32.xlu0 %v272, 21
    %v1300 = vpop.permute.xlu0 %1299
    %1301 = vrot.lane.b32.xlu0 %v271, 21
    %v1302 = vpop.permute.xlu0 %1301
    %1303 = vrot.lane.b32.xlu0 %v275, 21
    %v1304 = vpop.permute.xlu0 %1303
    %1305 = vrot.lane.b32.xlu0 %v274, 21
    %v1306 = vpop.permute.xlu0 %1305
    %1307 = vrot.lane.b32.xlu0 %v278, 21
    %v1308 = vpop.permute.xlu0 %1307
    %1309 = vrot.lane.b32.xlu0 %v277, 21
    %v1310 = vpop.permute.xlu0 %1309
    %1311 = vrot.lane.b32.xlu0 %v281, 21
    %v1312 = vpop.permute.xlu0 %1311
    %1313 = vrot.lane.b32.xlu0 %v280, 21
    %v1314 = vpop.permute.xlu0 %1313
    %1315 = vrot.lane.b32.xlu0 %v284, 21
    %v1316 = vpop.permute.xlu0 %1315
    %1317 = vrot.lane.b32.xlu0 %v283, 21
    %v1318 = vpop.permute.xlu0 %1317
    %1319 = vrot.lane.b32.xlu0 %v287, 21
    %v1320 = vpop.permute.xlu0 %1319
    %1321 = vrot.lane.b32.xlu0 %v286, 21
    %v1322 = vpop.permute.xlu0 %1321
    %1323 = vrot.lane.b32.xlu0 %v290, 21
    %v1324 = vpop.permute.xlu0 %1323
    %1325 = vrot.lane.b32.xlu0 %v289, 21
    %v1326 = vpop.permute.xlu0 %1325
    %1327 = vrot.lane.b32.xlu0 %v293, 21
    %v1328 = vpop.permute.xlu0 %1327
    %1329 = vrot.lane.b32.xlu0 %v292, 21
    %v1330 = vpop.permute.xlu0 %1329
    %1331 = vrot.lane.b32.xlu0 %v296, 21
    %v1332 = vpop.permute.xlu0 %1331
    %1333 = vrot.lane.b32.xlu0 %v295, 21
    %v1334 = vpop.permute.xlu0 %1333
    %1335 = vrot.lane.b32.xlu0 %v299, 21
    %v1336 = vpop.permute.xlu0 %1335
    %1337 = vrot.lane.b32.xlu0 %v298, 21
    %v1338 = vpop.permute.xlu0 %1337
    %1339 = vrot.lane.b32.xlu0 %v847, 21
    %v1340 = vpop.permute.xlu0 %1339
    %1341 = vrot.lane.b32.xlu0 %v846, 21
    %v1342 = vpop.permute.xlu0 %1341
    %1343 = vrot.lane.b32.xlu0 %v1295, 21
    %v1344 = vpop.permute.xlu0 %1343
    %1345 = vrot.lane.b32.xlu0 %v1294, 21
    %v1346 = vpop.permute.xlu0 %1345
    %1347 = vrot.lane.b32.xlu0 %v308, 21
    %v1348 = vpop.permute.xlu0 %1347
    %1349 = vrot.lane.b32.xlu0 %v307, 21
    %v1350 = vpop.permute.xlu0 %1349
    %1351 = vrot.lane.b32.xlu0 %v311, 21
    %v1352 = vpop.permute.xlu0 %1351
    %1353 = vrot.lane.b32.xlu0 %v310, 21
    %v1354 = vpop.permute.xlu0 %1353
    %1355 = vrot.lane.b32.xlu0 %v314, 21
    %v1356 = vpop.permute.xlu0 %1355
    %1357 = vrot.lane.b32.xlu0 %v313, 21
    %v1358 = vpop.permute.xlu0 %1357
    %1359 = vrot.lane.b32.xlu0 %v317, 21
    %v1360 = vpop.permute.xlu0 %1359
    %1361 = vrot.lane.b32.xlu0 %v316, 21
    %v1362 = vpop.permute.xlu0 %1361
    %1363 = vrot.lane.b32.xlu0 %v320, 21
    %v1364 = vpop.permute.xlu0 %1363
    %1365 = vrot.lane.b32.xlu0 %v319, 21
    %v1366 = vpop.permute.xlu0 %1365
    %1367 = vrot.lane.b32.xlu0 %v323, 21
    %v1368 = vpop.permute.xlu0 %1367
    %1369 = vrot.lane.b32.xlu0 %v322, 21
    %v1370 = vpop.permute.xlu0 %1369
    %1371 = vrot.lane.b32.xlu0 %v326, 21
    %v1372 = vpop.permute.xlu0 %1371
    %1373 = vrot.lane.b32.xlu0 %v325, 21
    %v1374 = vpop.permute.xlu0 %1373
    %1375 = vrot.lane.b32.xlu0 %v329, 21
    %v1376 = vpop.permute.xlu0 %1375
    %1377 = vrot.lane.b32.xlu0 %v328, 21
    %v1378 = vpop.permute.xlu0 %1377
    %1379 = vrot.lane.b32.xlu0 %v332, 21
    %v1380 = vpop.permute.xlu0 %1379
    %1381 = vrot.lane.b32.xlu0 %v331, 21
    %v1382 = vpop.permute.xlu0 %1381
    %1383 = vrot.lane.b32.xlu0 %v335, 21
    %v1384 = vpop.permute.xlu0 %1383
    %1385 = vrot.lane.b32.xlu0 %v334, 21
    %v1386 = vpop.permute.xlu0 %1385
    %1387 = vrot.lane.b32.xlu0 %v850, 21
    %v1388 = vpop.permute.xlu0 %1387
    %1389 = vrot.lane.b32.xlu0 %v849, 21
    %v1390 = vpop.permute.xlu0 %1389
    %1391 = vrot.lane.b32.xlu0 %v1298, 21
    %v1392 = vpop.permute.xlu0 %1391
    %1393 = vrot.lane.b32.xlu0 %v1297, 21
    %v1394 = vpop.permute.xlu0 %1393
    %v1443 = vrot.slane %v180, 2
    %v1444 = vrot.slane %v181, 2
    %v1445 = vsel %vm480, %v1443, %v1444
    %v1446 = vrot.slane %v208, 2
    %v1447 = vrot.slane %v209, 2
    %v1448 = vsel %vm480, %v1446, %v1447
    %1449 = vrot.lane.b32.xlu0 %v489, 24
    %v1450 = vpop.permute.xlu0 %1449
    %1451 = vrot.lane.b32.xlu0 %v488, 24
    %v1452 = vpop.permute.xlu0 %1451
    %1453 = vrot.lane.b32.xlu0 %v492, 24
    %v1454 = vpop.permute.xlu0 %1453
    %1455 = vrot.lane.b32.xlu0 %v491, 24
    %v1456 = vpop.permute.xlu0 %1455
    %1457 = vrot.lane.b32.xlu0 %v495, 24
    %v1458 = vpop.permute.xlu0 %1457
    %1459 = vrot.lane.b32.xlu0 %v494, 24
    %v1460 = vpop.permute.xlu0 %1459
    %1461 = vrot.lane.b32.xlu0 %v498, 24
    %v1462 = vpop.permute.xlu0 %1461
    %1463 = vrot.lane.b32.xlu0 %v497, 24
    %v1464 = vpop.permute.xlu0 %1463
    %1465 = vrot.lane.b32.xlu0 %v501, 24
    %v1466 = vpop.permute.xlu0 %1465
    %1467 = vrot.lane.b32.xlu0 %v500, 24
    %v1468 = vpop.permute.xlu0 %1467
    %1469 = vrot.lane.b32.xlu0 %v504, 24
    %v1470 = vpop.permute.xlu0 %1469
    %1471 = vrot.lane.b32.xlu0 %v503, 24
    %v1472 = vpop.permute.xlu0 %1471
    %1473 = vrot.lane.b32.xlu0 %v507, 24
    %v1474 = vpop.permute.xlu0 %1473
    %1475 = vrot.lane.b32.xlu0 %v506, 24
    %v1476 = vpop.permute.xlu0 %1475
    %1477 = vrot.lane.b32.xlu0 %v510, 24
    %v1478 = vpop.permute.xlu0 %1477
    %1479 = vrot.lane.b32.xlu0 %v509, 24
    %v1480 = vpop.permute.xlu0 %1479
    %1481 = vrot.lane.b32.xlu0 %v513, 24
    %v1482 = vpop.permute.xlu0 %1481
    %1483 = vrot.lane.b32.xlu0 %v512, 24
    %v1484 = vpop.permute.xlu0 %1483
    %1485 = vrot.lane.b32.xlu0 %v516, 24
    %v1486 = vpop.permute.xlu0 %1485
    %1487 = vrot.lane.b32.xlu0 %v515, 24
    %v1488 = vpop.permute.xlu0 %1487
    %1489 = vrot.lane.b32.xlu0 %v997, 24
    %v1490 = vpop.permute.xlu0 %1489
    %1491 = vrot.lane.b32.xlu0 %v996, 24
    %v1492 = vpop.permute.xlu0 %1491
    %1493 = vrot.lane.b32.xlu0 %v1445, 24
    %v1494 = vpop.permute.xlu0 %1493
    %1495 = vrot.lane.b32.xlu0 %v1444, 24
    %v1496 = vpop.permute.xlu0 %1495
    %1497 = vrot.lane.b32.xlu0 %v525, 24
    %v1498 = vpop.permute.xlu0 %1497
    %1499 = vrot.lane.b32.xlu0 %v524, 24
    %v1500 = vpop.permute.xlu0 %1499
    %1501 = vrot.lane.b32.xlu0 %v528, 24
    %v1502 = vpop.permute.xlu0 %1501
    %1503 = vrot.lane.b32.xlu0 %v527, 24
    %v1504 = vpop.permute.xlu0 %1503
    %1505 = vrot.lane.b32.xlu0 %v531, 24
    %v1506 = vpop.permute.xlu0 %1505
    %1507 = vrot.lane.b32.xlu0 %v530, 24
    %v1508 = vpop.permute.xlu0 %1507
    %1509 = vrot.lane.b32.xlu0 %v534, 24
    %v1510 = vpop.permute.xlu0 %1509
    %1511 = vrot.lane.b32.xlu0 %v533, 24
    %v1512 = vpop.permute.xlu0 %1511
    %1513 = vrot.lane.b32.xlu0 %v537, 24
    %v1514 = vpop.permute.xlu0 %1513
    %1515 = vrot.lane.b32.xlu0 %v536, 24
    %v1516 = vpop.permute.xlu0 %1515
    %1517 = vrot.lane.b32.xlu0 %v540, 24
    %v1518 = vpop.permute.xlu0 %1517
    %1519 = vrot.lane.b32.xlu0 %v539, 24
    %v1520 = vpop.permute.xlu0 %1519
    %1521 = vrot.lane.b32.xlu0 %v543, 24
    %v1522 = vpop.permute.xlu0 %1521
    %1523 = vrot.lane.b32.xlu0 %v542, 24
    %v1524 = vpop.permute.xlu0 %1523
    %1525 = vrot.lane.b32.xlu0 %v546, 24
    %v1526 = vpop.permute.xlu0 %1525
    %1527 = vrot.lane.b32.xlu0 %v545, 24
    %v1528 = vpop.permute.xlu0 %1527
    %1529 = vrot.lane.b32.xlu0 %v549, 24
    %v1530 = vpop.permute.xlu0 %1529
    %1531 = vrot.lane.b32.xlu0 %v548, 24
    %v1532 = vpop.permute.xlu0 %1531
    %1533 = vrot.lane.b32.xlu0 %v552, 24
    %v1534 = vpop.permute.xlu0 %1533
    %1535 = vrot.lane.b32.xlu0 %v551, 24
    %v1536 = vpop.permute.xlu0 %1535
    %1537 = vrot.lane.b32.xlu0 %v1000, 24
    %v1538 = vpop.permute.xlu0 %1537
    %1539 = vrot.lane.b32.xlu0 %v999, 24
    %v1540 = vpop.permute.xlu0 %1539
    %1541 = vrot.lane.b32.xlu0 %v1448, 24
    %v1542 = vpop.permute.xlu0 %1541
    %1543 = vrot.lane.b32.xlu0 %v1447, 24
    %v1544 = vpop.permute.xlu0 %1543
    %vm1593 = vcmask 23552
    %v1594 = vsel %vm1593, %v154, %v337
    %v1595 = vsel %vm1593, %v155, %v339
    %v1596 = vsel %vm1593, %v156, %v341
    %v1597 = vsel %vm1593, %v157, %v343
    %v1598 = vsel %vm1593, %v158, %v345
    %v1599 = vsel %vm1593, %v159, %v347
    %v1600 = vsel %vm1593, %v160, %v349
    %v1601 = vsel %vm1593, %v161, %v351
    %v1602 = vsel %vm1593, %v162, %v353
    %v1603 = vsel %vm1593, %v163, %v355
    %v1604 = vsel %vm1593, %v164, %v357
    %v1605 = vsel %vm1593, %v165, %v359
    %v1606 = vsel %vm1593, %v166, %v361
    %v1607 = vsel %vm1593, %v167, %v363
    %v1608 = vsel %vm1593, %v168, %v365
    %v1609 = vsel %vm1593, %v169, %v367
    %v1610 = vsel %vm1593, %v170, %v369
    %v1611 = vsel %vm1593, %v171, %v371
    %v1612 = vsel %vm1593, %v172, %v373
    %v1613 = vsel %vm1593, %v173, %v375
    %v1614 = vsel %vm1593, %v174, %v377
    %v1615 = vsel %vm1593, %v175, %v379
    %v1616 = vsel %vm1593, %v176, %v381
    %v1617 = vsel %vm1593, %v177, %v383
    %v1618 = vsel %vm1593, %v182, %v385
    %v1619 = vsel %vm1593, %v183, %v387
    %v1620 = vsel %vm1593, %v184, %v389
    %v1621 = vsel %vm1593, %v185, %v391
    %v1622 = vsel %vm1593, %v186, %v393
    %v1623 = vsel %vm1593, %v187, %v395
    %v1624 = vsel %vm1593, %v188, %v397
    %v1625 = vsel %vm1593, %v189, %v399
    %v1626 = vsel %vm1593, %v190, %v401
    %v1627 = vsel %vm1593, %v191, %v403
    %v1628 = vsel %vm1593, %v192, %v405
    %v1629 = vsel %vm1593, %v193, %v407
    %v1630 = vsel %vm1593, %v194, %v409
    %v1631 = vsel %vm1593, %v195, %v411
    %v1632 = vsel %vm1593, %v196, %v413
    %v1633 = vsel %vm1593, %v197, %v415
    %v1634 = vsel %vm1593, %v198, %v417
    %v1635 = vsel %vm1593, %v199, %v419
    %v1636 = vsel %vm1593, %v200, %v421
    %v1637 = vsel %vm1593, %v201, %v423
    %v1638 = vsel %vm1593, %v202, %v425
    %v1639 = vsel %vm1593, %v203, %v427
    %v1640 = vsel %vm1593, %v204, %v429
    %v1641 = vsel %vm1593, %v205, %v431
    %vm1642 = vcmask 48128
    %v1643 = vsel %vm1642, %v1594, %v554
    %v1644 = vsel %vm1642, %v1595, %v556
    %v1645 = vsel %vm1642, %v1596, %v558
    %v1646 = vsel %vm1642, %v1597, %v560
    %v1647 = vsel %vm1642, %v1598, %v562
    %v1648 = vsel %vm1642, %v1599, %v564
    %v1649 = vsel %vm1642, %v1600, %v566
    %v1650 = vsel %vm1642, %v1601, %v568
    %v1651 = vsel %vm1642, %v1602, %v570
    %v1652 = vsel %vm1642, %v1603, %v572
    %v1653 = vsel %vm1642, %v1604, %v574
    %v1654 = vsel %vm1642, %v1605, %v576
    %v1655 = vsel %vm1642, %v1606, %v578
    %v1656 = vsel %vm1642, %v1607, %v580
    %v1657 = vsel %vm1642, %v1608, %v582
    %v1658 = vsel %vm1642, %v1609, %v584
    %v1659 = vsel %vm1642, %v1610, %v586
    %v1660 = vsel %vm1642, %v1611, %v588
    %v1661 = vsel %vm1642, %v1612, %v590
    %v1662 = vsel %vm1642, %v1613, %v592
    %v1663 = vsel %vm1642, %v1614, %v594
    %v1664 = vsel %vm1642, %v1615, %v596
    %v1665 = vsel %vm1642, %v1616, %v598
    %v1666 = vsel %vm1642, %v1617, %v600
    %v1667 = vsel %vm1642, %v1618, %v602
    %v1668 = vsel %vm1642, %v1619, %v604
    %v1669 = vsel %vm1642, %v1620, %v606
    %v1670 = vsel %vm1642, %v1621, %v608
    %v1671 = vsel %vm1642, %v1622, %v610
    %v1672 = vsel %vm1642, %v1623, %v612
    %v1673 = vsel %vm1642, %v1624, %v614
    %v1674 = vsel %vm1642, %v1625, %v616
    %v1675 = vsel %vm1642, %v1626, %v618
    %v1676 = vsel %vm1642, %v1627, %v620
    %v1677 = vsel %vm1642, %v1628, %v622
    %v1678 = vsel %vm1642, %v1629, %v624
    %v1679 = vsel %vm1642, %v1630, %v626
    %v1680 = vsel %vm1642, %v1631, %v628
    %v1681 = vsel %vm1642, %v1632, %v630
    %v1682 = vsel %vm1642, %v1633, %v632
    %v1683 = vsel %vm1642, %v1634, %v634
    %v1684 = vsel %vm1642, %v1635, %v636
    %v1685 = vsel %vm1642, %v1636, %v638
    %v1686 = vsel %vm1642, %v1637, %v640
    %v1687 = vsel %vm1642, %v1638, %v642
    %v1688 = vsel %vm1642, %v1639, %v644
    %v1689 = vsel %vm1642, %v1640, %v646
    %v1690 = vsel %vm1642, %v1641, %v648
    %vm1691 = vcmask 72704
    %v1692 = vsel %vm1691, %v1643, %v702
    %v1693 = vsel %vm1691, %v1644, %v704
    %v1694 = vsel %vm1691, %v1645, %v706
    %v1695 = vsel %vm1691, %v1646, %v708
    %v1696 = vsel %vm1691, %v1647, %v710
    %v1697 = vsel %vm1691, %v1648, %v712
    %v1698 = vsel %vm1691, %v1649, %v714
    %v1699 = vsel %vm1691, %v1650, %v716
    %v1700 = vsel %vm1691, %v1651, %v718
    %v1701 = vsel %vm1691, %v1652, %v720
    %v1702 = vsel %vm1691, %v1653, %v722
    %v1703 = vsel %vm1691, %v1654, %v724
    %v1704 = vsel %vm1691, %v1655, %v726
    %v1705 = vsel %vm1691, %v1656, %v728
    %v1706 = vsel %vm1691, %v1657, %v730
    %v1707 = vsel %vm1691, %v1658, %v732
    %v1708 = vsel %vm1691, %v1659, %v734
    %v1709 = vsel %vm1691, %v1660, %v736
    %v1710 = vsel %vm1691, %v1661, %v738
    %v1711 = vsel %vm1691, %v1662, %v740
    %v1712 = vsel %vm1691, %v1663, %v742
    %v1713 = vsel %vm1691, %v1664, %v744
    %v1714 = vsel %vm1691, %v1665, %v746
    %v1715 = vsel %vm1691, %v1666, %v748
    %v1716 = vsel %vm1691, %v1667, %v750
    %v1717 = vsel %vm1691, %v1668, %v752
    %v1718 = vsel %vm1691, %v1669, %v754
    %v1719 = vsel %vm1691, %v1670, %v756
    %v1720 = vsel %vm1691, %v1671, %v758
    %v1721 = vsel %vm1691, %v1672, %v760
    %v1722 = vsel %vm1691, %v1673, %v762
    %v1723 = vsel %vm1691, %v1674, %v764
    %v1724 = vsel %vm1691, %v1675, %v766
    %v1725 = vsel %vm1691, %v1676, %v768
    %v1726 = vsel %vm1691, %v1677, %v770
    %v1727 = vsel %vm1691, %v1678, %v772
    %v1728 = vsel %vm1691, %v1679, %v774
    %v1729 = vsel %vm1691, %v1680, %v776
    %v1730 = vsel %vm1691, %v1681, %v778
    %v1731 = vsel %vm1691, %v1682, %v780
    %v1732 = vsel %vm1691, %v1683, %v782
    %v1733 = vsel %vm1691, %v1684, %v784
    %v1734 = vsel %vm1691, %v1685, %v786
    %v1735 = vsel %vm1691, %v1686, %v788
    %v1736 = vsel %vm1691, %v1687, %v790
    %v1737 = vsel %vm1691, %v1688, %v792
    %v1738 = vsel %vm1691, %v1689, %v794
    %v1739 = vsel %vm1691, %v1690, %v796
    %vm1740 = vcmask 97280
    %v1741 = vsel %vm1740, %v1692, %v852
    %v1742 = vsel %vm1740, %v1693, %v854
    %v1743 = vsel %vm1740, %v1694, %v856
    %v1744 = vsel %vm1740, %v1695, %v858
    %v1745 = vsel %vm1740, %v1696, %v860
    %v1746 = vsel %vm1740, %v1697, %v862
    %v1747 = vsel %vm1740, %v1698, %v864
    %v1748 = vsel %vm1740, %v1699, %v866
    %v1749 = vsel %vm1740, %v1700, %v868
    %v1750 = vsel %vm1740, %v1701, %v870
    %v1751 = vsel %vm1740, %v1702, %v872
    %v1752 = vsel %vm1740, %v1703, %v874
    %v1753 = vsel %vm1740, %v1704, %v876
    %v1754 = vsel %vm1740, %v1705, %v878
    %v1755 = vsel %vm1740, %v1706, %v880
    %v1756 = vsel %vm1740, %v1707, %v882
    %v1757 = vsel %vm1740, %v1708, %v884
    %v1758 = vsel %vm1740, %v1709, %v886
    %v1759 = vsel %vm1740, %v1710, %v888
    %v1760 = vsel %vm1740, %v1711, %v890
    %v1761 = vsel %vm1740, %v1712, %v892
    %v1762 = vsel %vm1740, %v1713, %v894
    %v1763 = vsel %vm1740, %v1714, %v896
    %v1764 = vsel %vm1740, %v1715, %v898
    %v1765 = vsel %vm1740, %v1716, %v900
    %v1766 = vsel %vm1740, %v1717, %v902
    %v1767 = vsel %vm1740, %v1718, %v904
    %v1768 = vsel %vm1740, %v1719, %v906
    %v1769 = vsel %vm1740, %v1720, %v908
    %v1770 = vsel %vm1740, %v1721, %v910
    %v1771 = vsel %vm1740, %v1722, %v912
    %v1772 = vsel %vm1740, %v1723, %v914
    %v1773 = vsel %vm1740, %v1724, %v916
    %v1774 = vsel %vm1740, %v1725, %v918
    %v1775 = vsel %vm1740, %v1726, %v920
    %v1776 = vsel %vm1740, %v1727, %v922
    %v1777 = vsel %vm1740, %v1728, %v924
    %v1778 = vsel %vm1740, %v1729, %v926
    %v1779 = vsel %vm1740, %v1730, %v928
    %v1780 = vsel %vm1740, %v1731, %v930
    %v1781 = vsel %vm1740, %v1732, %v932
    %v1782 = vsel %vm1740, %v1733, %v934
    %v1783 = vsel %vm1740, %v1734, %v936
    %v1784 = vsel %vm1740, %v1735, %v938
    %v1785 = vsel %vm1740, %v1736, %v940
    %v1786 = vsel %vm1740, %v1737, %v942
    %v1787 = vsel %vm1740, %v1738, %v944
    %v1788 = vsel %vm1740, %v1739, %v946
    %vm1789 = vcmask 121856
    %v1790 = vsel %vm1789, %v1741, %v1002
    %v1791 = vsel %vm1789, %v1742, %v1004
    %v1792 = vsel %vm1789, %v1743, %v1006
    %v1793 = vsel %vm1789, %v1744, %v1008
    %v1794 = vsel %vm1789, %v1745, %v1010
    %v1795 = vsel %vm1789, %v1746, %v1012
    %v1796 = vsel %vm1789, %v1747, %v1014
    %v1797 = vsel %vm1789, %v1748, %v1016
    %v1798 = vsel %vm1789, %v1749, %v1018
    %v1799 = vsel %vm1789, %v1750, %v1020
    %v1800 = vsel %vm1789, %v1751, %v1022
    %v1801 = vsel %vm1789, %v1752, %v1024
    %v1802 = vsel %vm1789, %v1753, %v1026
    %v1803 = vsel %vm1789, %v1754, %v1028
    %v1804 = vsel %vm1789, %v1755, %v1030
    %v1805 = vsel %vm1789, %v1756, %v1032
    %v1806 = vsel %vm1789, %v1757, %v1034
    %v1807 = vsel %vm1789, %v1758, %v1036
    %v1808 = vsel %vm1789, %v1759, %v1038
    %v1809 = vsel %vm1789, %v1760, %v1040
    %v1810 = vsel %vm1789, %v1761, %v1042
    %v1811 = vsel %vm1789, %v1762, %v1044
    %v1812 = vsel %vm1789, %v1763, %v1046
    %v1813 = vsel %vm1789, %v1764, %v1048
    %v1814 = vsel %vm1789, %v1765, %v1050
    %v1815 = vsel %vm1789, %v1766, %v1052
    %v1816 = vsel %vm1789, %v1767, %v1054
    %v1817 = vsel %vm1789, %v1768, %v1056
    %v1818 = vsel %vm1789, %v1769, %v1058
    %v1819 = vsel %vm1789, %v1770, %v1060
    %v1820 = vsel %vm1789, %v1771, %v1062
    %v1821 = vsel %vm1789, %v1772, %v1064
    %v1822 = vsel %vm1789, %v1773, %v1066
    %v1823 = vsel %vm1789, %v1774, %v1068
    %v1824 = vsel %vm1789, %v1775, %v1070
    %v1825 = vsel %vm1789, %v1776, %v1072
    %v1826 = vsel %vm1789, %v1777, %v1074
    %v1827 = vsel %vm1789, %v1778, %v1076
    %v1828 = vsel %vm1789, %v1779, %v1078
    %v1829 = vsel %vm1789, %v1780, %v1080
    %v1830 = vsel %vm1789, %v1781, %v1082
    %v1831 = vsel %vm1789, %v1782, %v1084
    %v1832 = vsel %vm1789, %v1783, %v1086
    %v1833 = vsel %vm1789, %v1784, %v1088
    %v1834 = vsel %vm1789, %v1785, %v1090
    %v1835 = vsel %vm1789, %v1786, %v1092
    %v1836 = vsel %vm1789, %v1787, %v1094
    %v1837 = vsel %vm1789, %v1788, %v1096
    %vm1838 = vcmask 146432
    %v1839 = vsel %vm1838, %v1790, %v1150
    %v1840 = vsel %vm1838, %v1791, %v1152
    %v1841 = vsel %vm1838, %v1792, %v1154
    %v1842 = vsel %vm1838, %v1793, %v1156
    %v1843 = vsel %vm1838, %v1794, %v1158
    %v1844 = vsel %vm1838, %v1795, %v1160
    %v1845 = vsel %vm1838, %v1796, %v1162
    %v1846 = vsel %vm1838, %v1797, %v1164
    %v1847 = vsel %vm1838, %v1798, %v1166
    %v1848 = vsel %vm1838, %v1799, %v1168
    %v1849 = vsel %vm1838, %v1800, %v1170
    %v1850 = vsel %vm1838, %v1801, %v1172
    %v1851 = vsel %vm1838, %v1802, %v1174
    %v1852 = vsel %vm1838, %v1803, %v1176
    %v1853 = vsel %vm1838, %v1804, %v1178
    %v1854 = vsel %vm1838, %v1805, %v1180
    %v1855 = vsel %vm1838, %v1806, %v1182
    %v1856 = vsel %vm1838, %v1807, %v1184
    %v1857 = vsel %vm1838, %v1808, %v1186
    %v1858 = vsel %vm1838, %v1809, %v1188
    %v1859 = vsel %vm1838, %v1810, %v1190
    %v1860 = vsel %vm1838, %v1811, %v1192
    %v1861 = vsel %vm1838, %v1812, %v1194
    %v1862 = vsel %vm1838, %v1813, %v1196
    %v1863 = vsel %vm1838, %v1814, %v1198
    %v1864 = vsel %vm1838, %v1815, %v1200
    %v1865 = vsel %vm1838, %v1816, %v1202
    %v1866 = vsel %vm1838, %v1817, %v1204
    %v1867 = vsel %vm1838, %v1818, %v1206
    %v1868 = vsel %vm1838, %v1819, %v1208
    %v1869 = vsel %vm1838, %v1820, %v1210
    %v1870 = vsel %vm1838, %v1821, %v1212
    %v1871 = vsel %vm1838, %v1822, %v1214
    %v1872 = vsel %vm1838, %v1823, %v1216
    %v1873 = vsel %vm1838, %v1824, %v1218
    %v1874 = vsel %vm1838, %v1825, %v1220
    %v1875 = vsel %vm1838, %v1826, %v1222
    %v1876 = vsel %vm1838, %v1827, %v1224
    %v1877 = vsel %vm1838, %v1828, %v1226
    %v1878 = vsel %vm1838, %v1829, %v1228
    %v1879 = vsel %vm1838, %v1830, %v1230
    %v1880 = vsel %vm1838, %v1831, %v1232
    %v1881 = vsel %vm1838, %v1832, %v1234
    %v1882 = vsel %vm1838, %v1833, %v1236
    %v1883 = vsel %vm1838, %v1834, %v1238
    %v1884 = vsel %vm1838, %v1835, %v1240
    %v1885 = vsel %vm1838, %v1836, %v1242
    %v1886 = vsel %vm1838, %v1837, %v1244
    %vm1887 = vcmask 171008
    %v1888 = vsel %vm1887, %v1839, %v1300
    %v1889 = vsel %vm1887, %v1840, %v1302
    %v1890 = vsel %vm1887, %v1841, %v1304
    %v1891 = vsel %vm1887, %v1842, %v1306
    %v1892 = vsel %vm1887, %v1843, %v1308
    %v1893 = vsel %vm1887, %v1844, %v1310
    %v1894 = vsel %vm1887, %v1845, %v1312
    %v1895 = vsel %vm1887, %v1846, %v1314
    %v1896 = vsel %vm1887, %v1847, %v1316
    %v1897 = vsel %vm1887, %v1848, %v1318
    %v1898 = vsel %vm1887, %v1849, %v1320
    %v1899 = vsel %vm1887, %v1850, %v1322
    %v1900 = vsel %vm1887, %v1851, %v1324
    %v1901 = vsel %vm1887, %v1852, %v1326
    %v1902 = vsel %vm1887, %v1853, %v1328
    %v1903 = vsel %vm1887, %v1854, %v1330
    %v1904 = vsel %vm1887, %v1855, %v1332
    %v1905 = vsel %vm1887, %v1856, %v1334
    %v1906 = vsel %vm1887, %v1857, %v1336
    %v1907 = vsel %vm1887, %v1858, %v1338
    %v1908 = vsel %vm1887, %v1859, %v1340
    %v1909 = vsel %vm1887, %v1860, %v1342
    %v1910 = vsel %vm1887, %v1861, %v1344
    %v1911 = vsel %vm1887, %v1862, %v1346
    %v1912 = vsel %vm1887, %v1863, %v1348
    %v1913 = vsel %vm1887, %v1864, %v1350
    %v1914 = vsel %vm1887, %v1865, %v1352
    %v1915 = vsel %vm1887, %v1866, %v1354
    %v1916 = vsel %vm1887, %v1867, %v1356
    %v1917 = vsel %vm1887, %v1868, %v1358
    %v1918 = vsel %vm1887, %v1869, %v1360
    %v1919 = vsel %vm1887, %v1870, %v1362
    %v1920 = vsel %vm1887, %v1871, %v1364
    %v1921 = vsel %vm1887, %v1872, %v1366
    %v1922 = vsel %vm1887, %v1873, %v1368
    %v1923 = vsel %vm1887, %v1874, %v1370
    %v1924 = vsel %vm1887, %v1875, %v1372
    %v1925 = vsel %vm1887, %v1876, %v1374
    %v1926 = vsel %vm1887, %v1877, %v1376
    %v1927 = vsel %vm1887, %v1878, %v1378
    %v1928 = vsel %vm1887, %v1879, %v1380
    %v1929 = vsel %vm1887, %v1880, %v1382
    %v1930 = vsel %vm1887, %v1881, %v1384
    %v1931 = vsel %vm1887, %v1882, %v1386
    %v1932 = vsel %vm1887, %v1883, %v1388
    %v1933 = vsel %vm1887, %v1884, %v1390
    %v1934 = vsel %vm1887, %v1885, %v1392
    %v1935 = vsel %vm1887, %v1886, %v1394
    %vm1936 = vcmask 195584
    %v1937 = vsel %vm1936, %v1888, %v1450
    %v1938 = vsel %vm1936, %v1889, %v1452
    %v1939 = vsel %vm1936, %v1890, %v1454
    %v1940 = vsel %vm1936, %v1891, %v1456
    %v1941 = vsel %vm1936, %v1892, %v1458
    %v1942 = vsel %vm1936, %v1893, %v1460
    %v1943 = vsel %vm1936, %v1894, %v1462
    %v1944 = vsel %vm1936, %v1895, %v1464
    %v1945 = vsel %vm1936, %v1896, %v1466
    %v1946 = vsel %vm1936, %v1897, %v1468
    %v1947 = vsel %vm1936, %v1898, %v1470
    %v1948 = vsel %vm1936, %v1899, %v1472
    %v1949 = vsel %vm1936, %v1900, %v1474
    %v1950 = vsel %vm1936, %v1901, %v1476
    %v1951 = vsel %vm1936, %v1902, %v1478
    %v1952 = vsel %vm1936, %v1903, %v1480
    %v1953 = vsel %vm1936, %v1904, %v1482
    %v1954 = vsel %vm1936, %v1905, %v1484
    %v1955 = vsel %vm1936, %v1906, %v1486
    %v1956 = vsel %vm1936, %v1907, %v1488
    %v1957 = vsel %vm1936, %v1908, %v1490
    %v1958 = vsel %vm1936, %v1909, %v1492
    %v1959 = vsel %vm1936, %v1910, %v1494
    %v1960 = vsel %vm1936, %v1911, %v1496
    %v1961 = vsel %vm1936, %v1912, %v1498
    %v1962 = vsel %vm1936, %v1913, %v1500
    %v1963 = vsel %vm1936, %v1914, %v1502
    %v1964 = vsel %vm1936, %v1915, %v1504
    %v1965 = vsel %vm1936, %v1916, %v1506
    %v1966 = vsel %vm1936, %v1917, %v1508
    %v1967 = vsel %vm1936, %v1918, %v1510
    %v1968 = vsel %vm1936, %v1919, %v1512
    %v1969 = vsel %vm1936, %v1920, %v1514
    %v1970 = vsel %vm1936, %v1921, %v1516
    %v1971 = vsel %vm1936, %v1922, %v1518
    %v1972 = vsel %vm1936, %v1923, %v1520
    %v1973 = vsel %vm1936, %v1924, %v1522
    %v1974 = vsel %vm1936, %v1925, %v1524
    %v1975 = vsel %vm1936, %v1926, %v1526
    %v1976 = vsel %vm1936, %v1927, %v1528
    %v1977 = vsel %vm1936, %v1928, %v1530
    %v1978 = vsel %vm1936, %v1929, %v1532
    %v1979 = vsel %vm1936, %v1930, %v1534
    %v1980 = vsel %vm1936, %v1931, %v1536
    %v1981 = vsel %vm1936, %v1932, %v1538
    %v1982 = vsel %vm1936, %v1933, %v1540
    %v1983 = vsel %vm1936, %v1934, %v1542
    %v1984 = vsel %vm1936, %v1935, %v1544
    %v2033 = vcombine.high %v1937, %v1937
    %v2034 = vcombine.high %v1939, %v1939
    %v2035 = vcombine.high %v1941, %v1941
    %v2036 = vcombine.high %v1943, %v1943
    %v2037 = vcombine.high %v1945, %v1945
    %v2038 = vcombine.high %v1947, %v1947
    %v2039 = vcombine.high %v1949, %v1949
    %v2040 = vcombine.high %v1951, %v1951
    %v2041 = vcombine.high %v1953, %v1953
    %v2042 = vcombine.high %v1955, %v1955
    %v2043 = vcombine.high %v1957, %v1957
    %v2044 = vcombine.high %v1959, %v1959
    %v2045 = vcombine.high %v1961, %v1961
    %v2046 = vcombine.high %v1963, %v1963
    %v2047 = vcombine.high %v1965, %v1965
    %v2048 = vcombine.high %v1967, %v1967
    %v2049 = vcombine.high %v1969, %v1969
    %v2050 = vcombine.high %v1971, %v1971
    %v2051 = vcombine.high %v1973, %v1973
    %v2052 = vcombine.high %v1975, %v1975
    %v2053 = vcombine.high %v1977, %v1977
    %v2054 = vcombine.high %v1979, %v1979
    %v2055 = vcombine.high %v1981, %v1981
    %v2056 = vcombine.high %v1983, %v1983
    %v2058 = vlaneseq
    %v2059 = vshrl.u32 %v2058, 7
    %v2060 = vsub.s32 0, %v2059
    %v2061 = vrot.slane %v214, %v2060
    %v2063 = vcombine.low %v1937, %v2033
    %v2064 = vcombine.low %v1938, %v1939
    %v2065 = vcombine.low %v2034, %v1940
    %v2066 = vcombine.low %v1941, %v2035
    %v2067 = vcombine.low %v1942, %v1943
    %v2068 = vcombine.low %v2036, %v1944
    %v2069 = vcombine.low %v1945, %v2037
    %v2070 = vcombine.low %v1946, %v1947
    %v2071 = vcombine.low %v2038, %v1948
    %v2072 = vcombine.low %v1949, %v2039
    %v2073 = vcombine.low %v1950, %v1951
    %v2074 = vcombine.low %v2040, %v1952
    %v2075 = vcombine.low %v1953, %v2041
    %v2076 = vcombine.low %v1954, %v1955
    %v2077 = vcombine.low %v2042, %v1956
    %v2078 = vcombine.low %v1957, %v2043
    %v2079 = vcombine.low %v1958, %v1959
    %v2080 = vcombine.low %v2044, %v1960
    %v2081 = vcombine.low %v1961, %v2045
    %v2082 = vcombine.low %v1962, %v1963
    %v2083 = vcombine.low %v2046, %v1964
    %v2084 = vcombine.low %v1965, %v2047
    %v2085 = vcombine.low %v1966, %v1967
    %v2086 = vcombine.low %v2048, %v1968
    %v2087 = vcombine.low %v1969, %v2049
    %v2088 = vcombine.low %v1970, %v1971
    %v2089 = vcombine.low %v2050, %v1972
    %v2090 = vcombine.low %v1973, %v2051
    %v2091 = vcombine.low %v1974, %v1975
    %v2092 = vcombine.low %v2052, %v1976
    %v2093 = vcombine.low %v1977, %v2053
    %v2094 = vcombine.low %v1978, %v1979
    %v2095 = vcombine.low %v2054, %v1980
    %v2096 = vcombine.low %v1981, %v2055
    %v2097 = vcombine.low %v1982, %v1983
    %v2098 = vcombine.low %v2056, %v1984
    %vm2099 = vcmask 220160
    %v2100 = vsel %vm2099, %v2063, 0
    %v2102 = vsel %vm2099, %v2064, 0
    %v2104 = vsel %vm2099, %v2065, 0
    %v2106 = vsel %vm2099, %v2066, 0
    %v2108 = vsel %vm2099, %v2067, 0
    %v2110 = vsel %vm2099, %v2068, 0
    %v2112 = vsel %vm2099, %v2069, 0
    %v2114 = vsel %vm2099, %v2070, 0
    %v2116 = vsel %vm2099, %v2071, 0
    %v2118 = vsel %vm2099, %v2072, 0
    %v2120 = vsel %vm2099, %v2073, 0
    %v2122 = vsel %vm2099, %v2074, 0
    %v2124 = vsel %vm2099, %v2075, 0
    %v2126 = vsel %vm2099, %v2076, 0
    %v2128 = vsel %vm2099, %v2077, 0
    %v2130 = vsel %vm2099, %v2078, 0
    %v2132 = vsel %vm2099, %v2079, 0
    %v2134 = vsel %vm2099, %v2080, 0
    %v2136 = vsel %vm2099, %v2081, 0
    %v2138 = vsel %vm2099, %v2082, 0
    %v2140 = vsel %vm2099, %v2083, 0
    %v2142 = vsel %vm2099, %v2084, 0
    %v2144 = vsel %vm2099, %v2085, 0
    %v2146 = vsel %vm2099, %v2086, 0
    %v2148 = vsel %vm2099, %v2087, 0
    %v2150 = vsel %vm2099, %v2088, 0
    %v2152 = vsel %vm2099, %v2089, 0
    %v2154 = vsel %vm2099, %v2090, 0
    %v2156 = vsel %vm2099, %v2091, 0
    %v2158 = vsel %vm2099, %v2092, 0
    %v2160 = vsel %vm2099, %v2093, 0
    %v2162 = vsel %vm2099, %v2094, 0
    %v2164 = vsel %vm2099, %v2095, 0
    %v2166 = vsel %vm2099, %v2096, 0
    %v2168 = vsel %vm2099, %v2097, 0
    %v2170 = vsel %vm2099, %v2098, 0
    %vm2172 = vcmask 1042432
    %v2174 = vsel %vm2172, %v213, 0
    %2176 = vmatprep.subr.mxu0 0.0
    %2177 = vmatpush1.msra.mxu0 0.0
    %2178 = vmatprep.subr.mxu0 0.0
    %2179 = vmatpush1.msra.mxu0 0.0
    %2180 = vmatprep.subr.mxu0 0.0
    %2181 = vmatpush1.msra.mxu0 0.0
    %2182 = vmatprep.subr.mxu0 0.0
    %2183 = vmatpush1.msra.mxu0 0.0
    %2184 = vmatprep.subr.mxu0 0.0
    %2185 = vmatpush1.msra.mxu0 0.0
    %2186 = vmatprep.subr.mxu0 0.0
    %2187 = vmatpush1.msra.mxu0 0.0
    %2188 = vmatprep.subr.mxu0 0.0
    %2189 = vmatpush1.msra.mxu0 0.0
    %2190 = vmatprep.subr.mxu0 0.0
    %2191 = vmatpush1.msra.mxu0 0.0
    %2192 = vmatprep.subr.mxu0 0.0
    %2193 = vmatpush1.msra.mxu0 0.0
    %2194 = vmatprep.subr.mxu0 0.0
    %2195 = vmatpush1.msra.mxu0 0.0
    %2196 = vmatprep.subr.mxu0 0.0
    %2197 = vmatpush1.msra.mxu0 0.0
    %2198 = vmatprep.subr.mxu0 0.0
    %2199 = vmatpush1.msra.mxu0 0.0
    %2200 = vmatprep.subr.mxu0 0.0
    %2201 = vmatpush1.msra.mxu0 %v2174
    %2202 = vmatprep.subr.mxu0 0.0
    %2203 = vmatpush1.msra.mxu0 %v212
    %2204 = vmatprep.subr.mxu0 0.0
    %2205 = vmatpush1.msra.mxu0 %v211
    %2206 = vmatprep.subr.mxu0 0.0
    %2207 = vmatpush1.msra.mxu0 %v210
    %2208 = vmatprep.subr.mxu0 0.0
    %2209 = vmatpush2.msra.mxu0 0.0
    %2210 = vmatprep.subr.mxu0 0.0
    %2211 = vmatpush2.msra.mxu0 0.0
    %2212 = vmatprep.subr.mxu0 0.0
    %2213 = vmatpush2.msra.mxu0 0.0
    %2214 = vmatprep.subr.mxu0 0.0
    %2215 = vmatpush2.msra.mxu0 0.0
    %2216 = vmatprep.subr.mxu0 0.0
    %2217 = vmatpush2.msra.mxu0 0.0
    %2218 = vmatprep.subr.mxu0 0.0
    %2219 = vmatpush2.msra.mxu0 0.0
    %2220 = vmatprep.subr.mxu0 0.0
    %2221 = vmatpush2.msra.mxu0 0.0
    %2222 = vmatprep.subr.mxu0 0.0
    %2223 = vmatpush2.msra.mxu0 0.0
    %2224 = vmatprep.subr.mxu0 0.0
    %2225 = vmatpush2.msra.mxu0 0.0
    %2226 = vmatprep.subr.mxu0 0.0
    %2227 = vmatpush2.msra.mxu0 0.0
    %2228 = vmatprep.subr.mxu0 0.0
    %2229 = vmatpush2.msra.mxu0 0.0
    %2230 = vmatprep.subr.mxu0 0.0
    %2231 = vmatpush2.msra.mxu0 0.0
    %2232 = vmatprep.subr.mxu0 0.0
    %2233 = vmatpush2.msra.mxu0 0.0
    %2234 = vmatprep.subr.mxu0 0.0
    %2235 = vmatpush2.msra.mxu0 0.0
    %2236 = vmatprep.subr.mxu0 0.0
    %2237 = vmatpush2.msra.mxu0 0.0
    %2238 = vmatprep.subr.mxu0 0.0
    %2239 = vmatpush2.msra.mxu0 0.0
    %2240 = vmatprep.mubr.f32.mxu0 0.0
    %2241 = vmatmul.mubr.f32.gmra.mxu0 %v2100
    %v2242 = vpop.f32.mrf.mxu0
    %v2243 = vadd.f32 %v2061, %v2242
    %v2244 = vpop.f32.mrf.mxu0
    %2245 = vmatprep.mubr.f32.mxu0 0.0
    %2246 = vmatmul.mubr.f32.gmra.mxu0 %v2102
    %v2247 = vpop.f32.mrf.mxu0
    %v2248 = vadd.f32 %v2061, %v2247
    %v2249 = vpop.f32.mrf.mxu0
    %2250 = vmatprep.mubr.f32.mxu0 0.0
    %2251 = vmatmul.mubr.f32.gmra.mxu0 %v2104
    %v2252 = vpop.f32.mrf.mxu0
    %v2253 = vadd.f32 %v2061, %v2252
    %v2254 = vpop.f32.mrf.mxu0
    %2255 = vmatprep.mubr.f32.mxu0 0.0
    %2256 = vmatmul.mubr.f32.gmra.mxu0 %v2106
    %v2257 = vpop.f32.mrf.mxu0
    %v2258 = vadd.f32 %v2061, %v2257
    %v2259 = vpop.f32.mrf.mxu0
    %2260 = vmatprep.mubr.f32.mxu0 0.0
    %2261 = vmatmul.mubr.f32.gmra.mxu0 %v2108
    %v2262 = vpop.f32.mrf.mxu0
    %v2263 = vadd.f32 %v2061, %v2262
    %v2264 = vpop.f32.mrf.mxu0
    %2265 = vmatprep.mubr.f32.mxu0 0.0
    %2266 = vmatmul.mubr.f32.gmra.mxu0 %v2110
    %v2267 = vpop.f32.mrf.mxu0
    %v2268 = vadd.f32 %v2061, %v2267
    %v2269 = vpop.f32.mrf.mxu0
    %2270 = vmatprep.mubr.f32.mxu0 0.0
    %2271 = vmatmul.mubr.f32.gmra.mxu0 %v2112
    %v2272 = vpop.f32.mrf.mxu0
    %v2273 = vadd.f32 %v2061, %v2272
    %v2274 = vpop.f32.mrf.mxu0
    %2275 = vmatprep.mubr.f32.mxu0 0.0
    %2276 = vmatmul.mubr.f32.gmra.mxu0 %v2114
    %v2277 = vpop.f32.mrf.mxu0
    %v2278 = vadd.f32 %v2061, %v2277
    %v2279 = vpop.f32.mrf.mxu0
    %2280 = vmatprep.mubr.f32.mxu0 0.0
    %2281 = vmatmul.mubr.f32.gmra.mxu0 %v2116
    %v2282 = vpop.f32.mrf.mxu0
    %v2283 = vadd.f32 %v2061, %v2282
    %v2284 = vpop.f32.mrf.mxu0
    %2285 = vmatprep.mubr.f32.mxu0 0.0
    %2286 = vmatmul.mubr.f32.gmra.mxu0 %v2118
    %v2287 = vpop.f32.mrf.mxu0
    %v2288 = vadd.f32 %v2061, %v2287
    %v2289 = vpop.f32.mrf.mxu0
    %2290 = vmatprep.mubr.f32.mxu0 0.0
    %2291 = vmatmul.mubr.f32.gmra.mxu0 %v2120
    %v2292 = vpop.f32.mrf.mxu0
    %v2293 = vadd.f32 %v2061, %v2292
    %v2294 = vpop.f32.mrf.mxu0
    %2295 = vmatprep.mubr.f32.mxu0 0.0
    %2296 = vmatmul.mubr.f32.gmra.mxu0 %v2122
    %v2297 = vpop.f32.mrf.mxu0
    %v2298 = vadd.f32 %v2061, %v2297
    %v2299 = vpop.f32.mrf.mxu0
    %2300 = vmatprep.mubr.f32.mxu0 0.0
    %2301 = vmatmul.mubr.f32.gmra.mxu0 %v2124
    %v2302 = vpop.f32.mrf.mxu0
    %v2303 = vadd.f32 %v2061, %v2302
    %v2304 = vpop.f32.mrf.mxu0
    %2305 = vmatprep.mubr.f32.mxu0 0.0
    %2306 = vmatmul.mubr.f32.gmra.mxu0 %v2126
    %v2307 = vpop.f32.mrf.mxu0
    %v2308 = vadd.f32 %v2061, %v2307
    %v2309 = vpop.f32.mrf.mxu0
    %2310 = vmatprep.mubr.f32.mxu0 0.0
    %2311 = vmatmul.mubr.f32.gmra.mxu0 %v2128
    %v2312 = vpop.f32.mrf.mxu0
    %v2313 = vadd.f32 %v2061, %v2312
    %v2314 = vpop.f32.mrf.mxu0
    %2315 = vmatprep.mubr.f32.mxu0 0.0
    %2316 = vmatmul.mubr.f32.gmra.mxu0 %v2130
    %v2317 = vpop.f32.mrf.mxu0
    %v2318 = vadd.f32 %v2061, %v2317
    %v2319 = vpop.f32.mrf.mxu0
    %2320 = vmatprep.mubr.f32.mxu0 0.0
    %2321 = vmatmul.mubr.f32.gmra.mxu0 %v2132
    %v2322 = vpop.f32.mrf.mxu0
    %v2323 = vadd.f32 %v2061, %v2322
    %v2324 = vpop.f32.mrf.mxu0
    %2325 = vmatprep.mubr.f32.mxu0 0.0
    %2326 = vmatmul.mubr.f32.gmra.mxu0 %v2134
    %v2327 = vpop.f32.mrf.mxu0
    %v2328 = vadd.f32 %v2061, %v2327
    %v2329 = vpop.f32.mrf.mxu0
    %2330 = vmatprep.mubr.f32.mxu0 0.0
    %2331 = vmatmul.mubr.f32.gmra.mxu0 %v2136
    %v2332 = vpop.f32.mrf.mxu0
    %v2333 = vadd.f32 %v2061, %v2332
    %v2334 = vpop.f32.mrf.mxu0
    %2335 = vmatprep.mubr.f32.mxu0 0.0
    %2336 = vmatmul.mubr.f32.gmra.mxu0 %v2138
    %v2337 = vpop.f32.mrf.mxu0
    %v2338 = vadd.f32 %v2061, %v2337
    %v2339 = vpop.f32.mrf.mxu0
    %2340 = vmatprep.mubr.f32.mxu0 0.0
    %2341 = vmatmul.mubr.f32.gmra.mxu0 %v2140
    %v2342 = vpop.f32.mrf.mxu0
    %v2343 = vadd.f32 %v2061, %v2342
    %v2344 = vpop.f32.mrf.mxu0
    %2345 = vmatprep.mubr.f32.mxu0 0.0
    %2346 = vmatmul.mubr.f32.gmra.mxu0 %v2142
    %v2347 = vpop.f32.mrf.mxu0
    %v2348 = vadd.f32 %v2061, %v2347
    %v2349 = vpop.f32.mrf.mxu0
    %2350 = vmatprep.mubr.f32.mxu0 0.0
    %2351 = vmatmul.mubr.f32.gmra.mxu0 %v2144
    %v2352 = vpop.f32.mrf.mxu0
    %v2353 = vadd.f32 %v2061, %v2352
    %v2354 = vpop.f32.mrf.mxu0
    %2355 = vmatprep.mubr.f32.mxu0 0.0
    %2356 = vmatmul.mubr.f32.gmra.mxu0 %v2146
    %v2357 = vpop.f32.mrf.mxu0
    %v2358 = vadd.f32 %v2061, %v2357
    %v2359 = vpop.f32.mrf.mxu0
    %2360 = vmatprep.mubr.f32.mxu0 0.0
    %2361 = vmatmul.mubr.f32.gmra.mxu0 %v2148
    %v2362 = vpop.f32.mrf.mxu0
    %v2363 = vadd.f32 %v2061, %v2362
    %v2364 = vpop.f32.mrf.mxu0
    %2365 = vmatprep.mubr.f32.mxu0 0.0
    %2366 = vmatmul.mubr.f32.gmra.mxu0 %v2150
    %v2367 = vpop.f32.mrf.mxu0
    %v2368 = vadd.f32 %v2061, %v2367
    %v2369 = vpop.f32.mrf.mxu0
    %2370 = vmatprep.mubr.f32.mxu0 0.0
    %2371 = vmatmul.mubr.f32.gmra.mxu0 %v2152
    %v2372 = vpop.f32.mrf.mxu0
    %v2373 = vadd.f32 %v2061, %v2372
    %v2374 = vpop.f32.mrf.mxu0
    %2375 = vmatprep.mubr.f32.mxu0 0.0
    %2376 = vmatmul.mubr.f32.gmra.mxu0 %v2154
    %v2377 = vpop.f32.mrf.mxu0
    %v2378 = vadd.f32 %v2061, %v2377
    %v2379 = vpop.f32.mrf.mxu0
    %2380 = vmatprep.mubr.f32.mxu0 0.0
    %2381 = vmatmul.mubr.f32.gmra.mxu0 %v2156
    %v2382 = vpop.f32.mrf.mxu0
    %v2383 = vadd.f32 %v2061, %v2382
    %v2384 = vpop.f32.mrf.mxu0
    %2385 = vmatprep.mubr.f32.mxu0 0.0
    %2386 = vmatmul.mubr.f32.gmra.mxu0 %v2158
    %v2387 = vpop.f32.mrf.mxu0
    %v2388 = vadd.f32 %v2061, %v2387
    %v2389 = vpop.f32.mrf.mxu0
    %2390 = vmatprep.mubr.f32.mxu0 0.0
    %2391 = vmatmul.mubr.f32.gmra.mxu0 %v2160
    %v2392 = vpop.f32.mrf.mxu0
    %v2393 = vadd.f32 %v2061, %v2392
    %v2394 = vpop.f32.mrf.mxu0
    %2395 = vmatprep.mubr.f32.mxu0 0.0
    %2396 = vmatmul.mubr.f32.gmra.mxu0 %v2162
    %v2397 = vpop.f32.mrf.mxu0
    %v2398 = vadd.f32 %v2061, %v2397
    %v2399 = vpop.f32.mrf.mxu0
    %2400 = vmatprep.mubr.f32.mxu0 0.0
    %2401 = vmatmul.mubr.f32.gmra.mxu0 %v2164
    %v2402 = vpop.f32.mrf.mxu0
    %v2403 = vadd.f32 %v2061, %v2402
    %v2404 = vpop.f32.mrf.mxu0
    %2405 = vmatprep.mubr.f32.mxu0 0.0
    %2406 = vmatmul.mubr.f32.gmra.mxu0 %v2166
    %v2407 = vpop.f32.mrf.mxu0
    %v2408 = vadd.f32 %v2061, %v2407
    %v2409 = vpop.f32.mrf.mxu0
    %2410 = vmatprep.mubr.f32.mxu0 0.0
    %2411 = vmatmul.mubr.f32.gmra.mxu0 %v2168
    %v2412 = vpop.f32.mrf.mxu0
    %v2413 = vadd.f32 %v2061, %v2412
    %v2414 = vpop.f32.mrf.mxu0
    %2415 = vmatprep.mubr.f32.mxu0 0.0
    %2416 = vmatmul.mubr.f32.gmra.mxu0 %v2170
    %v2417 = vpop.f32.mrf.mxu0
    %v2418 = vadd.f32 %v2061, %v2417
    %v2419 = vpop.f32.mrf.mxu0
    %2420 = vdwg.mxu0
    %v2421 = vmax.f32 %v2243, 0.0
    %v2422 = vmax.f32 %v2248, 0.0
    %v2423 = vmax.f32 %v2253, 0.0
    %v2424 = vmax.f32 %v2258, 0.0
    %v2425 = vmax.f32 %v2263, 0.0
    %v2426 = vmax.f32 %v2268, 0.0
    %v2427 = vmax.f32 %v2273, 0.0
    %v2428 = vmax.f32 %v2278, 0.0
    %v2429 = vmax.f32 %v2283, 0.0
    %v2430 = vmax.f32 %v2288, 0.0
    %v2431 = vmax.f32 %v2293, 0.0
    %v2432 = vmax.f32 %v2298, 0.0
    %v2433 = vmax.f32 %v2303, 0.0
    %v2434 = vmax.f32 %v2308, 0.0
    %v2435 = vmax.f32 %v2313, 0.0
    %v2436 = vmax.f32 %v2318, 0.0
    %v2437 = vmax.f32 %v2323, 0.0
    %v2438 = vmax.f32 %v2328, 0.0
    %v2439 = vmax.f32 %v2333, 0.0
    %v2440 = vmax.f32 %v2338, 0.0
    %v2441 = vmax.f32 %v2343, 0.0
    %v2442 = vmax.f32 %v2348, 0.0
    %v2443 = vmax.f32 %v2353, 0.0
    %v2444 = vmax.f32 %v2358, 0.0
    %v2445 = vmax.f32 %v2363, 0.0
    %v2446 = vmax.f32 %v2368, 0.0
    %v2447 = vmax.f32 %v2373, 0.0
    %v2448 = vmax.f32 %v2378, 0.0
    %v2449 = vmax.f32 %v2383, 0.0
    %v2450 = vmax.f32 %v2388, 0.0
    %v2451 = vmax.f32 %v2393, 0.0
    %v2452 = vmax.f32 %v2398, 0.0
    %v2453 = vmax.f32 %v2403, 0.0
    %v2454 = vmax.f32 %v2408, 0.0
    %v2455 = vmax.f32 %v2413, 0.0
    %v2456 = vmax.f32 %v2418, 0.0
    %vm2457 = vcmask 261120
    %2458 = vst.msk [vmem:[#allocation2] sm:$0xff] %vm2457, 0.0
    %vm2459 = vcmask 259072
    %2460 = vst.msk [vmem:[#allocation2 + $0x8] sm:$0x3f] %vm2459, 0.0
    %2461 = vst.msk [vmem:[#allocation2 + $0x10] sm:$0xff] %vm2457, 0.0
    %2462 = vst.msk [vmem:[#allocation2 + $0x18] sm:$0x3f] %vm2459, 0.0
    %2463 = vst.msk [vmem:[#allocation2 + $0x20] sm:$0xff] %vm2457, 0.0
    %2464 = vst.msk [vmem:[#allocation2 + $0x28] sm:$0x3f] %vm2459, 0.0
    %2465 = vst.msk [vmem:[#allocation2 + $0x30] sm:$0xff] %vm2457, 0.0
    %2466 = vst.msk [vmem:[#allocation2 + $0x38] sm:$0x3f] %vm2459, 0.0
    %2467 = vst.msk [vmem:[#allocation2 + $0x40] sm:$0xff] %vm2457, 0.0
    %2468 = vst.msk [vmem:[#allocation2 + $0x48] sm:$0x3f] %vm2459, 0.0
    %2469 = vst.msk [vmem:[#allocation2 + $0x50] sm:$0xff] %vm2457, 0.0
    %2470 = vst.msk [vmem:[#allocation2 + $0x58] sm:$0x3f] %vm2459, 0.0
    %2471 = vst.msk [vmem:[#allocation2 + $0x60] sm:$0xff] %vm2457, 0.0
    %2472 = vst.msk [vmem:[#allocation2 + $0x68] sm:$0x3f] %vm2459, 0.0
    %2473 = vst.msk [vmem:[#allocation2 + $0x70] sm:$0xff] %vm2457, 0.0
    %2474 = vst.msk [vmem:[#allocation2 + $0x78] sm:$0x3f] %vm2459, 0.0
    %2475 = vst.msk [vmem:[#allocation2 + $0x80] sm:$0xff] %vm2457, 0.0
    %2476 = vst.msk [vmem:[#allocation2 + $0x88] sm:$0x3f] %vm2459, 0.0
    %2477 = vst.msk [vmem:[#allocation2 + $0x90] sm:$0xff] %vm2457, 0.0
    %2478 = vst.msk [vmem:[#allocation2 + $0x98] sm:$0x3f] %vm2459, 0.0
    %2479 = vst.msk [vmem:[#allocation2 + $0xa0] sm:$0xff] %vm2457, 0.0
    %2480 = vst.msk [vmem:[#allocation2 + $0xa8] sm:$0x3f] %vm2459, 0.0
    %2481 = vst.msk [vmem:[#allocation2 + $0xb0] sm:$0xff] %vm2457, 0.0
    %2482 = vst.msk [vmem:[#allocation2 + $0xb8] sm:$0x3f] %vm2459, 0.0
    %2483 = vst.msk [vmem:[#allocation2 + $0xc0] sm:$0xff] %vm2457, 0.0
    %2484 = vst.msk [vmem:[#allocation2 + $0xc8] sm:$0x3f] %vm2459, 0.0
    %2485 = vst.msk [vmem:[#allocation2 + $0xd0] sm:$0xff] %vm2457, 0.0
    %2486 = vst.msk [vmem:[#allocation2 + $0xd8] sm:$0x3f] %vm2459, 0.0
    %2487 = vst.msk [vmem:[#allocation2 + $0xe0] sm:$0xff] %vm2457, 0.0
    %2488 = vst.msk [vmem:[#allocation2 + $0xe8] sm:$0x3f] %vm2459, 0.0
    %2489 = vst.msk [vmem:[#allocation2 + $0xf0] sm:$0xff] %vm2457, 0.0
    %2490 = vst.msk [vmem:[#allocation2 + $0xf8] sm:$0x3f] %vm2459, 0.0
    %2491 = vst.msk [vmem:[#allocation2 + $0x100] sm:$0xff] %vm2457, 0.0
    %2492 = vst.msk [vmem:[#allocation2 + $0x108] sm:$0x3f] %vm2459, 0.0
    %2493 = vst.msk [vmem:[#allocation2 + $0x110] sm:$0xff] %vm2457, 0.0
    %2494 = vst.msk [vmem:[#allocation2 + $0x118] sm:$0x3f] %vm2459, 0.0
    %2495 = vst.msk [vmem:[#allocation2 + $0x120] sm:$0xff] %vm2457, 0.0
    %2496 = vst.msk [vmem:[#allocation2 + $0x128] sm:$0x3f] %vm2459, 0.0
    %2497 = vst.msk [vmem:[#allocation2 + $0x130] sm:$0xff] %vm2457, 0.0
    %2498 = vst.msk [vmem:[#allocation2 + $0x138] sm:$0x3f] %vm2459, 0.0
    %2499 = vst.msk [vmem:[#allocation2 + $0x140] sm:$0xff] %vm2457, 0.0
    %2500 = vst.msk [vmem:[#allocation2 + $0x148] sm:$0x3f] %vm2459, 0.0
    %2501 = vst.msk [vmem:[#allocation2 + $0x150] sm:$0xff] %vm2457, 0.0
    %2502 = vst.msk [vmem:[#allocation2 + $0x158] sm:$0x3f] %vm2459, 0.0
    %2503 = vst.msk [vmem:[#allocation2 + $0x160] sm:$0xff] %vm2457, 0.0
    %2504 = vst.msk [vmem:[#allocation2 + $0x168] sm:$0x3f] %vm2459, 0.0
    %2505 = vst.msk [vmem:[#allocation2 + $0x170] sm:$0xff] %vm2457, 0.0
    %2506 = vst.msk [vmem:[#allocation2 + $0x178] sm:$0x3f] %vm2459, 0.0
    %2507 = vst.msk [vmem:[#allocation2 + $0x180] sm:$0xff] %vm2457, 0.0
    %2508 = vst.msk [vmem:[#allocation2 + $0x188] sm:$0x3f] %vm2459, 0.0
    %2509 = vst.msk [vmem:[#allocation2 + $0x190] sm:$0xff] %vm2457, 0.0
    %2510 = vst.msk [vmem:[#allocation2 + $0x198] sm:$0x3f] %vm2459, 0.0
    %2511 = vst.msk [vmem:[#allocation2 + $0x1a0] sm:$0xff] %vm2457, 0.0
    %2512 = vst.msk [vmem:[#allocation2 + $0x1a8] sm:$0x3f] %vm2459, 0.0
    %2513 = vst.msk [vmem:[#allocation2 + $0x1b0] sm:$0xff] %vm2457, 0.0
    %2514 = vst.msk [vmem:[#allocation2 + $0x1b8] sm:$0x3f] %vm2459, 0.0
    %v2551 = vcombine.high %v2421, %v2421
    %v2552 = vcombine.high %v2422, %v2422
    %v2553 = vcombine.high %v2423, %v2423
    %v2554 = vcombine.high %v2424, %v2424
    %v2555 = vcombine.high %v2425, %v2425
    %v2556 = vcombine.high %v2426, %v2426
    %v2557 = vcombine.high %v2427, %v2427
    %v2558 = vcombine.high %v2428, %v2428
    %v2559 = vcombine.high %v2429, %v2429
    %v2560 = vcombine.high %v2430, %v2430
    %v2561 = vcombine.high %v2431, %v2431
    %v2562 = vcombine.high %v2432, %v2432
    %v2563 = vcombine.high %v2433, %v2433
    %v2564 = vcombine.high %v2434, %v2434
    %v2565 = vcombine.high %v2435, %v2435
    %v2566 = vcombine.high %v2436, %v2436
    %v2567 = vcombine.high %v2437, %v2437
    %v2568 = vcombine.high %v2438, %v2438
    %v2569 = vcombine.high %v2439, %v2439
    %v2570 = vcombine.high %v2440, %v2440
    %v2571 = vcombine.high %v2441, %v2441
    %v2572 = vcombine.high %v2442, %v2442
    %v2573 = vcombine.high %v2443, %v2443
    %v2574 = vcombine.high %v2444, %v2444
    %v2575 = vcombine.high %v2445, %v2445
    %v2576 = vcombine.high %v2446, %v2446
    %v2577 = vcombine.high %v2447, %v2447
    %v2578 = vcombine.high %v2448, %v2448
    %v2579 = vcombine.high %v2449, %v2449
    %v2580 = vcombine.high %v2450, %v2450
    %v2581 = vcombine.high %v2451, %v2451
    %v2582 = vcombine.high %v2452, %v2452
    %v2583 = vcombine.high %v2453, %v2453
    %v2584 = vcombine.high %v2454, %v2454
    %v2585 = vcombine.high %v2455, %v2455
    %v2586 = vcombine.high %v2456, %v2456
    %v2599 = vcombine.low %v2421, %v2551
    %v2600 = vcombine.low %v2552, %v2423
    %v2601 = vcombine.low %v2424, %v2554
    %v2602 = vcombine.low %v2555, %v2426
    %v2603 = vcombine.low %v2427, %v2557
    %v2604 = vcombine.low %v2558, %v2429
    %v2605 = vcombine.low %v2430, %v2560
    %v2606 = vcombine.low %v2561, %v2432
    %v2607 = vcombine.low %v2433, %v2563
    %v2608 = vcombine.low %v2564, %v2435
    %v2609 = vcombine.low %v2436, %v2566
    %v2610 = vcombine.low %v2567, %v2438
    %v2611 = vcombine.low %v2439, %v2569
    %v2612 = vcombine.low %v2570, %v2441
    %v2613 = vcombine.low %v2442, %v2572
    %v2614 = vcombine.low %v2573, %v2444
    %v2615 = vcombine.low %v2445, %v2575
    %v2616 = vcombine.low %v2576, %v2447
    %v2617 = vcombine.low %v2448, %v2578
    %v2618 = vcombine.low %v2579, %v2450
    %v2619 = vcombine.low %v2451, %v2581
    %v2620 = vcombine.low %v2582, %v2453
    %v2621 = vcombine.low %v2454, %v2584
    %v2622 = vcombine.low %v2585, %v2456
    %s2647 = scalar_lea.vmem [#allocation2], 16
    %2648 = vst.msk [vmem:[%s2647 + $0x1] sm:$0xff] %vm2457, %v2599
    %vm2649 = vcmask 257024
    %2650 = vst.msk [vmem:[%s2647 + $0x9] sm:$0xf] %vm2649, %v2422
    %2651 = vst.msk [vmem:[%s2647 + $0x11] sm:$0xff] %vm2457, %v2600
    %2652 = vst.msk [vmem:[%s2647 + $0x19] sm:$0xf] %vm2649, %v2553
    %2653 = vst.msk [vmem:[%s2647 + $0x21] sm:$0xff] %vm2457, %v2601
    %2654 = vst.msk [vmem:[%s2647 + $0x29] sm:$0xf] %vm2649, %v2425
    %2655 = vst.msk [vmem:[%s2647 + $0x31] sm:$0xff] %vm2457, %v2602
    %2656 = vst.msk [vmem:[%s2647 + $0x39] sm:$0xf] %vm2649, %v2556
    %2657 = vst.msk [vmem:[%s2647 + $0x41] sm:$0xff] %vm2457, %v2603
    %2658 = vst.msk [vmem:[%s2647 + $0x49] sm:$0xf] %vm2649, %v2428
    %2659 = vst.msk [vmem:[%s2647 + $0x51] sm:$0xff] %vm2457, %v2604
    %2660 = vst.msk [vmem:[%s2647 + $0x59] sm:$0xf] %vm2649, %v2559
    %2661 = vst.msk [vmem:[%s2647 + $0x61] sm:$0xff] %vm2457, %v2605
    %2662 = vst.msk [vmem:[%s2647 + $0x69] sm:$0xf] %vm2649, %v2431
    %2663 = vst.msk [vmem:[%s2647 + $0x71] sm:$0xff] %vm2457, %v2606
    %2664 = vst.msk [vmem:[%s2647 + $0x79] sm:$0xf] %vm2649, %v2562
    %2665 = vst.msk [vmem:[%s2647 + $0x81] sm:$0xff] %vm2457, %v2607
    %2666 = vst.msk [vmem:[%s2647 + $0x89] sm:$0xf] %vm2649, %v2434
    %2667 = vst.msk [vmem:[%s2647 + $0x91] sm:$0xff] %vm2457, %v2608
    %2668 = vst.msk [vmem:[%s2647 + $0x99] sm:$0xf] %vm2649, %v2565
    %2669 = vst.msk [vmem:[%s2647 + $0xa1] sm:$0xff] %vm2457, %v2609
    %2670 = vst.msk [vmem:[%s2647 + $0xa9] sm:$0xf] %vm2649, %v2437
    %2671 = vst.msk [vmem:[%s2647 + $0xb1] sm:$0xff] %vm2457, %v2610
    %2672 = vst.msk [vmem:[%s2647 + $0xb9] sm:$0xf] %vm2649, %v2568
    %2673 = vst.msk [vmem:[%s2647 + $0xe1] sm:$0xff] %vm2457, %v2611
    %2674 = vst.msk [vmem:[%s2647 + $0xe9] sm:$0xf] %vm2649, %v2440
    %2675 = vst.msk [vmem:[%s2647 + $0xf1] sm:$0xff] %vm2457, %v2612
    %2676 = vst.msk [vmem:[%s2647 + $0xf9] sm:$0xf] %vm2649, %v2571
    %2677 = vst.msk [vmem:[%s2647 + $0x101] sm:$0xff] %vm2457, %v2613
    %2678 = vst.msk [vmem:[%s2647 + $0x109] sm:$0xf] %vm2649, %v2443
    %2679 = vst.msk [vmem:[%s2647 + $0x111] sm:$0xff] %vm2457, %v2614
    %2680 = vst.msk [vmem:[%s2647 + $0x119] sm:$0xf] %vm2649, %v2574
    %2681 = vst.msk [vmem:[%s2647 + $0x121] sm:$0xff] %vm2457, %v2615
    %2682 = vst.msk [vmem:[%s2647 + $0x129] sm:$0xf] %vm2649, %v2446
    %2683 = vst.msk [vmem:[%s2647 + $0x131] sm:$0xff] %vm2457, %v2616
    %2684 = vst.msk [vmem:[%s2647 + $0x139] sm:$0xf] %vm2649, %v2577
    %2685 = vst.msk [vmem:[%s2647 + $0x141] sm:$0xff] %vm2457, %v2617
    %2686 = vst.msk [vmem:[%s2647 + $0x149] sm:$0xf] %vm2649, %v2449
    %2687 = vst.msk [vmem:[%s2647 + $0x151] sm:$0xff] %vm2457, %v2618
    %2688 = vst.msk [vmem:[%s2647 + $0x159] sm:$0xf] %vm2649, %v2580
    %2689 = vst.msk [vmem:[%s2647 + $0x161] sm:$0xff] %vm2457, %v2619
    %2690 = vst.msk [vmem:[%s2647 + $0x169] sm:$0xf] %vm2649, %v2452
    %2691 = vst.msk [vmem:[%s2647 + $0x171] sm:$0xff] %vm2457, %v2620
    %2692 = vst.msk [vmem:[%s2647 + $0x179] sm:$0xf] %vm2649, %v2583
    %2693 = vst.msk [vmem:[%s2647 + $0x181] sm:$0xff] %vm2457, %v2621
    %2694 = vst.msk [vmem:[%s2647 + $0x189] sm:$0xf] %vm2649, %v2455
    %2695 = vst.msk [vmem:[%s2647 + $0x191] sm:$0xff] %vm2457, %v2622
    %2696 = vst.msk [vmem:[%s2647 + $0x199] sm:$0xf] %vm2649, %v2586
    %v2697 = vld [vmem:[#allocation2] sm:$0xff]
    %v2698 = vld [vmem:[#allocation2 + $0x8] sm:$0x3f]
    %v2699 = vld [vmem:[#allocation2 + $0x10] sm:$0xff]
    %v2700 = vld [vmem:[#allocation2 + $0x18] sm:$0x3f]
    %v2701 = vld [vmem:[#allocation2 + $0x20] sm:$0xff]
    %v2702 = vld [vmem:[#allocation2 + $0x28] sm:$0x3f]
    %v2703 = vld [vmem:[#allocation2 + $0x30] sm:$0xff]
    %v2704 = vld [vmem:[#allocation2 + $0x38] sm:$0x3f]
    %v2705 = vld [vmem:[#allocation2 + $0x40] sm:$0xff]
    %v2706 = vld [vmem:[#allocation2 + $0x48] sm:$0x3f]
    %v2707 = vld [vmem:[#allocation2 + $0x50] sm:$0xff]
    %v2708 = vld [vmem:[#allocation2 + $0x58] sm:$0x3f]
    %v2709 = vld [vmem:[#allocation2 + $0x60] sm:$0xff]
    %v2710 = vld [vmem:[#allocation2 + $0x68] sm:$0x3f]
    %v2711 = vld [vmem:[#allocation2 + $0x70] sm:$0xff]
    %v2712 = vld [vmem:[#allocation2 + $0x78] sm:$0x3f]
    %v2713 = vld [vmem:[#allocation2 + $0x80] sm:$0xff]
    %v2714 = vld [vmem:[#allocation2 + $0x88] sm:$0x3f]
    %v2715 = vld [vmem:[#allocation2 + $0x90] sm:$0xff]
    %v2716 = vld [vmem:[#allocation2 + $0x98] sm:$0x3f]
    %v2717 = vld [vmem:[#allocation2 + $0xa0] sm:$0xff]
    %v2718 = vld [vmem:[#allocation2 + $0xa8] sm:$0x3f]
    %v2719 = vld [vmem:[#allocation2 + $0xb0] sm:$0xff]
    %v2720 = vld [vmem:[#allocation2 + $0xb8] sm:$0x3f]
    %v2721 = vld [vmem:[#allocation2 + $0xc0] sm:$0xff]
    %v2722 = vld [vmem:[#allocation2 + $0xc8] sm:$0x3f]
    %v2723 = vld [vmem:[#allocation2 + $0xd0] sm:$0xff]
    %v2724 = vld [vmem:[#allocation2 + $0xd8] sm:$0x3f]
    %v2725 = vld [vmem:[#allocation2 + $0xe0] sm:$0xff]
    %v2726 = vld [vmem:[#allocation2 + $0xe8] sm:$0x3f]
    %v2727 = vld [vmem:[#allocation2 + $0xf0] sm:$0xff]
    %v2728 = vld [vmem:[#allocation2 + $0xf8] sm:$0x3f]
    %v2729 = vld [vmem:[#allocation2 + $0x100] sm:$0xff]
    %v2730 = vld [vmem:[#allocation2 + $0x108] sm:$0x3f]
    %v2731 = vld [vmem:[#allocation2 + $0x110] sm:$0xff]
    %v2732 = vld [vmem:[#allocation2 + $0x118] sm:$0x3f]
    %v2733 = vld [vmem:[#allocation2 + $0x120] sm:$0xff]
    %v2734 = vld [vmem:[#allocation2 + $0x128] sm:$0x3f]
    %v2735 = vld [vmem:[#allocation2 + $0x130] sm:$0xff]
    %v2736 = vld [vmem:[#allocation2 + $0x138] sm:$0x3f]
    %v2737 = vld [vmem:[#allocation2 + $0x140] sm:$0xff]
    %v2738 = vld [vmem:[#allocation2 + $0x148] sm:$0x3f]
    %v2739 = vld [vmem:[#allocation2 + $0x150] sm:$0xff]
    %v2740 = vld [vmem:[#allocation2 + $0x158] sm:$0x3f]
    %v2741 = vld [vmem:[#allocation2 + $0x160] sm:$0xff]
    %v2742 = vld [vmem:[#allocation2 + $0x168] sm:$0x3f]
    %v2743 = vld [vmem:[#allocation2 + $0x170] sm:$0xff]
    %v2744 = vld [vmem:[#allocation2 + $0x178] sm:$0x3f]
    %v2745 = vld [vmem:[#allocation2 + $0x180] sm:$0xff]
    %v2746 = vld [vmem:[#allocation2 + $0x188] sm:$0x3f]
    %v2747 = vld [vmem:[#allocation2 + $0x190] sm:$0xff]
    %v2748 = vld [vmem:[#allocation2 + $0x198] sm:$0x3f]
    %v2749 = vld [vmem:[#allocation2 + $0x1a0] sm:$0xff]
    %v2750 = vld [vmem:[#allocation2 + $0x1a8] sm:$0x3f]
    %v2751 = vld [vmem:[#allocation2 + $0x1b0] sm:$0xff]
    %v2752 = vld [vmem:[#allocation2 + $0x1b8] sm:$0x3f]
    %v2753 = vld [vmem:[%s3] sm:$0xff]
    %v2754 = vld [vmem:[%s3 + $0x8] sm:$0xff]
    %v2755 = vld [vmem:[%s3 + $0x10] sm:$0xff]
    %v2756 = vld [vmem:[%s3 + $0x18] sm:$0xff]
    %v2757 = vld [vmem:[%s3 + $0x20] sm:$0xff]
    %v2758 = vld [vmem:[%s3 + $0x28] sm:$0xff]
    %v2759 = vld [vmem:[%s3 + $0x30] sm:$0xff]
    %v2760 = vld [vmem:[%s3 + $0x38] sm:$0xff]
    %v2761 = vld [vmem:[%s3 + $0x40] sm:$0xff]
    %v2762 = vld [vmem:[%s3 + $0x48] sm:$0xff]
    %v2763 = vld [vmem:[%s3 + $0x50] sm:$0xff]
    %v2764 = vld [vmem:[%s3 + $0x58] sm:$0xff]
    %v2765 = vld [vmem:[%s3 + $0x60] sm:$0xff]
    %v2766 = vld [vmem:[%s3 + $0x68] sm:$0xff]
    %v2767 = vld [vmem:[%s3 + $0x70] sm:$0xff]
    %v2768 = vld [vmem:[%s3 + $0x78] sm:$0xff]
    %v2769 = vld [vmem:[%s3 + $0x80] sm:$0xff]
    %v2770 = vld [vmem:[%s3 + $0x88] sm:$0xff]
    %v2771 = vld [vmem:[%s3 + $0x90] sm:$0xff]
    %v2772 = vld [vmem:[%s3 + $0x98] sm:$0xff]
    %v2773 = vld [vmem:[%s3 + $0xa0] sm:$0xff]
    %v2774 = vld [vmem:[%s3 + $0xa8] sm:$0xff]
    %v2775 = vld [vmem:[%s3 + $0xb0] sm:$0xff]
    %v2776 = vld [vmem:[%s3 + $0xb8] sm:$0xff]
    %v2777 = vld [vmem:[%s3 + $0xc0] sm:$0xff]
    %v2778 = vld [vmem:[%s3 + $0xc8] sm:$0xff]
    %v2779 = vld [vmem:[%s3 + $0xd0] sm:$0xff]
    %v2780 = vld [vmem:[%s3 + $0xd8] sm:$0xff]
    %v2781 = vld [vmem:[%s3 + $0xe0] sm:$0xff]
    %v2782 = vld [vmem:[%s3 + $0xe8] sm:$0xff]
    %v2783 = vld [vmem:[%s3 + $0xf0] sm:$0xff]
    %v2784 = vld [vmem:[%s3 + $0xf8] sm:$0xff]
    %v2785 = vld [vmem:[%s3 + $0x100] sm:$0xff]
    %v2786 = vld [vmem:[%s3 + $0x108] sm:$0xff]
    %v2787 = vld [vmem:[%s3 + $0x110] sm:$0xff]
    %v2788 = vld [vmem:[%s3 + $0x118] sm:$0xff]
    %v2789 = vld [vmem:[#allocation9] sm:$0x1]
    %v2838 = vrot.slane %v2697, 1
    %v2839 = vrot.slane %v2698, 1
    %v2840 = vsel %vm263, %v2838, %v2839
    %v2841 = vrot.slane %v2699, 1
    %v2842 = vrot.slane %v2700, 1
    %v2843 = vsel %vm263, %v2841, %v2842
    %v2844 = vrot.slane %v2701, 1
    %v2845 = vrot.slane %v2702, 1
    %v2846 = vsel %vm263, %v2844, %v2845
    %v2847 = vrot.slane %v2703, 1
    %v2848 = vrot.slane %v2704, 1
    %v2849 = vsel %vm263, %v2847, %v2848
    %v2850 = vrot.slane %v2705, 1
    %v2851 = vrot.slane %v2706, 1
    %v2852 = vsel %vm263, %v2850, %v2851
    %v2853 = vrot.slane %v2707, 1
    %v2854 = vrot.slane %v2708, 1
    %v2855 = vsel %vm263, %v2853, %v2854
    %v2856 = vrot.slane %v2709, 1
    %v2857 = vrot.slane %v2710, 1
    %v2858 = vsel %vm263, %v2856, %v2857
    %v2859 = vrot.slane %v2711, 1
    %v2860 = vrot.slane %v2712, 1
    %v2861 = vsel %vm263, %v2859, %v2860
    %v2862 = vrot.slane %v2713, 1
    %v2863 = vrot.slane %v2714, 1
    %v2864 = vsel %vm263, %v2862, %v2863
    %v2865 = vrot.slane %v2715, 1
    %v2866 = vrot.slane %v2716, 1
    %v2867 = vsel %vm263, %v2865, %v2866
    %v2868 = vrot.slane %v2717, 1
    %v2869 = vrot.slane %v2718, 1
    %v2870 = vsel %vm263, %v2868, %v2869
    %v2871 = vrot.slane %v2719, 1
    %v2872 = vrot.slane %v2720, 1
    %v2873 = vsel %vm263, %v2871, %v2872
    %v2874 = vrot.slane %v2725, 1
    %v2875 = vrot.slane %v2726, 1
    %v2876 = vsel %vm263, %v2874, %v2875
    %v2877 = vrot.slane %v2727, 1
    %v2878 = vrot.slane %v2728, 1
    %v2879 = vsel %vm263, %v2877, %v2878
    %v2880 = vrot.slane %v2729, 1
    %v2881 = vrot.slane %v2730, 1
    %v2882 = vsel %vm263, %v2880, %v2881
    %v2883 = vrot.slane %v2731, 1
    %v2884 = vrot.slane %v2732, 1
    %v2885 = vsel %vm263, %v2883, %v2884
    %v2886 = vrot.slane %v2733, 1
    %v2887 = vrot.slane %v2734, 1
    %v2888 = vsel %vm263, %v2886, %v2887
    %v2889 = vrot.slane %v2735, 1
    %v2890 = vrot.slane %v2736, 1
    %v2891 = vsel %vm263, %v2889, %v2890
    %v2892 = vrot.slane %v2737, 1
    %v2893 = vrot.slane %v2738, 1
    %v2894 = vsel %vm263, %v2892, %v2893
    %v2895 = vrot.slane %v2739, 1
    %v2896 = vrot.slane %v2740, 1
    %v2897 = vsel %vm263, %v2895, %v2896
    %v2898 = vrot.slane %v2741, 1
    %v2899 = vrot.slane %v2742, 1
    %v2900 = vsel %vm263, %v2898, %v2899
    %v2901 = vrot.slane %v2743, 1
    %v2902 = vrot.slane %v2744, 1
    %v2903 = vsel %vm263, %v2901, %v2902
    %v2904 = vrot.slane %v2745, 1
    %v2905 = vrot.slane %v2746, 1
    %v2906 = vsel %vm263, %v2904, %v2905
    %v2907 = vrot.slane %v2747, 1
    %v2908 = vrot.slane %v2748, 1
    %v2909 = vsel %vm263, %v2907, %v2908
    %2910 = vrot.lane.b32.xlu0 %v2840, 32
    %v2911 = vpop.permute.xlu0 %2910
    %2912 = vrot.lane.b32.xlu0 %v2839, 32
    %v2913 = vpop.permute.xlu0 %2912
    %2914 = vrot.lane.b32.xlu0 %v2843, 32
    %v2915 = vpop.permute.xlu0 %2914
    %2916 = vrot.lane.b32.xlu0 %v2842, 32
    %v2917 = vpop.permute.xlu0 %2916
    %2918 = vrot.lane.b32.xlu0 %v2846, 32
    %v2919 = vpop.permute.xlu0 %2918
    %2920 = vrot.lane.b32.xlu0 %v2845, 32
    %v2921 = vpop.permute.xlu0 %2920
    %2922 = vrot.lane.b32.xlu0 %v2849, 32
    %v2923 = vpop.permute.xlu0 %2922
    %2924 = vrot.lane.b32.xlu0 %v2848, 32
    %v2925 = vpop.permute.xlu0 %2924
    %2926 = vrot.lane.b32.xlu0 %v2852, 32
    %v2927 = vpop.permute.xlu0 %2926
    %2928 = vrot.lane.b32.xlu0 %v2851, 32
    %v2929 = vpop.permute.xlu0 %2928
    %2930 = vrot.lane.b32.xlu0 %v2855, 32
    %v2931 = vpop.permute.xlu0 %2930
    %2932 = vrot.lane.b32.xlu0 %v2854, 32
    %v2933 = vpop.permute.xlu0 %2932
    %2934 = vrot.lane.b32.xlu0 %v2858, 32
    %v2935 = vpop.permute.xlu0 %2934
    %2936 = vrot.lane.b32.xlu0 %v2857, 32
    %v2937 = vpop.permute.xlu0 %2936
    %2938 = vrot.lane.b32.xlu0 %v2861, 32
    %v2939 = vpop.permute.xlu0 %2938
    %2940 = vrot.lane.b32.xlu0 %v2860, 32
    %v2941 = vpop.permute.xlu0 %2940
    %2942 = vrot.lane.b32.xlu0 %v2864, 32
    %v2943 = vpop.permute.xlu0 %2942
    %2944 = vrot.lane.b32.xlu0 %v2863, 32
    %v2945 = vpop.permute.xlu0 %2944
    %2946 = vrot.lane.b32.xlu0 %v2867, 32
    %v2947 = vpop.permute.xlu0 %2946
    %2948 = vrot.lane.b32.xlu0 %v2866, 32
    %v2949 = vpop.permute.xlu0 %2948
    %2950 = vrot.lane.b32.xlu0 %v2870, 32
    %v2951 = vpop.permute.xlu0 %2950
    %2952 = vrot.lane.b32.xlu0 %v2869, 32
    %v2953 = vpop.permute.xlu0 %2952
    %2954 = vrot.lane.b32.xlu0 %v2873, 32
    %v2955 = vpop.permute.xlu0 %2954
    %2956 = vrot.lane.b32.xlu0 %v2872, 32
    %v2957 = vpop.permute.xlu0 %2956
    %2958 = vrot.lane.b32.xlu0 %v2876, 32
    %v2959 = vpop.permute.xlu0 %2958
    %2960 = vrot.lane.b32.xlu0 %v2875, 32
    %v2961 = vpop.permute.xlu0 %2960
    %2962 = vrot.lane.b32.xlu0 %v2879, 32
    %v2963 = vpop.permute.xlu0 %2962
    %2964 = vrot.lane.b32.xlu0 %v2878, 32
    %v2965 = vpop.permute.xlu0 %2964
    %2966 = vrot.lane.b32.xlu0 %v2882, 32
    %v2967 = vpop.permute.xlu0 %2966
    %2968 = vrot.lane.b32.xlu0 %v2881, 32
    %v2969 = vpop.permute.xlu0 %2968
    %2970 = vrot.lane.b32.xlu0 %v2885, 32
    %v2971 = vpop.permute.xlu0 %2970
    %2972 = vrot.lane.b32.xlu0 %v2884, 32
    %v2973 = vpop.permute.xlu0 %2972
    %2974 = vrot.lane.b32.xlu0 %v2888, 32
    %v2975 = vpop.permute.xlu0 %2974
    %2976 = vrot.lane.b32.xlu0 %v2887, 32
    %v2977 = vpop.permute.xlu0 %2976
    %2978 = vrot.lane.b32.xlu0 %v2891, 32
    %v2979 = vpop.permute.xlu0 %2978
    %2980 = vrot.lane.b32.xlu0 %v2890, 32
    %v2981 = vpop.permute.xlu0 %2980
    %2982 = vrot.lane.b32.xlu0 %v2894, 32
    %v2983 = vpop.permute.xlu0 %2982
    %2984 = vrot.lane.b32.xlu0 %v2893, 32
    %v2985 = vpop.permute.xlu0 %2984
    %2986 = vrot.lane.b32.xlu0 %v2897, 32
    %v2987 = vpop.permute.xlu0 %2986
    %2988 = vrot.lane.b32.xlu0 %v2896, 32
    %v2989 = vpop.permute.xlu0 %2988
    %2990 = vrot.lane.b32.xlu0 %v2900, 32
    %v2991 = vpop.permute.xlu0 %2990
    %2992 = vrot.lane.b32.xlu0 %v2899, 32
    %v2993 = vpop.permute.xlu0 %2992
    %2994 = vrot.lane.b32.xlu0 %v2903, 32
    %v2995 = vpop.permute.xlu0 %2994
    %2996 = vrot.lane.b32.xlu0 %v2902, 32
    %v2997 = vpop.permute.xlu0 %2996
    %2998 = vrot.lane.b32.xlu0 %v2906, 32
    %v2999 = vpop.permute.xlu0 %2998
    %3000 = vrot.lane.b32.xlu0 %v2905, 32
    %v3001 = vpop.permute.xlu0 %3000
    %3002 = vrot.lane.b32.xlu0 %v2909, 32
    %v3003 = vpop.permute.xlu0 %3002
    %3004 = vrot.lane.b32.xlu0 %v2908, 32
    %v3005 = vpop.permute.xlu0 %3004
    %v3054 = vrot.slane %v2697, 2
    %v3055 = vrot.slane %v2698, 2
    %v3056 = vsel %vm480, %v3054, %v3055
    %v3057 = vrot.slane %v2699, 2
    %v3058 = vrot.slane %v2700, 2
    %v3059 = vsel %vm480, %v3057, %v3058
    %v3060 = vrot.slane %v2701, 2
    %v3061 = vrot.slane %v2702, 2
    %v3062 = vsel %vm480, %v3060, %v3061
    %v3063 = vrot.slane %v2703, 2
    %v3064 = vrot.slane %v2704, 2
    %v3065 = vsel %vm480, %v3063, %v3064
    %v3066 = vrot.slane %v2705, 2
    %v3067 = vrot.slane %v2706, 2
    %v3068 = vsel %vm480, %v3066, %v3067
    %v3069 = vrot.slane %v2707, 2
    %v3070 = vrot.slane %v2708, 2
    %v3071 = vsel %vm480, %v3069, %v3070
    %v3072 = vrot.slane %v2709, 2
    %v3073 = vrot.slane %v2710, 2
    %v3074 = vsel %vm480, %v3072, %v3073
    %v3075 = vrot.slane %v2711, 2
    %v3076 = vrot.slane %v2712, 2
    %v3077 = vsel %vm480, %v3075, %v3076
    %v3078 = vrot.slane %v2713, 2
    %v3079 = vrot.slane %v2714, 2
    %v3080 = vsel %vm480, %v3078, %v3079
    %v3081 = vrot.slane %v2715, 2
    %v3082 = vrot.slane %v2716, 2
    %v3083 = vsel %vm480, %v3081, %v3082
    %v3084 = vrot.slane %v2717, 2
    %v3085 = vrot.slane %v2718, 2
    %v3086 = vsel %vm480, %v3084, %v3085
    %v3087 = vrot.slane %v2719, 2
    %v3088 = vrot.slane %v2720, 2
    %v3089 = vsel %vm480, %v3087, %v3088
    %v3090 = vrot.slane %v2725, 2
    %v3091 = vrot.slane %v2726, 2
    %v3092 = vsel %vm480, %v3090, %v3091
    %v3093 = vrot.slane %v2727, 2
    %v3094 = vrot.slane %v2728, 2
    %v3095 = vsel %vm480, %v3093, %v3094
    %v3096 = vrot.slane %v2729, 2
    %v3097 = vrot.slane %v2730, 2
    %v3098 = vsel %vm480, %v3096, %v3097
    %v3099 = vrot.slane %v2731, 2
    %v3100 = vrot.slane %v2732, 2
    %v3101 = vsel %vm480, %v3099, %v3100
    %v3102 = vrot.slane %v2733, 2
    %v3103 = vrot.slane %v2734, 2
    %v3104 = vsel %vm480, %v3102, %v3103
    %v3105 = vrot.slane %v2735, 2
    %v3106 = vrot.slane %v2736, 2
    %v3107 = vsel %vm480, %v3105, %v3106
    %v3108 = vrot.slane %v2737, 2
    %v3109 = vrot.slane %v2738, 2
    %v3110 = vsel %vm480, %v3108, %v3109
    %v3111 = vrot.slane %v2739, 2
    %v3112 = vrot.slane %v2740, 2
    %v3113 = vsel %vm480, %v3111, %v3112
    %v3114 = vrot.slane %v2741, 2
    %v3115 = vrot.slane %v2742, 2
    %v3116 = vsel %vm480, %v3114, %v3115
    %v3117 = vrot.slane %v2743, 2
    %v3118 = vrot.slane %v2744, 2
    %v3119 = vsel %vm480, %v3117, %v3118
    %v3120 = vrot.slane %v2745, 2
    %v3121 = vrot.slane %v2746, 2
    %v3122 = vsel %vm480, %v3120, %v3121
    %v3123 = vrot.slane %v2747, 2
    %v3124 = vrot.slane %v2748, 2
    %v3125 = vsel %vm480, %v3123, %v3124
    %3126 = vrot.lane.b32.xlu0 %v3056, 64
    %v3127 = vpop.permute.xlu0 %3126
    %3128 = vrot.lane.b32.xlu0 %v3055, 64
    %v3129 = vpop.permute.xlu0 %3128
    %3130 = vrot.lane.b32.xlu0 %v3059, 64
    %v3131 = vpop.permute.xlu0 %3130
    %3132 = vrot.lane.b32.xlu0 %v3058, 64
    %v3133 = vpop.permute.xlu0 %3132
    %3134 = vrot.lane.b32.xlu0 %v3062, 64
    %v3135 = vpop.permute.xlu0 %3134
    %3136 = vrot.lane.b32.xlu0 %v3061, 64
    %v3137 = vpop.permute.xlu0 %3136
    %3138 = vrot.lane.b32.xlu0 %v3065, 64
    %v3139 = vpop.permute.xlu0 %3138
    %3140 = vrot.lane.b32.xlu0 %v3064, 64
    %v3141 = vpop.permute.xlu0 %3140
    %3142 = vrot.lane.b32.xlu0 %v3068, 64
    %v3143 = vpop.permute.xlu0 %3142
    %3144 = vrot.lane.b32.xlu0 %v3067, 64
    %v3145 = vpop.permute.xlu0 %3144
    %3146 = vrot.lane.b32.xlu0 %v3071, 64
    %v3147 = vpop.permute.xlu0 %3146
    %3148 = vrot.lane.b32.xlu0 %v3070, 64
    %v3149 = vpop.permute.xlu0 %3148
    %3150 = vrot.lane.b32.xlu0 %v3074, 64
    %v3151 = vpop.permute.xlu0 %3150
    %3152 = vrot.lane.b32.xlu0 %v3073, 64
    %v3153 = vpop.permute.xlu0 %3152
    %3154 = vrot.lane.b32.xlu0 %v3077, 64
    %v3155 = vpop.permute.xlu0 %3154
    %3156 = vrot.lane.b32.xlu0 %v3076, 64
    %v3157 = vpop.permute.xlu0 %3156
    %3158 = vrot.lane.b32.xlu0 %v3080, 64
    %v3159 = vpop.permute.xlu0 %3158
    %3160 = vrot.lane.b32.xlu0 %v3079, 64
    %v3161 = vpop.permute.xlu0 %3160
    %3162 = vrot.lane.b32.xlu0 %v3083, 64
    %v3163 = vpop.permute.xlu0 %3162
    %3164 = vrot.lane.b32.xlu0 %v3082, 64
    %v3165 = vpop.permute.xlu0 %3164
    %3166 = vrot.lane.b32.xlu0 %v3086, 64
    %v3167 = vpop.permute.xlu0 %3166
    %3168 = vrot.lane.b32.xlu0 %v3085, 64
    %v3169 = vpop.permute.xlu0 %3168
    %3170 = vrot.lane.b32.xlu0 %v3089, 64
    %v3171 = vpop.permute.xlu0 %3170
    %3172 = vrot.lane.b32.xlu0 %v3088, 64
    %v3173 = vpop.permute.xlu0 %3172
    %3174 = vrot.lane.b32.xlu0 %v3092, 64
    %v3175 = vpop.permute.xlu0 %3174
    %3176 = vrot.lane.b32.xlu0 %v3091, 64
    %v3177 = vpop.permute.xlu0 %3176
    %3178 = vrot.lane.b32.xlu0 %v3095, 64
    %v3179 = vpop.permute.xlu0 %3178
    %3180 = vrot.lane.b32.xlu0 %v3094, 64
    %v3181 = vpop.permute.xlu0 %3180
    %3182 = vrot.lane.b32.xlu0 %v3098, 64
    %v3183 = vpop.permute.xlu0 %3182
    %3184 = vrot.lane.b32.xlu0 %v3097, 64
    %v3185 = vpop.permute.xlu0 %3184
    %3186 = vrot.lane.b32.xlu0 %v3101, 64
    %v3187 = vpop.permute.xlu0 %3186
    %3188 = vrot.lane.b32.xlu0 %v3100, 64
    %v3189 = vpop.permute.xlu0 %3188
    %3190 = vrot.lane.b32.xlu0 %v3104, 64
    %v3191 = vpop.permute.xlu0 %3190
    %3192 = vrot.lane.b32.xlu0 %v3103, 64
    %v3193 = vpop.permute.xlu0 %3192
    %3194 = vrot.lane.b32.xlu0 %v3107, 64
    %v3195 = vpop.permute.xlu0 %3194
    %3196 = vrot.lane.b32.xlu0 %v3106, 64
    %v3197 = vpop.permute.xlu0 %3196
    %3198 = vrot.lane.b32.xlu0 %v3110, 64
    %v3199 = vpop.permute.xlu0 %3198
    %3200 = vrot.lane.b32.xlu0 %v3109, 64
    %v3201 = vpop.permute.xlu0 %3200
    %3202 = vrot.lane.b32.xlu0 %v3113, 64
    %v3203 = vpop.permute.xlu0 %3202
    %3204 = vrot.lane.b32.xlu0 %v3112, 64
    %v3205 = vpop.permute.xlu0 %3204
    %3206 = vrot.lane.b32.xlu0 %v3116, 64
    %v3207 = vpop.permute.xlu0 %3206
    %3208 = vrot.lane.b32.xlu0 %v3115, 64
    %v3209 = vpop.permute.xlu0 %3208
    %3210 = vrot.lane.b32.xlu0 %v3119, 64
    %v3211 = vpop.permute.xlu0 %3210
    %3212 = vrot.lane.b32.xlu0 %v3118, 64
    %v3213 = vpop.permute.xlu0 %3212
    %3214 = vrot.lane.b32.xlu0 %v3122, 64
    %v3215 = vpop.permute.xlu0 %3214
    %3216 = vrot.lane.b32.xlu0 %v3121, 64
    %v3217 = vpop.permute.xlu0 %3216
    %3218 = vrot.lane.b32.xlu0 %v3125, 64
    %v3219 = vpop.permute.xlu0 %3218
    %3220 = vrot.lane.b32.xlu0 %v3124, 64
    %v3221 = vpop.permute.xlu0 %3220
    %3274 = vrot.lane.b32.xlu0 %v2699, 96
    %v3275 = vpop.permute.xlu0 %3274
    %3276 = vrot.lane.b32.xlu0 %v2700, 96
    %v3277 = vpop.permute.xlu0 %3276
    %3278 = vrot.lane.b32.xlu0 %v2701, 96
    %v3279 = vpop.permute.xlu0 %3278
    %3280 = vrot.lane.b32.xlu0 %v2702, 96
    %v3281 = vpop.permute.xlu0 %3280
    %3282 = vrot.lane.b32.xlu0 %v2703, 96
    %v3283 = vpop.permute.xlu0 %3282
    %3284 = vrot.lane.b32.xlu0 %v2704, 96
    %v3285 = vpop.permute.xlu0 %3284
    %3286 = vrot.lane.b32.xlu0 %v2705, 96
    %v3287 = vpop.permute.xlu0 %3286
    %3288 = vrot.lane.b32.xlu0 %v2706, 96
    %v3289 = vpop.permute.xlu0 %3288
    %3290 = vrot.lane.b32.xlu0 %v2707, 96
    %v3291 = vpop.permute.xlu0 %3290
    %3292 = vrot.lane.b32.xlu0 %v2708, 96
    %v3293 = vpop.permute.xlu0 %3292
    %3294 = vrot.lane.b32.xlu0 %v2709, 96
    %v3295 = vpop.permute.xlu0 %3294
    %3296 = vrot.lane.b32.xlu0 %v2710, 96
    %v3297 = vpop.permute.xlu0 %3296
    %3298 = vrot.lane.b32.xlu0 %v2711, 96
    %v3299 = vpop.permute.xlu0 %3298
    %3300 = vrot.lane.b32.xlu0 %v2712, 96
    %v3301 = vpop.permute.xlu0 %3300
    %3302 = vrot.lane.b32.xlu0 %v2713, 96
    %v3303 = vpop.permute.xlu0 %3302
    %3304 = vrot.lane.b32.xlu0 %v2714, 96
    %v3305 = vpop.permute.xlu0 %3304
    %3306 = vrot.lane.b32.xlu0 %v2715, 96
    %v3307 = vpop.permute.xlu0 %3306
    %3308 = vrot.lane.b32.xlu0 %v2716, 96
    %v3309 = vpop.permute.xlu0 %3308
    %3310 = vrot.lane.b32.xlu0 %v2717, 96
    %v3311 = vpop.permute.xlu0 %3310
    %3312 = vrot.lane.b32.xlu0 %v2718, 96
    %v3313 = vpop.permute.xlu0 %3312
    %3314 = vrot.lane.b32.xlu0 %v2719, 96
    %v3315 = vpop.permute.xlu0 %3314
    %3316 = vrot.lane.b32.xlu0 %v2720, 96
    %v3317 = vpop.permute.xlu0 %3316
    %3318 = vrot.lane.b32.xlu0 %v2721, 96
    %v3319 = vpop.permute.xlu0 %3318
    %3320 = vrot.lane.b32.xlu0 %v2722, 96
    %v3321 = vpop.permute.xlu0 %3320
    %3322 = vrot.lane.b32.xlu0 %v2727, 96
    %v3323 = vpop.permute.xlu0 %3322
    %3324 = vrot.lane.b32.xlu0 %v2728, 96
    %v3325 = vpop.permute.xlu0 %3324
    %3326 = vrot.lane.b32.xlu0 %v2729, 96
    %v3327 = vpop.permute.xlu0 %3326
    %3328 = vrot.lane.b32.xlu0 %v2730, 96
    %v3329 = vpop.permute.xlu0 %3328
    %3330 = vrot.lane.b32.xlu0 %v2731, 96
    %v3331 = vpop.permute.xlu0 %3330
    %3332 = vrot.lane.b32.xlu0 %v2732, 96
    %v3333 = vpop.permute.xlu0 %3332
    %3334 = vrot.lane.b32.xlu0 %v2733, 96
    %v3335 = vpop.permute.xlu0 %3334
    %3336 = vrot.lane.b32.xlu0 %v2734, 96
    %v3337 = vpop.permute.xlu0 %3336
    %3338 = vrot.lane.b32.xlu0 %v2735, 96
    %v3339 = vpop.permute.xlu0 %3338
    %3340 = vrot.lane.b32.xlu0 %v2736, 96
    %v3341 = vpop.permute.xlu0 %3340
    %3342 = vrot.lane.b32.xlu0 %v2737, 96
    %v3343 = vpop.permute.xlu0 %3342
    %3344 = vrot.lane.b32.xlu0 %v2738, 96
    %v3345 = vpop.permute.xlu0 %3344
    %3346 = vrot.lane.b32.xlu0 %v2739, 96
    %v3347 = vpop.permute.xlu0 %3346
    %3348 = vrot.lane.b32.xlu0 %v2740, 96
    %v3349 = vpop.permute.xlu0 %3348
    %3350 = vrot.lane.b32.xlu0 %v2741, 96
    %v3351 = vpop.permute.xlu0 %3350
    %3352 = vrot.lane.b32.xlu0 %v2742, 96
    %v3353 = vpop.permute.xlu0 %3352
    %3354 = vrot.lane.b32.xlu0 %v2743, 96
    %v3355 = vpop.permute.xlu0 %3354
    %3356 = vrot.lane.b32.xlu0 %v2744, 96
    %v3357 = vpop.permute.xlu0 %3356
    %3358 = vrot.lane.b32.xlu0 %v2745, 96
    %v3359 = vpop.permute.xlu0 %3358
    %3360 = vrot.lane.b32.xlu0 %v2746, 96
    %v3361 = vpop.permute.xlu0 %3360
    %3362 = vrot.lane.b32.xlu0 %v2747, 96
    %v3363 = vpop.permute.xlu0 %3362
    %3364 = vrot.lane.b32.xlu0 %v2748, 96
    %v3365 = vpop.permute.xlu0 %3364
    %3366 = vrot.lane.b32.xlu0 %v2749, 96
    %v3367 = vpop.permute.xlu0 %3366
    %3368 = vrot.lane.b32.xlu0 %v2750, 96
    %v3369 = vpop.permute.xlu0 %3368
    %v3418 = vrot.slane %v2721, 1
    %v3419 = vrot.slane %v2722, 1
    %v3420 = vsel %vm263, %v3418, %v3419
    %v3421 = vrot.slane %v2749, 1
    %v3422 = vrot.slane %v2750, 1
    %v3423 = vsel %vm263, %v3421, %v3422
    %v3472 = vrot.slane %v2721, 2
    %v3473 = vrot.slane %v2722, 2
    %v3474 = vsel %vm480, %v3472, %v3473
    %v3475 = vrot.slane %v2749, 2
    %v3476 = vrot.slane %v2750, 2
    %v3477 = vsel %vm480, %v3475, %v3476
    %3478 = vrot.lane.b32.xlu0 %v3059, 32
    %v3479 = vpop.permute.xlu0 %3478
    %3480 = vrot.lane.b32.xlu0 %v3058, 32
    %v3481 = vpop.permute.xlu0 %3480
    %3482 = vrot.lane.b32.xlu0 %v3062, 32
    %v3483 = vpop.permute.xlu0 %3482
    %3484 = vrot.lane.b32.xlu0 %v3061, 32
    %v3485 = vpop.permute.xlu0 %3484
    %3486 = vrot.lane.b32.xlu0 %v3065, 32
    %v3487 = vpop.permute.xlu0 %3486
    %3488 = vrot.lane.b32.xlu0 %v3064, 32
    %v3489 = vpop.permute.xlu0 %3488
    %3490 = vrot.lane.b32.xlu0 %v3068, 32
    %v3491 = vpop.permute.xlu0 %3490
    %3492 = vrot.lane.b32.xlu0 %v3067, 32
    %v3493 = vpop.permute.xlu0 %3492
    %3494 = vrot.lane.b32.xlu0 %v3071, 32
    %v3495 = vpop.permute.xlu0 %3494
    %3496 = vrot.lane.b32.xlu0 %v3070, 32
    %v3497 = vpop.permute.xlu0 %3496
    %3498 = vrot.lane.b32.xlu0 %v3074, 32
    %v3499 = vpop.permute.xlu0 %3498
    %3500 = vrot.lane.b32.xlu0 %v3073, 32
    %v3501 = vpop.permute.xlu0 %3500
    %3502 = vrot.lane.b32.xlu0 %v3077, 32
    %v3503 = vpop.permute.xlu0 %3502
    %3504 = vrot.lane.b32.xlu0 %v3076, 32
    %v3505 = vpop.permute.xlu0 %3504
    %3506 = vrot.lane.b32.xlu0 %v3080, 32
    %v3507 = vpop.permute.xlu0 %3506
    %3508 = vrot.lane.b32.xlu0 %v3079, 32
    %v3509 = vpop.permute.xlu0 %3508
    %3510 = vrot.lane.b32.xlu0 %v3083, 32
    %v3511 = vpop.permute.xlu0 %3510
    %3512 = vrot.lane.b32.xlu0 %v3082, 32
    %v3513 = vpop.permute.xlu0 %3512
    %3514 = vrot.lane.b32.xlu0 %v3086, 32
    %v3515 = vpop.permute.xlu0 %3514
    %3516 = vrot.lane.b32.xlu0 %v3085, 32
    %v3517 = vpop.permute.xlu0 %3516
    %3518 = vrot.lane.b32.xlu0 %v3089, 32
    %v3519 = vpop.permute.xlu0 %3518
    %3520 = vrot.lane.b32.xlu0 %v3088, 32
    %v3521 = vpop.permute.xlu0 %3520
    %3522 = vrot.lane.b32.xlu0 %v3474, 32
    %v3523 = vpop.permute.xlu0 %3522
    %3524 = vrot.lane.b32.xlu0 %v3473, 32
    %v3525 = vpop.permute.xlu0 %3524
    %3526 = vrot.lane.b32.xlu0 %v3095, 32
    %v3527 = vpop.permute.xlu0 %3526
    %3528 = vrot.lane.b32.xlu0 %v3094, 32
    %v3529 = vpop.permute.xlu0 %3528
    %3530 = vrot.lane.b32.xlu0 %v3098, 32
    %v3531 = vpop.permute.xlu0 %3530
    %3532 = vrot.lane.b32.xlu0 %v3097, 32
    %v3533 = vpop.permute.xlu0 %3532
    %3534 = vrot.lane.b32.xlu0 %v3101, 32
    %v3535 = vpop.permute.xlu0 %3534
    %3536 = vrot.lane.b32.xlu0 %v3100, 32
    %v3537 = vpop.permute.xlu0 %3536
    %3538 = vrot.lane.b32.xlu0 %v3104, 32
    %v3539 = vpop.permute.xlu0 %3538
    %3540 = vrot.lane.b32.xlu0 %v3103, 32
    %v3541 = vpop.permute.xlu0 %3540
    %3542 = vrot.lane.b32.xlu0 %v3107, 32
    %v3543 = vpop.permute.xlu0 %3542
    %3544 = vrot.lane.b32.xlu0 %v3106, 32
    %v3545 = vpop.permute.xlu0 %3544
    %3546 = vrot.lane.b32.xlu0 %v3110, 32
    %v3547 = vpop.permute.xlu0 %3546
    %3548 = vrot.lane.b32.xlu0 %v3109, 32
    %v3549 = vpop.permute.xlu0 %3548
    %3550 = vrot.lane.b32.xlu0 %v3113, 32
    %v3551 = vpop.permute.xlu0 %3550
    %3552 = vrot.lane.b32.xlu0 %v3112, 32
    %v3553 = vpop.permute.xlu0 %3552
    %3554 = vrot.lane.b32.xlu0 %v3116, 32
    %v3555 = vpop.permute.xlu0 %3554
    %3556 = vrot.lane.b32.xlu0 %v3115, 32
    %v3557 = vpop.permute.xlu0 %3556
    %3558 = vrot.lane.b32.xlu0 %v3119, 32
    %v3559 = vpop.permute.xlu0 %3558
    %3560 = vrot.lane.b32.xlu0 %v3118, 32
    %v3561 = vpop.permute.xlu0 %3560
    %3562 = vrot.lane.b32.xlu0 %v3122, 32
    %v3563 = vpop.permute.xlu0 %3562
    %3564 = vrot.lane.b32.xlu0 %v3121, 32
    %v3565 = vpop.permute.xlu0 %3564
    %3566 = vrot.lane.b32.xlu0 %v3125, 32
    %v3567 = vpop.permute.xlu0 %3566
    %3568 = vrot.lane.b32.xlu0 %v3124, 32
    %v3569 = vpop.permute.xlu0 %3568
    %3570 = vrot.lane.b32.xlu0 %v3477, 32
    %v3571 = vpop.permute.xlu0 %3570
    %3572 = vrot.lane.b32.xlu0 %v3476, 32
    %v3573 = vpop.permute.xlu0 %3572
    %3626 = vrot.lane.b32.xlu0 %v2701, 64
    %v3627 = vpop.permute.xlu0 %3626
    %3628 = vrot.lane.b32.xlu0 %v2702, 64
    %v3629 = vpop.permute.xlu0 %3628
    %3630 = vrot.lane.b32.xlu0 %v2703, 64
    %v3631 = vpop.permute.xlu0 %3630
    %3632 = vrot.lane.b32.xlu0 %v2704, 64
    %v3633 = vpop.permute.xlu0 %3632
    %3634 = vrot.lane.b32.xlu0 %v2705, 64
    %v3635 = vpop.permute.xlu0 %3634
    %3636 = vrot.lane.b32.xlu0 %v2706, 64
    %v3637 = vpop.permute.xlu0 %3636
    %3638 = vrot.lane.b32.xlu0 %v2707, 64
    %v3639 = vpop.permute.xlu0 %3638
    %3640 = vrot.lane.b32.xlu0 %v2708, 64
    %v3641 = vpop.permute.xlu0 %3640
    %3642 = vrot.lane.b32.xlu0 %v2709, 64
    %v3643 = vpop.permute.xlu0 %3642
    %3644 = vrot.lane.b32.xlu0 %v2710, 64
    %v3645 = vpop.permute.xlu0 %3644
    %3646 = vrot.lane.b32.xlu0 %v2711, 64
    %v3647 = vpop.permute.xlu0 %3646
    %3648 = vrot.lane.b32.xlu0 %v2712, 64
    %v3649 = vpop.permute.xlu0 %3648
    %3650 = vrot.lane.b32.xlu0 %v2713, 64
    %v3651 = vpop.permute.xlu0 %3650
    %3652 = vrot.lane.b32.xlu0 %v2714, 64
    %v3653 = vpop.permute.xlu0 %3652
    %3654 = vrot.lane.b32.xlu0 %v2715, 64
    %v3655 = vpop.permute.xlu0 %3654
    %3656 = vrot.lane.b32.xlu0 %v2716, 64
    %v3657 = vpop.permute.xlu0 %3656
    %3658 = vrot.lane.b32.xlu0 %v2717, 64
    %v3659 = vpop.permute.xlu0 %3658
    %3660 = vrot.lane.b32.xlu0 %v2718, 64
    %v3661 = vpop.permute.xlu0 %3660
    %3662 = vrot.lane.b32.xlu0 %v2719, 64
    %v3663 = vpop.permute.xlu0 %3662
    %3664 = vrot.lane.b32.xlu0 %v2720, 64
    %v3665 = vpop.permute.xlu0 %3664
    %3666 = vrot.lane.b32.xlu0 %v2721, 64
    %v3667 = vpop.permute.xlu0 %3666
    %3668 = vrot.lane.b32.xlu0 %v2722, 64
    %v3669 = vpop.permute.xlu0 %3668
    %3670 = vrot.lane.b32.xlu0 %v2723, 64
    %v3671 = vpop.permute.xlu0 %3670
    %3672 = vrot.lane.b32.xlu0 %v2724, 64
    %v3673 = vpop.permute.xlu0 %3672
    %3674 = vrot.lane.b32.xlu0 %v2729, 64
    %v3675 = vpop.permute.xlu0 %3674
    %3676 = vrot.lane.b32.xlu0 %v2730, 64
    %v3677 = vpop.permute.xlu0 %3676
    %3678 = vrot.lane.b32.xlu0 %v2731, 64
    %v3679 = vpop.permute.xlu0 %3678
    %3680 = vrot.lane.b32.xlu0 %v2732, 64
    %v3681 = vpop.permute.xlu0 %3680
    %3682 = vrot.lane.b32.xlu0 %v2733, 64
    %v3683 = vpop.permute.xlu0 %3682
    %3684 = vrot.lane.b32.xlu0 %v2734, 64
    %v3685 = vpop.permute.xlu0 %3684
    %3686 = vrot.lane.b32.xlu0 %v2735, 64
    %v3687 = vpop.permute.xlu0 %3686
    %3688 = vrot.lane.b32.xlu0 %v2736, 64
    %v3689 = vpop.permute.xlu0 %3688
    %3690 = vrot.lane.b32.xlu0 %v2737, 64
    %v3691 = vpop.permute.xlu0 %3690
    %3692 = vrot.lane.b32.xlu0 %v2738, 64
    %v3693 = vpop.permute.xlu0 %3692
    %3694 = vrot.lane.b32.xlu0 %v2739, 64
    %v3695 = vpop.permute.xlu0 %3694
    %3696 = vrot.lane.b32.xlu0 %v2740, 64
    %v3697 = vpop.permute.xlu0 %3696
    %3698 = vrot.lane.b32.xlu0 %v2741, 64
    %v3699 = vpop.permute.xlu0 %3698
    %3700 = vrot.lane.b32.xlu0 %v2742, 64
    %v3701 = vpop.permute.xlu0 %3700
    %3702 = vrot.lane.b32.xlu0 %v2743, 64
    %v3703 = vpop.permute.xlu0 %3702
    %3704 = vrot.lane.b32.xlu0 %v2744, 64
    %v3705 = vpop.permute.xlu0 %3704
    %3706 = vrot.lane.b32.xlu0 %v2745, 64
    %v3707 = vpop.permute.xlu0 %3706
    %3708 = vrot.lane.b32.xlu0 %v2746, 64
    %v3709 = vpop.permute.xlu0 %3708
    %3710 = vrot.lane.b32.xlu0 %v2747, 64
    %v3711 = vpop.permute.xlu0 %3710
    %3712 = vrot.lane.b32.xlu0 %v2748, 64
    %v3713 = vpop.permute.xlu0 %3712
    %3714 = vrot.lane.b32.xlu0 %v2749, 64
    %v3715 = vpop.permute.xlu0 %3714
    %3716 = vrot.lane.b32.xlu0 %v2750, 64
    %v3717 = vpop.permute.xlu0 %3716
    %3718 = vrot.lane.b32.xlu0 %v2751, 64
    %v3719 = vpop.permute.xlu0 %3718
    %3720 = vrot.lane.b32.xlu0 %v2752, 64
    %v3721 = vpop.permute.xlu0 %3720
    %v3770 = vrot.slane %v2723, 1
    %v3771 = vrot.slane %v2724, 1
    %v3772 = vsel %vm263, %v3770, %v3771
    %v3773 = vrot.slane %v2751, 1
    %v3774 = vrot.slane %v2752, 1
    %v3775 = vsel %vm263, %v3773, %v3774
    %3776 = vrot.lane.b32.xlu0 %v2846, 96
    %v3777 = vpop.permute.xlu0 %3776
    %3778 = vrot.lane.b32.xlu0 %v2845, 96
    %v3779 = vpop.permute.xlu0 %3778
    %3780 = vrot.lane.b32.xlu0 %v2849, 96
    %v3781 = vpop.permute.xlu0 %3780
    %3782 = vrot.lane.b32.xlu0 %v2848, 96
    %v3783 = vpop.permute.xlu0 %3782
    %3784 = vrot.lane.b32.xlu0 %v2852, 96
    %v3785 = vpop.permute.xlu0 %3784
    %3786 = vrot.lane.b32.xlu0 %v2851, 96
    %v3787 = vpop.permute.xlu0 %3786
    %3788 = vrot.lane.b32.xlu0 %v2855, 96
    %v3789 = vpop.permute.xlu0 %3788
    %3790 = vrot.lane.b32.xlu0 %v2854, 96
    %v3791 = vpop.permute.xlu0 %3790
    %3792 = vrot.lane.b32.xlu0 %v2858, 96
    %v3793 = vpop.permute.xlu0 %3792
    %3794 = vrot.lane.b32.xlu0 %v2857, 96
    %v3795 = vpop.permute.xlu0 %3794
    %3796 = vrot.lane.b32.xlu0 %v2861, 96
    %v3797 = vpop.permute.xlu0 %3796
    %3798 = vrot.lane.b32.xlu0 %v2860, 96
    %v3799 = vpop.permute.xlu0 %3798
    %3800 = vrot.lane.b32.xlu0 %v2864, 96
    %v3801 = vpop.permute.xlu0 %3800
    %3802 = vrot.lane.b32.xlu0 %v2863, 96
    %v3803 = vpop.permute.xlu0 %3802
    %3804 = vrot.lane.b32.xlu0 %v2867, 96
    %v3805 = vpop.permute.xlu0 %3804
    %3806 = vrot.lane.b32.xlu0 %v2866, 96
    %v3807 = vpop.permute.xlu0 %3806
    %3808 = vrot.lane.b32.xlu0 %v2870, 96
    %v3809 = vpop.permute.xlu0 %3808
    %3810 = vrot.lane.b32.xlu0 %v2869, 96
    %v3811 = vpop.permute.xlu0 %3810
    %3812 = vrot.lane.b32.xlu0 %v2873, 96
    %v3813 = vpop.permute.xlu0 %3812
    %3814 = vrot.lane.b32.xlu0 %v2872, 96
    %v3815 = vpop.permute.xlu0 %3814
    %3816 = vrot.lane.b32.xlu0 %v3420, 96
    %v3817 = vpop.permute.xlu0 %3816
    %3818 = vrot.lane.b32.xlu0 %v3419, 96
    %v3819 = vpop.permute.xlu0 %3818
    %3820 = vrot.lane.b32.xlu0 %v3772, 96
    %v3821 = vpop.permute.xlu0 %3820
    %3822 = vrot.lane.b32.xlu0 %v3771, 96
    %v3823 = vpop.permute.xlu0 %3822
    %3824 = vrot.lane.b32.xlu0 %v2882, 96
    %v3825 = vpop.permute.xlu0 %3824
    %3826 = vrot.lane.b32.xlu0 %v2881, 96
    %v3827 = vpop.permute.xlu0 %3826
    %3828 = vrot.lane.b32.xlu0 %v2885, 96
    %v3829 = vpop.permute.xlu0 %3828
    %3830 = vrot.lane.b32.xlu0 %v2884, 96
    %v3831 = vpop.permute.xlu0 %3830
    %3832 = vrot.lane.b32.xlu0 %v2888, 96
    %v3833 = vpop.permute.xlu0 %3832
    %3834 = vrot.lane.b32.xlu0 %v2887, 96
    %v3835 = vpop.permute.xlu0 %3834
    %3836 = vrot.lane.b32.xlu0 %v2891, 96
    %v3837 = vpop.permute.xlu0 %3836
    %3838 = vrot.lane.b32.xlu0 %v2890, 96
    %v3839 = vpop.permute.xlu0 %3838
    %3840 = vrot.lane.b32.xlu0 %v2894, 96
    %v3841 = vpop.permute.xlu0 %3840
    %3842 = vrot.lane.b32.xlu0 %v2893, 96
    %v3843 = vpop.permute.xlu0 %3842
    %3844 = vrot.lane.b32.xlu0 %v2897, 96
    %v3845 = vpop.permute.xlu0 %3844
    %3846 = vrot.lane.b32.xlu0 %v2896, 96
    %v3847 = vpop.permute.xlu0 %3846
    %3848 = vrot.lane.b32.xlu0 %v2900, 96
    %v3849 = vpop.permute.xlu0 %3848
    %3850 = vrot.lane.b32.xlu0 %v2899, 96
    %v3851 = vpop.permute.xlu0 %3850
    %3852 = vrot.lane.b32.xlu0 %v2903, 96
    %v3853 = vpop.permute.xlu0 %3852
    %3854 = vrot.lane.b32.xlu0 %v2902, 96
    %v3855 = vpop.permute.xlu0 %3854
    %3856 = vrot.lane.b32.xlu0 %v2906, 96
    %v3857 = vpop.permute.xlu0 %3856
    %3858 = vrot.lane.b32.xlu0 %v2905, 96
    %v3859 = vpop.permute.xlu0 %3858
    %3860 = vrot.lane.b32.xlu0 %v2909, 96
    %v3861 = vpop.permute.xlu0 %3860
    %3862 = vrot.lane.b32.xlu0 %v2908, 96
    %v3863 = vpop.permute.xlu0 %3862
    %3864 = vrot.lane.b32.xlu0 %v3423, 96
    %v3865 = vpop.permute.xlu0 %3864
    %3866 = vrot.lane.b32.xlu0 %v3422, 96
    %v3867 = vpop.permute.xlu0 %3866
    %3868 = vrot.lane.b32.xlu0 %v3775, 96
    %v3869 = vpop.permute.xlu0 %3868
    %3870 = vrot.lane.b32.xlu0 %v3774, 96
    %v3871 = vpop.permute.xlu0 %3870
    %v3920 = vrot.slane %v2723, 2
    %v3921 = vrot.slane %v2724, 2
    %v3922 = vsel %vm480, %v3920, %v3921
    %v3923 = vrot.slane %v2751, 2
    %v3924 = vrot.slane %v2752, 2
    %v3925 = vsel %vm480, %v3923, %v3924
    %v3926 = vsel %vm2457, %v2697, %v2911
    %v3927 = vsel %vm2457, %v2698, %v2913
    %v3928 = vsel %vm2457, %v2699, %v2915
    %v3929 = vsel %vm2457, %v2700, %v2917
    %v3930 = vsel %vm2457, %v2701, %v2919
    %v3931 = vsel %vm2457, %v2702, %v2921
    %v3932 = vsel %vm2457, %v2703, %v2923
    %v3933 = vsel %vm2457, %v2704, %v2925
    %v3934 = vsel %vm2457, %v2705, %v2927
    %v3935 = vsel %vm2457, %v2706, %v2929
    %v3936 = vsel %vm2457, %v2707, %v2931
    %v3937 = vsel %vm2457, %v2708, %v2933
    %v3938 = vsel %vm2457, %v2709, %v2935
    %v3939 = vsel %vm2457, %v2710, %v2937
    %v3940 = vsel %vm2457, %v2711, %v2939
    %v3941 = vsel %vm2457, %v2712, %v2941
    %v3942 = vsel %vm2457, %v2713, %v2943
    %v3943 = vsel %vm2457, %v2714, %v2945
    %v3944 = vsel %vm2457, %v2715, %v2947
    %v3945 = vsel %vm2457, %v2716, %v2949
    %v3946 = vsel %vm2457, %v2717, %v2951
    %v3947 = vsel %vm2457, %v2718, %v2953
    %v3948 = vsel %vm2457, %v2719, %v2955
    %v3949 = vsel %vm2457, %v2720, %v2957
    %v3950 = vsel %vm2457, %v2725, %v2959
    %v3951 = vsel %vm2457, %v2726, %v2961
    %v3952 = vsel %vm2457, %v2727, %v2963
    %v3953 = vsel %vm2457, %v2728, %v2965
    %v3954 = vsel %vm2457, %v2729, %v2967
    %v3955 = vsel %vm2457, %v2730, %v2969
    %v3956 = vsel %vm2457, %v2731, %v2971
    %v3957 = vsel %vm2457, %v2732, %v2973
    %v3958 = vsel %vm2457, %v2733, %v2975
    %v3959 = vsel %vm2457, %v2734, %v2977
    %v3960 = vsel %vm2457, %v2735, %v2979
    %v3961 = vsel %vm2457, %v2736, %v2981
    %v3962 = vsel %vm2457, %v2737, %v2983
    %v3963 = vsel %vm2457, %v2738, %v2985
    %v3964 = vsel %vm2457, %v2739, %v2987
    %v3965 = vsel %vm2457, %v2740, %v2989
    %v3966 = vsel %vm2457, %v2741, %v2991
    %v3967 = vsel %vm2457, %v2742, %v2993
    %v3968 = vsel %vm2457, %v2743, %v2995
    %v3969 = vsel %vm2457, %v2744, %v2997
    %v3970 = vsel %vm2457, %v2745, %v2999
    %v3971 = vsel %vm2457, %v2746, %v3001
    %v3972 = vsel %vm2457, %v2747, %v3003
    %v3973 = vsel %vm2457, %v2748, %v3005
    %vm3974 = vcmask 523264
    %v3975 = vsel %vm3974, %v3926, %v3127
    %v3976 = vsel %vm3974, %v3927, %v3129
    %v3977 = vsel %vm3974, %v3928, %v3131
    %v3978 = vsel %vm3974, %v3929, %v3133
    %v3979 = vsel %vm3974, %v3930, %v3135
    %v3980 = vsel %vm3974, %v3931, %v3137
    %v3981 = vsel %vm3974, %v3932, %v3139
    %v3982 = vsel %vm3974, %v3933, %v3141
    %v3983 = vsel %vm3974, %v3934, %v3143
    %v3984 = vsel %vm3974, %v3935, %v3145
    %v3985 = vsel %vm3974, %v3936, %v3147
    %v3986 = vsel %vm3974, %v3937, %v3149
    %v3987 = vsel %vm3974, %v3938, %v3151
    %v3988 = vsel %vm3974, %v3939, %v3153
    %v3989 = vsel %vm3974, %v3940, %v3155
    %v3990 = vsel %vm3974, %v3941, %v3157
    %v3991 = vsel %vm3974, %v3942, %v3159
    %v3992 = vsel %vm3974, %v3943, %v3161
    %v3993 = vsel %vm3974, %v3944, %v3163
    %v3994 = vsel %vm3974, %v3945, %v3165
    %v3995 = vsel %vm3974, %v3946, %v3167
    %v3996 = vsel %vm3974, %v3947, %v3169
    %v3997 = vsel %vm3974, %v3948, %v3171
    %v3998 = vsel %vm3974, %v3949, %v3173
    %v3999 = vsel %vm3974, %v3950, %v3175
    %v4000 = vsel %vm3974, %v3951, %v3177
    %v4001 = vsel %vm3974, %v3952, %v3179
    %v4002 = vsel %vm3974, %v3953, %v3181
    %v4003 = vsel %vm3974, %v3954, %v3183
    %v4004 = vsel %vm3974, %v3955, %v3185
    %v4005 = vsel %vm3974, %v3956, %v3187
    %v4006 = vsel %vm3974, %v3957, %v3189
    %v4007 = vsel %vm3974, %v3958, %v3191
    %v4008 = vsel %vm3974, %v3959, %v3193
    %v4009 = vsel %vm3974, %v3960, %v3195
    %v4010 = vsel %vm3974, %v3961, %v3197
    %v4011 = vsel %vm3974, %v3962, %v3199
    %v4012 = vsel %vm3974, %v3963, %v3201
    %v4013 = vsel %vm3974, %v3964, %v3203
    %v4014 = vsel %vm3974, %v3965, %v3205
    %v4015 = vsel %vm3974, %v3966, %v3207
    %v4016 = vsel %vm3974, %v3967, %v3209
    %v4017 = vsel %vm3974, %v3968, %v3211
    %v4018 = vsel %vm3974, %v3969, %v3213
    %v4019 = vsel %vm3974, %v3970, %v3215
    %v4020 = vsel %vm3974, %v3971, %v3217
    %v4021 = vsel %vm3974, %v3972, %v3219
    %v4022 = vsel %vm3974, %v3973, %v3221
    %vm4023 = vcmask 785408
    %v4024 = vsel %vm4023, %v3975, %v3275
    %v4025 = vsel %vm4023, %v3976, %v3277
    %v4026 = vsel %vm4023, %v3977, %v3279
    %v4027 = vsel %vm4023, %v3978, %v3281
    %v4028 = vsel %vm4023, %v3979, %v3283
    %v4029 = vsel %vm4023, %v3980, %v3285
    %v4030 = vsel %vm4023, %v3981, %v3287
    %v4031 = vsel %vm4023, %v3982, %v3289
    %v4032 = vsel %vm4023, %v3983, %v3291
    %v4033 = vsel %vm4023, %v3984, %v3293
    %v4034 = vsel %vm4023, %v3985, %v3295
    %v4035 = vsel %vm4023, %v3986, %v3297
    %v4036 = vsel %vm4023, %v3987, %v3299
    %v4037 = vsel %vm4023, %v3988, %v3301
    %v4038 = vsel %vm4023, %v3989, %v3303
    %v4039 = vsel %vm4023, %v3990, %v3305
    %v4040 = vsel %vm4023, %v3991, %v3307
    %v4041 = vsel %vm4023, %v3992, %v3309
    %v4042 = vsel %vm4023, %v3993, %v3311
    %v4043 = vsel %vm4023, %v3994, %v3313
    %v4044 = vsel %vm4023, %v3995, %v3315
    %v4045 = vsel %vm4023, %v3996, %v3317
    %v4046 = vsel %vm4023, %v3997, %v3319
    %v4047 = vsel %vm4023, %v3998, %v3321
    %v4048 = vsel %vm4023, %v3999, %v3323
    %v4049 = vsel %vm4023, %v4000, %v3325
    %v4050 = vsel %vm4023, %v4001, %v3327
    %v4051 = vsel %vm4023, %v4002, %v3329
    %v4052 = vsel %vm4023, %v4003, %v3331
    %v4053 = vsel %vm4023, %v4004, %v3333
    %v4054 = vsel %vm4023, %v4005, %v3335
    %v4055 = vsel %vm4023, %v4006, %v3337
    %v4056 = vsel %vm4023, %v4007, %v3339
    %v4057 = vsel %vm4023, %v4008, %v3341
    %v4058 = vsel %vm4023, %v4009, %v3343
    %v4059 = vsel %vm4023, %v4010, %v3345
    %v4060 = vsel %vm4023, %v4011, %v3347
    %v4061 = vsel %vm4023, %v4012, %v3349
    %v4062 = vsel %vm4023, %v4013, %v3351
    %v4063 = vsel %vm4023, %v4014, %v3353
    %v4064 = vsel %vm4023, %v4015, %v3355
    %v4065 = vsel %vm4023, %v4016, %v3357
    %v4066 = vsel %vm4023, %v4017, %v3359
    %v4067 = vsel %vm4023, %v4018, %v3361
    %v4068 = vsel %vm4023, %v4019, %v3363
    %v4069 = vsel %vm4023, %v4020, %v3365
    %v4070 = vsel %vm4023, %v4021, %v3367
    %v4071 = vsel %vm4023, %v4022, %v3369
    %v4072 = vsel %vm2457, %v2843, %v3479
    %v4073 = vsel %vm2457, %v2842, %v3481
    %v4074 = vsel %vm2457, %v2846, %v3483
    %v4075 = vsel %vm2457, %v2845, %v3485
    %v4076 = vsel %vm2457, %v2849, %v3487
    %v4077 = vsel %vm2457, %v2848, %v3489
    %v4078 = vsel %vm2457, %v2852, %v3491
    %v4079 = vsel %vm2457, %v2851, %v3493
    %v4080 = vsel %vm2457, %v2855, %v3495
    %v4081 = vsel %vm2457, %v2854, %v3497
    %v4082 = vsel %vm2457, %v2858, %v3499
    %v4083 = vsel %vm2457, %v2857, %v3501
    %v4084 = vsel %vm2457, %v2861, %v3503
    %v4085 = vsel %vm2457, %v2860, %v3505
    %v4086 = vsel %vm2457, %v2864, %v3507
    %v4087 = vsel %vm2457, %v2863, %v3509
    %v4088 = vsel %vm2457, %v2867, %v3511
    %v4089 = vsel %vm2457, %v2866, %v3513
    %v4090 = vsel %vm2457, %v2870, %v3515
    %v4091 = vsel %vm2457, %v2869, %v3517
    %v4092 = vsel %vm2457, %v2873, %v3519
    %v4093 = vsel %vm2457, %v2872, %v3521
    %v4094 = vsel %vm2457, %v3420, %v3523
    %v4095 = vsel %vm2457, %v3419, %v3525
    %v4096 = vsel %vm2457, %v2879, %v3527
    %v4097 = vsel %vm2457, %v2878, %v3529
    %v4098 = vsel %vm2457, %v2882, %v3531
    %v4099 = vsel %vm2457, %v2881, %v3533
    %v4100 = vsel %vm2457, %v2885, %v3535
    %v4101 = vsel %vm2457, %v2884, %v3537
    %v4102 = vsel %vm2457, %v2888, %v3539
    %v4103 = vsel %vm2457, %v2887, %v3541
    %v4104 = vsel %vm2457, %v2891, %v3543
    %v4105 = vsel %vm2457, %v2890, %v3545
    %v4106 = vsel %vm2457, %v2894, %v3547
    %v4107 = vsel %vm2457, %v2893, %v3549
    %v4108 = vsel %vm2457, %v2897, %v3551
    %v4109 = vsel %vm2457, %v2896, %v3553
    %v4110 = vsel %vm2457, %v2900, %v3555
    %v4111 = vsel %vm2457, %v2899, %v3557
    %v4112 = vsel %vm2457, %v2903, %v3559
    %v4113 = vsel %vm2457, %v2902, %v3561
    %v4114 = vsel %vm2457, %v2906, %v3563
    %v4115 = vsel %vm2457, %v2905, %v3565
    %v4116 = vsel %vm2457, %v2909, %v3567
    %v4117 = vsel %vm2457, %v2908, %v3569
    %v4118 = vsel %vm2457, %v3423, %v3571
    %v4119 = vsel %vm2457, %v3422, %v3573
    %v4120 = vsel %vm3974, %v4072, %v3627
    %v4121 = vsel %vm3974, %v4073, %v3629
    %v4122 = vsel %vm3974, %v4074, %v3631
    %v4123 = vsel %vm3974, %v4075, %v3633
    %v4124 = vsel %vm3974, %v4076, %v3635
    %v4125 = vsel %vm3974, %v4077, %v3637
    %v4126 = vsel %vm3974, %v4078, %v3639
    %v4127 = vsel %vm3974, %v4079, %v3641
    %v4128 = vsel %vm3974, %v4080, %v3643
    %v4129 = vsel %vm3974, %v4081, %v3645
    %v4130 = vsel %vm3974, %v4082, %v3647
    %v4131 = vsel %vm3974, %v4083, %v3649
    %v4132 = vsel %vm3974, %v4084, %v3651
    %v4133 = vsel %vm3974, %v4085, %v3653
    %v4134 = vsel %vm3974, %v4086, %v3655
    %v4135 = vsel %vm3974, %v4087, %v3657
    %v4136 = vsel %vm3974, %v4088, %v3659
    %v4137 = vsel %vm3974, %v4089, %v3661
    %v4138 = vsel %vm3974, %v4090, %v3663
    %v4139 = vsel %vm3974, %v4091, %v3665
    %v4140 = vsel %vm3974, %v4092, %v3667
    %v4141 = vsel %vm3974, %v4093, %v3669
    %v4142 = vsel %vm3974, %v4094, %v3671
    %v4143 = vsel %vm3974, %v4095, %v3673
    %v4144 = vsel %vm3974, %v4096, %v3675
    %v4145 = vsel %vm3974, %v4097, %v3677
    %v4146 = vsel %vm3974, %v4098, %v3679
    %v4147 = vsel %vm3974, %v4099, %v3681
    %v4148 = vsel %vm3974, %v4100, %v3683
    %v4149 = vsel %vm3974, %v4101, %v3685
    %v4150 = vsel %vm3974, %v4102, %v3687
    %v4151 = vsel %vm3974, %v4103, %v3689
    %v4152 = vsel %vm3974, %v4104, %v3691
    %v4153 = vsel %vm3974, %v4105, %v3693
    %v4154 = vsel %vm3974, %v4106, %v3695
    %v4155 = vsel %vm3974, %v4107, %v3697
    %v4156 = vsel %vm3974, %v4108, %v3699
    %v4157 = vsel %vm3974, %v4109, %v3701
    %v4158 = vsel %vm3974, %v4110, %v3703
    %v4159 = vsel %vm3974, %v4111, %v3705
    %v4160 = vsel %vm3974, %v4112, %v3707
    %v4161 = vsel %vm3974, %v4113, %v3709
    %v4162 = vsel %vm3974, %v4114, %v3711
    %v4163 = vsel %vm3974, %v4115, %v3713
    %v4164 = vsel %vm3974, %v4116, %v3715
    %v4165 = vsel %vm3974, %v4117, %v3717
    %v4166 = vsel %vm3974, %v4118, %v3719
    %v4167 = vsel %vm3974, %v4119, %v3721
    %v4168 = vsel %vm4023, %v4120, %v3777
    %v4169 = vsel %vm4023, %v4121, %v3779
    %v4170 = vsel %vm4023, %v4122, %v3781
    %v4171 = vsel %vm4023, %v4123, %v3783
    %v4172 = vsel %vm4023, %v4124, %v3785
    %v4173 = vsel %vm4023, %v4125, %v3787
    %v4174 = vsel %vm4023, %v4126, %v3789
    %v4175 = vsel %vm4023, %v4127, %v3791
    %v4176 = vsel %vm4023, %v4128, %v3793
    %v4177 = vsel %vm4023, %v4129, %v3795
    %v4178 = vsel %vm4023, %v4130, %v3797
    %v4179 = vsel %vm4023, %v4131, %v3799
    %v4180 = vsel %vm4023, %v4132, %v3801
    %v4181 = vsel %vm4023, %v4133, %v3803
    %v4182 = vsel %vm4023, %v4134, %v3805
    %v4183 = vsel %vm4023, %v4135, %v3807
    %v4184 = vsel %vm4023, %v4136, %v3809
    %v4185 = vsel %vm4023, %v4137, %v3811
    %v4186 = vsel %vm4023, %v4138, %v3813
    %v4187 = vsel %vm4023, %v4139, %v3815
    %v4188 = vsel %vm4023, %v4140, %v3817
    %v4189 = vsel %vm4023, %v4141, %v3819
    %v4190 = vsel %vm4023, %v4142, %v3821
    %v4191 = vsel %vm4023, %v4143, %v3823
    %v4192 = vsel %vm4023, %v4144, %v3825
    %v4193 = vsel %vm4023, %v4145, %v3827
    %v4194 = vsel %vm4023, %v4146, %v3829
    %v4195 = vsel %vm4023, %v4147, %v3831
    %v4196 = vsel %vm4023, %v4148, %v3833
    %v4197 = vsel %vm4023, %v4149, %v3835
    %v4198 = vsel %vm4023, %v4150, %v3837
    %v4199 = vsel %vm4023, %v4151, %v3839
    %v4200 = vsel %vm4023, %v4152, %v3841
    %v4201 = vsel %vm4023, %v4153, %v3843
    %v4202 = vsel %vm4023, %v4154, %v3845
    %v4203 = vsel %vm4023, %v4155, %v3847
    %v4204 = vsel %vm4023, %v4156, %v3849
    %v4205 = vsel %vm4023, %v4157, %v3851
    %v4206 = vsel %vm4023, %v4158, %v3853
    %v4207 = vsel %vm4023, %v4159, %v3855
    %v4208 = vsel %vm4023, %v4160, %v3857
    %v4209 = vsel %vm4023, %v4161, %v3859
    %v4210 = vsel %vm4023, %v4162, %v3861
    %v4211 = vsel %vm4023, %v4163, %v3863
    %v4212 = vsel %vm4023, %v4164, %v3865
    %v4213 = vsel %vm4023, %v4165, %v3867
    %v4214 = vsel %vm4023, %v4166, %v3869
    %v4215 = vsel %vm4023, %v4167, %v3871
    %v4312 = vcombine.low %v4024, %v4168
    %v4313 = vcombine.high %v4024, %v4168
    %v4314 = vcombine.high %v3062, %v3062
    %v4315 = vcombine.low %v4025, %v4169
    %v4316 = vcombine.low %v4026, %v4170
    %v4317 = vcombine.high %v4026, %v4170
    %v4318 = vcombine.high %v3065, %v3065
    %v4319 = vcombine.low %v4027, %v4171
    %v4320 = vcombine.low %v4028, %v4172
    %v4321 = vcombine.high %v4028, %v4172
    %v4322 = vcombine.high %v3068, %v3068
    %v4323 = vcombine.low %v4029, %v4173
    %v4324 = vcombine.low %v4030, %v4174
    %v4325 = vcombine.high %v4030, %v4174
    %v4326 = vcombine.high %v3071, %v3071
    %v4327 = vcombine.low %v4031, %v4175
    %v4328 = vcombine.low %v4032, %v4176
    %v4329 = vcombine.high %v4032, %v4176
    %v4330 = vcombine.high %v3074, %v3074
    %v4331 = vcombine.low %v4033, %v4177
    %v4332 = vcombine.low %v4034, %v4178
    %v4333 = vcombine.high %v4034, %v4178
    %v4334 = vcombine.high %v3077, %v3077
    %v4335 = vcombine.low %v4035, %v4179
    %v4336 = vcombine.low %v4036, %v4180
    %v4337 = vcombine.high %v4036, %v4180
    %v4338 = vcombine.high %v3080, %v3080
    %v4339 = vcombine.low %v4037, %v4181
    %v4340 = vcombine.low %v4038, %v4182
    %v4341 = vcombine.high %v4038, %v4182
    %v4342 = vcombine.high %v3083, %v3083
    %v4343 = vcombine.low %v4039, %v4183
    %v4344 = vcombine.low %v4040, %v4184
    %v4345 = vcombine.high %v4040, %v4184
    %v4346 = vcombine.high %v3086, %v3086
    %v4347 = vcombine.low %v4041, %v4185
    %v4348 = vcombine.low %v4042, %v4186
    %v4349 = vcombine.high %v4042, %v4186
    %v4350 = vcombine.high %v3089, %v3089
    %v4351 = vcombine.low %v4043, %v4187
    %v4352 = vcombine.low %v4044, %v4188
    %v4353 = vcombine.high %v4044, %v4188
    %v4354 = vcombine.high %v3474, %v3474
    %v4355 = vcombine.low %v4045, %v4189
    %v4356 = vcombine.low %v4046, %v4190
    %v4357 = vcombine.high %v4046, %v4190
    %v4358 = vcombine.high %v3922, %v3922
    %v4359 = vcombine.low %v4047, %v4191
    %v4360 = vcombine.low %v4048, %v4192
    %v4361 = vcombine.high %v4048, %v4192
    %v4362 = vcombine.high %v3098, %v3098
    %v4363 = vcombine.low %v4049, %v4193
    %v4364 = vcombine.low %v4050, %v4194
    %v4365 = vcombine.high %v4050, %v4194
    %v4366 = vcombine.high %v3101, %v3101
    %v4367 = vcombine.low %v4051, %v4195
    %v4368 = vcombine.low %v4052, %v4196
    %v4369 = vcombine.high %v4052, %v4196
    %v4370 = vcombine.high %v3104, %v3104
    %v4371 = vcombine.low %v4053, %v4197
    %v4372 = vcombine.low %v4054, %v4198
    %v4373 = vcombine.high %v4054, %v4198
    %v4374 = vcombine.high %v3107, %v3107
    %v4375 = vcombine.low %v4055, %v4199
    %v4376 = vcombine.low %v4056, %v4200
    %v4377 = vcombine.high %v4056, %v4200
    %v4378 = vcombine.high %v3110, %v3110
    %v4379 = vcombine.low %v4057, %v4201
    %v4380 = vcombine.low %v4058, %v4202
    %v4381 = vcombine.high %v4058, %v4202
    %v4382 = vcombine.high %v3113, %v3113
    %v4383 = vcombine.low %v4059, %v4203
    %v4384 = vcombine.low %v4060, %v4204
    %v4385 = vcombine.high %v4060, %v4204
    %v4386 = vcombine.high %v3116, %v3116
    %v4387 = vcombine.low %v4061, %v4205
    %v4388 = vcombine.low %v4062, %v4206
    %v4389 = vcombine.high %v4062, %v4206
    %v4390 = vcombine.high %v3119, %v3119
    %v4391 = vcombine.low %v4063, %v4207
    %v4392 = vcombine.low %v4064, %v4208
    %v4393 = vcombine.high %v4064, %v4208
    %v4394 = vcombine.high %v3122, %v3122
    %v4395 = vcombine.low %v4065, %v4209
    %v4396 = vcombine.low %v4066, %v4210
    %v4397 = vcombine.high %v4066, %v4210
    %v4398 = vcombine.high %v3125, %v3125
    %v4399 = vcombine.low %v4067, %v4211
    %v4400 = vcombine.low %v4068, %v4212
    %v4401 = vcombine.high %v4068, %v4212
    %v4402 = vcombine.high %v3477, %v3477
    %v4403 = vcombine.low %v4069, %v4213
    %v4404 = vcombine.low %v4070, %v4214
    %v4405 = vcombine.high %v4070, %v4214
    %v4406 = vcombine.high %v3925, %v3925
    %v4407 = vcombine.low %v4071, %v4215
    %v4409 = vlaneseq
    %v4410 = vshrl.u32 %v4409, 7
    %v4411 = vsub.s32 0, %v4410
    %v4412 = vrot.slane %v2789, %v4411
    %v4414 = vcombine.low %v4312, %v4313
    %v4415 = vcombine.high %v4312, %v4313
    %v4416 = vcombine.low %v3062, %v4314
    %v4417 = vcombine.low %v4315, %v4316
    %v4418 = vcombine.high %v4315, %v4316
    %v4419 = vcombine.low %v3061, %v3065
    %v4420 = vcombine.low %v4317, %v4319
    %v4421 = vcombine.high %v4317, %v4319
    %v4422 = vcombine.low %v4318, %v3064
    %v4423 = vcombine.low %v4320, %v4321
    %v4424 = vcombine.high %v4320, %v4321
    %v4425 = vcombine.low %v3068, %v4322
    %v4426 = vcombine.low %v4323, %v4324
    %v4427 = vcombine.high %v4323, %v4324
    %v4428 = vcombine.low %v3067, %v3071
    %v4429 = vcombine.low %v4325, %v4327
    %v4430 = vcombine.high %v4325, %v4327
    %v4431 = vcombine.low %v4326, %v3070
    %v4432 = vcombine.low %v4328, %v4329
    %v4433 = vcombine.high %v4328, %v4329
    %v4434 = vcombine.low %v3074, %v4330
    %v4435 = vcombine.low %v4331, %v4332
    %v4436 = vcombine.high %v4331, %v4332
    %v4437 = vcombine.low %v3073, %v3077
    %v4438 = vcombine.low %v4333, %v4335
    %v4439 = vcombine.high %v4333, %v4335
    %v4440 = vcombine.low %v4334, %v3076
    %v4441 = vcombine.low %v4336, %v4337
    %v4442 = vcombine.high %v4336, %v4337
    %v4443 = vcombine.low %v3080, %v4338
    %v4444 = vcombine.low %v4339, %v4340
    %v4445 = vcombine.high %v4339, %v4340
    %v4446 = vcombine.low %v3079, %v3083
    %v4447 = vcombine.low %v4341, %v4343
    %v4448 = vcombine.high %v4341, %v4343
    %v4449 = vcombine.low %v4342, %v3082
    %v4450 = vcombine.low %v4344, %v4345
    %v4451 = vcombine.high %v4344, %v4345
    %v4452 = vcombine.low %v3086, %v4346
    %v4453 = vcombine.low %v4347, %v4348
    %v4454 = vcombine.high %v4347, %v4348
    %v4455 = vcombine.low %v3085, %v3089
    %v4456 = vcombine.low %v4349, %v4351
    %v4457 = vcombine.high %v4349, %v4351
    %v4458 = vcombine.low %v4350, %v3088
    %v4459 = vcombine.low %v4352, %v4353
    %v4460 = vcombine.high %v4352, %v4353
    %v4461 = vcombine.low %v3474, %v4354
    %v4462 = vcombine.low %v4355, %v4356
    %v4463 = vcombine.high %v4355, %v4356
    %v4464 = vcombine.low %v3473, %v3922
    %v4465 = vcombine.low %v4357, %v4359
    %v4466 = vcombine.high %v4357, %v4359
    %v4467 = vcombine.low %v4358, %v3921
    %v4468 = vcombine.low %v4360, %v4361
    %v4469 = vcombine.high %v4360, %v4361
    %v4470 = vcombine.low %v3098, %v4362
    %v4471 = vcombine.low %v4363, %v4364
    %v4472 = vcombine.high %v4363, %v4364
    %v4473 = vcombine.low %v3097, %v3101
    %v4474 = vcombine.low %v4365, %v4367
    %v4475 = vcombine.high %v4365, %v4367
    %v4476 = vcombine.low %v4366, %v3100
    %v4477 = vcombine.low %v4368, %v4369
    %v4478 = vcombine.high %v4368, %v4369
    %v4479 = vcombine.low %v3104, %v4370
    %v4480 = vcombine.low %v4371, %v4372
    %v4481 = vcombine.high %v4371, %v4372
    %v4482 = vcombine.low %v3103, %v3107
    %v4483 = vcombine.low %v4373, %v4375
    %v4484 = vcombine.high %v4373, %v4375
    %v4485 = vcombine.low %v4374, %v3106
    %v4486 = vcombine.low %v4376, %v4377
    %v4487 = vcombine.high %v4376, %v4377
    %v4488 = vcombine.low %v3110, %v4378
    %v4489 = vcombine.low %v4379, %v4380
    %v4490 = vcombine.high %v4379, %v4380
    %v4491 = vcombine.low %v3109, %v3113
    %v4492 = vcombine.low %v4381, %v4383
    %v4493 = vcombine.high %v4381, %v4383
    %v4494 = vcombine.low %v4382, %v3112
    %v4495 = vcombine.low %v4384, %v4385
    %v4496 = vcombine.high %v4384, %v4385
    %v4497 = vcombine.low %v3116, %v4386
    %v4498 = vcombine.low %v4387, %v4388
    %v4499 = vcombine.high %v4387, %v4388
    %v4500 = vcombine.low %v3115, %v3119
    %v4501 = vcombine.low %v4389, %v4391
    %v4502 = vcombine.high %v4389, %v4391
    %v4503 = vcombine.low %v4390, %v3118
    %v4504 = vcombine.low %v4392, %v4393
    %v4505 = vcombine.high %v4392, %v4393
    %v4506 = vcombine.low %v3122, %v4394
    %v4507 = vcombine.low %v4395, %v4396
    %v4508 = vcombine.high %v4395, %v4396
    %v4509 = vcombine.low %v3121, %v3125
    %v4510 = vcombine.low %v4397, %v4399
    %v4511 = vcombine.high %v4397, %v4399
    %v4512 = vcombine.low %v4398, %v3124
    %v4513 = vcombine.low %v4400, %v4401
    %v4514 = vcombine.high %v4400, %v4401
    %v4515 = vcombine.low %v3477, %v4402
    %v4516 = vcombine.low %v4403, %v4404
    %v4517 = vcombine.high %v4403, %v4404
    %v4518 = vcombine.low %v3476, %v3925
    %v4519 = vcombine.low %v4405, %v4407
    %v4520 = vcombine.high %v4405, %v4407
    %v4521 = vcombine.low %v4406, %v3924
    %v4594 = vsel %vm2457, %v4416, 0
    %v4596 = vsel %vm2457, %v4419, 0
    %v4598 = vsel %vm2457, %v4422, 0
    %v4600 = vsel %vm2457, %v4425, 0
    %v4602 = vsel %vm2457, %v4428, 0
    %v4604 = vsel %vm2457, %v4431, 0
    %v4606 = vsel %vm2457, %v4434, 0
    %v4608 = vsel %vm2457, %v4437, 0
    %v4610 = vsel %vm2457, %v4440, 0
    %v4612 = vsel %vm2457, %v4443, 0
    %v4614 = vsel %vm2457, %v4446, 0
    %v4616 = vsel %vm2457, %v4449, 0
    %v4618 = vsel %vm2457, %v4452, 0
    %v4620 = vsel %vm2457, %v4455, 0
    %v4622 = vsel %vm2457, %v4458, 0
    %v4624 = vsel %vm2457, %v4461, 0
    %v4626 = vsel %vm2457, %v4464, 0
    %v4628 = vsel %vm2457, %v4467, 0
    %v4630 = vsel %vm2457, %v4470, 0
    %v4632 = vsel %vm2457, %v4473, 0
    %v4634 = vsel %vm2457, %v4476, 0
    %v4636 = vsel %vm2457, %v4479, 0
    %v4638 = vsel %vm2457, %v4482, 0
    %v4640 = vsel %vm2457, %v4485, 0
    %v4642 = vsel %vm2457, %v4488, 0
    %v4644 = vsel %vm2457, %v4491, 0
    %v4646 = vsel %vm2457, %v4494, 0
    %v4648 = vsel %vm2457, %v4497, 0
    %v4650 = vsel %vm2457, %v4500, 0
    %v4652 = vsel %vm2457, %v4503, 0
    %v4654 = vsel %vm2457, %v4506, 0
    %v4656 = vsel %vm2457, %v4509, 0
    %v4658 = vsel %vm2457, %v4512, 0
    %v4660 = vsel %vm2457, %v4515, 0
    %v4662 = vsel %vm2457, %v4518, 0
    %v4664 = vsel %vm2457, %v4521, 0
    %4666 = vmatprep.subr.mxu0 0.0
    %4667 = vmatpush1.msra.mxu0 %v2768
    %4668 = vmatprep.subr.mxu0 0.0
    %4669 = vmatpush1.msra.mxu0 %v2767
    %4670 = vmatprep.subr.mxu0 0.0
    %4671 = vmatpush1.msra.mxu0 %v2766
    %4672 = vmatprep.subr.mxu0 0.0
    %4673 = vmatpush1.msra.mxu0 %v2765
    %4674 = vmatprep.subr.mxu0 0.0
    %4675 = vmatpush1.msra.mxu0 %v2764
    %4676 = vmatprep.subr.mxu0 0.0
    %4677 = vmatpush1.msra.mxu0 %v2763
    %4678 = vmatprep.subr.mxu0 0.0
    %4679 = vmatpush1.msra.mxu0 %v2762
    %4680 = vmatprep.subr.mxu0 0.0
    %4681 = vmatpush1.msra.mxu0 %v2761
    %4682 = vmatprep.subr.mxu0 0.0
    %4683 = vmatpush1.msra.mxu0 %v2760
    %4684 = vmatprep.subr.mxu0 0.0
    %4685 = vmatpush1.msra.mxu0 %v2759
    %4686 = vmatprep.subr.mxu0 0.0
    %4687 = vmatpush1.msra.mxu0 %v2758
    %4688 = vmatprep.subr.mxu0 0.0
    %4689 = vmatpush1.msra.mxu0 %v2757
    %4690 = vmatprep.subr.mxu0 0.0
    %4691 = vmatpush1.msra.mxu0 %v2756
    %4692 = vmatprep.subr.mxu0 0.0
    %4693 = vmatpush1.msra.mxu0 %v2755
    %4694 = vmatprep.subr.mxu0 0.0
    %4695 = vmatpush1.msra.mxu0 %v2754
    %4696 = vmatprep.subr.mxu0 0.0
    %4697 = vmatpush1.msra.mxu0 %v2753
    %4698 = vmatprep.subr.mxu0 0.0
    %4699 = vmatpush2.msra.mxu0 %v2784
    %4700 = vmatprep.subr.mxu0 0.0
    %4701 = vmatpush2.msra.mxu0 %v2783
    %4702 = vmatprep.subr.mxu0 0.0
    %4703 = vmatpush2.msra.mxu0 %v2782
    %4704 = vmatprep.subr.mxu0 0.0
    %4705 = vmatpush2.msra.mxu0 %v2781
    %4706 = vmatprep.subr.mxu0 0.0
    %4707 = vmatpush2.msra.mxu0 %v2780
    %4708 = vmatprep.subr.mxu0 0.0
    %4709 = vmatpush2.msra.mxu0 %v2779
    %4710 = vmatprep.subr.mxu0 0.0
    %4711 = vmatpush2.msra.mxu0 %v2778
    %4712 = vmatprep.subr.mxu0 0.0
    %4713 = vmatpush2.msra.mxu0 %v2777
    %4714 = vmatprep.subr.mxu0 0.0
    %4715 = vmatpush2.msra.mxu0 %v2776
    %4716 = vmatprep.subr.mxu0 0.0
    %4717 = vmatpush2.msra.mxu0 %v2775
    %4718 = vmatprep.subr.mxu0 0.0
    %4719 = vmatpush2.msra.mxu0 %v2774
    %4720 = vmatprep.subr.mxu0 0.0
    %4721 = vmatpush2.msra.mxu0 %v2773
    %4722 = vmatprep.subr.mxu0 0.0
    %4723 = vmatpush2.msra.mxu0 %v2772
    %4724 = vmatprep.subr.mxu0 0.0
    %4725 = vmatpush2.msra.mxu0 %v2771
    %4726 = vmatprep.subr.mxu0 0.0
    %4727 = vmatpush2.msra.mxu0 %v2770
    %4728 = vmatprep.subr.mxu0 0.0
    %4729 = vmatpush2.msra.mxu0 %v2769
    %4730 = vmatprep.mubr.f32.mxu0 %v4415
    %4731 = vmatmul.mubr.f32.gmra.mxu0 %v4414
    %v4732 = vpop.f32.mrf.mxu0
    %v4733 = vadd.f32 %v4412, %v4732
    %v4734 = vpop.f32.mrf.mxu0
    %4735 = vmatprep.mubr.f32.mxu0 %v4418
    %4736 = vmatmul.mubr.f32.gmra.mxu0 %v4417
    %v4737 = vpop.f32.mrf.mxu0
    %v4738 = vadd.f32 %v4412, %v4737
    %v4739 = vpop.f32.mrf.mxu0
    %4740 = vmatprep.mubr.f32.mxu0 %v4421
    %4741 = vmatmul.mubr.f32.gmra.mxu0 %v4420
    %v4742 = vpop.f32.mrf.mxu0
    %v4743 = vadd.f32 %v4412, %v4742
    %v4744 = vpop.f32.mrf.mxu0
    %4745 = vmatprep.mubr.f32.mxu0 %v4424
    %4746 = vmatmul.mubr.f32.gmra.mxu0 %v4423
    %v4747 = vpop.f32.mrf.mxu0
    %v4748 = vadd.f32 %v4412, %v4747
    %v4749 = vpop.f32.mrf.mxu0
    %4750 = vmatprep.mubr.f32.mxu0 %v4427
    %4751 = vmatmul.mubr.f32.gmra.mxu0 %v4426
    %v4752 = vpop.f32.mrf.mxu0
    %v4753 = vadd.f32 %v4412, %v4752
    %v4754 = vpop.f32.mrf.mxu0
    %4755 = vmatprep.mubr.f32.mxu0 %v4430
    %4756 = vmatmul.mubr.f32.gmra.mxu0 %v4429
    %v4757 = vpop.f32.mrf.mxu0
    %v4758 = vadd.f32 %v4412, %v4757
    %v4759 = vpop.f32.mrf.mxu0
    %4760 = vmatprep.mubr.f32.mxu0 %v4433
    %4761 = vmatmul.mubr.f32.gmra.mxu0 %v4432
    %v4762 = vpop.f32.mrf.mxu0
    %v4763 = vadd.f32 %v4412, %v4762
    %v4764 = vpop.f32.mrf.mxu0
    %4765 = vmatprep.mubr.f32.mxu0 %v4436
    %4766 = vmatmul.mubr.f32.gmra.mxu0 %v4435
    %v4767 = vpop.f32.mrf.mxu0
    %v4768 = vadd.f32 %v4412, %v4767
    %v4769 = vpop.f32.mrf.mxu0
    %4770 = vmatprep.mubr.f32.mxu0 %v4439
    %4771 = vmatmul.mubr.f32.gmra.mxu0 %v4438
    %v4772 = vpop.f32.mrf.mxu0
    %v4773 = vadd.f32 %v4412, %v4772
    %v4774 = vpop.f32.mrf.mxu0
    %4775 = vmatprep.mubr.f32.mxu0 %v4442
    %4776 = vmatmul.mubr.f32.gmra.mxu0 %v4441
    %v4777 = vpop.f32.mrf.mxu0
    %v4778 = vadd.f32 %v4412, %v4777
    %v4779 = vpop.f32.mrf.mxu0
    %4780 = vmatprep.mubr.f32.mxu0 %v4445
    %4781 = vmatmul.mubr.f32.gmra.mxu0 %v4444
    %v4782 = vpop.f32.mrf.mxu0
    %v4783 = vadd.f32 %v4412, %v4782
    %v4784 = vpop.f32.mrf.mxu0
    %4785 = vmatprep.mubr.f32.mxu0 %v4448
    %4786 = vmatmul.mubr.f32.gmra.mxu0 %v4447
    %v4787 = vpop.f32.mrf.mxu0
    %v4788 = vadd.f32 %v4412, %v4787
    %v4789 = vpop.f32.mrf.mxu0
    %4790 = vmatprep.mubr.f32.mxu0 %v4451
    %4791 = vmatmul.mubr.f32.gmra.mxu0 %v4450
    %v4792 = vpop.f32.mrf.mxu0
    %v4793 = vadd.f32 %v4412, %v4792
    %v4794 = vpop.f32.mrf.mxu0
    %4795 = vmatprep.mubr.f32.mxu0 %v4454
    %4796 = vmatmul.mubr.f32.gmra.mxu0 %v4453
    %v4797 = vpop.f32.mrf.mxu0
    %v4798 = vadd.f32 %v4412, %v4797
    %v4799 = vpop.f32.mrf.mxu0
    %4800 = vmatprep.mubr.f32.mxu0 %v4457
    %4801 = vmatmul.mubr.f32.gmra.mxu0 %v4456
    %v4802 = vpop.f32.mrf.mxu0
    %v4803 = vadd.f32 %v4412, %v4802
    %v4804 = vpop.f32.mrf.mxu0
    %4805 = vmatprep.mubr.f32.mxu0 %v4460
    %4806 = vmatmul.mubr.f32.gmra.mxu0 %v4459
    %v4807 = vpop.f32.mrf.mxu0
    %v4808 = vadd.f32 %v4412, %v4807
    %v4809 = vpop.f32.mrf.mxu0
    %4810 = vmatprep.mubr.f32.mxu0 %v4463
    %4811 = vmatmul.mubr.f32.gmra.mxu0 %v4462
    %v4812 = vpop.f32.mrf.mxu0
    %v4813 = vadd.f32 %v4412, %v4812
    %v4814 = vpop.f32.mrf.mxu0
    %4815 = vmatprep.mubr.f32.mxu0 %v4466
    %4816 = vmatmul.mubr.f32.gmra.mxu0 %v4465
    %v4817 = vpop.f32.mrf.mxu0
    %v4818 = vadd.f32 %v4412, %v4817
    %v4819 = vpop.f32.mrf.mxu0
    %4820 = vmatprep.mubr.f32.mxu0 %v4469
    %4821 = vmatmul.mubr.f32.gmra.mxu0 %v4468
    %v4822 = vpop.f32.mrf.mxu0
    %v4823 = vadd.f32 %v4412, %v4822
    %v4824 = vpop.f32.mrf.mxu0
    %4825 = vmatprep.mubr.f32.mxu0 %v4472
    %4826 = vmatmul.mubr.f32.gmra.mxu0 %v4471
    %v4827 = vpop.f32.mrf.mxu0
    %v4828 = vadd.f32 %v4412, %v4827
    %v4829 = vpop.f32.mrf.mxu0
    %4830 = vmatprep.mubr.f32.mxu0 %v4475
    %4831 = vmatmul.mubr.f32.gmra.mxu0 %v4474
    %v4832 = vpop.f32.mrf.mxu0
    %v4833 = vadd.f32 %v4412, %v4832
    %v4834 = vpop.f32.mrf.mxu0
    %4835 = vmatprep.mubr.f32.mxu0 %v4478
    %4836 = vmatmul.mubr.f32.gmra.mxu0 %v4477
    %v4837 = vpop.f32.mrf.mxu0
    %v4838 = vadd.f32 %v4412, %v4837
    %v4839 = vpop.f32.mrf.mxu0
    %4840 = vmatprep.mubr.f32.mxu0 %v4481
    %4841 = vmatmul.mubr.f32.gmra.mxu0 %v4480
    %v4842 = vpop.f32.mrf.mxu0
    %v4843 = vadd.f32 %v4412, %v4842
    %v4844 = vpop.f32.mrf.mxu0
    %4845 = vmatprep.mubr.f32.mxu0 %v4484
    %4846 = vmatmul.mubr.f32.gmra.mxu0 %v4483
    %v4847 = vpop.f32.mrf.mxu0
    %v4848 = vadd.f32 %v4412, %v4847
    %v4849 = vpop.f32.mrf.mxu0
    %4850 = vmatprep.mubr.f32.mxu0 %v4487
    %4851 = vmatmul.mubr.f32.gmra.mxu0 %v4486
    %v4852 = vpop.f32.mrf.mxu0
    %v4853 = vadd.f32 %v4412, %v4852
    %v4854 = vpop.f32.mrf.mxu0
    %4855 = vmatprep.mubr.f32.mxu0 %v4490
    %4856 = vmatmul.mubr.f32.gmra.mxu0 %v4489
    %v4857 = vpop.f32.mrf.mxu0
    %v4858 = vadd.f32 %v4412, %v4857
    %v4859 = vpop.f32.mrf.mxu0
    %4860 = vmatprep.mubr.f32.mxu0 %v4493
    %4861 = vmatmul.mubr.f32.gmra.mxu0 %v4492
    %v4862 = vpop.f32.mrf.mxu0
    %v4863 = vadd.f32 %v4412, %v4862
    %v4864 = vpop.f32.mrf.mxu0
    %4865 = vmatprep.mubr.f32.mxu0 %v4496
    %4866 = vmatmul.mubr.f32.gmra.mxu0 %v4495
    %v4867 = vpop.f32.mrf.mxu0
    %v4868 = vadd.f32 %v4412, %v4867
    %v4869 = vpop.f32.mrf.mxu0
    %4870 = vmatprep.mubr.f32.mxu0 %v4499
    %4871 = vmatmul.mubr.f32.gmra.mxu0 %v4498
    %v4872 = vpop.f32.mrf.mxu0
    %v4873 = vadd.f32 %v4412, %v4872
    %v4874 = vpop.f32.mrf.mxu0
    %4875 = vmatprep.mubr.f32.mxu0 %v4502
    %4876 = vmatmul.mubr.f32.gmra.mxu0 %v4501
    %v4877 = vpop.f32.mrf.mxu0
    %v4878 = vadd.f32 %v4412, %v4877
    %v4879 = vpop.f32.mrf.mxu0
    %4880 = vmatprep.mubr.f32.mxu0 %v4505
    %4881 = vmatmul.mubr.f32.gmra.mxu0 %v4504
    %v4882 = vpop.f32.mrf.mxu0
    %v4883 = vadd.f32 %v4412, %v4882
    %v4884 = vpop.f32.mrf.mxu0
    %4885 = vmatprep.mubr.f32.mxu0 %v4508
    %4886 = vmatmul.mubr.f32.gmra.mxu0 %v4507
    %v4887 = vpop.f32.mrf.mxu0
    %v4888 = vadd.f32 %v4412, %v4887
    %v4889 = vpop.f32.mrf.mxu0
    %4890 = vmatprep.mubr.f32.mxu0 %v4511
    %4891 = vmatmul.mubr.f32.gmra.mxu0 %v4510
    %v4892 = vpop.f32.mrf.mxu0
    %v4893 = vadd.f32 %v4412, %v4892
    %v4894 = vpop.f32.mrf.mxu0
    %4895 = vmatprep.mubr.f32.mxu0 %v4514
    %4896 = vmatmul.mubr.f32.gmra.mxu0 %v4513
    %v4897 = vpop.f32.mrf.mxu0
    %v4898 = vadd.f32 %v4412, %v4897
    %v4899 = vpop.f32.mrf.mxu0
    %4900 = vmatprep.mubr.f32.mxu0 %v4517
    %4901 = vmatmul.mubr.f32.gmra.mxu0 %v4516
    %v4902 = vpop.f32.mrf.mxu0
    %v4903 = vadd.f32 %v4412, %v4902
    %v4904 = vpop.f32.mrf.mxu0
    %4905 = vmatprep.mubr.f32.mxu0 %v4520
    %4906 = vmatmul.mubr.f32.gmra.mxu0 %v4519
    %v4907 = vpop.f32.mrf.mxu0
    %v4908 = vadd.f32 %v4412, %v4907
    %v4909 = vpop.f32.mrf.mxu0
    %4910 = vdwg.mxu0
    %4911 = vmatprep.subr.mxu0 0.0
    %4912 = vmatpush1.msra.mxu0 0.0
    %4913 = vmatprep.subr.mxu0 0.0
    %4914 = vmatpush1.msra.mxu0 0.0
    %4915 = vmatprep.subr.mxu0 0.0
    %4916 = vmatpush1.msra.mxu0 0.0
    %4917 = vmatprep.subr.mxu0 0.0
    %4918 = vmatpush1.msra.mxu0 0.0
    %4919 = vmatprep.subr.mxu0 0.0
    %4920 = vmatpush1.msra.mxu0 0.0
    %4921 = vmatprep.subr.mxu0 0.0
    %4922 = vmatpush1.msra.mxu0 0.0
    %4923 = vmatprep.subr.mxu0 0.0
    %4924 = vmatpush1.msra.mxu0 0.0
    %4925 = vmatprep.subr.mxu0 0.0
    %4926 = vmatpush1.msra.mxu0 0.0
    %4927 = vmatprep.subr.mxu0 0.0
    %4928 = vmatpush1.msra.mxu0 0.0
    %4929 = vmatprep.subr.mxu0 0.0
    %4930 = vmatpush1.msra.mxu0 0.0
    %4931 = vmatprep.subr.mxu0 0.0
    %4932 = vmatpush1.msra.mxu0 0.0
    %4933 = vmatprep.subr.mxu0 0.0
    %4934 = vmatpush1.msra.mxu0 0.0
    %4935 = vmatprep.subr.mxu0 0.0
    %4936 = vmatpush1.msra.mxu0 %v2788
    %4937 = vmatprep.subr.mxu0 0.0
    %4938 = vmatpush1.msra.mxu0 %v2787
    %4939 = vmatprep.subr.mxu0 0.0
    %4940 = vmatpush1.msra.mxu0 %v2786
    %4941 = vmatprep.subr.mxu0 0.0
    %4942 = vmatpush1.msra.mxu0 %v2785
    %4943 = vmatprep.subr.mxu0 0.0
    %4944 = vmatpush2.msra.mxu0 0.0
    %4945 = vmatprep.subr.mxu0 0.0
    %4946 = vmatpush2.msra.mxu0 0.0
    %4947 = vmatprep.subr.mxu0 0.0
    %4948 = vmatpush2.msra.mxu0 0.0
    %4949 = vmatprep.subr.mxu0 0.0
    %4950 = vmatpush2.msra.mxu0 0.0
    %4951 = vmatprep.subr.mxu0 0.0
    %4952 = vmatpush2.msra.mxu0 0.0
    %4953 = vmatprep.subr.mxu0 0.0
    %4954 = vmatpush2.msra.mxu0 0.0
    %4955 = vmatprep.subr.mxu0 0.0
    %4956 = vmatpush2.msra.mxu0 0.0
    %4957 = vmatprep.subr.mxu0 0.0
    %4958 = vmatpush2.msra.mxu0 0.0
    %4959 = vmatprep.subr.mxu0 0.0
    %4960 = vmatpush2.msra.mxu0 0.0
    %4961 = vmatprep.subr.mxu0 0.0
    %4962 = vmatpush2.msra.mxu0 0.0
    %4963 = vmatprep.subr.mxu0 0.0
    %4964 = vmatpush2.msra.mxu0 0.0
    %4965 = vmatprep.subr.mxu0 0.0
    %4966 = vmatpush2.msra.mxu0 0.0
    %4967 = vmatprep.subr.mxu0 0.0
    %4968 = vmatpush2.msra.mxu0 0.0
    %4969 = vmatprep.subr.mxu0 0.0
    %4970 = vmatpush2.msra.mxu0 0.0
    %4971 = vmatprep.subr.mxu0 0.0
    %4972 = vmatpush2.msra.mxu0 0.0
    %4973 = vmatprep.subr.mxu0 0.0
    %4974 = vmatpush2.msra.mxu0 0.0
    %4975 = vmatprep.mubr.f32.mxu0 0.0
    %4976 = vmatmul.mubr.f32.gmra.mxu0 %v4594
    %v4977 = vpop.f32.mrf.mxu0
    %v4978 = vadd.f32 %v4733, %v4977
    %v4979 = vpop.f32.mrf.mxu0
    %4980 = vmatprep.mubr.f32.mxu0 0.0
    %4981 = vmatmul.mubr.f32.gmra.mxu0 %v4596
    %v4982 = vpop.f32.mrf.mxu0
    %v4983 = vadd.f32 %v4738, %v4982
    %v4984 = vpop.f32.mrf.mxu0
    %4985 = vmatprep.mubr.f32.mxu0 0.0
    %4986 = vmatmul.mubr.f32.gmra.mxu0 %v4598
    %v4987 = vpop.f32.mrf.mxu0
    %v4988 = vadd.f32 %v4743, %v4987
    %v4989 = vpop.f32.mrf.mxu0
    %4990 = vmatprep.mubr.f32.mxu0 0.0
    %4991 = vmatmul.mubr.f32.gmra.mxu0 %v4600
    %v4992 = vpop.f32.mrf.mxu0
    %v4993 = vadd.f32 %v4748, %v4992
    %v4994 = vpop.f32.mrf.mxu0
    %4995 = vmatprep.mubr.f32.mxu0 0.0
    %4996 = vmatmul.mubr.f32.gmra.mxu0 %v4602
    %v4997 = vpop.f32.mrf.mxu0
    %v4998 = vadd.f32 %v4753, %v4997
    %v4999 = vpop.f32.mrf.mxu0
    %5000 = vmatprep.mubr.f32.mxu0 0.0
    %5001 = vmatmul.mubr.f32.gmra.mxu0 %v4604
    %v5002 = vpop.f32.mrf.mxu0
    %v5003 = vadd.f32 %v4758, %v5002
    %v5004 = vpop.f32.mrf.mxu0
    %5005 = vmatprep.mubr.f32.mxu0 0.0
    %5006 = vmatmul.mubr.f32.gmra.mxu0 %v4606
    %v5007 = vpop.f32.mrf.mxu0
    %v5008 = vadd.f32 %v4763, %v5007
    %v5009 = vpop.f32.mrf.mxu0
    %5010 = vmatprep.mubr.f32.mxu0 0.0
    %5011 = vmatmul.mubr.f32.gmra.mxu0 %v4608
    %v5012 = vpop.f32.mrf.mxu0
    %v5013 = vadd.f32 %v4768, %v5012
    %v5014 = vpop.f32.mrf.mxu0
    %5015 = vmatprep.mubr.f32.mxu0 0.0
    %5016 = vmatmul.mubr.f32.gmra.mxu0 %v4610
    %v5017 = vpop.f32.mrf.mxu0
    %v5018 = vadd.f32 %v4773, %v5017
    %v5019 = vpop.f32.mrf.mxu0
    %5020 = vmatprep.mubr.f32.mxu0 0.0
    %5021 = vmatmul.mubr.f32.gmra.mxu0 %v4612
    %v5022 = vpop.f32.mrf.mxu0
    %v5023 = vadd.f32 %v4778, %v5022
    %v5024 = vpop.f32.mrf.mxu0
    %5025 = vmatprep.mubr.f32.mxu0 0.0
    %5026 = vmatmul.mubr.f32.gmra.mxu0 %v4614
    %v5027 = vpop.f32.mrf.mxu0
    %v5028 = vadd.f32 %v4783, %v5027
    %v5029 = vpop.f32.mrf.mxu0
    %5030 = vmatprep.mubr.f32.mxu0 0.0
    %5031 = vmatmul.mubr.f32.gmra.mxu0 %v4616
    %v5032 = vpop.f32.mrf.mxu0
    %v5033 = vadd.f32 %v4788, %v5032
    %v5034 = vpop.f32.mrf.mxu0
    %5035 = vmatprep.mubr.f32.mxu0 0.0
    %5036 = vmatmul.mubr.f32.gmra.mxu0 %v4618
    %v5037 = vpop.f32.mrf.mxu0
    %v5038 = vadd.f32 %v4793, %v5037
    %v5039 = vpop.f32.mrf.mxu0
    %5040 = vmatprep.mubr.f32.mxu0 0.0
    %5041 = vmatmul.mubr.f32.gmra.mxu0 %v4620
    %v5042 = vpop.f32.mrf.mxu0
    %v5043 = vadd.f32 %v4798, %v5042
    %v5044 = vpop.f32.mrf.mxu0
    %5045 = vmatprep.mubr.f32.mxu0 0.0
    %5046 = vmatmul.mubr.f32.gmra.mxu0 %v4622
    %v5047 = vpop.f32.mrf.mxu0
    %v5048 = vadd.f32 %v4803, %v5047
    %v5049 = vpop.f32.mrf.mxu0
    %5050 = vmatprep.mubr.f32.mxu0 0.0
    %5051 = vmatmul.mubr.f32.gmra.mxu0 %v4624
    %v5052 = vpop.f32.mrf.mxu0
    %v5053 = vadd.f32 %v4808, %v5052
    %v5054 = vpop.f32.mrf.mxu0
    %5055 = vmatprep.mubr.f32.mxu0 0.0
    %5056 = vmatmul.mubr.f32.gmra.mxu0 %v4626
    %v5057 = vpop.f32.mrf.mxu0
    %v5058 = vadd.f32 %v4813, %v5057
    %v5059 = vpop.f32.mrf.mxu0
    %5060 = vmatprep.mubr.f32.mxu0 0.0
    %5061 = vmatmul.mubr.f32.gmra.mxu0 %v4628
    %v5062 = vpop.f32.mrf.mxu0
    %v5063 = vadd.f32 %v4818, %v5062
    %v5064 = vpop.f32.mrf.mxu0
    %5065 = vmatprep.mubr.f32.mxu0 0.0
    %5066 = vmatmul.mubr.f32.gmra.mxu0 %v4630
    %v5067 = vpop.f32.mrf.mxu0
    %v5068 = vadd.f32 %v4823, %v5067
    %v5069 = vpop.f32.mrf.mxu0
    %5070 = vmatprep.mubr.f32.mxu0 0.0
    %5071 = vmatmul.mubr.f32.gmra.mxu0 %v4632
    %v5072 = vpop.f32.mrf.mxu0
    %v5073 = vadd.f32 %v4828, %v5072
    %v5074 = vpop.f32.mrf.mxu0
    %5075 = vmatprep.mubr.f32.mxu0 0.0
    %5076 = vmatmul.mubr.f32.gmra.mxu0 %v4634
    %v5077 = vpop.f32.mrf.mxu0
    %v5078 = vadd.f32 %v4833, %v5077
    %v5079 = vpop.f32.mrf.mxu0
    %5080 = vmatprep.mubr.f32.mxu0 0.0
    %5081 = vmatmul.mubr.f32.gmra.mxu0 %v4636
    %v5082 = vpop.f32.mrf.mxu0
    %v5083 = vadd.f32 %v4838, %v5082
    %v5084 = vpop.f32.mrf.mxu0
    %5085 = vmatprep.mubr.f32.mxu0 0.0
    %5086 = vmatmul.mubr.f32.gmra.mxu0 %v4638
    %v5087 = vpop.f32.mrf.mxu0
    %v5088 = vadd.f32 %v4843, %v5087
    %v5089 = vpop.f32.mrf.mxu0
    %5090 = vmatprep.mubr.f32.mxu0 0.0
    %5091 = vmatmul.mubr.f32.gmra.mxu0 %v4640
    %v5092 = vpop.f32.mrf.mxu0
    %v5093 = vadd.f32 %v4848, %v5092
    %v5094 = vpop.f32.mrf.mxu0
    %5095 = vmatprep.mubr.f32.mxu0 0.0
    %5096 = vmatmul.mubr.f32.gmra.mxu0 %v4642
    %v5097 = vpop.f32.mrf.mxu0
    %v5098 = vadd.f32 %v4853, %v5097
    %v5099 = vpop.f32.mrf.mxu0
    %5100 = vmatprep.mubr.f32.mxu0 0.0
    %5101 = vmatmul.mubr.f32.gmra.mxu0 %v4644
    %v5102 = vpop.f32.mrf.mxu0
    %v5103 = vadd.f32 %v4858, %v5102
    %v5104 = vpop.f32.mrf.mxu0
    %5105 = vmatprep.mubr.f32.mxu0 0.0
    %5106 = vmatmul.mubr.f32.gmra.mxu0 %v4646
    %v5107 = vpop.f32.mrf.mxu0
    %v5108 = vadd.f32 %v4863, %v5107
    %v5109 = vpop.f32.mrf.mxu0
    %5110 = vmatprep.mubr.f32.mxu0 0.0
    %5111 = vmatmul.mubr.f32.gmra.mxu0 %v4648
    %v5112 = vpop.f32.mrf.mxu0
    %v5113 = vadd.f32 %v4868, %v5112
    %v5114 = vpop.f32.mrf.mxu0
    %5115 = vmatprep.mubr.f32.mxu0 0.0
    %5116 = vmatmul.mubr.f32.gmra.mxu0 %v4650
    %v5117 = vpop.f32.mrf.mxu0
    %v5118 = vadd.f32 %v4873, %v5117
    %v5119 = vpop.f32.mrf.mxu0
    %5120 = vmatprep.mubr.f32.mxu0 0.0
    %5121 = vmatmul.mubr.f32.gmra.mxu0 %v4652
    %v5122 = vpop.f32.mrf.mxu0
    %v5123 = vadd.f32 %v4878, %v5122
    %v5124 = vpop.f32.mrf.mxu0
    %5125 = vmatprep.mubr.f32.mxu0 0.0
    %5126 = vmatmul.mubr.f32.gmra.mxu0 %v4654
    %v5127 = vpop.f32.mrf.mxu0
    %v5128 = vadd.f32 %v4883, %v5127
    %v5129 = vpop.f32.mrf.mxu0
    %5130 = vmatprep.mubr.f32.mxu0 0.0
    %5131 = vmatmul.mubr.f32.gmra.mxu0 %v4656
    %v5132 = vpop.f32.mrf.mxu0
    %v5133 = vadd.f32 %v4888, %v5132
    %v5134 = vpop.f32.mrf.mxu0
    %5135 = vmatprep.mubr.f32.mxu0 0.0
    %5136 = vmatmul.mubr.f32.gmra.mxu0 %v4658
    %v5137 = vpop.f32.mrf.mxu0
    %v5138 = vadd.f32 %v4893, %v5137
    %v5139 = vpop.f32.mrf.mxu0
    %5140 = vmatprep.mubr.f32.mxu0 0.0
    %5141 = vmatmul.mubr.f32.gmra.mxu0 %v4660
    %v5142 = vpop.f32.mrf.mxu0
    %v5143 = vadd.f32 %v4898, %v5142
    %v5144 = vpop.f32.mrf.mxu0
    %5145 = vmatprep.mubr.f32.mxu0 0.0
    %5146 = vmatmul.mubr.f32.gmra.mxu0 %v4662
    %v5147 = vpop.f32.mrf.mxu0
    %v5148 = vadd.f32 %v4903, %v5147
    %v5149 = vpop.f32.mrf.mxu0
    %5150 = vmatprep.mubr.f32.mxu0 0.0
    %5151 = vmatmul.mubr.f32.gmra.mxu0 %v4664
    %v5152 = vpop.f32.mrf.mxu0
    %v5153 = vadd.f32 %v4908, %v5152
    %v5154 = vpop.f32.mrf.mxu0
    %5155 = vdwg.mxu0
    %v5156 = vmax.f32 %v4978, 0.0
    %v5157 = vmax.f32 %v4983, 0.0
    %v5158 = vmax.f32 %v4988, 0.0
    %v5159 = vmax.f32 %v4993, 0.0
    %v5160 = vmax.f32 %v4998, 0.0
    %v5161 = vmax.f32 %v5003, 0.0
    %v5162 = vmax.f32 %v5008, 0.0
    %v5163 = vmax.f32 %v5013, 0.0
    %v5164 = vmax.f32 %v5018, 0.0
    %v5165 = vmax.f32 %v5023, 0.0
    %v5166 = vmax.f32 %v5028, 0.0
    %v5167 = vmax.f32 %v5033, 0.0
    %v5168 = vmax.f32 %v5038, 0.0
    %v5169 = vmax.f32 %v5043, 0.0
    %v5170 = vmax.f32 %v5048, 0.0
    %v5171 = vmax.f32 %v5053, 0.0
    %v5172 = vmax.f32 %v5058, 0.0
    %v5173 = vmax.f32 %v5063, 0.0
    %v5174 = vmax.f32 %v5068, 0.0
    %v5175 = vmax.f32 %v5073, 0.0
    %v5176 = vmax.f32 %v5078, 0.0
    %v5177 = vmax.f32 %v5083, 0.0
    %v5178 = vmax.f32 %v5088, 0.0
    %v5179 = vmax.f32 %v5093, 0.0
    %v5180 = vmax.f32 %v5098, 0.0
    %v5181 = vmax.f32 %v5103, 0.0
    %v5182 = vmax.f32 %v5108, 0.0
    %v5183 = vmax.f32 %v5113, 0.0
    %v5184 = vmax.f32 %v5118, 0.0
    %v5185 = vmax.f32 %v5123, 0.0
    %v5186 = vmax.f32 %v5128, 0.0
    %v5187 = vmax.f32 %v5133, 0.0
    %v5188 = vmax.f32 %v5138, 0.0
    %v5189 = vmax.f32 %v5143, 0.0
    %v5190 = vmax.f32 %v5148, 0.0
    %v5191 = vmax.f32 %v5153, 0.0
    %5192 = vst.msk [vmem:[#allocation3] sm:$0xff] %vm3974, 0.0
    %vm5193 = vcmask 521216
    %5194 = vst.msk [vmem:[#allocation3 + $0x8] sm:$0x3f] %vm5193, 0.0
    %5195 = vst.msk [vmem:[#allocation3 + $0x10] sm:$0xff] %vm3974, 0.0
    %5196 = vst.msk [vmem:[#allocation3 + $0x18] sm:$0x3f] %vm5193, 0.0
    %5197 = vst.msk [vmem:[#allocation3 + $0x20] sm:$0xff] %vm3974, 0.0
    %5198 = vst.msk [vmem:[#allocation3 + $0x28] sm:$0x3f] %vm5193, 0.0
    %5199 = vst.msk [vmem:[#allocation3 + $0x30] sm:$0xff] %vm3974, 0.0
    %5200 = vst.msk [vmem:[#allocation3 + $0x38] sm:$0x3f] %vm5193, 0.0
    %5201 = vst.msk [vmem:[#allocation3 + $0x40] sm:$0xff] %vm3974, 0.0
    %5202 = vst.msk [vmem:[#allocation3 + $0x48] sm:$0x3f] %vm5193, 0.0
    %5203 = vst.msk [vmem:[#allocation3 + $0x50] sm:$0xff] %vm3974, 0.0
    %5204 = vst.msk [vmem:[#allocation3 + $0x58] sm:$0x3f] %vm5193, 0.0
    %5205 = vst.msk [vmem:[#allocation3 + $0x60] sm:$0xff] %vm3974, 0.0
    %5206 = vst.msk [vmem:[#allocation3 + $0x68] sm:$0x3f] %vm5193, 0.0
    %5207 = vst.msk [vmem:[#allocation3 + $0x70] sm:$0xff] %vm3974, 0.0
    %5208 = vst.msk [vmem:[#allocation3 + $0x78] sm:$0x3f] %vm5193, 0.0
    %5209 = vst.msk [vmem:[#allocation3 + $0x80] sm:$0xff] %vm3974, 0.0
    %5210 = vst.msk [vmem:[#allocation3 + $0x88] sm:$0x3f] %vm5193, 0.0
    %5211 = vst.msk [vmem:[#allocation3 + $0x90] sm:$0xff] %vm3974, 0.0
    %5212 = vst.msk [vmem:[#allocation3 + $0x98] sm:$0x3f] %vm5193, 0.0
    %5213 = vst.msk [vmem:[#allocation3 + $0xa0] sm:$0xff] %vm3974, 0.0
    %5214 = vst.msk [vmem:[#allocation3 + $0xa8] sm:$0x3f] %vm5193, 0.0
    %5215 = vst.msk [vmem:[#allocation3 + $0xb0] sm:$0xff] %vm3974, 0.0
    %5216 = vst.msk [vmem:[#allocation3 + $0xb8] sm:$0x3f] %vm5193, 0.0
    %5217 = vst.msk [vmem:[#allocation3 + $0xc0] sm:$0xff] %vm3974, 0.0
    %5218 = vst.msk [vmem:[#allocation3 + $0xc8] sm:$0x3f] %vm5193, 0.0
    %5219 = vst.msk [vmem:[#allocation3 + $0xd0] sm:$0xff] %vm3974, 0.0
    %5220 = vst.msk [vmem:[#allocation3 + $0xd8] sm:$0x3f] %vm5193, 0.0
    %5221 = vst.msk [vmem:[#allocation3 + $0xe0] sm:$0xff] %vm3974, 0.0
    %5222 = vst.msk [vmem:[#allocation3 + $0xe8] sm:$0x3f] %vm5193, 0.0
    %5223 = vst.msk [vmem:[#allocation3 + $0xf0] sm:$0xff] %vm3974, 0.0
    %5224 = vst.msk [vmem:[#allocation3 + $0xf8] sm:$0x3f] %vm5193, 0.0
    %5225 = vst.msk [vmem:[#allocation3 + $0x100] sm:$0xff] %vm3974, 0.0
    %5226 = vst.msk [vmem:[#allocation3 + $0x108] sm:$0x3f] %vm5193, 0.0
    %5227 = vst.msk [vmem:[#allocation3 + $0x110] sm:$0xff] %vm3974, 0.0
    %5228 = vst.msk [vmem:[#allocation3 + $0x118] sm:$0x3f] %vm5193, 0.0
    %5229 = vst.msk [vmem:[#allocation3 + $0x120] sm:$0xff] %vm3974, 0.0
    %5230 = vst.msk [vmem:[#allocation3 + $0x128] sm:$0x3f] %vm5193, 0.0
    %5231 = vst.msk [vmem:[#allocation3 + $0x130] sm:$0xff] %vm3974, 0.0
    %5232 = vst.msk [vmem:[#allocation3 + $0x138] sm:$0x3f] %vm5193, 0.0
    %5233 = vst.msk [vmem:[#allocation3 + $0x140] sm:$0xff] %vm3974, 0.0
    %5234 = vst.msk [vmem:[#allocation3 + $0x148] sm:$0x3f] %vm5193, 0.0
    %5235 = vst.msk [vmem:[#allocation3 + $0x150] sm:$0xff] %vm3974, 0.0
    %5236 = vst.msk [vmem:[#allocation3 + $0x158] sm:$0x3f] %vm5193, 0.0
    %5237 = vst.msk [vmem:[#allocation3 + $0x160] sm:$0xff] %vm3974, 0.0
    %5238 = vst.msk [vmem:[#allocation3 + $0x168] sm:$0x3f] %vm5193, 0.0
    %5239 = vst.msk [vmem:[#allocation3 + $0x170] sm:$0xff] %vm3974, 0.0
    %5240 = vst.msk [vmem:[#allocation3 + $0x178] sm:$0x3f] %vm5193, 0.0
    %5241 = vst.msk [vmem:[#allocation3 + $0x180] sm:$0xff] %vm3974, 0.0
    %5242 = vst.msk [vmem:[#allocation3 + $0x188] sm:$0x3f] %vm5193, 0.0
    %5243 = vst.msk [vmem:[#allocation3 + $0x190] sm:$0xff] %vm3974, 0.0
    %5244 = vst.msk [vmem:[#allocation3 + $0x198] sm:$0x3f] %vm5193, 0.0
    %5245 = vst.msk [vmem:[#allocation3 + $0x1a0] sm:$0xff] %vm3974, 0.0
    %5246 = vst.msk [vmem:[#allocation3 + $0x1a8] sm:$0x3f] %vm5193, 0.0
    %5247 = vst.msk [vmem:[#allocation3 + $0x1b0] sm:$0xff] %vm3974, 0.0
    %5248 = vst.msk [vmem:[#allocation3 + $0x1b8] sm:$0x3f] %vm5193, 0.0
    %v5285 = vcombine.high %v5156, %v5156
    %v5286 = vcombine.high %v5157, %v5157
    %v5287 = vcombine.high %v5158, %v5158
    %v5288 = vcombine.high %v5159, %v5159
    %v5289 = vcombine.high %v5160, %v5160
    %v5290 = vcombine.high %v5161, %v5161
    %v5291 = vcombine.high %v5162, %v5162
    %v5292 = vcombine.high %v5163, %v5163
    %v5293 = vcombine.high %v5164, %v5164
    %v5294 = vcombine.high %v5165, %v5165
    %v5295 = vcombine.high %v5166, %v5166
    %v5296 = vcombine.high %v5167, %v5167
    %v5297 = vcombine.high %v5168, %v5168
    %v5298 = vcombine.high %v5169, %v5169
    %v5299 = vcombine.high %v5170, %v5170
    %v5300 = vcombine.high %v5171, %v5171
    %v5301 = vcombine.high %v5172, %v5172
    %v5302 = vcombine.high %v5173, %v5173
    %v5303 = vcombine.high %v5174, %v5174
    %v5304 = vcombine.high %v5175, %v5175
    %v5305 = vcombine.high %v5176, %v5176
    %v5306 = vcombine.high %v5177, %v5177
    %v5307 = vcombine.high %v5178, %v5178
    %v5308 = vcombine.high %v5179, %v5179
    %v5309 = vcombine.high %v5180, %v5180
    %v5310 = vcombine.high %v5181, %v5181
    %v5311 = vcombine.high %v5182, %v5182
    %v5312 = vcombine.high %v5183, %v5183
    %v5313 = vcombine.high %v5184, %v5184
    %v5314 = vcombine.high %v5185, %v5185
    %v5315 = vcombine.high %v5186, %v5186
    %v5316 = vcombine.high %v5187, %v5187
    %v5317 = vcombine.high %v5188, %v5188
    %v5318 = vcombine.high %v5189, %v5189
    %v5319 = vcombine.high %v5190, %v5190
    %v5320 = vcombine.high %v5191, %v5191
    %v5333 = vcombine.low %v5156, %v5285
    %v5334 = vcombine.low %v5286, %v5158
    %v5335 = vcombine.low %v5159, %v5288
    %v5336 = vcombine.low %v5289, %v5161
    %v5337 = vcombine.low %v5162, %v5291
    %v5338 = vcombine.low %v5292, %v5164
    %v5339 = vcombine.low %v5165, %v5294
    %v5340 = vcombine.low %v5295, %v5167
    %v5341 = vcombine.low %v5168, %v5297
    %v5342 = vcombine.low %v5298, %v5170
    %v5343 = vcombine.low %v5171, %v5300
    %v5344 = vcombine.low %v5301, %v5173
    %v5345 = vcombine.low %v5174, %v5303
    %v5346 = vcombine.low %v5304, %v5176
    %v5347 = vcombine.low %v5177, %v5306
    %v5348 = vcombine.low %v5307, %v5179
    %v5349 = vcombine.low %v5180, %v5309
    %v5350 = vcombine.low %v5310, %v5182
    %v5351 = vcombine.low %v5183, %v5312
    %v5352 = vcombine.low %v5313, %v5185
    %v5353 = vcombine.low %v5186, %v5315
    %v5354 = vcombine.low %v5316, %v5188
    %v5355 = vcombine.low %v5189, %v5318
    %v5356 = vcombine.low %v5319, %v5191
    %s5381 = scalar_lea.vmem [#allocation3], 16
    %5382 = vst.msk [vmem:[%s5381 + $0x1] sm:$0xff] %vm3974, %v5333
    %vm5383 = vcmask 519168
    %5384 = vst.msk [vmem:[%s5381 + $0x9] sm:$0xf] %vm5383, %v5157
    %5385 = vst.msk [vmem:[%s5381 + $0x11] sm:$0xff] %vm3974, %v5334
    %5386 = vst.msk [vmem:[%s5381 + $0x19] sm:$0xf] %vm5383, %v5287
    %5387 = vst.msk [vmem:[%s5381 + $0x21] sm:$0xff] %vm3974, %v5335
    %5388 = vst.msk [vmem:[%s5381 + $0x29] sm:$0xf] %vm5383, %v5160
    %5389 = vst.msk [vmem:[%s5381 + $0x31] sm:$0xff] %vm3974, %v5336
    %5390 = vst.msk [vmem:[%s5381 + $0x39] sm:$0xf] %vm5383, %v5290
    %5391 = vst.msk [vmem:[%s5381 + $0x41] sm:$0xff] %vm3974, %v5337
    %5392 = vst.msk [vmem:[%s5381 + $0x49] sm:$0xf] %vm5383, %v5163
    %5393 = vst.msk [vmem:[%s5381 + $0x51] sm:$0xff] %vm3974, %v5338
    %5394 = vst.msk [vmem:[%s5381 + $0x59] sm:$0xf] %vm5383, %v5293
    %5395 = vst.msk [vmem:[%s5381 + $0x61] sm:$0xff] %vm3974, %v5339
    %5396 = vst.msk [vmem:[%s5381 + $0x69] sm:$0xf] %vm5383, %v5166
    %5397 = vst.msk [vmem:[%s5381 + $0x71] sm:$0xff] %vm3974, %v5340
    %5398 = vst.msk [vmem:[%s5381 + $0x79] sm:$0xf] %vm5383, %v5296
    %5399 = vst.msk [vmem:[%s5381 + $0x81] sm:$0xff] %vm3974, %v5341
    %5400 = vst.msk [vmem:[%s5381 + $0x89] sm:$0xf] %vm5383, %v5169
    %5401 = vst.msk [vmem:[%s5381 + $0x91] sm:$0xff] %vm3974, %v5342
    %5402 = vst.msk [vmem:[%s5381 + $0x99] sm:$0xf] %vm5383, %v5299
    %5403 = vst.msk [vmem:[%s5381 + $0xa1] sm:$0xff] %vm3974, %v5343
    %5404 = vst.msk [vmem:[%s5381 + $0xa9] sm:$0xf] %vm5383, %v5172
    %5405 = vst.msk [vmem:[%s5381 + $0xb1] sm:$0xff] %vm3974, %v5344
    %5406 = vst.msk [vmem:[%s5381 + $0xb9] sm:$0xf] %vm5383, %v5302
    %5407 = vst.msk [vmem:[%s5381 + $0xe1] sm:$0xff] %vm3974, %v5345
    %5408 = vst.msk [vmem:[%s5381 + $0xe9] sm:$0xf] %vm5383, %v5175
    %5409 = vst.msk [vmem:[%s5381 + $0xf1] sm:$0xff] %vm3974, %v5346
    %5410 = vst.msk [vmem:[%s5381 + $0xf9] sm:$0xf] %vm5383, %v5305
    %5411 = vst.msk [vmem:[%s5381 + $0x101] sm:$0xff] %vm3974, %v5347
    %5412 = vst.msk [vmem:[%s5381 + $0x109] sm:$0xf] %vm5383, %v5178
    %5413 = vst.msk [vmem:[%s5381 + $0x111] sm:$0xff] %vm3974, %v5348
    %5414 = vst.msk [vmem:[%s5381 + $0x119] sm:$0xf] %vm5383, %v5308
    %5415 = vst.msk [vmem:[%s5381 + $0x121] sm:$0xff] %vm3974, %v5349
    %5416 = vst.msk [vmem:[%s5381 + $0x129] sm:$0xf] %vm5383, %v5181
    %5417 = vst.msk [vmem:[%s5381 + $0x131] sm:$0xff] %vm3974, %v5350
    %5418 = vst.msk [vmem:[%s5381 + $0x139] sm:$0xf] %vm5383, %v5311
    %5419 = vst.msk [vmem:[%s5381 + $0x141] sm:$0xff] %vm3974, %v5351
    %5420 = vst.msk [vmem:[%s5381 + $0x149] sm:$0xf] %vm5383, %v5184
    %5421 = vst.msk [vmem:[%s5381 + $0x151] sm:$0xff] %vm3974, %v5352
    %5422 = vst.msk [vmem:[%s5381 + $0x159] sm:$0xf] %vm5383, %v5314
    %5423 = vst.msk [vmem:[%s5381 + $0x161] sm:$0xff] %vm3974, %v5353
    %5424 = vst.msk [vmem:[%s5381 + $0x169] sm:$0xf] %vm5383, %v5187
    %5425 = vst.msk [vmem:[%s5381 + $0x171] sm:$0xff] %vm3974, %v5354
    %5426 = vst.msk [vmem:[%s5381 + $0x179] sm:$0xf] %vm5383, %v5317
    %5427 = vst.msk [vmem:[%s5381 + $0x181] sm:$0xff] %vm3974, %v5355
    %5428 = vst.msk [vmem:[%s5381 + $0x189] sm:$0xf] %vm5383, %v5190
    %5429 = vst.msk [vmem:[%s5381 + $0x191] sm:$0xff] %vm3974, %v5356
    %5430 = vst.msk [vmem:[%s5381 + $0x199] sm:$0xf] %vm5383, %v5320
    %v5431 = vld [vmem:[#allocation3] sm:$0xff]
    %v5432 = vld [vmem:[#allocation3 + $0x8] sm:$0x3f]
    %v5433 = vld [vmem:[#allocation3 + $0x10] sm:$0xff]
    %v5434 = vld [vmem:[#allocation3 + $0x18] sm:$0x3f]
    %v5435 = vld [vmem:[#allocation3 + $0x20] sm:$0xff]
    %v5436 = vld [vmem:[#allocation3 + $0x28] sm:$0x3f]
    %v5437 = vld [vmem:[#allocation3 + $0x30] sm:$0xff]
    %v5438 = vld [vmem:[#allocation3 + $0x38] sm:$0x3f]
    %v5439 = vld [vmem:[#allocation3 + $0x40] sm:$0xff]
    %v5440 = vld [vmem:[#allocation3 + $0x48] sm:$0x3f]
    %v5441 = vld [vmem:[#allocation3 + $0x50] sm:$0xff]
    %v5442 = vld [vmem:[#allocation3 + $0x58] sm:$0x3f]
    %v5443 = vld [vmem:[#allocation3 + $0x60] sm:$0xff]
    %v5444 = vld [vmem:[#allocation3 + $0x68] sm:$0x3f]
    %v5445 = vld [vmem:[#allocation3 + $0x70] sm:$0xff]
    %v5446 = vld [vmem:[#allocation3 + $0x78] sm:$0x3f]
    %v5447 = vld [vmem:[#allocation3 + $0x80] sm:$0xff]
    %v5448 = vld [vmem:[#allocation3 + $0x88] sm:$0x3f]
    %v5449 = vld [vmem:[#allocation3 + $0x90] sm:$0xff]
    %v5450 = vld [vmem:[#allocation3 + $0x98] sm:$0x3f]
    %v5451 = vld [vmem:[#allocation3 + $0xa0] sm:$0xff]
    %v5452 = vld [vmem:[#allocation3 + $0xa8] sm:$0x3f]
    %v5453 = vld [vmem:[#allocation3 + $0xb0] sm:$0xff]
    %v5454 = vld [vmem:[#allocation3 + $0xb8] sm:$0x3f]
    %v5455 = vld [vmem:[#allocation3 + $0xc0] sm:$0xff]
    %v5456 = vld [vmem:[#allocation3 + $0xc8] sm:$0x3f]
    %v5457 = vld [vmem:[#allocation3 + $0xd0] sm:$0xff]
    %v5458 = vld [vmem:[#allocation3 + $0xd8] sm:$0x3f]
    %v5459 = vld [vmem:[#allocation3 + $0xe0] sm:$0xff]
    %v5460 = vld [vmem:[#allocation3 + $0xe8] sm:$0x3f]
    %v5461 = vld [vmem:[#allocation3 + $0xf0] sm:$0xff]
    %v5462 = vld [vmem:[#allocation3 + $0xf8] sm:$0x3f]
    %v5463 = vld [vmem:[#allocation3 + $0x100] sm:$0xff]
    %v5464 = vld [vmem:[#allocation3 + $0x108] sm:$0x3f]
    %v5465 = vld [vmem:[#allocation3 + $0x110] sm:$0xff]
    %v5466 = vld [vmem:[#allocation3 + $0x118] sm:$0x3f]
    %v5467 = vld [vmem:[#allocation3 + $0x120] sm:$0xff]
    %v5468 = vld [vmem:[#allocation3 + $0x128] sm:$0x3f]
    %v5469 = vld [vmem:[#allocation3 + $0x130] sm:$0xff]
    %v5470 = vld [vmem:[#allocation3 + $0x138] sm:$0x3f]
    %v5471 = vld [vmem:[#allocation3 + $0x140] sm:$0xff]
    %v5472 = vld [vmem:[#allocation3 + $0x148] sm:$0x3f]
    %v5473 = vld [vmem:[#allocation3 + $0x150] sm:$0xff]
    %v5474 = vld [vmem:[#allocation3 + $0x158] sm:$0x3f]
    %v5475 = vld [vmem:[#allocation3 + $0x160] sm:$0xff]
    %v5476 = vld [vmem:[#allocation3 + $0x168] sm:$0x3f]
    %v5477 = vld [vmem:[#allocation3 + $0x170] sm:$0xff]
    %v5478 = vld [vmem:[#allocation3 + $0x178] sm:$0x3f]
    %v5479 = vld [vmem:[#allocation3 + $0x180] sm:$0xff]
    %v5480 = vld [vmem:[#allocation3 + $0x188] sm:$0x3f]
    %v5481 = vld [vmem:[#allocation3 + $0x190] sm:$0xff]
    %v5482 = vld [vmem:[#allocation3 + $0x198] sm:$0x3f]
    %v5483 = vld [vmem:[#allocation3 + $0x1a0] sm:$0xff]
    %v5484 = vld [vmem:[#allocation3 + $0x1a8] sm:$0x3f]
    %v5485 = vld [vmem:[#allocation3 + $0x1b0] sm:$0xff]
    %v5486 = vld [vmem:[#allocation3 + $0x1b8] sm:$0x3f]
    %v5487 = vld [vmem:[#allocation10] sm:$0xff]
    %v5488 = vld [vmem:[#allocation10 + $0x8] sm:$0xff]
    %v5489 = vld [vmem:[#allocation10 + $0x10] sm:$0xff]
    %v5490 = vld [vmem:[#allocation10 + $0x18] sm:$0xff]
    %v5491 = vld [vmem:[#allocation10 + $0x20] sm:$0xff]
    %v5492 = vld [vmem:[#allocation10 + $0x28] sm:$0xff]
    %v5493 = vld [vmem:[#allocation10 + $0x30] sm:$0xff]
    %v5494 = vld [vmem:[#allocation10 + $0x38] sm:$0xff]
    %v5495 = vld [vmem:[#allocation10 + $0x40] sm:$0xff]
    %v5496 = vld [vmem:[#allocation10 + $0x48] sm:$0xff]
    %v5497 = vld [vmem:[#allocation10 + $0x50] sm:$0xff]
    %v5498 = vld [vmem:[#allocation10 + $0x58] sm:$0xff]
    %v5499 = vld [vmem:[#allocation10 + $0x60] sm:$0xff]
    %v5500 = vld [vmem:[#allocation10 + $0x68] sm:$0xff]
    %v5501 = vld [vmem:[#allocation10 + $0x70] sm:$0xff]
    %v5502 = vld [vmem:[#allocation10 + $0x78] sm:$0xff]
    %v5503 = vld [vmem:[#allocation10 + $0x80] sm:$0xff]
    %v5504 = vld [vmem:[#allocation10 + $0x88] sm:$0xff]
    %v5505 = vld [vmem:[#allocation10 + $0x90] sm:$0xff]
    %v5506 = vld [vmem:[#allocation10 + $0x98] sm:$0xff]
    %v5507 = vld [vmem:[#allocation10 + $0xa0] sm:$0xff]
    %v5508 = vld [vmem:[#allocation10 + $0xa8] sm:$0xff]
    %v5509 = vld [vmem:[#allocation10 + $0xb0] sm:$0xff]
    %v5510 = vld [vmem:[#allocation10 + $0xb8] sm:$0xff]
    %v5511 = vld [vmem:[#allocation10 + $0xc0] sm:$0xff]
    %v5512 = vld [vmem:[#allocation10 + $0xc8] sm:$0xff]
    %v5513 = vld [vmem:[#allocation10 + $0xd0] sm:$0xff]
    %v5514 = vld [vmem:[#allocation10 + $0xd8] sm:$0xff]
    %v5515 = vld [vmem:[#allocation10 + $0xe0] sm:$0xff]
    %v5516 = vld [vmem:[#allocation10 + $0xe8] sm:$0xff]
    %v5517 = vld [vmem:[#allocation10 + $0xf0] sm:$0xff]
    %v5518 = vld [vmem:[#allocation10 + $0xf8] sm:$0xff]
    %v5519 = vld [vmem:[#allocation10 + $0x100] sm:$0xff]
    %v5520 = vld [vmem:[#allocation10 + $0x108] sm:$0xff]
    %v5521 = vld [vmem:[#allocation10 + $0x110] sm:$0xff]
    %v5522 = vld [vmem:[#allocation10 + $0x118] sm:$0xff]
    %v5523 = vld [vmem:[#allocation10 + $0x120] sm:$0xff]
    %v5524 = vld [vmem:[#allocation10 + $0x128] sm:$0xff]
    %v5525 = vld [vmem:[#allocation10 + $0x130] sm:$0xff]
    %v5526 = vld [vmem:[#allocation10 + $0x138] sm:$0xff]
    %v5527 = vld [vmem:[#allocation10 + $0x140] sm:$0xff]
    %v5528 = vld [vmem:[#allocation10 + $0x148] sm:$0xff]
    %v5529 = vld [vmem:[#allocation10 + $0x150] sm:$0xff]
    %v5530 = vld [vmem:[#allocation10 + $0x158] sm:$0xff]
    %v5531 = vld [vmem:[#allocation10 + $0x160] sm:$0xff]
    %v5532 = vld [vmem:[#allocation10 + $0x168] sm:$0xff]
    %v5533 = vld [vmem:[#allocation10 + $0x170] sm:$0xff]
    %v5534 = vld [vmem:[#allocation10 + $0x178] sm:$0xff]
    %v5535 = vld [vmem:[#allocation10 + $0x180] sm:$0xff]
    %v5536 = vld [vmem:[#allocation10 + $0x188] sm:$0xff]
    %v5537 = vld [vmem:[#allocation10 + $0x190] sm:$0xff]
    %v5538 = vld [vmem:[#allocation10 + $0x198] sm:$0xff]
    %v5539 = vld [vmem:[#allocation10 + $0x1a0] sm:$0xff]
    %v5540 = vld [vmem:[#allocation10 + $0x1a8] sm:$0xff]
    %v5541 = vld [vmem:[#allocation10 + $0x1b0] sm:$0xff]
    %v5542 = vld [vmem:[#allocation10 + $0x1b8] sm:$0xff]
    %v5543 = vld [vmem:[#allocation10 + $0x1c0] sm:$0xff]
    %v5544 = vld [vmem:[#allocation10 + $0x1c8] sm:$0xff]
    %v5545 = vld [vmem:[#allocation10 + $0x1d0] sm:$0xff]
    %v5546 = vld [vmem:[#allocation10 + $0x1d8] sm:$0xff]
    %v5547 = vld [vmem:[#allocation10 + $0x1e0] sm:$0xff]
    %v5548 = vld [vmem:[#allocation10 + $0x1e8] sm:$0xff]
    %v5549 = vld [vmem:[#allocation10 + $0x1f0] sm:$0xff]
    %v5550 = vld [vmem:[#allocation10 + $0x1f8] sm:$0xff]
    %v5551 = vld [vmem:[#allocation10 + $0x200] sm:$0xff]
    %v5552 = vld [vmem:[#allocation10 + $0x208] sm:$0xff]
    %v5553 = vld [vmem:[#allocation10 + $0x210] sm:$0xff]
    %v5554 = vld [vmem:[#allocation10 + $0x218] sm:$0xff]
    %v5555 = vld [vmem:[#allocation10 + $0x220] sm:$0xff]
    %v5556 = vld [vmem:[#allocation10 + $0x228] sm:$0xff]
    %v5557 = vld [vmem:[#allocation10 + $0x230] sm:$0xff]
    %v5558 = vld [vmem:[#allocation10 + $0x238] sm:$0xff]
    %v5559 = vld [vmem:[#allocation12] sm:$0x1]
    %v5608 = vrot.slane %v5431, 1
    %v5609 = vrot.slane %v5432, 1
    %v5610 = vsel %vm263, %v5608, %v5609
    %v5611 = vrot.slane %v5433, 1
    %v5612 = vrot.slane %v5434, 1
    %v5613 = vsel %vm263, %v5611, %v5612
    %v5614 = vrot.slane %v5435, 1
    %v5615 = vrot.slane %v5436, 1
    %v5616 = vsel %vm263, %v5614, %v5615
    %v5617 = vrot.slane %v5437, 1
    %v5618 = vrot.slane %v5438, 1
    %v5619 = vsel %vm263, %v5617, %v5618
    %v5620 = vrot.slane %v5439, 1
    %v5621 = vrot.slane %v5440, 1
    %v5622 = vsel %vm263, %v5620, %v5621
    %v5623 = vrot.slane %v5441, 1
    %v5624 = vrot.slane %v5442, 1
    %v5625 = vsel %vm263, %v5623, %v5624
    %v5626 = vrot.slane %v5443, 1
    %v5627 = vrot.slane %v5444, 1
    %v5628 = vsel %vm263, %v5626, %v5627
    %v5629 = vrot.slane %v5445, 1
    %v5630 = vrot.slane %v5446, 1
    %v5631 = vsel %vm263, %v5629, %v5630
    %v5632 = vrot.slane %v5447, 1
    %v5633 = vrot.slane %v5448, 1
    %v5634 = vsel %vm263, %v5632, %v5633
    %v5635 = vrot.slane %v5449, 1
    %v5636 = vrot.slane %v5450, 1
    %v5637 = vsel %vm263, %v5635, %v5636
    %v5638 = vrot.slane %v5451, 1
    %v5639 = vrot.slane %v5452, 1
    %v5640 = vsel %vm263, %v5638, %v5639
    %v5641 = vrot.slane %v5453, 1
    %v5642 = vrot.slane %v5454, 1
    %v5643 = vsel %vm263, %v5641, %v5642
    %v5644 = vrot.slane %v5459, 1
    %v5645 = vrot.slane %v5460, 1
    %v5646 = vsel %vm263, %v5644, %v5645
    %v5647 = vrot.slane %v5461, 1
    %v5648 = vrot.slane %v5462, 1
    %v5649 = vsel %vm263, %v5647, %v5648
    %v5650 = vrot.slane %v5463, 1
    %v5651 = vrot.slane %v5464, 1
    %v5652 = vsel %vm263, %v5650, %v5651
    %v5653 = vrot.slane %v5465, 1
    %v5654 = vrot.slane %v5466, 1
    %v5655 = vsel %vm263, %v5653, %v5654
    %v5656 = vrot.slane %v5467, 1
    %v5657 = vrot.slane %v5468, 1
    %v5658 = vsel %vm263, %v5656, %v5657
    %v5659 = vrot.slane %v5469, 1
    %v5660 = vrot.slane %v5470, 1
    %v5661 = vsel %vm263, %v5659, %v5660
    %v5662 = vrot.slane %v5471, 1
    %v5663 = vrot.slane %v5472, 1
    %v5664 = vsel %vm263, %v5662, %v5663
    %v5665 = vrot.slane %v5473, 1
    %v5666 = vrot.slane %v5474, 1
    %v5667 = vsel %vm263, %v5665, %v5666
    %v5668 = vrot.slane %v5475, 1
    %v5669 = vrot.slane %v5476, 1
    %v5670 = vsel %vm263, %v5668, %v5669
    %v5671 = vrot.slane %v5477, 1
    %v5672 = vrot.slane %v5478, 1
    %v5673 = vsel %vm263, %v5671, %v5672
    %v5674 = vrot.slane %v5479, 1
    %v5675 = vrot.slane %v5480, 1
    %v5676 = vsel %vm263, %v5674, %v5675
    %v5677 = vrot.slane %v5481, 1
    %v5678 = vrot.slane %v5482, 1
    %v5679 = vsel %vm263, %v5677, %v5678
    %5680 = vrot.lane.b32.xlu0 %v5610, 64
    %v5681 = vpop.permute.xlu0 %5680
    %5682 = vrot.lane.b32.xlu0 %v5609, 64
    %v5683 = vpop.permute.xlu0 %5682
    %5684 = vrot.lane.b32.xlu0 %v5613, 64
    %v5685 = vpop.permute.xlu0 %5684
    %5686 = vrot.lane.b32.xlu0 %v5612, 64
    %v5687 = vpop.permute.xlu0 %5686
    %5688 = vrot.lane.b32.xlu0 %v5616, 64
    %v5689 = vpop.permute.xlu0 %5688
    %5690 = vrot.lane.b32.xlu0 %v5615, 64
    %v5691 = vpop.permute.xlu0 %5690
    %5692 = vrot.lane.b32.xlu0 %v5619, 64
    %v5693 = vpop.permute.xlu0 %5692
    %5694 = vrot.lane.b32.xlu0 %v5618, 64
    %v5695 = vpop.permute.xlu0 %5694
    %5696 = vrot.lane.b32.xlu0 %v5622, 64
    %v5697 = vpop.permute.xlu0 %5696
    %5698 = vrot.lane.b32.xlu0 %v5621, 64
    %v5699 = vpop.permute.xlu0 %5698
    %5700 = vrot.lane.b32.xlu0 %v5625, 64
    %v5701 = vpop.permute.xlu0 %5700
    %5702 = vrot.lane.b32.xlu0 %v5624, 64
    %v5703 = vpop.permute.xlu0 %5702
    %5704 = vrot.lane.b32.xlu0 %v5628, 64
    %v5705 = vpop.permute.xlu0 %5704
    %5706 = vrot.lane.b32.xlu0 %v5627, 64
    %v5707 = vpop.permute.xlu0 %5706
    %5708 = vrot.lane.b32.xlu0 %v5631, 64
    %v5709 = vpop.permute.xlu0 %5708
    %5710 = vrot.lane.b32.xlu0 %v5630, 64
    %v5711 = vpop.permute.xlu0 %5710
    %5712 = vrot.lane.b32.xlu0 %v5634, 64
    %v5713 = vpop.permute.xlu0 %5712
    %5714 = vrot.lane.b32.xlu0 %v5633, 64
    %v5715 = vpop.permute.xlu0 %5714
    %5716 = vrot.lane.b32.xlu0 %v5637, 64
    %v5717 = vpop.permute.xlu0 %5716
    %5718 = vrot.lane.b32.xlu0 %v5636, 64
    %v5719 = vpop.permute.xlu0 %5718
    %5720 = vrot.lane.b32.xlu0 %v5640, 64
    %v5721 = vpop.permute.xlu0 %5720
    %5722 = vrot.lane.b32.xlu0 %v5639, 64
    %v5723 = vpop.permute.xlu0 %5722
    %5724 = vrot.lane.b32.xlu0 %v5643, 64
    %v5725 = vpop.permute.xlu0 %5724
    %5726 = vrot.lane.b32.xlu0 %v5642, 64
    %v5727 = vpop.permute.xlu0 %5726
    %5728 = vrot.lane.b32.xlu0 %v5646, 64
    %v5729 = vpop.permute.xlu0 %5728
    %5730 = vrot.lane.b32.xlu0 %v5645, 64
    %v5731 = vpop.permute.xlu0 %5730
    %5732 = vrot.lane.b32.xlu0 %v5649, 64
    %v5733 = vpop.permute.xlu0 %5732
    %5734 = vrot.lane.b32.xlu0 %v5648, 64
    %v5735 = vpop.permute.xlu0 %5734
    %5736 = vrot.lane.b32.xlu0 %v5652, 64
    %v5737 = vpop.permute.xlu0 %5736
    %5738 = vrot.lane.b32.xlu0 %v5651, 64
    %v5739 = vpop.permute.xlu0 %5738
    %5740 = vrot.lane.b32.xlu0 %v5655, 64
    %v5741 = vpop.permute.xlu0 %5740
    %5742 = vrot.lane.b32.xlu0 %v5654, 64
    %v5743 = vpop.permute.xlu0 %5742
    %5744 = vrot.lane.b32.xlu0 %v5658, 64
    %v5745 = vpop.permute.xlu0 %5744
    %5746 = vrot.lane.b32.xlu0 %v5657, 64
    %v5747 = vpop.permute.xlu0 %5746
    %5748 = vrot.lane.b32.xlu0 %v5661, 64
    %v5749 = vpop.permute.xlu0 %5748
    %5750 = vrot.lane.b32.xlu0 %v5660, 64
    %v5751 = vpop.permute.xlu0 %5750
    %5752 = vrot.lane.b32.xlu0 %v5664, 64
    %v5753 = vpop.permute.xlu0 %5752
    %5754 = vrot.lane.b32.xlu0 %v5663, 64
    %v5755 = vpop.permute.xlu0 %5754
    %5756 = vrot.lane.b32.xlu0 %v5667, 64
    %v5757 = vpop.permute.xlu0 %5756
    %5758 = vrot.lane.b32.xlu0 %v5666, 64
    %v5759 = vpop.permute.xlu0 %5758
    %5760 = vrot.lane.b32.xlu0 %v5670, 64
    %v5761 = vpop.permute.xlu0 %5760
    %5762 = vrot.lane.b32.xlu0 %v5669, 64
    %v5763 = vpop.permute.xlu0 %5762
    %5764 = vrot.lane.b32.xlu0 %v5673, 64
    %v5765 = vpop.permute.xlu0 %5764
    %5766 = vrot.lane.b32.xlu0 %v5672, 64
    %v5767 = vpop.permute.xlu0 %5766
    %5768 = vrot.lane.b32.xlu0 %v5676, 64
    %v5769 = vpop.permute.xlu0 %5768
    %5770 = vrot.lane.b32.xlu0 %v5675, 64
    %v5771 = vpop.permute.xlu0 %5770
    %5772 = vrot.lane.b32.xlu0 %v5679, 64
    %v5773 = vpop.permute.xlu0 %5772
    %5774 = vrot.lane.b32.xlu0 %v5678, 64
    %v5775 = vpop.permute.xlu0 %5774
    %v5824 = vrot.slane %v5431, 2
    %v5825 = vrot.slane %v5432, 2
    %v5826 = vsel %vm480, %v5824, %v5825
    %v5827 = vrot.slane %v5433, 2
    %v5828 = vrot.slane %v5434, 2
    %v5829 = vsel %vm480, %v5827, %v5828
    %v5830 = vrot.slane %v5435, 2
    %v5831 = vrot.slane %v5436, 2
    %v5832 = vsel %vm480, %v5830, %v5831
    %v5833 = vrot.slane %v5437, 2
    %v5834 = vrot.slane %v5438, 2
    %v5835 = vsel %vm480, %v5833, %v5834
    %v5836 = vrot.slane %v5439, 2
    %v5837 = vrot.slane %v5440, 2
    %v5838 = vsel %vm480, %v5836, %v5837
    %v5839 = vrot.slane %v5441, 2
    %v5840 = vrot.slane %v5442, 2
    %v5841 = vsel %vm480, %v5839, %v5840
    %v5842 = vrot.slane %v5443, 2
    %v5843 = vrot.slane %v5444, 2
    %v5844 = vsel %vm480, %v5842, %v5843
    %v5845 = vrot.slane %v5445, 2
    %v5846 = vrot.slane %v5446, 2
    %v5847 = vsel %vm480, %v5845, %v5846
    %v5848 = vrot.slane %v5447, 2
    %v5849 = vrot.slane %v5448, 2
    %v5850 = vsel %vm480, %v5848, %v5849
    %v5851 = vrot.slane %v5449, 2
    %v5852 = vrot.slane %v5450, 2
    %v5853 = vsel %vm480, %v5851, %v5852
    %v5854 = vrot.slane %v5451, 2
    %v5855 = vrot.slane %v5452, 2
    %v5856 = vsel %vm480, %v5854, %v5855
    %v5857 = vrot.slane %v5453, 2
    %v5858 = vrot.slane %v5454, 2
    %v5859 = vsel %vm480, %v5857, %v5858
    %v5860 = vrot.slane %v5459, 2
    %v5861 = vrot.slane %v5460, 2
    %v5862 = vsel %vm480, %v5860, %v5861
    %v5863 = vrot.slane %v5461, 2
    %v5864 = vrot.slane %v5462, 2
    %v5865 = vsel %vm480, %v5863, %v5864
    %v5866 = vrot.slane %v5463, 2
    %v5867 = vrot.slane %v5464, 2
    %v5868 = vsel %vm480, %v5866, %v5867
    %v5869 = vrot.slane %v5465, 2
    %v5870 = vrot.slane %v5466, 2
    %v5871 = vsel %vm480, %v5869, %v5870
    %v5872 = vrot.slane %v5467, 2
    %v5873 = vrot.slane %v5468, 2
    %v5874 = vsel %vm480, %v5872, %v5873
    %v5875 = vrot.slane %v5469, 2
    %v5876 = vrot.slane %v5470, 2
    %v5877 = vsel %vm480, %v5875, %v5876
    %v5878 = vrot.slane %v5471, 2
    %v5879 = vrot.slane %v5472, 2
    %v5880 = vsel %vm480, %v5878, %v5879
    %v5881 = vrot.slane %v5473, 2
    %v5882 = vrot.slane %v5474, 2
    %v5883 = vsel %vm480, %v5881, %v5882
    %v5884 = vrot.slane %v5475, 2
    %v5885 = vrot.slane %v5476, 2
    %v5886 = vsel %vm480, %v5884, %v5885
    %v5887 = vrot.slane %v5477, 2
    %v5888 = vrot.slane %v5478, 2
    %v5889 = vsel %vm480, %v5887, %v5888
    %v5890 = vrot.slane %v5479, 2
    %v5891 = vrot.slane %v5480, 2
    %v5892 = vsel %vm480, %v5890, %v5891
    %v5893 = vrot.slane %v5481, 2
    %v5894 = vrot.slane %v5482, 2
    %v5895 = vsel %vm480, %v5893, %v5894
    %5948 = vrot.lane.b32.xlu0 %v5433, 64
    %v5949 = vpop.permute.xlu0 %5948
    %5950 = vrot.lane.b32.xlu0 %v5434, 64
    %v5951 = vpop.permute.xlu0 %5950
    %5952 = vrot.lane.b32.xlu0 %v5435, 64
    %v5953 = vpop.permute.xlu0 %5952
    %5954 = vrot.lane.b32.xlu0 %v5436, 64
    %v5955 = vpop.permute.xlu0 %5954
    %5956 = vrot.lane.b32.xlu0 %v5437, 64
    %v5957 = vpop.permute.xlu0 %5956
    %5958 = vrot.lane.b32.xlu0 %v5438, 64
    %v5959 = vpop.permute.xlu0 %5958
    %5960 = vrot.lane.b32.xlu0 %v5439, 64
    %v5961 = vpop.permute.xlu0 %5960
    %5962 = vrot.lane.b32.xlu0 %v5440, 64
    %v5963 = vpop.permute.xlu0 %5962
    %5964 = vrot.lane.b32.xlu0 %v5441, 64
    %v5965 = vpop.permute.xlu0 %5964
    %5966 = vrot.lane.b32.xlu0 %v5442, 64
    %v5967 = vpop.permute.xlu0 %5966
    %5968 = vrot.lane.b32.xlu0 %v5443, 64
    %v5969 = vpop.permute.xlu0 %5968
    %5970 = vrot.lane.b32.xlu0 %v5444, 64
    %v5971 = vpop.permute.xlu0 %5970
    %5972 = vrot.lane.b32.xlu0 %v5445, 64
    %v5973 = vpop.permute.xlu0 %5972
    %5974 = vrot.lane.b32.xlu0 %v5446, 64
    %v5975 = vpop.permute.xlu0 %5974
    %5976 = vrot.lane.b32.xlu0 %v5447, 64
    %v5977 = vpop.permute.xlu0 %5976
    %5978 = vrot.lane.b32.xlu0 %v5448, 64
    %v5979 = vpop.permute.xlu0 %5978
    %5980 = vrot.lane.b32.xlu0 %v5449, 64
    %v5981 = vpop.permute.xlu0 %5980
    %5982 = vrot.lane.b32.xlu0 %v5450, 64
    %v5983 = vpop.permute.xlu0 %5982
    %5984 = vrot.lane.b32.xlu0 %v5451, 64
    %v5985 = vpop.permute.xlu0 %5984
    %5986 = vrot.lane.b32.xlu0 %v5452, 64
    %v5987 = vpop.permute.xlu0 %5986
    %5988 = vrot.lane.b32.xlu0 %v5453, 64
    %v5989 = vpop.permute.xlu0 %5988
    %5990 = vrot.lane.b32.xlu0 %v5454, 64
    %v5991 = vpop.permute.xlu0 %5990
    %5992 = vrot.lane.b32.xlu0 %v5455, 64
    %v5993 = vpop.permute.xlu0 %5992
    %5994 = vrot.lane.b32.xlu0 %v5456, 64
    %v5995 = vpop.permute.xlu0 %5994
    %5996 = vrot.lane.b32.xlu0 %v5461, 64
    %v5997 = vpop.permute.xlu0 %5996
    %5998 = vrot.lane.b32.xlu0 %v5462, 64
    %v5999 = vpop.permute.xlu0 %5998
    %6000 = vrot.lane.b32.xlu0 %v5463, 64
    %v6001 = vpop.permute.xlu0 %6000
    %6002 = vrot.lane.b32.xlu0 %v5464, 64
    %v6003 = vpop.permute.xlu0 %6002
    %6004 = vrot.lane.b32.xlu0 %v5465, 64
    %v6005 = vpop.permute.xlu0 %6004
    %6006 = vrot.lane.b32.xlu0 %v5466, 64
    %v6007 = vpop.permute.xlu0 %6006
    %6008 = vrot.lane.b32.xlu0 %v5467, 64
    %v6009 = vpop.permute.xlu0 %6008
    %6010 = vrot.lane.b32.xlu0 %v5468, 64
    %v6011 = vpop.permute.xlu0 %6010
    %6012 = vrot.lane.b32.xlu0 %v5469, 64
    %v6013 = vpop.permute.xlu0 %6012
    %6014 = vrot.lane.b32.xlu0 %v5470, 64
    %v6015 = vpop.permute.xlu0 %6014
    %6016 = vrot.lane.b32.xlu0 %v5471, 64
    %v6017 = vpop.permute.xlu0 %6016
    %6018 = vrot.lane.b32.xlu0 %v5472, 64
    %v6019 = vpop.permute.xlu0 %6018
    %6020 = vrot.lane.b32.xlu0 %v5473, 64
    %v6021 = vpop.permute.xlu0 %6020
    %6022 = vrot.lane.b32.xlu0 %v5474, 64
    %v6023 = vpop.permute.xlu0 %6022
    %6024 = vrot.lane.b32.xlu0 %v5475, 64
    %v6025 = vpop.permute.xlu0 %6024
    %6026 = vrot.lane.b32.xlu0 %v5476, 64
    %v6027 = vpop.permute.xlu0 %6026
    %6028 = vrot.lane.b32.xlu0 %v5477, 64
    %v6029 = vpop.permute.xlu0 %6028
    %6030 = vrot.lane.b32.xlu0 %v5478, 64
    %v6031 = vpop.permute.xlu0 %6030
    %6032 = vrot.lane.b32.xlu0 %v5479, 64
    %v6033 = vpop.permute.xlu0 %6032
    %6034 = vrot.lane.b32.xlu0 %v5480, 64
    %v6035 = vpop.permute.xlu0 %6034
    %6036 = vrot.lane.b32.xlu0 %v5481, 64
    %v6037 = vpop.permute.xlu0 %6036
    %6038 = vrot.lane.b32.xlu0 %v5482, 64
    %v6039 = vpop.permute.xlu0 %6038
    %6040 = vrot.lane.b32.xlu0 %v5483, 64
    %v6041 = vpop.permute.xlu0 %6040
    %6042 = vrot.lane.b32.xlu0 %v5484, 64
    %v6043 = vpop.permute.xlu0 %6042
    %v6092 = vrot.slane %v5455, 1
    %v6093 = vrot.slane %v5456, 1
    %v6094 = vsel %vm263, %v6092, %v6093
    %v6095 = vrot.slane %v5483, 1
    %v6096 = vrot.slane %v5484, 1
    %v6097 = vsel %vm263, %v6095, %v6096
    %v6146 = vrot.slane %v5455, 2
    %v6147 = vrot.slane %v5456, 2
    %v6148 = vsel %vm480, %v6146, %v6147
    %v6149 = vrot.slane %v5483, 2
    %v6150 = vrot.slane %v5484, 2
    %v6151 = vsel %vm480, %v6149, %v6150
    %6152 = vrot.lane.b32.xlu0 %v5829, 64
    %v6153 = vpop.permute.xlu0 %6152
    %6154 = vrot.lane.b32.xlu0 %v5828, 64
    %v6155 = vpop.permute.xlu0 %6154
    %6156 = vrot.lane.b32.xlu0 %v5832, 64
    %v6157 = vpop.permute.xlu0 %6156
    %6158 = vrot.lane.b32.xlu0 %v5831, 64
    %v6159 = vpop.permute.xlu0 %6158
    %6160 = vrot.lane.b32.xlu0 %v5835, 64
    %v6161 = vpop.permute.xlu0 %6160
    %6162 = vrot.lane.b32.xlu0 %v5834, 64
    %v6163 = vpop.permute.xlu0 %6162
    %6164 = vrot.lane.b32.xlu0 %v5838, 64
    %v6165 = vpop.permute.xlu0 %6164
    %6166 = vrot.lane.b32.xlu0 %v5837, 64
    %v6167 = vpop.permute.xlu0 %6166
    %6168 = vrot.lane.b32.xlu0 %v5841, 64
    %v6169 = vpop.permute.xlu0 %6168
    %6170 = vrot.lane.b32.xlu0 %v5840, 64
    %v6171 = vpop.permute.xlu0 %6170
    %6172 = vrot.lane.b32.xlu0 %v5844, 64
    %v6173 = vpop.permute.xlu0 %6172
    %6174 = vrot.lane.b32.xlu0 %v5843, 64
    %v6175 = vpop.permute.xlu0 %6174
    %6176 = vrot.lane.b32.xlu0 %v5847, 64
    %v6177 = vpop.permute.xlu0 %6176
    %6178 = vrot.lane.b32.xlu0 %v5846, 64
    %v6179 = vpop.permute.xlu0 %6178
    %6180 = vrot.lane.b32.xlu0 %v5850, 64
    %v6181 = vpop.permute.xlu0 %6180
    %6182 = vrot.lane.b32.xlu0 %v5849, 64
    %v6183 = vpop.permute.xlu0 %6182
    %6184 = vrot.lane.b32.xlu0 %v5853, 64
    %v6185 = vpop.permute.xlu0 %6184
    %6186 = vrot.lane.b32.xlu0 %v5852, 64
    %v6187 = vpop.permute.xlu0 %6186
    %6188 = vrot.lane.b32.xlu0 %v5856, 64
    %v6189 = vpop.permute.xlu0 %6188
    %6190 = vrot.lane.b32.xlu0 %v5855, 64
    %v6191 = vpop.permute.xlu0 %6190
    %6192 = vrot.lane.b32.xlu0 %v5859, 64
    %v6193 = vpop.permute.xlu0 %6192
    %6194 = vrot.lane.b32.xlu0 %v5858, 64
    %v6195 = vpop.permute.xlu0 %6194
    %6196 = vrot.lane.b32.xlu0 %v6148, 64
    %v6197 = vpop.permute.xlu0 %6196
    %6198 = vrot.lane.b32.xlu0 %v6147, 64
    %v6199 = vpop.permute.xlu0 %6198
    %6200 = vrot.lane.b32.xlu0 %v5865, 64
    %v6201 = vpop.permute.xlu0 %6200
    %6202 = vrot.lane.b32.xlu0 %v5864, 64
    %v6203 = vpop.permute.xlu0 %6202
    %6204 = vrot.lane.b32.xlu0 %v5868, 64
    %v6205 = vpop.permute.xlu0 %6204
    %6206 = vrot.lane.b32.xlu0 %v5867, 64
    %v6207 = vpop.permute.xlu0 %6206
    %6208 = vrot.lane.b32.xlu0 %v5871, 64
    %v6209 = vpop.permute.xlu0 %6208
    %6210 = vrot.lane.b32.xlu0 %v5870, 64
    %v6211 = vpop.permute.xlu0 %6210
    %6212 = vrot.lane.b32.xlu0 %v5874, 64
    %v6213 = vpop.permute.xlu0 %6212
    %6214 = vrot.lane.b32.xlu0 %v5873, 64
    %v6215 = vpop.permute.xlu0 %6214
    %6216 = vrot.lane.b32.xlu0 %v5877, 64
    %v6217 = vpop.permute.xlu0 %6216
    %6218 = vrot.lane.b32.xlu0 %v5876, 64
    %v6219 = vpop.permute.xlu0 %6218
    %6220 = vrot.lane.b32.xlu0 %v5880, 64
    %v6221 = vpop.permute.xlu0 %6220
    %6222 = vrot.lane.b32.xlu0 %v5879, 64
    %v6223 = vpop.permute.xlu0 %6222
    %6224 = vrot.lane.b32.xlu0 %v5883, 64
    %v6225 = vpop.permute.xlu0 %6224
    %6226 = vrot.lane.b32.xlu0 %v5882, 64
    %v6227 = vpop.permute.xlu0 %6226
    %6228 = vrot.lane.b32.xlu0 %v5886, 64
    %v6229 = vpop.permute.xlu0 %6228
    %6230 = vrot.lane.b32.xlu0 %v5885, 64
    %v6231 = vpop.permute.xlu0 %6230
    %6232 = vrot.lane.b32.xlu0 %v5889, 64
    %v6233 = vpop.permute.xlu0 %6232
    %6234 = vrot.lane.b32.xlu0 %v5888, 64
    %v6235 = vpop.permute.xlu0 %6234
    %6236 = vrot.lane.b32.xlu0 %v5892, 64
    %v6237 = vpop.permute.xlu0 %6236
    %6238 = vrot.lane.b32.xlu0 %v5891, 64
    %v6239 = vpop.permute.xlu0 %6238
    %6240 = vrot.lane.b32.xlu0 %v5895, 64
    %v6241 = vpop.permute.xlu0 %6240
    %6242 = vrot.lane.b32.xlu0 %v5894, 64
    %v6243 = vpop.permute.xlu0 %6242
    %6244 = vrot.lane.b32.xlu0 %v6151, 64
    %v6245 = vpop.permute.xlu0 %6244
    %6246 = vrot.lane.b32.xlu0 %v6150, 64
    %v6247 = vpop.permute.xlu0 %6246
    %v6300 = vrot.slane %v5457, 1
    %v6301 = vrot.slane %v5458, 1
    %v6302 = vsel %vm263, %v6300, %v6301
    %v6303 = vrot.slane %v5485, 1
    %v6304 = vrot.slane %v5486, 1
    %v6305 = vsel %vm263, %v6303, %v6304
    %6306 = vrot.lane.b32.xlu0 %v6094, 64
    %v6307 = vpop.permute.xlu0 %6306
    %6308 = vrot.lane.b32.xlu0 %v6093, 64
    %v6309 = vpop.permute.xlu0 %6308
    %6310 = vrot.lane.b32.xlu0 %v6302, 64
    %v6311 = vpop.permute.xlu0 %6310
    %6312 = vrot.lane.b32.xlu0 %v6301, 64
    %v6313 = vpop.permute.xlu0 %6312
    %6314 = vrot.lane.b32.xlu0 %v6097, 64
    %v6315 = vpop.permute.xlu0 %6314
    %6316 = vrot.lane.b32.xlu0 %v6096, 64
    %v6317 = vpop.permute.xlu0 %6316
    %6318 = vrot.lane.b32.xlu0 %v6305, 64
    %v6319 = vpop.permute.xlu0 %6318
    %6320 = vrot.lane.b32.xlu0 %v6304, 64
    %v6321 = vpop.permute.xlu0 %6320
    %v6330 = vrot.slane %v5457, 2
    %v6331 = vrot.slane %v5458, 2
    %v6332 = vsel %vm480, %v6330, %v6331
    %v6333 = vrot.slane %v5485, 2
    %v6334 = vrot.slane %v5486, 2
    %v6335 = vsel %vm480, %v6333, %v6334
    %v6336 = vsel %vm3974, %v5431, %v5681
    %v6337 = vsel %vm3974, %v5432, %v5683
    %v6338 = vsel %vm3974, %v5433, %v5685
    %v6339 = vsel %vm3974, %v5434, %v5687
    %v6340 = vsel %vm3974, %v5435, %v5689
    %v6341 = vsel %vm3974, %v5436, %v5691
    %v6342 = vsel %vm3974, %v5437, %v5693
    %v6343 = vsel %vm3974, %v5438, %v5695
    %v6344 = vsel %vm3974, %v5439, %v5697
    %v6345 = vsel %vm3974, %v5440, %v5699
    %v6346 = vsel %vm3974, %v5441, %v5701
    %v6347 = vsel %vm3974, %v5442, %v5703
    %v6348 = vsel %vm3974, %v5443, %v5705
    %v6349 = vsel %vm3974, %v5444, %v5707
    %v6350 = vsel %vm3974, %v5445, %v5709
    %v6351 = vsel %vm3974, %v5446, %v5711
    %v6352 = vsel %vm3974, %v5447, %v5713
    %v6353 = vsel %vm3974, %v5448, %v5715
    %v6354 = vsel %vm3974, %v5449, %v5717
    %v6355 = vsel %vm3974, %v5450, %v5719
    %v6356 = vsel %vm3974, %v5451, %v5721
    %v6357 = vsel %vm3974, %v5452, %v5723
    %v6358 = vsel %vm3974, %v5453, %v5725
    %v6359 = vsel %vm3974, %v5454, %v5727
    %v6360 = vsel %vm3974, %v5459, %v5729
    %v6361 = vsel %vm3974, %v5460, %v5731
    %v6362 = vsel %vm3974, %v5461, %v5733
    %v6363 = vsel %vm3974, %v5462, %v5735
    %v6364 = vsel %vm3974, %v5463, %v5737
    %v6365 = vsel %vm3974, %v5464, %v5739
    %v6366 = vsel %vm3974, %v5465, %v5741
    %v6367 = vsel %vm3974, %v5466, %v5743
    %v6368 = vsel %vm3974, %v5467, %v5745
    %v6369 = vsel %vm3974, %v5468, %v5747
    %v6370 = vsel %vm3974, %v5469, %v5749
    %v6371 = vsel %vm3974, %v5470, %v5751
    %v6372 = vsel %vm3974, %v5471, %v5753
    %v6373 = vsel %vm3974, %v5472, %v5755
    %v6374 = vsel %vm3974, %v5473, %v5757
    %v6375 = vsel %vm3974, %v5474, %v5759
    %v6376 = vsel %vm3974, %v5475, %v5761
    %v6377 = vsel %vm3974, %v5476, %v5763
    %v6378 = vsel %vm3974, %v5477, %v5765
    %v6379 = vsel %vm3974, %v5478, %v5767
    %v6380 = vsel %vm3974, %v5479, %v5769
    %v6381 = vsel %vm3974, %v5480, %v5771
    %v6382 = vsel %vm3974, %v5481, %v5773
    %v6383 = vsel %vm3974, %v5482, %v5775
    %v6384 = vsel %vm3974, %v5826, %v5949
    %v6385 = vsel %vm3974, %v5825, %v5951
    %v6386 = vsel %vm3974, %v5829, %v5953
    %v6387 = vsel %vm3974, %v5828, %v5955
    %v6388 = vsel %vm3974, %v5832, %v5957
    %v6389 = vsel %vm3974, %v5831, %v5959
    %v6390 = vsel %vm3974, %v5835, %v5961
    %v6391 = vsel %vm3974, %v5834, %v5963
    %v6392 = vsel %vm3974, %v5838, %v5965
    %v6393 = vsel %vm3974, %v5837, %v5967
    %v6394 = vsel %vm3974, %v5841, %v5969
    %v6395 = vsel %vm3974, %v5840, %v5971
    %v6396 = vsel %vm3974, %v5844, %v5973
    %v6397 = vsel %vm3974, %v5843, %v5975
    %v6398 = vsel %vm3974, %v5847, %v5977
    %v6399 = vsel %vm3974, %v5846, %v5979
    %v6400 = vsel %vm3974, %v5850, %v5981
    %v6401 = vsel %vm3974, %v5849, %v5983
    %v6402 = vsel %vm3974, %v5853, %v5985
    %v6403 = vsel %vm3974, %v5852, %v5987
    %v6404 = vsel %vm3974, %v5856, %v5989
    %v6405 = vsel %vm3974, %v5855, %v5991
    %v6406 = vsel %vm3974, %v5859, %v5993
    %v6407 = vsel %vm3974, %v5858, %v5995
    %v6408 = vsel %vm3974, %v5862, %v5997
    %v6409 = vsel %vm3974, %v5861, %v5999
    %v6410 = vsel %vm3974, %v5865, %v6001
    %v6411 = vsel %vm3974, %v5864, %v6003
    %v6412 = vsel %vm3974, %v5868, %v6005
    %v6413 = vsel %vm3974, %v5867, %v6007
    %v6414 = vsel %vm3974, %v5871, %v6009
    %v6415 = vsel %vm3974, %v5870, %v6011
    %v6416 = vsel %vm3974, %v5874, %v6013
    %v6417 = vsel %vm3974, %v5873, %v6015
    %v6418 = vsel %vm3974, %v5877, %v6017
    %v6419 = vsel %vm3974, %v5876, %v6019
    %v6420 = vsel %vm3974, %v5880, %v6021
    %v6421 = vsel %vm3974, %v5879, %v6023
    %v6422 = vsel %vm3974, %v5883, %v6025
    %v6423 = vsel %vm3974, %v5882, %v6027
    %v6424 = vsel %vm3974, %v5886, %v6029
    %v6425 = vsel %vm3974, %v5885, %v6031
    %v6426 = vsel %vm3974, %v5889, %v6033
    %v6427 = vsel %vm3974, %v5888, %v6035
    %v6428 = vsel %vm3974, %v5892, %v6037
    %v6429 = vsel %vm3974, %v5891, %v6039
    %v6430 = vsel %vm3974, %v5895, %v6041
    %v6431 = vsel %vm3974, %v5894, %v6043
    %v6432 = vsel %vm3974, %v5613, %v6153
    %v6433 = vsel %vm3974, %v5612, %v6155
    %v6434 = vsel %vm3974, %v5616, %v6157
    %v6435 = vsel %vm3974, %v5615, %v6159
    %v6436 = vsel %vm3974, %v5619, %v6161
    %v6437 = vsel %vm3974, %v5618, %v6163
    %v6438 = vsel %vm3974, %v5622, %v6165
    %v6439 = vsel %vm3974, %v5621, %v6167
    %v6440 = vsel %vm3974, %v5625, %v6169
    %v6441 = vsel %vm3974, %v5624, %v6171
    %v6442 = vsel %vm3974, %v5628, %v6173
    %v6443 = vsel %vm3974, %v5627, %v6175
    %v6444 = vsel %vm3974, %v5631, %v6177
    %v6445 = vsel %vm3974, %v5630, %v6179
    %v6446 = vsel %vm3974, %v5634, %v6181
    %v6447 = vsel %vm3974, %v5633, %v6183
    %v6448 = vsel %vm3974, %v5637, %v6185
    %v6449 = vsel %vm3974, %v5636, %v6187
    %v6450 = vsel %vm3974, %v5640, %v6189
    %v6451 = vsel %vm3974, %v5639, %v6191
    %v6452 = vsel %vm3974, %v5643, %v6193
    %v6453 = vsel %vm3974, %v5642, %v6195
    %v6454 = vsel %vm3974, %v6094, %v6197
    %v6455 = vsel %vm3974, %v6093, %v6199
    %v6456 = vsel %vm3974, %v5649, %v6201
    %v6457 = vsel %vm3974, %v5648, %v6203
    %v6458 = vsel %vm3974, %v5652, %v6205
    %v6459 = vsel %vm3974, %v5651, %v6207
    %v6460 = vsel %vm3974, %v5655, %v6209
    %v6461 = vsel %vm3974, %v5654, %v6211
    %v6462 = vsel %vm3974, %v5658, %v6213
    %v6463 = vsel %vm3974, %v5657, %v6215
    %v6464 = vsel %vm3974, %v5661, %v6217
    %v6465 = vsel %vm3974, %v5660, %v6219
    %v6466 = vsel %vm3974, %v5664, %v6221
    %v6467 = vsel %vm3974, %v5663, %v6223
    %v6468 = vsel %vm3974, %v5667, %v6225
    %v6469 = vsel %vm3974, %v5666, %v6227
    %v6470 = vsel %vm3974, %v5670, %v6229
    %v6471 = vsel %vm3974, %v5669, %v6231
    %v6472 = vsel %vm3974, %v5673, %v6233
    %v6473 = vsel %vm3974, %v5672, %v6235
    %v6474 = vsel %vm3974, %v5676, %v6237
    %v6475 = vsel %vm3974, %v5675, %v6239
    %v6476 = vsel %vm3974, %v5679, %v6241
    %v6477 = vsel %vm3974, %v5678, %v6243
    %v6478 = vsel %vm3974, %v6097, %v6245
    %v6479 = vsel %vm3974, %v6096, %v6247
    %v6480 = vsel %vm3974, %v5455, %v6307
    %v6481 = vsel %vm3974, %v5456, %v6309
    %v6482 = vsel %vm3974, %v5457, %v6311
    %v6483 = vsel %vm3974, %v5458, %v6313
    %v6484 = vsel %vm3974, %v5483, %v6315
    %v6485 = vsel %vm3974, %v5484, %v6317
    %v6486 = vsel %vm3974, %v5485, %v6319
    %v6487 = vsel %vm3974, %v5486, %v6321
    %v6640 = vcombine.low %v6336, %v6384
    %v6641 = vcombine.high %v6336, %v6384
    %v6642 = vcombine.low %v6432, %v6340
    %v6643 = vcombine.high %v6432, %v6340
    %v6644 = vcombine.high %v5832, %v5832
    %v6645 = vcombine.low %v6337, %v6385
    %v6646 = vcombine.low %v6433, %v6341
    %v6647 = vcombine.low %v6338, %v6386
    %v6648 = vcombine.high %v6338, %v6386
    %v6649 = vcombine.low %v6434, %v6342
    %v6650 = vcombine.high %v6434, %v6342
    %v6651 = vcombine.high %v5835, %v5835
    %v6652 = vcombine.low %v6339, %v6387
    %v6653 = vcombine.low %v6435, %v6343
    %v6654 = vcombine.low %v6340, %v6388
    %v6655 = vcombine.high %v6340, %v6388
    %v6656 = vcombine.low %v6436, %v6344
    %v6657 = vcombine.high %v6436, %v6344
    %v6658 = vcombine.high %v5838, %v5838
    %v6659 = vcombine.low %v6341, %v6389
    %v6660 = vcombine.low %v6437, %v6345
    %v6661 = vcombine.low %v6342, %v6390
    %v6662 = vcombine.high %v6342, %v6390
    %v6663 = vcombine.low %v6438, %v6346
    %v6664 = vcombine.high %v6438, %v6346
    %v6665 = vcombine.high %v5841, %v5841
    %v6666 = vcombine.low %v6343, %v6391
    %v6667 = vcombine.low %v6439, %v6347
    %v6668 = vcombine.low %v6344, %v6392
    %v6669 = vcombine.high %v6344, %v6392
    %v6670 = vcombine.low %v6440, %v6348
    %v6671 = vcombine.high %v6440, %v6348
    %v6672 = vcombine.high %v5844, %v5844
    %v6673 = vcombine.low %v6345, %v6393
    %v6674 = vcombine.low %v6441, %v6349
    %v6675 = vcombine.low %v6346, %v6394
    %v6676 = vcombine.high %v6346, %v6394
    %v6677 = vcombine.low %v6442, %v6350
    %v6678 = vcombine.high %v6442, %v6350
    %v6679 = vcombine.high %v5847, %v5847
    %v6680 = vcombine.low %v6347, %v6395
    %v6681 = vcombine.low %v6443, %v6351
    %v6682 = vcombine.low %v6348, %v6396
    %v6683 = vcombine.high %v6348, %v6396
    %v6684 = vcombine.low %v6444, %v6352
    %v6685 = vcombine.high %v6444, %v6352
    %v6686 = vcombine.high %v5850, %v5850
    %v6687 = vcombine.low %v6349, %v6397
    %v6688 = vcombine.low %v6445, %v6353
    %v6689 = vcombine.low %v6350, %v6398
    %v6690 = vcombine.high %v6350, %v6398
    %v6691 = vcombine.low %v6446, %v6354
    %v6692 = vcombine.high %v6446, %v6354
    %v6693 = vcombine.high %v5853, %v5853
    %v6694 = vcombine.low %v6351, %v6399
    %v6695 = vcombine.low %v6447, %v6355
    %v6696 = vcombine.low %v6352, %v6400
    %v6697 = vcombine.high %v6352, %v6400
    %v6698 = vcombine.low %v6448, %v6356
    %v6699 = vcombine.high %v6448, %v6356
    %v6700 = vcombine.high %v5856, %v5856
    %v6701 = vcombine.low %v6353, %v6401
    %v6702 = vcombine.low %v6449, %v6357
    %v6703 = vcombine.low %v6354, %v6402
    %v6704 = vcombine.high %v6354, %v6402
    %v6705 = vcombine.low %v6450, %v6358
    %v6706 = vcombine.high %v6450, %v6358
    %v6707 = vcombine.high %v5859, %v5859
    %v6708 = vcombine.low %v6355, %v6403
    %v6709 = vcombine.low %v6451, %v6359
    %v6710 = vcombine.low %v6356, %v6404
    %v6711 = vcombine.high %v6356, %v6404
    %v6712 = vcombine.low %v6452, %v6480
    %v6713 = vcombine.high %v6452, %v6480
    %v6714 = vcombine.high %v6148, %v6148
    %v6715 = vcombine.low %v6357, %v6405
    %v6716 = vcombine.low %v6453, %v6481
    %v6717 = vcombine.low %v6358, %v6406
    %v6718 = vcombine.high %v6358, %v6406
    %v6719 = vcombine.low %v6454, %v6482
    %v6720 = vcombine.high %v6454, %v6482
    %v6721 = vcombine.high %v6332, %v6332
    %v6722 = vcombine.low %v6359, %v6407
    %v6723 = vcombine.low %v6455, %v6483
    %v6724 = vcombine.low %v6360, %v6408
    %v6725 = vcombine.high %v6360, %v6408
    %v6726 = vcombine.low %v6456, %v6364
    %v6727 = vcombine.high %v6456, %v6364
    %v6728 = vcombine.high %v5868, %v5868
    %v6729 = vcombine.low %v6361, %v6409
    %v6730 = vcombine.low %v6457, %v6365
    %v6731 = vcombine.low %v6362, %v6410
    %v6732 = vcombine.high %v6362, %v6410
    %v6733 = vcombine.low %v6458, %v6366
    %v6734 = vcombine.high %v6458, %v6366
    %v6735 = vcombine.high %v5871, %v5871
    %v6736 = vcombine.low %v6363, %v6411
    %v6737 = vcombine.low %v6459, %v6367
    %v6738 = vcombine.low %v6364, %v6412
    %v6739 = vcombine.high %v6364, %v6412
    %v6740 = vcombine.low %v6460, %v6368
    %v6741 = vcombine.high %v6460, %v6368
    %v6742 = vcombine.high %v5874, %v5874
    %v6743 = vcombine.low %v6365, %v6413
    %v6744 = vcombine.low %v6461, %v6369
    %v6745 = vcombine.low %v6366, %v6414
    %v6746 = vcombine.high %v6366, %v6414
    %v6747 = vcombine.low %v6462, %v6370
    %v6748 = vcombine.high %v6462, %v6370
    %v6749 = vcombine.high %v5877, %v5877
    %v6750 = vcombine.low %v6367, %v6415
    %v6751 = vcombine.low %v6463, %v6371
    %v6752 = vcombine.low %v6368, %v6416
    %v6753 = vcombine.high %v6368, %v6416
    %v6754 = vcombine.low %v6464, %v6372
    %v6755 = vcombine.high %v6464, %v6372
    %v6756 = vcombine.high %v5880, %v5880
    %v6757 = vcombine.low %v6369, %v6417
    %v6758 = vcombine.low %v6465, %v6373
    %v6759 = vcombine.low %v6370, %v6418
    %v6760 = vcombine.high %v6370, %v6418
    %v6761 = vcombine.low %v6466, %v6374
    %v6762 = vcombine.high %v6466, %v6374
    %v6763 = vcombine.high %v5883, %v5883
    %v6764 = vcombine.low %v6371, %v6419
    %v6765 = vcombine.low %v6467, %v6375
    %v6766 = vcombine.low %v6372, %v6420
    %v6767 = vcombine.high %v6372, %v6420
    %v6768 = vcombine.low %v6468, %v6376
    %v6769 = vcombine.high %v6468, %v6376
    %v6770 = vcombine.high %v5886, %v5886
    %v6771 = vcombine.low %v6373, %v6421
    %v6772 = vcombine.low %v6469, %v6377
    %v6773 = vcombine.low %v6374, %v6422
    %v6774 = vcombine.high %v6374, %v6422
    %v6775 = vcombine.low %v6470, %v6378
    %v6776 = vcombine.high %v6470, %v6378
    %v6777 = vcombine.high %v5889, %v5889
    %v6778 = vcombine.low %v6375, %v6423
    %v6779 = vcombine.low %v6471, %v6379
    %v6780 = vcombine.low %v6376, %v6424
    %v6781 = vcombine.high %v6376, %v6424
    %v6782 = vcombine.low %v6472, %v6380
    %v6783 = vcombine.high %v6472, %v6380
    %v6784 = vcombine.high %v5892, %v5892
    %v6785 = vcombine.low %v6377, %v6425
    %v6786 = vcombine.low %v6473, %v6381
    %v6787 = vcombine.low %v6378, %v6426
    %v6788 = vcombine.high %v6378, %v6426
    %v6789 = vcombine.low %v6474, %v6382
    %v6790 = vcombine.high %v6474, %v6382
    %v6791 = vcombine.high %v5895, %v5895
    %v6792 = vcombine.low %v6379, %v6427
    %v6793 = vcombine.low %v6475, %v6383
    %v6794 = vcombine.low %v6380, %v6428
    %v6795 = vcombine.high %v6380, %v6428
    %v6796 = vcombine.low %v6476, %v6484
    %v6797 = vcombine.high %v6476, %v6484
    %v6798 = vcombine.high %v6151, %v6151
    %v6799 = vcombine.low %v6381, %v6429
    %v6800 = vcombine.low %v6477, %v6485
    %v6801 = vcombine.low %v6382, %v6430
    %v6802 = vcombine.high %v6382, %v6430
    %v6803 = vcombine.low %v6478, %v6486
    %v6804 = vcombine.high %v6478, %v6486
    %v6805 = vcombine.high %v6335, %v6335
    %v6806 = vcombine.low %v6383, %v6431
    %v6807 = vcombine.low %v6479, %v6487
    %v6809 = vlaneseq
    %v6810 = vshrl.u32 %v6809, 7
    %v6811 = vsub.s32 0, %v6810
    %v6812 = vrot.slane %v5559, %v6811
    %v6814 = vcombine.low %v6640, %v6641
    %v6815 = vcombine.high %v6640, %v6641
    %v6816 = vcombine.low %v6642, %v6643
    %v6817 = vcombine.high %v6642, %v6643
    %v6818 = vcombine.low %v5832, %v6644
    %v6819 = vcombine.low %v6645, %v6647
    %v6820 = vcombine.high %v6645, %v6647
    %v6821 = vcombine.low %v6646, %v6649
    %v6822 = vcombine.high %v6646, %v6649
    %v6823 = vcombine.low %v5831, %v5835
    %v6824 = vcombine.low %v6648, %v6652
    %v6825 = vcombine.high %v6648, %v6652
    %v6826 = vcombine.low %v6650, %v6653
    %v6827 = vcombine.high %v6650, %v6653
    %v6828 = vcombine.low %v6651, %v5834
    %v6829 = vcombine.low %v6654, %v6655
    %v6830 = vcombine.high %v6654, %v6655
    %v6831 = vcombine.low %v6656, %v6657
    %v6832 = vcombine.high %v6656, %v6657
    %v6833 = vcombine.low %v5838, %v6658
    %v6834 = vcombine.low %v6659, %v6661
    %v6835 = vcombine.high %v6659, %v6661
    %v6836 = vcombine.low %v6660, %v6663
    %v6837 = vcombine.high %v6660, %v6663
    %v6838 = vcombine.low %v5837, %v5841
    %v6839 = vcombine.low %v6662, %v6666
    %v6840 = vcombine.high %v6662, %v6666
    %v6841 = vcombine.low %v6664, %v6667
    %v6842 = vcombine.high %v6664, %v6667
    %v6843 = vcombine.low %v6665, %v5840
    %v6844 = vcombine.low %v6668, %v6669
    %v6845 = vcombine.high %v6668, %v6669
    %v6846 = vcombine.low %v6670, %v6671
    %v6847 = vcombine.high %v6670, %v6671
    %v6848 = vcombine.low %v5844, %v6672
    %v6849 = vcombine.low %v6673, %v6675
    %v6850 = vcombine.high %v6673, %v6675
    %v6851 = vcombine.low %v6674, %v6677
    %v6852 = vcombine.high %v6674, %v6677
    %v6853 = vcombine.low %v5843, %v5847
    %v6854 = vcombine.low %v6676, %v6680
    %v6855 = vcombine.high %v6676, %v6680
    %v6856 = vcombine.low %v6678, %v6681
    %v6857 = vcombine.high %v6678, %v6681
    %v6858 = vcombine.low %v6679, %v5846
    %v6859 = vcombine.low %v6682, %v6683
    %v6860 = vcombine.high %v6682, %v6683
    %v6861 = vcombine.low %v6684, %v6685
    %v6862 = vcombine.high %v6684, %v6685
    %v6863 = vcombine.low %v5850, %v6686
    %v6864 = vcombine.low %v6687, %v6689
    %v6865 = vcombine.high %v6687, %v6689
    %v6866 = vcombine.low %v6688, %v6691
    %v6867 = vcombine.high %v6688, %v6691
    %v6868 = vcombine.low %v5849, %v5853
    %v6869 = vcombine.low %v6690, %v6694
    %v6870 = vcombine.high %v6690, %v6694
    %v6871 = vcombine.low %v6692, %v6695
    %v6872 = vcombine.high %v6692, %v6695
    %v6873 = vcombine.low %v6693, %v5852
    %v6874 = vcombine.low %v6696, %v6697
    %v6875 = vcombine.high %v6696, %v6697
    %v6876 = vcombine.low %v6698, %v6699
    %v6877 = vcombine.high %v6698, %v6699
    %v6878 = vcombine.low %v5856, %v6700
    %v6879 = vcombine.low %v6701, %v6703
    %v6880 = vcombine.high %v6701, %v6703
    %v6881 = vcombine.low %v6702, %v6705
    %v6882 = vcombine.high %v6702, %v6705
    %v6883 = vcombine.low %v5855, %v5859
    %v6884 = vcombine.low %v6704, %v6708
    %v6885 = vcombine.high %v6704, %v6708
    %v6886 = vcombine.low %v6706, %v6709
    %v6887 = vcombine.high %v6706, %v6709
    %v6888 = vcombine.low %v6707, %v5858
    %v6889 = vcombine.low %v6710, %v6711
    %v6890 = vcombine.high %v6710, %v6711
    %v6891 = vcombine.low %v6712, %v6713
    %v6892 = vcombine.high %v6712, %v6713
    %v6893 = vcombine.low %v6148, %v6714
    %v6894 = vcombine.low %v6715, %v6717
    %v6895 = vcombine.high %v6715, %v6717
    %v6896 = vcombine.low %v6716, %v6719
    %v6897 = vcombine.high %v6716, %v6719
    %v6898 = vcombine.low %v6147, %v6332
    %v6899 = vcombine.low %v6718, %v6722
    %v6900 = vcombine.high %v6718, %v6722
    %v6901 = vcombine.low %v6720, %v6723
    %v6902 = vcombine.high %v6720, %v6723
    %v6903 = vcombine.low %v6721, %v6331
    %v6904 = vcombine.low %v6724, %v6725
    %v6905 = vcombine.high %v6724, %v6725
    %v6906 = vcombine.low %v6726, %v6727
    %v6907 = vcombine.high %v6726, %v6727
    %v6908 = vcombine.low %v5868, %v6728
    %v6909 = vcombine.low %v6729, %v6731
    %v6910 = vcombine.high %v6729, %v6731
    %v6911 = vcombine.low %v6730, %v6733
    %v6912 = vcombine.high %v6730, %v6733
    %v6913 = vcombine.low %v5867, %v5871
    %v6914 = vcombine.low %v6732, %v6736
    %v6915 = vcombine.high %v6732, %v6736
    %v6916 = vcombine.low %v6734, %v6737
    %v6917 = vcombine.high %v6734, %v6737
    %v6918 = vcombine.low %v6735, %v5870
    %v6919 = vcombine.low %v6738, %v6739
    %v6920 = vcombine.high %v6738, %v6739
    %v6921 = vcombine.low %v6740, %v6741
    %v6922 = vcombine.high %v6740, %v6741
    %v6923 = vcombine.low %v5874, %v6742
    %v6924 = vcombine.low %v6743, %v6745
    %v6925 = vcombine.high %v6743, %v6745
    %v6926 = vcombine.low %v6744, %v6747
    %v6927 = vcombine.high %v6744, %v6747
    %v6928 = vcombine.low %v5873, %v5877
    %v6929 = vcombine.low %v6746, %v6750
    %v6930 = vcombine.high %v6746, %v6750
    %v6931 = vcombine.low %v6748, %v6751
    %v6932 = vcombine.high %v6748, %v6751
    %v6933 = vcombine.low %v6749, %v5876
    %v6934 = vcombine.low %v6752, %v6753
    %v6935 = vcombine.high %v6752, %v6753
    %v6936 = vcombine.low %v6754, %v6755
    %v6937 = vcombine.high %v6754, %v6755
    %v6938 = vcombine.low %v5880, %v6756
    %v6939 = vcombine.low %v6757, %v6759
    %v6940 = vcombine.high %v6757, %v6759
    %v6941 = vcombine.low %v6758, %v6761
    %v6942 = vcombine.high %v6758, %v6761
    %v6943 = vcombine.low %v5879, %v5883
    %v6944 = vcombine.low %v6760, %v6764
    %v6945 = vcombine.high %v6760, %v6764
    %v6946 = vcombine.low %v6762, %v6765
    %v6947 = vcombine.high %v6762, %v6765
    %v6948 = vcombine.low %v6763, %v5882
    %v6949 = vcombine.low %v6766, %v6767
    %v6950 = vcombine.high %v6766, %v6767
    %v6951 = vcombine.low %v6768, %v6769
    %v6952 = vcombine.high %v6768, %v6769
    %v6953 = vcombine.low %v5886, %v6770
    %v6954 = vcombine.low %v6771, %v6773
    %v6955 = vcombine.high %v6771, %v6773
    %v6956 = vcombine.low %v6772, %v6775
    %v6957 = vcombine.high %v6772, %v6775
    %v6958 = vcombine.low %v5885, %v5889
    %v6959 = vcombine.low %v6774, %v6778
    %v6960 = vcombine.high %v6774, %v6778
    %v6961 = vcombine.low %v6776, %v6779
    %v6962 = vcombine.high %v6776, %v6779
    %v6963 = vcombine.low %v6777, %v5888
    %v6964 = vcombine.low %v6780, %v6781
    %v6965 = vcombine.high %v6780, %v6781
    %v6966 = vcombine.low %v6782, %v6783
    %v6967 = vcombine.high %v6782, %v6783
    %v6968 = vcombine.low %v5892, %v6784
    %v6969 = vcombine.low %v6785, %v6787
    %v6970 = vcombine.high %v6785, %v6787
    %v6971 = vcombine.low %v6786, %v6789
    %v6972 = vcombine.high %v6786, %v6789
    %v6973 = vcombine.low %v5891, %v5895
    %v6974 = vcombine.low %v6788, %v6792
    %v6975 = vcombine.high %v6788, %v6792
    %v6976 = vcombine.low %v6790, %v6793
    %v6977 = vcombine.high %v6790, %v6793
    %v6978 = vcombine.low %v6791, %v5894
    %v6979 = vcombine.low %v6794, %v6795
    %v6980 = vcombine.high %v6794, %v6795
    %v6981 = vcombine.low %v6796, %v6797
    %v6982 = vcombine.high %v6796, %v6797
    %v6983 = vcombine.low %v6151, %v6798
    %v6984 = vcombine.low %v6799, %v6801
    %v6985 = vcombine.high %v6799, %v6801
    %v6986 = vcombine.low %v6800, %v6803
    %v6987 = vcombine.high %v6800, %v6803
    %v6988 = vcombine.low %v6150, %v6335
    %v6989 = vcombine.low %v6802, %v6806
    %v6990 = vcombine.high %v6802, %v6806
    %v6991 = vcombine.low %v6804, %v6807
    %v6992 = vcombine.high %v6804, %v6807
    %v6993 = vcombine.low %v6805, %v6334
    %v7138 = vsel %vm3974, %v6818, 0
    %v7140 = vsel %vm3974, %v6823, 0
    %v7142 = vsel %vm3974, %v6828, 0
    %v7144 = vsel %vm3974, %v6833, 0
    %v7146 = vsel %vm3974, %v6838, 0
    %v7148 = vsel %vm3974, %v6843, 0
    %v7150 = vsel %vm3974, %v6848, 0
    %v7152 = vsel %vm3974, %v6853, 0
    %v7154 = vsel %vm3974, %v6858, 0
    %v7156 = vsel %vm3974, %v6863, 0
    %v7158 = vsel %vm3974, %v6868, 0
    %v7160 = vsel %vm3974, %v6873, 0
    %v7162 = vsel %vm3974, %v6878, 0
    %v7164 = vsel %vm3974, %v6883, 0
    %v7166 = vsel %vm3974, %v6888, 0
    %v7168 = vsel %vm3974, %v6893, 0
    %v7170 = vsel %vm3974, %v6898, 0
    %v7172 = vsel %vm3974, %v6903, 0
    %v7174 = vsel %vm3974, %v6908, 0
    %v7176 = vsel %vm3974, %v6913, 0
    %v7178 = vsel %vm3974, %v6918, 0
    %v7180 = vsel %vm3974, %v6923, 0
    %v7182 = vsel %vm3974, %v6928, 0
    %v7184 = vsel %vm3974, %v6933, 0
    %v7186 = vsel %vm3974, %v6938, 0
    %v7188 = vsel %vm3974, %v6943, 0
    %v7190 = vsel %vm3974, %v6948, 0
    %v7192 = vsel %vm3974, %v6953, 0
    %v7194 = vsel %vm3974, %v6958, 0
    %v7196 = vsel %vm3974, %v6963, 0
    %v7198 = vsel %vm3974, %v6968, 0
    %v7200 = vsel %vm3974, %v6973, 0
    %v7202 = vsel %vm3974, %v6978, 0
    %v7204 = vsel %vm3974, %v6983, 0
    %v7206 = vsel %vm3974, %v6988, 0
    %v7208 = vsel %vm3974, %v6993, 0
    %7210 = vmatprep.subr.mxu0 0.0
    %7211 = vmatpush1.msra.mxu0 %v5502
    %7212 = vmatprep.subr.mxu0 0.0
    %7213 = vmatpush1.msra.mxu0 %v5501
    %7214 = vmatprep.subr.mxu0 0.0
    %7215 = vmatpush1.msra.mxu0 %v5500
    %7216 = vmatprep.subr.mxu0 0.0
    %7217 = vmatpush1.msra.mxu0 %v5499
    %7218 = vmatprep.subr.mxu0 0.0
    %7219 = vmatpush1.msra.mxu0 %v5498
    %7220 = vmatprep.subr.mxu0 0.0
    %7221 = vmatpush1.msra.mxu0 %v5497
    %7222 = vmatprep.subr.mxu0 0.0
    %7223 = vmatpush1.msra.mxu0 %v5496
    %7224 = vmatprep.subr.mxu0 0.0
    %7225 = vmatpush1.msra.mxu0 %v5495
    %7226 = vmatprep.subr.mxu0 0.0
    %7227 = vmatpush1.msra.mxu0 %v5494
    %7228 = vmatprep.subr.mxu0 0.0
    %7229 = vmatpush1.msra.mxu0 %v5493
    %7230 = vmatprep.subr.mxu0 0.0
    %7231 = vmatpush1.msra.mxu0 %v5492
    %7232 = vmatprep.subr.mxu0 0.0
    %7233 = vmatpush1.msra.mxu0 %v5491
    %7234 = vmatprep.subr.mxu0 0.0
    %7235 = vmatpush1.msra.mxu0 %v5490
    %7236 = vmatprep.subr.mxu0 0.0
    %7237 = vmatpush1.msra.mxu0 %v5489
    %7238 = vmatprep.subr.mxu0 0.0
    %7239 = vmatpush1.msra.mxu0 %v5488
    %7240 = vmatprep.subr.mxu0 0.0
    %7241 = vmatpush1.msra.mxu0 %v5487
    %7242 = vmatprep.subr.mxu0 0.0
    %7243 = vmatpush2.msra.mxu0 %v5518
    %7244 = vmatprep.subr.mxu0 0.0
    %7245 = vmatpush2.msra.mxu0 %v5517
    %7246 = vmatprep.subr.mxu0 0.0
    %7247 = vmatpush2.msra.mxu0 %v5516
    %7248 = vmatprep.subr.mxu0 0.0
    %7249 = vmatpush2.msra.mxu0 %v5515
    %7250 = vmatprep.subr.mxu0 0.0
    %7251 = vmatpush2.msra.mxu0 %v5514
    %7252 = vmatprep.subr.mxu0 0.0
    %7253 = vmatpush2.msra.mxu0 %v5513
    %7254 = vmatprep.subr.mxu0 0.0
    %7255 = vmatpush2.msra.mxu0 %v5512
    %7256 = vmatprep.subr.mxu0 0.0
    %7257 = vmatpush2.msra.mxu0 %v5511
    %7258 = vmatprep.subr.mxu0 0.0
    %7259 = vmatpush2.msra.mxu0 %v5510
    %7260 = vmatprep.subr.mxu0 0.0
    %7261 = vmatpush2.msra.mxu0 %v5509
    %7262 = vmatprep.subr.mxu0 0.0
    %7263 = vmatpush2.msra.mxu0 %v5508
    %7264 = vmatprep.subr.mxu0 0.0
    %7265 = vmatpush2.msra.mxu0 %v5507
    %7266 = vmatprep.subr.mxu0 0.0
    %7267 = vmatpush2.msra.mxu0 %v5506
    %7268 = vmatprep.subr.mxu0 0.0
    %7269 = vmatpush2.msra.mxu0 %v5505
    %7270 = vmatprep.subr.mxu0 0.0
    %7271 = vmatpush2.msra.mxu0 %v5504
    %7272 = vmatprep.subr.mxu0 0.0
    %7273 = vmatpush2.msra.mxu0 %v5503
    %7274 = vmatprep.mubr.f32.mxu0 %v6815
    %7275 = vmatmul.mubr.f32.gmra.mxu0 %v6814
    %v7276 = vpop.f32.mrf.mxu0
    %v7277 = vadd.f32 %v6812, %v7276
    %v7278 = vpop.f32.mrf.mxu0
    %7279 = vmatprep.mubr.f32.mxu0 %v6820
    %7280 = vmatmul.mubr.f32.gmra.mxu0 %v6819
    %v7281 = vpop.f32.mrf.mxu0
    %v7282 = vadd.f32 %v6812, %v7281
    %v7283 = vpop.f32.mrf.mxu0
    %7284 = vmatprep.mubr.f32.mxu0 %v6825
    %7285 = vmatmul.mubr.f32.gmra.mxu0 %v6824
    %v7286 = vpop.f32.mrf.mxu0
    %v7287 = vadd.f32 %v6812, %v7286
    %v7288 = vpop.f32.mrf.mxu0
    %7289 = vmatprep.mubr.f32.mxu0 %v6830
    %7290 = vmatmul.mubr.f32.gmra.mxu0 %v6829
    %v7291 = vpop.f32.mrf.mxu0
    %v7292 = vadd.f32 %v6812, %v7291
    %v7293 = vpop.f32.mrf.mxu0
    %7294 = vmatprep.mubr.f32.mxu0 %v6835
    %7295 = vmatmul.mubr.f32.gmra.mxu0 %v6834
    %v7296 = vpop.f32.mrf.mxu0
    %v7297 = vadd.f32 %v6812, %v7296
    %v7298 = vpop.f32.mrf.mxu0
    %7299 = vmatprep.mubr.f32.mxu0 %v6840
    %7300 = vmatmul.mubr.f32.gmra.mxu0 %v6839
    %v7301 = vpop.f32.mrf.mxu0
    %v7302 = vadd.f32 %v6812, %v7301
    %v7303 = vpop.f32.mrf.mxu0
    %7304 = vmatprep.mubr.f32.mxu0 %v6845
    %7305 = vmatmul.mubr.f32.gmra.mxu0 %v6844
    %v7306 = vpop.f32.mrf.mxu0
    %v7307 = vadd.f32 %v6812, %v7306
    %v7308 = vpop.f32.mrf.mxu0
    %7309 = vmatprep.mubr.f32.mxu0 %v6850
    %7310 = vmatmul.mubr.f32.gmra.mxu0 %v6849
    %v7311 = vpop.f32.mrf.mxu0
    %v7312 = vadd.f32 %v6812, %v7311
    %v7313 = vpop.f32.mrf.mxu0
    %7314 = vmatprep.mubr.f32.mxu0 %v6855
    %7315 = vmatmul.mubr.f32.gmra.mxu0 %v6854
    %v7316 = vpop.f32.mrf.mxu0
    %v7317 = vadd.f32 %v6812, %v7316
    %v7318 = vpop.f32.mrf.mxu0
    %7319 = vmatprep.mubr.f32.mxu0 %v6860
    %7320 = vmatmul.mubr.f32.gmra.mxu0 %v6859
    %v7321 = vpop.f32.mrf.mxu0
    %v7322 = vadd.f32 %v6812, %v7321
    %v7323 = vpop.f32.mrf.mxu0
    %7324 = vmatprep.mubr.f32.mxu0 %v6865
    %7325 = vmatmul.mubr.f32.gmra.mxu0 %v6864
    %v7326 = vpop.f32.mrf.mxu0
    %v7327 = vadd.f32 %v6812, %v7326
    %v7328 = vpop.f32.mrf.mxu0
    %7329 = vmatprep.mubr.f32.mxu0 %v6870
    %7330 = vmatmul.mubr.f32.gmra.mxu0 %v6869
    %v7331 = vpop.f32.mrf.mxu0
    %v7332 = vadd.f32 %v6812, %v7331
    %v7333 = vpop.f32.mrf.mxu0
    %7334 = vmatprep.mubr.f32.mxu0 %v6875
    %7335 = vmatmul.mubr.f32.gmra.mxu0 %v6874
    %v7336 = vpop.f32.mrf.mxu0
    %v7337 = vadd.f32 %v6812, %v7336
    %v7338 = vpop.f32.mrf.mxu0
    %7339 = vmatprep.mubr.f32.mxu0 %v6880
    %7340 = vmatmul.mubr.f32.gmra.mxu0 %v6879
    %v7341 = vpop.f32.mrf.mxu0
    %v7342 = vadd.f32 %v6812, %v7341
    %v7343 = vpop.f32.mrf.mxu0
    %7344 = vmatprep.mubr.f32.mxu0 %v6885
    %7345 = vmatmul.mubr.f32.gmra.mxu0 %v6884
    %v7346 = vpop.f32.mrf.mxu0
    %v7347 = vadd.f32 %v6812, %v7346
    %v7348 = vpop.f32.mrf.mxu0
    %7349 = vmatprep.mubr.f32.mxu0 %v6890
    %7350 = vmatmul.mubr.f32.gmra.mxu0 %v6889
    %v7351 = vpop.f32.mrf.mxu0
    %v7352 = vadd.f32 %v6812, %v7351
    %v7353 = vpop.f32.mrf.mxu0
    %7354 = vmatprep.mubr.f32.mxu0 %v6895
    %7355 = vmatmul.mubr.f32.gmra.mxu0 %v6894
    %v7356 = vpop.f32.mrf.mxu0
    %v7357 = vadd.f32 %v6812, %v7356
    %v7358 = vpop.f32.mrf.mxu0
    %7359 = vmatprep.mubr.f32.mxu0 %v6900
    %7360 = vmatmul.mubr.f32.gmra.mxu0 %v6899
    %v7361 = vpop.f32.mrf.mxu0
    %v7362 = vadd.f32 %v6812, %v7361
    %v7363 = vpop.f32.mrf.mxu0
    %7364 = vmatprep.mubr.f32.mxu0 %v6905
    %7365 = vmatmul.mubr.f32.gmra.mxu0 %v6904
    %v7366 = vpop.f32.mrf.mxu0
    %v7367 = vadd.f32 %v6812, %v7366
    %v7368 = vpop.f32.mrf.mxu0
    %7369 = vmatprep.mubr.f32.mxu0 %v6910
    %7370 = vmatmul.mubr.f32.gmra.mxu0 %v6909
    %v7371 = vpop.f32.mrf.mxu0
    %v7372 = vadd.f32 %v6812, %v7371
    %v7373 = vpop.f32.mrf.mxu0
    %7374 = vmatprep.mubr.f32.mxu0 %v6915
    %7375 = vmatmul.mubr.f32.gmra.mxu0 %v6914
    %v7376 = vpop.f32.mrf.mxu0
    %v7377 = vadd.f32 %v6812, %v7376
    %v7378 = vpop.f32.mrf.mxu0
    %7379 = vmatprep.mubr.f32.mxu0 %v6920
    %7380 = vmatmul.mubr.f32.gmra.mxu0 %v6919
    %v7381 = vpop.f32.mrf.mxu0
    %v7382 = vadd.f32 %v6812, %v7381
    %v7383 = vpop.f32.mrf.mxu0
    %7384 = vmatprep.mubr.f32.mxu0 %v6925
    %7385 = vmatmul.mubr.f32.gmra.mxu0 %v6924
    %v7386 = vpop.f32.mrf.mxu0
    %v7387 = vadd.f32 %v6812, %v7386
    %v7388 = vpop.f32.mrf.mxu0
    %7389 = vmatprep.mubr.f32.mxu0 %v6930
    %7390 = vmatmul.mubr.f32.gmra.mxu0 %v6929
    %v7391 = vpop.f32.mrf.mxu0
    %v7392 = vadd.f32 %v6812, %v7391
    %v7393 = vpop.f32.mrf.mxu0
    %7394 = vmatprep.mubr.f32.mxu0 %v6935
    %7395 = vmatmul.mubr.f32.gmra.mxu0 %v6934
    %v7396 = vpop.f32.mrf.mxu0
    %v7397 = vadd.f32 %v6812, %v7396
    %v7398 = vpop.f32.mrf.mxu0
    %7399 = vmatprep.mubr.f32.mxu0 %v6940
    %7400 = vmatmul.mubr.f32.gmra.mxu0 %v6939
    %v7401 = vpop.f32.mrf.mxu0
    %v7402 = vadd.f32 %v6812, %v7401
    %v7403 = vpop.f32.mrf.mxu0
    %7404 = vmatprep.mubr.f32.mxu0 %v6945
    %7405 = vmatmul.mubr.f32.gmra.mxu0 %v6944
    %v7406 = vpop.f32.mrf.mxu0
    %v7407 = vadd.f32 %v6812, %v7406
    %v7408 = vpop.f32.mrf.mxu0
    %7409 = vmatprep.mubr.f32.mxu0 %v6950
    %7410 = vmatmul.mubr.f32.gmra.mxu0 %v6949
    %v7411 = vpop.f32.mrf.mxu0
    %v7412 = vadd.f32 %v6812, %v7411
    %v7413 = vpop.f32.mrf.mxu0
    %7414 = vmatprep.mubr.f32.mxu0 %v6955
    %7415 = vmatmul.mubr.f32.gmra.mxu0 %v6954
    %v7416 = vpop.f32.mrf.mxu0
    %v7417 = vadd.f32 %v6812, %v7416
    %v7418 = vpop.f32.mrf.mxu0
    %7419 = vmatprep.mubr.f32.mxu0 %v6960
    %7420 = vmatmul.mubr.f32.gmra.mxu0 %v6959
    %v7421 = vpop.f32.mrf.mxu0
    %v7422 = vadd.f32 %v6812, %v7421
    %v7423 = vpop.f32.mrf.mxu0
    %7424 = vmatprep.mubr.f32.mxu0 %v6965
    %7425 = vmatmul.mubr.f32.gmra.mxu0 %v6964
    %v7426 = vpop.f32.mrf.mxu0
    %v7427 = vadd.f32 %v6812, %v7426
    %v7428 = vpop.f32.mrf.mxu0
    %7429 = vmatprep.mubr.f32.mxu0 %v6970
    %7430 = vmatmul.mubr.f32.gmra.mxu0 %v6969
    %v7431 = vpop.f32.mrf.mxu0
    %v7432 = vadd.f32 %v6812, %v7431
    %v7433 = vpop.f32.mrf.mxu0
    %7434 = vmatprep.mubr.f32.mxu0 %v6975
    %7435 = vmatmul.mubr.f32.gmra.mxu0 %v6974
    %v7436 = vpop.f32.mrf.mxu0
    %v7437 = vadd.f32 %v6812, %v7436
    %v7438 = vpop.f32.mrf.mxu0
    %7439 = vmatprep.mubr.f32.mxu0 %v6980
    %7440 = vmatmul.mubr.f32.gmra.mxu0 %v6979
    %v7441 = vpop.f32.mrf.mxu0
    %v7442 = vadd.f32 %v6812, %v7441
    %v7443 = vpop.f32.mrf.mxu0
    %7444 = vmatprep.mubr.f32.mxu0 %v6985
    %7445 = vmatmul.mubr.f32.gmra.mxu0 %v6984
    %v7446 = vpop.f32.mrf.mxu0
    %v7447 = vadd.f32 %v6812, %v7446
    %v7448 = vpop.f32.mrf.mxu0
    %7449 = vmatprep.mubr.f32.mxu0 %v6990
    %7450 = vmatmul.mubr.f32.gmra.mxu0 %v6989
    %v7451 = vpop.f32.mrf.mxu0
    %v7452 = vadd.f32 %v6812, %v7451
    %v7453 = vpop.f32.mrf.mxu0
    %7454 = vdwg.mxu0
    %7455 = vmatprep.subr.mxu0 0.0
    %7456 = vmatpush1.msra.mxu0 %v5534
    %7457 = vmatprep.subr.mxu0 0.0
    %7458 = vmatpush1.msra.mxu0 %v5533
    %7459 = vmatprep.subr.mxu0 0.0
    %7460 = vmatpush1.msra.mxu0 %v5532
    %7461 = vmatprep.subr.mxu0 0.0
    %7462 = vmatpush1.msra.mxu0 %v5531
    %7463 = vmatprep.subr.mxu0 0.0
    %7464 = vmatpush1.msra.mxu0 %v5530
    %7465 = vmatprep.subr.mxu0 0.0
    %7466 = vmatpush1.msra.mxu0 %v5529
    %7467 = vmatprep.subr.mxu0 0.0
    %7468 = vmatpush1.msra.mxu0 %v5528
    %7469 = vmatprep.subr.mxu0 0.0
    %7470 = vmatpush1.msra.mxu0 %v5527
    %7471 = vmatprep.subr.mxu0 0.0
    %7472 = vmatpush1.msra.mxu0 %v5526
    %7473 = vmatprep.subr.mxu0 0.0
    %7474 = vmatpush1.msra.mxu0 %v5525
    %7475 = vmatprep.subr.mxu0 0.0
    %7476 = vmatpush1.msra.mxu0 %v5524
    %7477 = vmatprep.subr.mxu0 0.0
    %7478 = vmatpush1.msra.mxu0 %v5523
    %7479 = vmatprep.subr.mxu0 0.0
    %7480 = vmatpush1.msra.mxu0 %v5522
    %7481 = vmatprep.subr.mxu0 0.0
    %7482 = vmatpush1.msra.mxu0 %v5521
    %7483 = vmatprep.subr.mxu0 0.0
    %7484 = vmatpush1.msra.mxu0 %v5520
    %7485 = vmatprep.subr.mxu0 0.0
    %7486 = vmatpush1.msra.mxu0 %v5519
    %7487 = vmatprep.subr.mxu0 0.0
    %7488 = vmatpush2.msra.mxu0 %v5550
    %7489 = vmatprep.subr.mxu0 0.0
    %7490 = vmatpush2.msra.mxu0 %v5549
    %7491 = vmatprep.subr.mxu0 0.0
    %7492 = vmatpush2.msra.mxu0 %v5548
    %7493 = vmatprep.subr.mxu0 0.0
    %7494 = vmatpush2.msra.mxu0 %v5547
    %7495 = vmatprep.subr.mxu0 0.0
    %7496 = vmatpush2.msra.mxu0 %v5546
    %7497 = vmatprep.subr.mxu0 0.0
    %7498 = vmatpush2.msra.mxu0 %v5545
    %7499 = vmatprep.subr.mxu0 0.0
    %7500 = vmatpush2.msra.mxu0 %v5544
    %7501 = vmatprep.subr.mxu0 0.0
    %7502 = vmatpush2.msra.mxu0 %v5543
    %7503 = vmatprep.subr.mxu0 0.0
    %7504 = vmatpush2.msra.mxu0 %v5542
    %7505 = vmatprep.subr.mxu0 0.0
    %7506 = vmatpush2.msra.mxu0 %v5541
    %7507 = vmatprep.subr.mxu0 0.0
    %7508 = vmatpush2.msra.mxu0 %v5540
    %7509 = vmatprep.subr.mxu0 0.0
    %7510 = vmatpush2.msra.mxu0 %v5539
    %7511 = vmatprep.subr.mxu0 0.0
    %7512 = vmatpush2.msra.mxu0 %v5538
    %7513 = vmatprep.subr.mxu0 0.0
    %7514 = vmatpush2.msra.mxu0 %v5537
    %7515 = vmatprep.subr.mxu0 0.0
    %7516 = vmatpush2.msra.mxu0 %v5536
    %7517 = vmatprep.subr.mxu0 0.0
    %7518 = vmatpush2.msra.mxu0 %v5535
    %7519 = vmatprep.mubr.f32.mxu0 %v6817
    %7520 = vmatmul.mubr.f32.gmra.mxu0 %v6816
    %v7521 = vpop.f32.mrf.mxu0
    %v7522 = vadd.f32 %v7277, %v7521
    %v7523 = vpop.f32.mrf.mxu0
    %7524 = vmatprep.mubr.f32.mxu0 %v6822
    %7525 = vmatmul.mubr.f32.gmra.mxu0 %v6821
    %v7526 = vpop.f32.mrf.mxu0
    %v7527 = vadd.f32 %v7282, %v7526
    %v7528 = vpop.f32.mrf.mxu0
    %7529 = vmatprep.mubr.f32.mxu0 %v6827
    %7530 = vmatmul.mubr.f32.gmra.mxu0 %v6826
    %v7531 = vpop.f32.mrf.mxu0
    %v7532 = vadd.f32 %v7287, %v7531
    %v7533 = vpop.f32.mrf.mxu0
    %7534 = vmatprep.mubr.f32.mxu0 %v6832
    %7535 = vmatmul.mubr.f32.gmra.mxu0 %v6831
    %v7536 = vpop.f32.mrf.mxu0
    %v7537 = vadd.f32 %v7292, %v7536
    %v7538 = vpop.f32.mrf.mxu0
    %7539 = vmatprep.mubr.f32.mxu0 %v6837
    %7540 = vmatmul.mubr.f32.gmra.mxu0 %v6836
    %v7541 = vpop.f32.mrf.mxu0
    %v7542 = vadd.f32 %v7297, %v7541
    %v7543 = vpop.f32.mrf.mxu0
    %7544 = vmatprep.mubr.f32.mxu0 %v6842
    %7545 = vmatmul.mubr.f32.gmra.mxu0 %v6841
    %v7546 = vpop.f32.mrf.mxu0
    %v7547 = vadd.f32 %v7302, %v7546
    %v7548 = vpop.f32.mrf.mxu0
    %7549 = vmatprep.mubr.f32.mxu0 %v6847
    %7550 = vmatmul.mubr.f32.gmra.mxu0 %v6846
    %v7551 = vpop.f32.mrf.mxu0
    %v7552 = vadd.f32 %v7307, %v7551
    %v7553 = vpop.f32.mrf.mxu0
    %7554 = vmatprep.mubr.f32.mxu0 %v6852
    %7555 = vmatmul.mubr.f32.gmra.mxu0 %v6851
    %v7556 = vpop.f32.mrf.mxu0
    %v7557 = vadd.f32 %v7312, %v7556
    %v7558 = vpop.f32.mrf.mxu0
    %7559 = vmatprep.mubr.f32.mxu0 %v6857
    %7560 = vmatmul.mubr.f32.gmra.mxu0 %v6856
    %v7561 = vpop.f32.mrf.mxu0
    %v7562 = vadd.f32 %v7317, %v7561
    %v7563 = vpop.f32.mrf.mxu0
    %7564 = vmatprep.mubr.f32.mxu0 %v6862
    %7565 = vmatmul.mubr.f32.gmra.mxu0 %v6861
    %v7566 = vpop.f32.mrf.mxu0
    %v7567 = vadd.f32 %v7322, %v7566
    %v7568 = vpop.f32.mrf.mxu0
    %7569 = vmatprep.mubr.f32.mxu0 %v6867
    %7570 = vmatmul.mubr.f32.gmra.mxu0 %v6866
    %v7571 = vpop.f32.mrf.mxu0
    %v7572 = vadd.f32 %v7327, %v7571
    %v7573 = vpop.f32.mrf.mxu0
    %7574 = vmatprep.mubr.f32.mxu0 %v6872
    %7575 = vmatmul.mubr.f32.gmra.mxu0 %v6871
    %v7576 = vpop.f32.mrf.mxu0
    %v7577 = vadd.f32 %v7332, %v7576
    %v7578 = vpop.f32.mrf.mxu0
    %7579 = vmatprep.mubr.f32.mxu0 %v6877
    %7580 = vmatmul.mubr.f32.gmra.mxu0 %v6876
    %v7581 = vpop.f32.mrf.mxu0
    %v7582 = vadd.f32 %v7337, %v7581
    %v7583 = vpop.f32.mrf.mxu0
    %7584 = vmatprep.mubr.f32.mxu0 %v6882
    %7585 = vmatmul.mubr.f32.gmra.mxu0 %v6881
    %v7586 = vpop.f32.mrf.mxu0
    %v7587 = vadd.f32 %v7342, %v7586
    %v7588 = vpop.f32.mrf.mxu0
    %7589 = vmatprep.mubr.f32.mxu0 %v6887
    %7590 = vmatmul.mubr.f32.gmra.mxu0 %v6886
    %v7591 = vpop.f32.mrf.mxu0
    %v7592 = vadd.f32 %v7347, %v7591
    %v7593 = vpop.f32.mrf.mxu0
    %7594 = vmatprep.mubr.f32.mxu0 %v6892
    %7595 = vmatmul.mubr.f32.gmra.mxu0 %v6891
    %v7596 = vpop.f32.mrf.mxu0
    %v7597 = vadd.f32 %v7352, %v7596
    %v7598 = vpop.f32.mrf.mxu0
    %7599 = vmatprep.mubr.f32.mxu0 %v6897
    %7600 = vmatmul.mubr.f32.gmra.mxu0 %v6896
    %v7601 = vpop.f32.mrf.mxu0
    %v7602 = vadd.f32 %v7357, %v7601
    %v7603 = vpop.f32.mrf.mxu0
    %7604 = vmatprep.mubr.f32.mxu0 %v6902
    %7605 = vmatmul.mubr.f32.gmra.mxu0 %v6901
    %v7606 = vpop.f32.mrf.mxu0
    %v7607 = vadd.f32 %v7362, %v7606
    %v7608 = vpop.f32.mrf.mxu0
    %7609 = vmatprep.mubr.f32.mxu0 %v6907
    %7610 = vmatmul.mubr.f32.gmra.mxu0 %v6906
    %v7611 = vpop.f32.mrf.mxu0
    %v7612 = vadd.f32 %v7367, %v7611
    %v7613 = vpop.f32.mrf.mxu0
    %7614 = vmatprep.mubr.f32.mxu0 %v6912
    %7615 = vmatmul.mubr.f32.gmra.mxu0 %v6911
    %v7616 = vpop.f32.mrf.mxu0
    %v7617 = vadd.f32 %v7372, %v7616
    %v7618 = vpop.f32.mrf.mxu0
    %7619 = vmatprep.mubr.f32.mxu0 %v6917
    %7620 = vmatmul.mubr.f32.gmra.mxu0 %v6916
    %v7621 = vpop.f32.mrf.mxu0
    %v7622 = vadd.f32 %v7377, %v7621
    %v7623 = vpop.f32.mrf.mxu0
    %7624 = vmatprep.mubr.f32.mxu0 %v6922
    %7625 = vmatmul.mubr.f32.gmra.mxu0 %v6921
    %v7626 = vpop.f32.mrf.mxu0
    %v7627 = vadd.f32 %v7382, %v7626
    %v7628 = vpop.f32.mrf.mxu0
    %7629 = vmatprep.mubr.f32.mxu0 %v6927
    %7630 = vmatmul.mubr.f32.gmra.mxu0 %v6926
    %v7631 = vpop.f32.mrf.mxu0
    %v7632 = vadd.f32 %v7387, %v7631
    %v7633 = vpop.f32.mrf.mxu0
    %7634 = vmatprep.mubr.f32.mxu0 %v6932
    %7635 = vmatmul.mubr.f32.gmra.mxu0 %v6931
    %v7636 = vpop.f32.mrf.mxu0
    %v7637 = vadd.f32 %v7392, %v7636
    %v7638 = vpop.f32.mrf.mxu0
    %7639 = vmatprep.mubr.f32.mxu0 %v6937
    %7640 = vmatmul.mubr.f32.gmra.mxu0 %v6936
    %v7641 = vpop.f32.mrf.mxu0
    %v7642 = vadd.f32 %v7397, %v7641
    %v7643 = vpop.f32.mrf.mxu0
    %7644 = vmatprep.mubr.f32.mxu0 %v6942
    %7645 = vmatmul.mubr.f32.gmra.mxu0 %v6941
    %v7646 = vpop.f32.mrf.mxu0
    %v7647 = vadd.f32 %v7402, %v7646
    %v7648 = vpop.f32.mrf.mxu0
    %7649 = vmatprep.mubr.f32.mxu0 %v6947
    %7650 = vmatmul.mubr.f32.gmra.mxu0 %v6946
    %v7651 = vpop.f32.mrf.mxu0
    %v7652 = vadd.f32 %v7407, %v7651
    %v7653 = vpop.f32.mrf.mxu0
    %7654 = vmatprep.mubr.f32.mxu0 %v6952
    %7655 = vmatmul.mubr.f32.gmra.mxu0 %v6951
    %v7656 = vpop.f32.mrf.mxu0
    %v7657 = vadd.f32 %v7412, %v7656
    %v7658 = vpop.f32.mrf.mxu0
    %7659 = vmatprep.mubr.f32.mxu0 %v6957
    %7660 = vmatmul.mubr.f32.gmra.mxu0 %v6956
    %v7661 = vpop.f32.mrf.mxu0
    %v7662 = vadd.f32 %v7417, %v7661
    %v7663 = vpop.f32.mrf.mxu0
    %7664 = vmatprep.mubr.f32.mxu0 %v6962
    %7665 = vmatmul.mubr.f32.gmra.mxu0 %v6961
    %v7666 = vpop.f32.mrf.mxu0
    %v7667 = vadd.f32 %v7422, %v7666
    %v7668 = vpop.f32.mrf.mxu0
    %7669 = vmatprep.mubr.f32.mxu0 %v6967
    %7670 = vmatmul.mubr.f32.gmra.mxu0 %v6966
    %v7671 = vpop.f32.mrf.mxu0
    %v7672 = vadd.f32 %v7427, %v7671
    %v7673 = vpop.f32.mrf.mxu0
    %7674 = vmatprep.mubr.f32.mxu0 %v6972
    %7675 = vmatmul.mubr.f32.gmra.mxu0 %v6971
    %v7676 = vpop.f32.mrf.mxu0
    %v7677 = vadd.f32 %v7432, %v7676
    %v7678 = vpop.f32.mrf.mxu0
    %7679 = vmatprep.mubr.f32.mxu0 %v6977
    %7680 = vmatmul.mubr.f32.gmra.mxu0 %v6976
    %v7681 = vpop.f32.mrf.mxu0
    %v7682 = vadd.f32 %v7437, %v7681
    %v7683 = vpop.f32.mrf.mxu0
    %7684 = vmatprep.mubr.f32.mxu0 %v6982
    %7685 = vmatmul.mubr.f32.gmra.mxu0 %v6981
    %v7686 = vpop.f32.mrf.mxu0
    %v7687 = vadd.f32 %v7442, %v7686
    %v7688 = vpop.f32.mrf.mxu0
    %7689 = vmatprep.mubr.f32.mxu0 %v6987
    %7690 = vmatmul.mubr.f32.gmra.mxu0 %v6986
    %v7691 = vpop.f32.mrf.mxu0
    %v7692 = vadd.f32 %v7447, %v7691
    %v7693 = vpop.f32.mrf.mxu0
    %7694 = vmatprep.mubr.f32.mxu0 %v6992
    %7695 = vmatmul.mubr.f32.gmra.mxu0 %v6991
    %v7696 = vpop.f32.mrf.mxu0
    %v7697 = vadd.f32 %v7452, %v7696
    %v7698 = vpop.f32.mrf.mxu0
    %7699 = vdwg.mxu0
    %7700 = vmatprep.subr.mxu0 0.0
    %7701 = vmatpush1.msra.mxu0 0.0
    %7702 = vmatprep.subr.mxu0 0.0
    %7703 = vmatpush1.msra.mxu0 0.0
    %7704 = vmatprep.subr.mxu0 0.0
    %7705 = vmatpush1.msra.mxu0 0.0
    %7706 = vmatprep.subr.mxu0 0.0
    %7707 = vmatpush1.msra.mxu0 0.0
    %7708 = vmatprep.subr.mxu0 0.0
    %7709 = vmatpush1.msra.mxu0 0.0
    %7710 = vmatprep.subr.mxu0 0.0
    %7711 = vmatpush1.msra.mxu0 0.0
    %7712 = vmatprep.subr.mxu0 0.0
    %7713 = vmatpush1.msra.mxu0 0.0
    %7714 = vmatprep.subr.mxu0 0.0
    %7715 = vmatpush1.msra.mxu0 0.0
    %7716 = vmatprep.subr.mxu0 0.0
    %7717 = vmatpush1.msra.mxu0 %v5558
    %7718 = vmatprep.subr.mxu0 0.0
    %7719 = vmatpush1.msra.mxu0 %v5557
    %7720 = vmatprep.subr.mxu0 0.0
    %7721 = vmatpush1.msra.mxu0 %v5556
    %7722 = vmatprep.subr.mxu0 0.0
    %7723 = vmatpush1.msra.mxu0 %v5555
    %7724 = vmatprep.subr.mxu0 0.0
    %7725 = vmatpush1.msra.mxu0 %v5554
    %7726 = vmatprep.subr.mxu0 0.0
    %7727 = vmatpush1.msra.mxu0 %v5553
    %7728 = vmatprep.subr.mxu0 0.0
    %7729 = vmatpush1.msra.mxu0 %v5552
    %7730 = vmatprep.subr.mxu0 0.0
    %7731 = vmatpush1.msra.mxu0 %v5551
    %7732 = vmatprep.subr.mxu0 0.0
    %7733 = vmatpush2.msra.mxu0 0.0
    %7734 = vmatprep.subr.mxu0 0.0
    %7735 = vmatpush2.msra.mxu0 0.0
    %7736 = vmatprep.subr.mxu0 0.0
    %7737 = vmatpush2.msra.mxu0 0.0
    %7738 = vmatprep.subr.mxu0 0.0
    %7739 = vmatpush2.msra.mxu0 0.0
    %7740 = vmatprep.subr.mxu0 0.0
    %7741 = vmatpush2.msra.mxu0 0.0
    %7742 = vmatprep.subr.mxu0 0.0
    %7743 = vmatpush2.msra.mxu0 0.0
    %7744 = vmatprep.subr.mxu0 0.0
    %7745 = vmatpush2.msra.mxu0 0.0
    %7746 = vmatprep.subr.mxu0 0.0
    %7747 = vmatpush2.msra.mxu0 0.0
    %7748 = vmatprep.subr.mxu0 0.0
    %7749 = vmatpush2.msra.mxu0 0.0
    %7750 = vmatprep.subr.mxu0 0.0
    %7751 = vmatpush2.msra.mxu0 0.0
    %7752 = vmatprep.subr.mxu0 0.0
    %7753 = vmatpush2.msra.mxu0 0.0
    %7754 = vmatprep.subr.mxu0 0.0
    %7755 = vmatpush2.msra.mxu0 0.0
    %7756 = vmatprep.subr.mxu0 0.0
    %7757 = vmatpush2.msra.mxu0 0.0
    %7758 = vmatprep.subr.mxu0 0.0
    %7759 = vmatpush2.msra.mxu0 0.0
    %7760 = vmatprep.subr.mxu0 0.0
    %7761 = vmatpush2.msra.mxu0 0.0
    %7762 = vmatprep.subr.mxu0 0.0
    %7763 = vmatpush2.msra.mxu0 0.0
    %7764 = vmatprep.mubr.f32.mxu0 0.0
    %7765 = vmatmul.mubr.f32.gmra.mxu0 %v7138
    %v7766 = vpop.f32.mrf.mxu0
    %v7767 = vadd.f32 %v7522, %v7766
    %v7768 = vpop.f32.mrf.mxu0
    %7769 = vmatprep.mubr.f32.mxu0 0.0
    %7770 = vmatmul.mubr.f32.gmra.mxu0 %v7140
    %v7771 = vpop.f32.mrf.mxu0
    %v7772 = vadd.f32 %v7527, %v7771
    %v7773 = vpop.f32.mrf.mxu0
    %7774 = vmatprep.mubr.f32.mxu0 0.0
    %7775 = vmatmul.mubr.f32.gmra.mxu0 %v7142
    %v7776 = vpop.f32.mrf.mxu0
    %v7777 = vadd.f32 %v7532, %v7776
    %v7778 = vpop.f32.mrf.mxu0
    %7779 = vmatprep.mubr.f32.mxu0 0.0
    %7780 = vmatmul.mubr.f32.gmra.mxu0 %v7144
    %v7781 = vpop.f32.mrf.mxu0
    %v7782 = vadd.f32 %v7537, %v7781
    %v7783 = vpop.f32.mrf.mxu0
    %7784 = vmatprep.mubr.f32.mxu0 0.0
    %7785 = vmatmul.mubr.f32.gmra.mxu0 %v7146
    %v7786 = vpop.f32.mrf.mxu0
    %v7787 = vadd.f32 %v7542, %v7786
    %v7788 = vpop.f32.mrf.mxu0
    %7789 = vmatprep.mubr.f32.mxu0 0.0
    %7790 = vmatmul.mubr.f32.gmra.mxu0 %v7148
    %v7791 = vpop.f32.mrf.mxu0
    %v7792 = vadd.f32 %v7547, %v7791
    %v7793 = vpop.f32.mrf.mxu0
    %7794 = vmatprep.mubr.f32.mxu0 0.0
    %7795 = vmatmul.mubr.f32.gmra.mxu0 %v7150
    %v7796 = vpop.f32.mrf.mxu0
    %v7797 = vadd.f32 %v7552, %v7796
    %v7798 = vpop.f32.mrf.mxu0
    %7799 = vmatprep.mubr.f32.mxu0 0.0
    %7800 = vmatmul.mubr.f32.gmra.mxu0 %v7152
    %v7801 = vpop.f32.mrf.mxu0
    %v7802 = vadd.f32 %v7557, %v7801
    %v7803 = vpop.f32.mrf.mxu0
    %7804 = vmatprep.mubr.f32.mxu0 0.0
    %7805 = vmatmul.mubr.f32.gmra.mxu0 %v7154
    %v7806 = vpop.f32.mrf.mxu0
    %v7807 = vadd.f32 %v7562, %v7806
    %v7808 = vpop.f32.mrf.mxu0
    %7809 = vmatprep.mubr.f32.mxu0 0.0
    %7810 = vmatmul.mubr.f32.gmra.mxu0 %v7156
    %v7811 = vpop.f32.mrf.mxu0
    %v7812 = vadd.f32 %v7567, %v7811
    %v7813 = vpop.f32.mrf.mxu0
    %7814 = vmatprep.mubr.f32.mxu0 0.0
    %7815 = vmatmul.mubr.f32.gmra.mxu0 %v7158
    %v7816 = vpop.f32.mrf.mxu0
    %v7817 = vadd.f32 %v7572, %v7816
    %v7818 = vpop.f32.mrf.mxu0
    %7819 = vmatprep.mubr.f32.mxu0 0.0
    %7820 = vmatmul.mubr.f32.gmra.mxu0 %v7160
    %v7821 = vpop.f32.mrf.mxu0
    %v7822 = vadd.f32 %v7577, %v7821
    %v7823 = vpop.f32.mrf.mxu0
    %7824 = vmatprep.mubr.f32.mxu0 0.0
    %7825 = vmatmul.mubr.f32.gmra.mxu0 %v7162
    %v7826 = vpop.f32.mrf.mxu0
    %v7827 = vadd.f32 %v7582, %v7826
    %v7828 = vpop.f32.mrf.mxu0
    %7829 = vmatprep.mubr.f32.mxu0 0.0
    %7830 = vmatmul.mubr.f32.gmra.mxu0 %v7164
    %v7831 = vpop.f32.mrf.mxu0
    %v7832 = vadd.f32 %v7587, %v7831
    %v7833 = vpop.f32.mrf.mxu0
    %7834 = vmatprep.mubr.f32.mxu0 0.0
    %7835 = vmatmul.mubr.f32.gmra.mxu0 %v7166
    %v7836 = vpop.f32.mrf.mxu0
    %v7837 = vadd.f32 %v7592, %v7836
    %v7838 = vpop.f32.mrf.mxu0
    %7839 = vmatprep.mubr.f32.mxu0 0.0
    %7840 = vmatmul.mubr.f32.gmra.mxu0 %v7168
    %v7841 = vpop.f32.mrf.mxu0
    %v7842 = vadd.f32 %v7597, %v7841
    %v7843 = vpop.f32.mrf.mxu0
    %7844 = vmatprep.mubr.f32.mxu0 0.0
    %7845 = vmatmul.mubr.f32.gmra.mxu0 %v7170
    %v7846 = vpop.f32.mrf.mxu0
    %v7847 = vadd.f32 %v7602, %v7846
    %v7848 = vpop.f32.mrf.mxu0
    %7849 = vmatprep.mubr.f32.mxu0 0.0
    %7850 = vmatmul.mubr.f32.gmra.mxu0 %v7172
    %v7851 = vpop.f32.mrf.mxu0
    %v7852 = vadd.f32 %v7607, %v7851
    %v7853 = vpop.f32.mrf.mxu0
    %7854 = vmatprep.mubr.f32.mxu0 0.0
    %7855 = vmatmul.mubr.f32.gmra.mxu0 %v7174
    %v7856 = vpop.f32.mrf.mxu0
    %v7857 = vadd.f32 %v7612, %v7856
    %v7858 = vpop.f32.mrf.mxu0
    %7859 = vmatprep.mubr.f32.mxu0 0.0
    %7860 = vmatmul.mubr.f32.gmra.mxu0 %v7176
    %v7861 = vpop.f32.mrf.mxu0
    %v7862 = vadd.f32 %v7617, %v7861
    %v7863 = vpop.f32.mrf.mxu0
    %7864 = vmatprep.mubr.f32.mxu0 0.0
    %7865 = vmatmul.mubr.f32.gmra.mxu0 %v7178
    %v7866 = vpop.f32.mrf.mxu0
    %v7867 = vadd.f32 %v7622, %v7866
    %v7868 = vpop.f32.mrf.mxu0
    %7869 = vmatprep.mubr.f32.mxu0 0.0
    %7870 = vmatmul.mubr.f32.gmra.mxu0 %v7180
    %v7871 = vpop.f32.mrf.mxu0
    %v7872 = vadd.f32 %v7627, %v7871
    %v7873 = vpop.f32.mrf.mxu0
    %7874 = vmatprep.mubr.f32.mxu0 0.0
    %7875 = vmatmul.mubr.f32.gmra.mxu0 %v7182
    %v7876 = vpop.f32.mrf.mxu0
    %v7877 = vadd.f32 %v7632, %v7876
    %v7878 = vpop.f32.mrf.mxu0
    %7879 = vmatprep.mubr.f32.mxu0 0.0
    %7880 = vmatmul.mubr.f32.gmra.mxu0 %v7184
    %v7881 = vpop.f32.mrf.mxu0
    %v7882 = vadd.f32 %v7637, %v7881
    %v7883 = vpop.f32.mrf.mxu0
    %7884 = vmatprep.mubr.f32.mxu0 0.0
    %7885 = vmatmul.mubr.f32.gmra.mxu0 %v7186
    %v7886 = vpop.f32.mrf.mxu0
    %v7887 = vadd.f32 %v7642, %v7886
    %v7888 = vpop.f32.mrf.mxu0
    %7889 = vmatprep.mubr.f32.mxu0 0.0
    %7890 = vmatmul.mubr.f32.gmra.mxu0 %v7188
    %v7891 = vpop.f32.mrf.mxu0
    %v7892 = vadd.f32 %v7647, %v7891
    %v7893 = vpop.f32.mrf.mxu0
    %7894 = vmatprep.mubr.f32.mxu0 0.0
    %7895 = vmatmul.mubr.f32.gmra.mxu0 %v7190
    %v7896 = vpop.f32.mrf.mxu0
    %v7897 = vadd.f32 %v7652, %v7896
    %v7898 = vpop.f32.mrf.mxu0
    %7899 = vmatprep.mubr.f32.mxu0 0.0
    %7900 = vmatmul.mubr.f32.gmra.mxu0 %v7192
    %v7901 = vpop.f32.mrf.mxu0
    %v7902 = vadd.f32 %v7657, %v7901
    %v7903 = vpop.f32.mrf.mxu0
    %7904 = vmatprep.mubr.f32.mxu0 0.0
    %7905 = vmatmul.mubr.f32.gmra.mxu0 %v7194
    %v7906 = vpop.f32.mrf.mxu0
    %v7907 = vadd.f32 %v7662, %v7906
    %v7908 = vpop.f32.mrf.mxu0
    %7909 = vmatprep.mubr.f32.mxu0 0.0
    %7910 = vmatmul.mubr.f32.gmra.mxu0 %v7196
    %v7911 = vpop.f32.mrf.mxu0
    %v7912 = vadd.f32 %v7667, %v7911
    %v7913 = vpop.f32.mrf.mxu0
    %7914 = vmatprep.mubr.f32.mxu0 0.0
    %7915 = vmatmul.mubr.f32.gmra.mxu0 %v7198
    %v7916 = vpop.f32.mrf.mxu0
    %v7917 = vadd.f32 %v7672, %v7916
    %v7918 = vpop.f32.mrf.mxu0
    %7919 = vmatprep.mubr.f32.mxu0 0.0
    %7920 = vmatmul.mubr.f32.gmra.mxu0 %v7200
    %v7921 = vpop.f32.mrf.mxu0
    %v7922 = vadd.f32 %v7677, %v7921
    %v7923 = vpop.f32.mrf.mxu0
    %7924 = vmatprep.mubr.f32.mxu0 0.0
    %7925 = vmatmul.mubr.f32.gmra.mxu0 %v7202
    %v7926 = vpop.f32.mrf.mxu0
    %v7927 = vadd.f32 %v7682, %v7926
    %v7928 = vpop.f32.mrf.mxu0
    %7929 = vmatprep.mubr.f32.mxu0 0.0
    %7930 = vmatmul.mubr.f32.gmra.mxu0 %v7204
    %v7931 = vpop.f32.mrf.mxu0
    %v7932 = vadd.f32 %v7687, %v7931
    %v7933 = vpop.f32.mrf.mxu0
    %7934 = vmatprep.mubr.f32.mxu0 0.0
    %7935 = vmatmul.mubr.f32.gmra.mxu0 %v7206
    %v7936 = vpop.f32.mrf.mxu0
    %v7937 = vadd.f32 %v7692, %v7936
    %v7938 = vpop.f32.mrf.mxu0
    %7939 = vmatprep.mubr.f32.mxu0 0.0
    %7940 = vmatmul.mubr.f32.gmra.mxu0 %v7208
    %v7941 = vpop.f32.mrf.mxu0
    %v7942 = vadd.f32 %v7697, %v7941
    %v7943 = vpop.f32.mrf.mxu0
    %7944 = vdwg.mxu0
    %v7945 = vmax.f32 %v7767, 0.0
    %v7946 = vmax.f32 %v7772, 0.0
    %v7947 = vmax.f32 %v7777, 0.0
    %v7948 = vmax.f32 %v7782, 0.0
    %v7949 = vmax.f32 %v7787, 0.0
    %v7950 = vmax.f32 %v7792, 0.0
    %v7951 = vmax.f32 %v7797, 0.0
    %v7952 = vmax.f32 %v7802, 0.0
    %v7953 = vmax.f32 %v7807, 0.0
    %v7954 = vmax.f32 %v7812, 0.0
    %v7955 = vmax.f32 %v7817, 0.0
    %v7956 = vmax.f32 %v7822, 0.0
    %v7957 = vmax.f32 %v7827, 0.0
    %v7958 = vmax.f32 %v7832, 0.0
    %v7959 = vmax.f32 %v7837, 0.0
    %v7960 = vmax.f32 %v7842, 0.0
    %v7961 = vmax.f32 %v7847, 0.0
    %v7962 = vmax.f32 %v7852, 0.0
    %v7963 = vmax.f32 %v7857, 0.0
    %v7964 = vmax.f32 %v7862, 0.0
    %v7965 = vmax.f32 %v7867, 0.0
    %v7966 = vmax.f32 %v7872, 0.0
    %v7967 = vmax.f32 %v7877, 0.0
    %v7968 = vmax.f32 %v7882, 0.0
    %v7969 = vmax.f32 %v7887, 0.0
    %v7970 = vmax.f32 %v7892, 0.0
    %v7971 = vmax.f32 %v7897, 0.0
    %v7972 = vmax.f32 %v7902, 0.0
    %v7973 = vmax.f32 %v7907, 0.0
    %v7974 = vmax.f32 %v7912, 0.0
    %v7975 = vmax.f32 %v7917, 0.0
    %v7976 = vmax.f32 %v7922, 0.0
    %v7977 = vmax.f32 %v7927, 0.0
    %v7978 = vmax.f32 %v7932, 0.0
    %v7979 = vmax.f32 %v7937, 0.0
    %v7980 = vmax.f32 %v7942, 0.0
    %v7981 = vld [vmem:[#allocation13] sm:$0xff]
    %v7982 = vld [vmem:[#allocation13 + $0x8] sm:$0xff]
    %v7983 = vld [vmem:[#allocation13 + $0x10] sm:$0xff]
    %v7984 = vld [vmem:[#allocation13 + $0x18] sm:$0xff]
    %v7985 = vld [vmem:[#allocation13 + $0x20] sm:$0xff]
    %v7986 = vld [vmem:[#allocation13 + $0x28] sm:$0xff]
    %v7987 = vld [vmem:[#allocation13 + $0x30] sm:$0xff]
    %v7988 = vld [vmem:[#allocation13 + $0x38] sm:$0xff]
    %v7989 = vld [vmem:[#allocation13 + $0x40] sm:$0xff]
    %v7990 = vld [vmem:[#allocation13 + $0x48] sm:$0xff]
    %v7991 = vld [vmem:[#allocation13 + $0x50] sm:$0xff]
    %v7992 = vld [vmem:[#allocation13 + $0x58] sm:$0xff]
    %v7993 = vld [vmem:[#allocation13 + $0x60] sm:$0xff]
    %v7994 = vld [vmem:[#allocation13 + $0x68] sm:$0xff]
    %v7995 = vld [vmem:[#allocation13 + $0x70] sm:$0xff]
    %v7996 = vld [vmem:[#allocation13 + $0x78] sm:$0xff]
    %v7997 = vld [vmem:[#allocation13 + $0x80] sm:$0xff]
    %v7998 = vld [vmem:[#allocation13 + $0x88] sm:$0xff]
    %v7999 = vld [vmem:[#allocation13 + $0x90] sm:$0xff]
    %v8000 = vld [vmem:[#allocation13 + $0x98] sm:$0xff]
    %v8001 = vld [vmem:[#allocation13 + $0xa0] sm:$0xff]
    %v8002 = vld [vmem:[#allocation13 + $0xa8] sm:$0xff]
    %v8003 = vld [vmem:[#allocation13 + $0xb0] sm:$0xff]
    %v8004 = vld [vmem:[#allocation13 + $0xb8] sm:$0xff]
    %v8005 = vld [vmem:[#allocation13 + $0xc0] sm:$0xff]
    %v8006 = vld [vmem:[#allocation13 + $0xc8] sm:$0xff]
    %v8007 = vld [vmem:[#allocation13 + $0xd0] sm:$0xff]
    %v8009 = vsel %vm2457, %v7983, 0
    %v8012 = vsel %vm2457, %v7986, 0
    %v8015 = vsel %vm2457, %v7989, 0
    %v8018 = vsel %vm2457, %v7992, 0
    %v8021 = vsel %vm2457, %v7995, 0
    %v8024 = vsel %vm2457, %v7998, 0
    %v8027 = vsel %vm2457, %v8001, 0
    %v8030 = vsel %vm2457, %v8004, 0
    %v8033 = vsel %vm2457, %v8007, 0
    %8035 = vmatprep.subr.mxu0 0.0
    %8036 = vmatpush1.msra.mxu0 %v7960
    %8037 = vmatprep.subr.mxu0 0.0
    %8038 = vmatpush1.msra.mxu0 %v7959
    %8039 = vmatprep.subr.mxu0 0.0
    %8040 = vmatpush1.msra.mxu0 %v7958
    %8041 = vmatprep.subr.mxu0 0.0
    %8042 = vmatpush1.msra.mxu0 %v7957
    %8043 = vmatprep.subr.mxu0 0.0
    %8044 = vmatpush1.msra.mxu0 %v7956
    %8045 = vmatprep.subr.mxu0 0.0
    %8046 = vmatpush1.msra.mxu0 %v7955
    %8047 = vmatprep.subr.mxu0 0.0
    %8048 = vmatpush1.msra.mxu0 %v7954
    %8049 = vmatprep.subr.mxu0 0.0
    %8050 = vmatpush1.msra.mxu0 %v7953
    %8051 = vmatprep.subr.mxu0 0.0
    %8052 = vmatpush1.msra.mxu0 %v7952
    %8053 = vmatprep.subr.mxu0 0.0
    %8054 = vmatpush1.msra.mxu0 %v7951
    %8055 = vmatprep.subr.mxu0 0.0
    %8056 = vmatpush1.msra.mxu0 %v7950
    %8057 = vmatprep.subr.mxu0 0.0
    %8058 = vmatpush1.msra.mxu0 %v7949
    %8059 = vmatprep.subr.mxu0 0.0
    %8060 = vmatpush1.msra.mxu0 %v7948
    %8061 = vmatprep.subr.mxu0 0.0
    %8062 = vmatpush1.msra.mxu0 %v7947
    %8063 = vmatprep.subr.mxu0 0.0
    %8064 = vmatpush1.msra.mxu0 %v7946
    %8065 = vmatprep.subr.mxu0 0.0
    %8066 = vmatpush1.msra.mxu0 %v7945
    %8067 = vmatprep.subr.mxu0 0.0
    %8068 = vmatpush2.msra.mxu0 %v7976
    %8069 = vmatprep.subr.mxu0 0.0
    %8070 = vmatpush2.msra.mxu0 %v7975
    %8071 = vmatprep.subr.mxu0 0.0
    %8072 = vmatpush2.msra.mxu0 %v7974
    %8073 = vmatprep.subr.mxu0 0.0
    %8074 = vmatpush2.msra.mxu0 %v7973
    %8075 = vmatprep.subr.mxu0 0.0
    %8076 = vmatpush2.msra.mxu0 %v7972
    %8077 = vmatprep.subr.mxu0 0.0
    %8078 = vmatpush2.msra.mxu0 %v7971
    %8079 = vmatprep.subr.mxu0 0.0
    %8080 = vmatpush2.msra.mxu0 %v7970
    %8081 = vmatprep.subr.mxu0 0.0
    %8082 = vmatpush2.msra.mxu0 %v7969
    %8083 = vmatprep.subr.mxu0 0.0
    %8084 = vmatpush2.msra.mxu0 %v7968
    %8085 = vmatprep.subr.mxu0 0.0
    %8086 = vmatpush2.msra.mxu0 %v7967
    %8087 = vmatprep.subr.mxu0 0.0
    %8088 = vmatpush2.msra.mxu0 %v7966
    %8089 = vmatprep.subr.mxu0 0.0
    %8090 = vmatpush2.msra.mxu0 %v7965
    %8091 = vmatprep.subr.mxu0 0.0
    %8092 = vmatpush2.msra.mxu0 %v7964
    %8093 = vmatprep.subr.mxu0 0.0
    %8094 = vmatpush2.msra.mxu0 %v7963
    %8095 = vmatprep.subr.mxu0 0.0
    %8096 = vmatpush2.msra.mxu0 %v7962
    %8097 = vmatprep.subr.mxu0 0.0
    %8098 = vmatpush2.msra.mxu0 %v7961
    %8099 = vmatprep.mubr.f32.mxu0 %v7982
    %8100 = vmatmul.mubr.f32.gmra.mxu0 %v7981
    %v8101 = vpop.f32.mrf.mxu0
    %v8102 = vadd.f32 0.0, %v8101
    %v8103 = vpop.f32.mrf.mxu0
    %8104 = vmatprep.mubr.f32.mxu0 %v7985
    %8105 = vmatmul.mubr.f32.gmra.mxu0 %v7984
    %v8106 = vpop.f32.mrf.mxu0
    %v8107 = vadd.f32 0.0, %v8106
    %v8108 = vpop.f32.mrf.mxu0
    %8109 = vmatprep.mubr.f32.mxu0 %v7988
    %8110 = vmatmul.mubr.f32.gmra.mxu0 %v7987
    %v8111 = vpop.f32.mrf.mxu0
    %v8112 = vadd.f32 0.0, %v8111
    %v8113 = vpop.f32.mrf.mxu0
    %8114 = vmatprep.mubr.f32.mxu0 %v7991
    %8115 = vmatmul.mubr.f32.gmra.mxu0 %v7990
    %v8116 = vpop.f32.mrf.mxu0
    %v8117 = vadd.f32 0.0, %v8116
    %v8118 = vpop.f32.mrf.mxu0
    %8119 = vmatprep.mubr.f32.mxu0 %v7994
    %8120 = vmatmul.mubr.f32.gmra.mxu0 %v7993
    %v8121 = vpop.f32.mrf.mxu0
    %v8122 = vadd.f32 0.0, %v8121
    %v8123 = vpop.f32.mrf.mxu0
    %8124 = vmatprep.mubr.f32.mxu0 %v7997
    %8125 = vmatmul.mubr.f32.gmra.mxu0 %v7996
    %v8126 = vpop.f32.mrf.mxu0
    %v8127 = vadd.f32 0.0, %v8126
    %v8128 = vpop.f32.mrf.mxu0
    %8129 = vmatprep.mubr.f32.mxu0 %v8000
    %8130 = vmatmul.mubr.f32.gmra.mxu0 %v7999
    %v8131 = vpop.f32.mrf.mxu0
    %v8132 = vadd.f32 0.0, %v8131
    %v8133 = vpop.f32.mrf.mxu0
    %8134 = vmatprep.mubr.f32.mxu0 %v8003
    %8135 = vmatmul.mubr.f32.gmra.mxu0 %v8002
    %v8136 = vpop.f32.mrf.mxu0
    %v8137 = vadd.f32 0.0, %v8136
    %v8138 = vpop.f32.mrf.mxu0
    %8139 = vmatprep.mubr.f32.mxu0 %v8006
    %8140 = vmatmul.mubr.f32.gmra.mxu0 %v8005
    %v8141 = vpop.f32.mrf.mxu0
    %v8142 = vadd.f32 0.0, %v8141
    %v8143 = vpop.f32.mrf.mxu0
    %8144 = vdwg.mxu0
    %8145 = vmatprep.subr.mxu0 0.0
    %8146 = vmatpush1.msra.mxu0 0.0
    %8147 = vmatprep.subr.mxu0 0.0
    %8148 = vmatpush1.msra.mxu0 0.0
    %8149 = vmatprep.subr.mxu0 0.0
    %8150 = vmatpush1.msra.mxu0 0.0
    %8151 = vmatprep.subr.mxu0 0.0
    %8152 = vmatpush1.msra.mxu0 0.0
    %8153 = vmatprep.subr.mxu0 0.0
    %8154 = vmatpush1.msra.mxu0 0.0
    %8155 = vmatprep.subr.mxu0 0.0
    %8156 = vmatpush1.msra.mxu0 0.0
    %8157 = vmatprep.subr.mxu0 0.0
    %8158 = vmatpush1.msra.mxu0 0.0
    %8159 = vmatprep.subr.mxu0 0.0
    %8160 = vmatpush1.msra.mxu0 0.0
    %8161 = vmatprep.subr.mxu0 0.0
    %8162 = vmatpush1.msra.mxu0 0.0
    %8163 = vmatprep.subr.mxu0 0.0
    %8164 = vmatpush1.msra.mxu0 0.0
    %8165 = vmatprep.subr.mxu0 0.0
    %8166 = vmatpush1.msra.mxu0 0.0
    %8167 = vmatprep.subr.mxu0 0.0
    %8168 = vmatpush1.msra.mxu0 0.0
    %8169 = vmatprep.subr.mxu0 0.0
    %8170 = vmatpush1.msra.mxu0 %v7980
    %8171 = vmatprep.subr.mxu0 0.0
    %8172 = vmatpush1.msra.mxu0 %v7979
    %8173 = vmatprep.subr.mxu0 0.0
    %8174 = vmatpush1.msra.mxu0 %v7978
    %8175 = vmatprep.subr.mxu0 0.0
    %8176 = vmatpush1.msra.mxu0 %v7977
    %8177 = vmatprep.subr.mxu0 0.0
    %8178 = vmatpush2.msra.mxu0 0.0
    %8179 = vmatprep.subr.mxu0 0.0
    %8180 = vmatpush2.msra.mxu0 0.0
    %8181 = vmatprep.subr.mxu0 0.0
    %8182 = vmatpush2.msra.mxu0 0.0
    %8183 = vmatprep.subr.mxu0 0.0
    %8184 = vmatpush2.msra.mxu0 0.0
    %8185 = vmatprep.subr.mxu0 0.0
    %8186 = vmatpush2.msra.mxu0 0.0
    %8187 = vmatprep.subr.mxu0 0.0
    %8188 = vmatpush2.msra.mxu0 0.0
    %8189 = vmatprep.subr.mxu0 0.0
    %8190 = vmatpush2.msra.mxu0 0.0
    %8191 = vmatprep.subr.mxu0 0.0
    %8192 = vmatpush2.msra.mxu0 0.0
    %8193 = vmatprep.subr.mxu0 0.0
    %8194 = vmatpush2.msra.mxu0 0.0
    %8195 = vmatprep.subr.mxu0 0.0
    %8196 = vmatpush2.msra.mxu0 0.0
    %8197 = vmatprep.subr.mxu0 0.0
    %8198 = vmatpush2.msra.mxu0 0.0
    %8199 = vmatprep.subr.mxu0 0.0
    %8200 = vmatpush2.msra.mxu0 0.0
    %8201 = vmatprep.subr.mxu0 0.0
    %8202 = vmatpush2.msra.mxu0 0.0
    %8203 = vmatprep.subr.mxu0 0.0
    %8204 = vmatpush2.msra.mxu0 0.0
    %8205 = vmatprep.subr.mxu0 0.0
    %8206 = vmatpush2.msra.mxu0 0.0
    %8207 = vmatprep.subr.mxu0 0.0
    %8208 = vmatpush2.msra.mxu0 0.0
    %8209 = vmatprep.mubr.f32.mxu0 0.0
    %8210 = vmatmul.mubr.f32.gmra.mxu0 %v8009
    %v8211 = vpop.f32.mrf.mxu0
    %v8212 = vadd.f32 %v8102, %v8211
    %v8213 = vpop.f32.mrf.mxu0
    %8214 = vmatprep.mubr.f32.mxu0 0.0
    %8215 = vmatmul.mubr.f32.gmra.mxu0 %v8012
    %v8216 = vpop.f32.mrf.mxu0
    %v8217 = vadd.f32 %v8107, %v8216
    %v8218 = vpop.f32.mrf.mxu0
    %8219 = vmatprep.mubr.f32.mxu0 0.0
    %8220 = vmatmul.mubr.f32.gmra.mxu0 %v8015
    %v8221 = vpop.f32.mrf.mxu0
    %v8222 = vadd.f32 %v8112, %v8221
    %v8223 = vpop.f32.mrf.mxu0
    %8224 = vmatprep.mubr.f32.mxu0 0.0
    %8225 = vmatmul.mubr.f32.gmra.mxu0 %v8018
    %v8226 = vpop.f32.mrf.mxu0
    %v8227 = vadd.f32 %v8117, %v8226
    %v8228 = vpop.f32.mrf.mxu0
    %8229 = vmatprep.mubr.f32.mxu0 0.0
    %8230 = vmatmul.mubr.f32.gmra.mxu0 %v8021
    %v8231 = vpop.f32.mrf.mxu0
    %v8232 = vadd.f32 %v8122, %v8231
    %v8233 = vpop.f32.mrf.mxu0
    %8234 = vmatprep.mubr.f32.mxu0 0.0
    %8235 = vmatmul.mubr.f32.gmra.mxu0 %v8024
    %v8236 = vpop.f32.mrf.mxu0
    %v8237 = vadd.f32 %v8127, %v8236
    %v8238 = vpop.f32.mrf.mxu0
    %8239 = vmatprep.mubr.f32.mxu0 0.0
    %8240 = vmatmul.mubr.f32.gmra.mxu0 %v8027
    %v8241 = vpop.f32.mrf.mxu0
    %v8242 = vadd.f32 %v8132, %v8241
    %v8243 = vpop.f32.mrf.mxu0
    %8244 = vmatprep.mubr.f32.mxu0 0.0
    %8245 = vmatmul.mubr.f32.gmra.mxu0 %v8030
    %v8246 = vpop.f32.mrf.mxu0
    %v8247 = vadd.f32 %v8137, %v8246
    %v8248 = vpop.f32.mrf.mxu0
    %8249 = vmatprep.mubr.f32.mxu0 0.0
    %8250 = vmatmul.mubr.f32.gmra.mxu0 %v8033
    %v8251 = vpop.f32.mrf.mxu0
    %v8252 = vadd.f32 %v8142, %v8251
    %v8253 = vpop.f32.mrf.mxu0
    %8254 = vdwg.mxu0
    %vm8255 = vcmask 1040384
    %v8256 = vsel %vm8255, %v8212, 0.0
    %v8257 = vrot.slane %v8232, 3
    %vm8258 = vcmask 1041409
    %v8259 = vsel %vm8258, %v8257, %v8256
    %v8260 = vrot.slane %v8212, 1
    %v8261 = vsel %vm8255, %v8260, 0.0
    %v8262 = vrot.slane %v8232, 4
    %v8263 = vsel %vm8258, %v8262, %v8261
    %v8264 = vrot.slane %v8212, 2
    %v8265 = vsel %vm8255, %v8264, 0.0
    %v8266 = vrot.slane %v8232, 5
    %v8267 = vsel %vm8258, %v8266, %v8265
    %v8268 = vrot.slane %v8212, 3
    %v8269 = vsel %vm8255, %v8268, 0.0
    %v8270 = vrot.slane %v8232, 6
    %v8271 = vsel %vm8258, %v8270, %v8269
    %v8272 = vrot.slane %v8212, 4
    %v8273 = vsel %vm8255, %v8272, 0.0
    %v8274 = vrot.slane %v8237, 7
    %v8275 = vsel %vm8258, %v8274, %v8273
    %v8276 = vrot.slane %v8212, 5
    %v8277 = vsel %vm8255, %v8276, 0.0
    %v8278 = vsel %vm8258, %v8237, %v8277
    %v8279 = vrot.slane %v8212, 6
    %v8280 = vsel %vm8255, %v8279, 0.0
    %v8281 = vrot.slane %v8237, 1
    %v8282 = vsel %vm8258, %v8281, %v8280
    %v8283 = vrot.slane %v8212, 7
    %v8284 = vsel %vm8255, %v8283, 0.0
    %v8285 = vrot.slane %v8237, 2
    %v8286 = vsel %vm8258, %v8285, %v8284
    %v8287 = vsel %vm8255, %v8217, 0.0
    %v8288 = vrot.slane %v8237, 3
    %v8289 = vsel %vm8258, %v8288, %v8287
    %v8290 = vrot.slane %v8217, 1
    %v8291 = vsel %vm8255, %v8290, 0.0
    %v8292 = vrot.slane %v8237, 4
    %v8293 = vsel %vm8258, %v8292, %v8291
    %v8294 = vrot.slane %v8217, 2
    %v8295 = vsel %vm8255, %v8294, 0.0
    %v8296 = vrot.slane %v8237, 5
    %v8297 = vsel %vm8258, %v8296, %v8295
    %v8298 = vrot.slane %v8217, 3
    %v8299 = vsel %vm8255, %v8298, 0.0
    %v8300 = vrot.slane %v8237, 6
    %v8301 = vsel %vm8258, %v8300, %v8299
    %v8302 = vrot.slane %v8217, 4
    %v8303 = vsel %vm8255, %v8302, 0.0
    %v8304 = vrot.slane %v8242, 7
    %v8305 = vsel %vm8258, %v8304, %v8303
    %v8306 = vrot.slane %v8217, 5
    %v8307 = vsel %vm8255, %v8306, 0.0
    %v8308 = vsel %vm8258, %v8242, %v8307
    %v8309 = vrot.slane %v8217, 6
    %v8310 = vsel %vm8255, %v8309, 0.0
    %v8311 = vrot.slane %v8242, 1
    %v8312 = vsel %vm8258, %v8311, %v8310
    %v8313 = vrot.slane %v8217, 7
    %v8314 = vsel %vm8255, %v8313, 0.0
    %v8315 = vrot.slane %v8242, 2
    %v8316 = vsel %vm8258, %v8315, %v8314
    %v8317 = vsel %vm8255, %v8222, 0.0
    %v8318 = vrot.slane %v8242, 3
    %v8319 = vsel %vm8258, %v8318, %v8317
    %v8320 = vrot.slane %v8222, 1
    %v8321 = vsel %vm8255, %v8320, 0.0
    %v8322 = vrot.slane %v8242, 4
    %v8323 = vsel %vm8258, %v8322, %v8321
    %v8324 = vrot.slane %v8222, 2
    %v8325 = vsel %vm8255, %v8324, 0.0
    %v8326 = vrot.slane %v8242, 5
    %v8327 = vsel %vm8258, %v8326, %v8325
    %v8328 = vrot.slane %v8222, 3
    %v8329 = vsel %vm8255, %v8328, 0.0
    %v8330 = vrot.slane %v8242, 6
    %v8331 = vsel %vm8258, %v8330, %v8329
    %v8332 = vrot.slane %v8222, 4
    %v8333 = vsel %vm8255, %v8332, 0.0
    %v8334 = vrot.slane %v8247, 7
    %v8335 = vsel %vm8258, %v8334, %v8333
    %v8336 = vrot.slane %v8222, 5
    %v8337 = vsel %vm8255, %v8336, 0.0
    %v8338 = vsel %vm8258, %v8247, %v8337
    %v8339 = vrot.slane %v8222, 6
    %v8340 = vsel %vm8255, %v8339, 0.0
    %v8341 = vrot.slane %v8247, 1
    %v8342 = vsel %vm8258, %v8341, %v8340
    %v8343 = vrot.slane %v8222, 7
    %v8344 = vsel %vm8255, %v8343, 0.0
    %v8345 = vrot.slane %v8247, 2
    %v8346 = vsel %vm8258, %v8345, %v8344
    %v8347 = vsel %vm8255, %v8227, 0.0
    %v8348 = vrot.slane %v8247, 3
    %v8349 = vsel %vm8258, %v8348, %v8347
    %v8350 = vrot.slane %v8227, 1
    %v8351 = vsel %vm8255, %v8350, 0.0
    %v8352 = vrot.slane %v8247, 4
    %v8353 = vsel %vm8258, %v8352, %v8351
    %v8354 = vrot.slane %v8227, 2
    %v8355 = vsel %vm8255, %v8354, 0.0
    %v8356 = vrot.slane %v8247, 5
    %v8357 = vsel %vm8258, %v8356, %v8355
    %v8358 = vrot.slane %v8227, 3
    %v8359 = vsel %vm8255, %v8358, 0.0
    %v8360 = vrot.slane %v8247, 6
    %v8361 = vsel %vm8258, %v8360, %v8359
    %v8362 = vrot.slane %v8227, 4
    %v8363 = vsel %vm8255, %v8362, 0.0
    %v8364 = vrot.slane %v8252, 7
    %v8365 = vsel %vm8258, %v8364, %v8363
    %v8366 = vrot.slane %v8227, 5
    %v8367 = vsel %vm8255, %v8366, 0.0
    %v8368 = vsel %vm8258, %v8252, %v8367
    %v8369 = vrot.slane %v8227, 6
    %v8370 = vsel %vm8255, %v8369, 0.0
    %v8371 = vrot.slane %v8252, 1
    %v8372 = vsel %vm8258, %v8371, %v8370
    %v8373 = vrot.slane %v8227, 7
    %v8374 = vsel %vm8255, %v8373, 0.0
    %v8375 = vrot.slane %v8252, 2
    %v8376 = vsel %vm8258, %v8375, %v8374
    %v8377 = vsel %vm8255, %v8232, 0.0
    %v8378 = vrot.slane %v8252, 3
    %v8379 = vsel %vm8258, %v8378, %v8377
    %v8380 = vrot.slane %v8232, 1
    %v8381 = vsel %vm8255, %v8380, 0.0
    %v8382 = vrot.slane %v8252, 4
    %v8383 = vsel %vm8258, %v8382, %v8381
    %v8384 = vrot.slane %v8232, 2
    %v8385 = vsel %vm8255, %v8384, 0.0
    %v8386 = vrot.slane %v8252, 5
    %v8387 = vsel %vm8258, %v8386, %v8385
    %v8388 = vsel %vm8255, %v8257, 0.0
    %v8389 = vrot.slane %v8252, 6
    %v8390 = vsel %vm8258, %v8389, %v8388
    %v8391 = vld [vmem:[#allocation15] sm:$0xff]
    %v8392 = vld [vmem:[#allocation15 + $0x8] sm:$0xff]
    %v8393 = vld [vmem:[#allocation15 + $0x10] sm:$0xff]
    %v8394 = vld [vmem:[#allocation15 + $0x18] sm:$0xff]
    %v8395 = vld [vmem:[#allocation15 + $0x20] sm:$0xff]
    %v8396 = vld [vmem:[#allocation15 + $0x28] sm:$0xff]
    %v8397 = vld [vmem:[#allocation15 + $0x30] sm:$0xff]
    %v8398 = vld [vmem:[#allocation15 + $0x38] sm:$0xff]
    %v8399 = vld [vmem:[#allocation15 + $0x40] sm:$0xff]
    %v8400 = vld [vmem:[#allocation15 + $0x48] sm:$0xff]
    %v8401 = vld [vmem:[#allocation15 + $0x50] sm:$0xff]
    %v8402 = vld [vmem:[#allocation15 + $0x58] sm:$0xff]
    %v8403 = vld [vmem:[#allocation15 + $0x60] sm:$0xff]
    %v8404 = vld [vmem:[#allocation15 + $0x68] sm:$0xff]
    %v8405 = vld [vmem:[#allocation15 + $0x70] sm:$0xff]
    %v8406 = vld [vmem:[#allocation15 + $0x78] sm:$0xff]
    %v8407 = vld [vmem:[#allocation15 + $0x80] sm:$0xff]
    %v8408 = vld [vmem:[#allocation15 + $0x88] sm:$0xff]
    %v8409 = vld [vmem:[#allocation15 + $0x90] sm:$0xff]
    %v8410 = vld [vmem:[#allocation15 + $0x98] sm:$0xff]
    %v8411 = vld [vmem:[#allocation15 + $0xa0] sm:$0xff]
    %v8412 = vld [vmem:[#allocation15 + $0xa8] sm:$0xff]
    %v8413 = vld [vmem:[#allocation15 + $0xb0] sm:$0xff]
    %v8414 = vld [vmem:[#allocation15 + $0xb8] sm:$0xff]
    %v8415 = vld [vmem:[#allocation15 + $0xc0] sm:$0xff]
    %v8416 = vld [vmem:[#allocation15 + $0xc8] sm:$0xff]
    %v8417 = vld [vmem:[#allocation15 + $0xd0] sm:$0xff]
    %v8418 = vld [vmem:[#allocation15 + $0xd8] sm:$0xff]
    %v8419 = vld [vmem:[#allocation15 + $0xe0] sm:$0xff]
    %v8420 = vld [vmem:[#allocation15 + $0xe8] sm:$0xff]
    %v8421 = vld [vmem:[#allocation15 + $0xf0] sm:$0xff]
    %v8422 = vld [vmem:[#allocation15 + $0xf8] sm:$0xff]
    %v8423 = vld [vmem:[#allocation15 + $0x100] sm:$0xff]
    %v8424 = vld [vmem:[#allocation15 + $0x108] sm:$0xff]
    %v8425 = vld [vmem:[#allocation15 + $0x110] sm:$0xff]
    %v8426 = vld [vmem:[#allocation15 + $0x118] sm:$0xff]
    %v8427 = vld [vmem:[#allocation15 + $0x120] sm:$0xff]
    %v8428 = vld [vmem:[#allocation15 + $0x128] sm:$0xff]
    %v8429 = vld [vmem:[#allocation15 + $0x130] sm:$0xff]
    %v8430 = vld [vmem:[#allocation15 + $0x138] sm:$0xff]
    %v8431 = vld [vmem:[#allocation15 + $0x140] sm:$0xff]
    %v8432 = vld [vmem:[#allocation15 + $0x148] sm:$0xff]
    %v8433 = vld [vmem:[#allocation15 + $0x150] sm:$0xff]
    %v8434 = vld [vmem:[#allocation15 + $0x158] sm:$0xff]
    %v8435 = vld [vmem:[#allocation15 + $0x160] sm:$0xff]
    %v8436 = vld [vmem:[#allocation15 + $0x168] sm:$0xff]
    %v8437 = vld [vmem:[#allocation15 + $0x170] sm:$0xff]
    %v8438 = vld [vmem:[#allocation15 + $0x178] sm:$0xff]
    %v8439 = vld [vmem:[#allocation15 + $0x180] sm:$0xff]
    %v8440 = vld [vmem:[#allocation15 + $0x188] sm:$0xff]
    %v8441 = vld [vmem:[#allocation15 + $0x190] sm:$0xff]
    %v8442 = vld [vmem:[#allocation15 + $0x198] sm:$0xff]
    %v8443 = vld [vmem:[#allocation15 + $0x1a0] sm:$0xff]
    %v8444 = vld [vmem:[#allocation15 + $0x1a8] sm:$0xff]
    %v8445 = vld [vmem:[#allocation15 + $0x1b0] sm:$0xff]
    %v8446 = vld [vmem:[#allocation15 + $0x1b8] sm:$0xff]
    %v8447 = vld [vmem:[#allocation15 + $0x1c0] sm:$0xff]
    %v8448 = vld [vmem:[#allocation15 + $0x1c8] sm:$0xff]
    %v8449 = vld [vmem:[#allocation15 + $0x1d0] sm:$0xff]
    %v8450 = vld [vmem:[#allocation15 + $0x1d8] sm:$0xff]
    %v8451 = vld [vmem:[#allocation15 + $0x1e0] sm:$0xff]
    %v8452 = vld [vmem:[#allocation15 + $0x1e8] sm:$0xff]
    %v8453 = vld [vmem:[#allocation15 + $0x1f0] sm:$0xff]
    %v8454 = vld [vmem:[#allocation15 + $0x1f8] sm:$0xff]
    %v8455 = vld [vmem:[#allocation15 + $0x200] sm:$0xff]
    %v8456 = vld [vmem:[#allocation15 + $0x208] sm:$0xff]
    %v8457 = vld [vmem:[#allocation15 + $0x210] sm:$0xff]
    %v8458 = vld [vmem:[#allocation15 + $0x218] sm:$0xff]
    %v8459 = vld [vmem:[#allocation15 + $0x220] sm:$0xff]
    %v8460 = vld [vmem:[#allocation15 + $0x228] sm:$0xff]
    %v8461 = vld [vmem:[#allocation15 + $0x230] sm:$0xff]
    %v8462 = vld [vmem:[#allocation15 + $0x238] sm:$0xff]
    %v8463 = vld [vmem:[#allocation15 + $0x240] sm:$0xff]
    %v8464 = vld [vmem:[#allocation15 + $0x248] sm:$0xff]
    %v8465 = vld [vmem:[#allocation15 + $0x250] sm:$0xff]
    %v8466 = vld [vmem:[#allocation15 + $0x258] sm:$0xff]
    %v8467 = vld [vmem:[#allocation15 + $0x260] sm:$0xff]
    %v8468 = vld [vmem:[#allocation15 + $0x268] sm:$0xff]
    %v8469 = vld [vmem:[#allocation15 + $0x270] sm:$0xff]
    %v8470 = vld [vmem:[#allocation15 + $0x278] sm:$0xff]
    %v8471 = vld [vmem:[#allocation15 + $0x280] sm:$0xff]
    %v8472 = vld [vmem:[#allocation15 + $0x288] sm:$0xff]
    %v8473 = vld [vmem:[#allocation15 + $0x290] sm:$0xff]
    %v8474 = vld [vmem:[#allocation15 + $0x298] sm:$0xff]
    %v8475 = vld [vmem:[#allocation15 + $0x2a0] sm:$0xff]
    %v8476 = vld [vmem:[#allocation15 + $0x2a8] sm:$0xff]
    %v8477 = vld [vmem:[#allocation15 + $0x2b0] sm:$0xff]
    %v8478 = vld [vmem:[#allocation15 + $0x2b8] sm:$0xff]
    %v8479 = vld [vmem:[#allocation15 + $0x2c0] sm:$0xff]
    %v8480 = vld [vmem:[#allocation15 + $0x2c8] sm:$0xff]
    %v8481 = vld [vmem:[#allocation15 + $0x2d0] sm:$0xff]
    %v8482 = vld [vmem:[#allocation15 + $0x2d8] sm:$0xff]
    %v8483 = vld [vmem:[#allocation15 + $0x2e0] sm:$0xff]
    %v8484 = vld [vmem:[#allocation15 + $0x2e8] sm:$0xff]
    %v8485 = vld [vmem:[#allocation15 + $0x2f0] sm:$0xff]
    %v8486 = vld [vmem:[#allocation15 + $0x2f8] sm:$0xff]
    %v8487 = vld [vmem:[#allocation15 + $0x300] sm:$0xff]
    %v8488 = vld [vmem:[#allocation15 + $0x308] sm:$0xff]
    %v8489 = vld [vmem:[#allocation15 + $0x310] sm:$0xff]
    %v8490 = vld [vmem:[#allocation15 + $0x318] sm:$0xff]
    %v8491 = vld [vmem:[#allocation15 + $0x320] sm:$0xff]
    %v8492 = vld [vmem:[#allocation15 + $0x328] sm:$0xff]
    %v8493 = vld [vmem:[#allocation15 + $0x330] sm:$0xff]
    %v8494 = vld [vmem:[#allocation15 + $0x338] sm:$0xff]
    %v8495 = vld [vmem:[#allocation15 + $0x340] sm:$0xff]
    %v8496 = vld [vmem:[#allocation15 + $0x348] sm:$0xff]
    %v8497 = vld [vmem:[#allocation15 + $0x350] sm:$0xff]
    %v8498 = vld [vmem:[#allocation15 + $0x358] sm:$0xff]
    %v8499 = vld [vmem:[#allocation15 + $0x360] sm:$0xff]
    %v8500 = vld [vmem:[#allocation15 + $0x368] sm:$0xff]
    %v8501 = vld [vmem:[#allocation15 + $0x370] sm:$0xff]
    %v8502 = vld [vmem:[#allocation15 + $0x378] sm:$0xff]
    %v8503 = vld [vmem:[#allocation15 + $0x380] sm:$0xff]
    %v8504 = vld [vmem:[#allocation15 + $0x388] sm:$0xff]
    %v8505 = vld [vmem:[#allocation15 + $0x390] sm:$0xff]
    %v8506 = vld [vmem:[#allocation15 + $0x398] sm:$0xff]
    %v8507 = vld [vmem:[#allocation15 + $0x3a0] sm:$0xff]
    %v8508 = vld [vmem:[#allocation15 + $0x3a8] sm:$0xff]
    %v8509 = vld [vmem:[#allocation15 + $0x3b0] sm:$0xff]
    %v8510 = vld [vmem:[#allocation15 + $0x3b8] sm:$0xff]
    %v8511 = vld [vmem:[#allocation15 + $0x3c0] sm:$0xff]
    %v8512 = vld [vmem:[#allocation15 + $0x3c8] sm:$0xff]
    %v8513 = vld [vmem:[#allocation15 + $0x3d0] sm:$0xff]
    %v8514 = vld [vmem:[#allocation15 + $0x3d8] sm:$0xff]
    %v8515 = vld [vmem:[#allocation15 + $0x3e0] sm:$0xff]
    %v8516 = vld [vmem:[#allocation15 + $0x3e8] sm:$0xff]
    %v8517 = vld [vmem:[#allocation15 + $0x3f0] sm:$0xff]
    %v8518 = vld [vmem:[#allocation15 + $0x3f8] sm:$0xff]
    %v8519 = vld [vmem:[#allocation15 + $0x400] sm:$0xff]
    %v8520 = vld [vmem:[#allocation15 + $0x408] sm:$0xff]
    %v8521 = vld [vmem:[#allocation15 + $0x410] sm:$0xff]
    %v8522 = vld [vmem:[#allocation15 + $0x418] sm:$0xff]
    %v8523 = vld [vmem:[#allocation15 + $0x420] sm:$0xff]
    %v8524 = vld [vmem:[#allocation15 + $0x428] sm:$0xff]
    %v8525 = vld [vmem:[#allocation15 + $0x430] sm:$0xff]
    %v8526 = vld [vmem:[#allocation15 + $0x438] sm:$0xff]
    %v8527 = vld [vmem:[#allocation15 + $0x440] sm:$0xff]
    %v8528 = vld [vmem:[#allocation15 + $0x448] sm:$0xff]
    %v8529 = vld [vmem:[#allocation15 + $0x450] sm:$0xff]
    %v8530 = vld [vmem:[#allocation15 + $0x458] sm:$0xff]
    %v8531 = vld [vmem:[#allocation15 + $0x460] sm:$0xff]
    %v8532 = vld [vmem:[#allocation15 + $0x468] sm:$0xff]
    %v8533 = vld [vmem:[#allocation15 + $0x470] sm:$0xff]
    %v8534 = vld [vmem:[#allocation15 + $0x478] sm:$0xff]
    %v8535 = vld [vmem:[#allocation15 + $0x480] sm:$0xff]
    %v8536 = vld [vmem:[#allocation15 + $0x488] sm:$0xff]
    %v8537 = vld [vmem:[#allocation15 + $0x490] sm:$0xff]
    %v8538 = vld [vmem:[#allocation15 + $0x498] sm:$0xff]
    %v8539 = vld [vmem:[#allocation15 + $0x4a0] sm:$0xff]
    %v8540 = vld [vmem:[#allocation15 + $0x4a8] sm:$0xff]
    %v8541 = vld [vmem:[#allocation15 + $0x4b0] sm:$0xff]
    %v8542 = vld [vmem:[#allocation15 + $0x4b8] sm:$0xff]
    %v8543 = vld [vmem:[#allocation15 + $0x4c0] sm:$0xff]
    %v8544 = vld [vmem:[#allocation15 + $0x4c8] sm:$0xff]
    %v8545 = vld [vmem:[#allocation15 + $0x4d0] sm:$0xff]
    %v8546 = vld [vmem:[#allocation15 + $0x4d8] sm:$0xff]
    %v8547 = vld [vmem:[#allocation15 + $0x4e0] sm:$0xff]
    %v8548 = vld [vmem:[#allocation15 + $0x4e8] sm:$0xff]
    %v8549 = vld [vmem:[#allocation15 + $0x4f0] sm:$0xff]
    %v8550 = vld [vmem:[#allocation15 + $0x4f8] sm:$0xff]
    %v8551 = vld [vmem:[#allocation15 + $0x500] sm:$0xff]
    %v8552 = vld [vmem:[#allocation15 + $0x508] sm:$0xff]
    %v8553 = vld [vmem:[#allocation15 + $0x510] sm:$0xff]
    %v8554 = vld [vmem:[#allocation15 + $0x518] sm:$0xff]
    %v8555 = vld [vmem:[#allocation15 + $0x520] sm:$0xff]
    %v8556 = vld [vmem:[#allocation15 + $0x528] sm:$0xff]
    %v8557 = vld [vmem:[#allocation15 + $0x530] sm:$0xff]
    %v8558 = vld [vmem:[#allocation15 + $0x538] sm:$0xff]
    %v8559 = vld [vmem:[#allocation15 + $0x540] sm:$0xff]
    %v8560 = vld [vmem:[#allocation15 + $0x548] sm:$0xff]
    %v8561 = vld [vmem:[#allocation15 + $0x550] sm:$0xff]
    %v8562 = vld [vmem:[#allocation15 + $0x558] sm:$0xff]
    %v8563 = vld [vmem:[#allocation15 + $0x560] sm:$0xff]
    %v8564 = vld [vmem:[#allocation15 + $0x568] sm:$0xff]
    %v8565 = vld [vmem:[#allocation15 + $0x570] sm:$0xff]
    %v8566 = vld [vmem:[#allocation15 + $0x578] sm:$0xff]
    %v8567 = vld [vmem:[#allocation15 + $0x580] sm:$0xff]
    %v8568 = vld [vmem:[#allocation15 + $0x588] sm:$0xff]
    %v8569 = vld [vmem:[#allocation15 + $0x590] sm:$0xff]
    %v8570 = vld [vmem:[#allocation15 + $0x598] sm:$0xff]
    %v8571 = vld [vmem:[#allocation15 + $0x5a0] sm:$0xff]
    %v8572 = vld [vmem:[#allocation15 + $0x5a8] sm:$0xff]
    %v8573 = vld [vmem:[#allocation15 + $0x5b0] sm:$0xff]
    %v8574 = vld [vmem:[#allocation15 + $0x5b8] sm:$0xff]
    %v8575 = vld [vmem:[#allocation15 + $0x5c0] sm:$0xff]
    %v8576 = vld [vmem:[#allocation15 + $0x5c8] sm:$0xff]
    %v8577 = vld [vmem:[#allocation15 + $0x5d0] sm:$0xff]
    %v8578 = vld [vmem:[#allocation15 + $0x5d8] sm:$0xff]
    %v8579 = vld [vmem:[#allocation15 + $0x5e0] sm:$0xff]
    %v8580 = vld [vmem:[#allocation15 + $0x5e8] sm:$0xff]
    %v8581 = vld [vmem:[#allocation15 + $0x5f0] sm:$0xff]
    %v8582 = vld [vmem:[#allocation15 + $0x5f8] sm:$0xff]
    %v8583 = vld [vmem:[#allocation15 + $0x600] sm:$0xff]
    %v8584 = vld [vmem:[#allocation15 + $0x608] sm:$0xff]
    %v8585 = vld [vmem:[#allocation15 + $0x610] sm:$0xff]
    %v8586 = vld [vmem:[#allocation15 + $0x618] sm:$0xff]
    %v8587 = vld [vmem:[#allocation15 + $0x620] sm:$0xff]
    %v8588 = vld [vmem:[#allocation15 + $0x628] sm:$0xff]
    %v8589 = vld [vmem:[#allocation15 + $0x630] sm:$0xff]
    %v8590 = vld [vmem:[#allocation15 + $0x638] sm:$0xff]
    %v8591 = vld [vmem:[#allocation15 + $0x640] sm:$0xff]
    %v8592 = vld [vmem:[#allocation15 + $0x648] sm:$0xff]
    %v8593 = vld [vmem:[#allocation15 + $0x650] sm:$0xff]
    %v8594 = vld [vmem:[#allocation15 + $0x658] sm:$0xff]
    %v8595 = vld [vmem:[#allocation15 + $0x660] sm:$0xff]
    %v8596 = vld [vmem:[#allocation15 + $0x668] sm:$0xff]
    %v8597 = vld [vmem:[#allocation15 + $0x670] sm:$0xff]
    %v8598 = vld [vmem:[#allocation15 + $0x678] sm:$0xff]
    %v8599 = vld [vmem:[#allocation15 + $0x680] sm:$0xff]
    %v8600 = vld [vmem:[#allocation15 + $0x688] sm:$0xff]
    %v8601 = vld [vmem:[#allocation15 + $0x690] sm:$0xff]
    %v8602 = vld [vmem:[#allocation15 + $0x698] sm:$0xff]
    %v8603 = vld [vmem:[#allocation15 + $0x6a0] sm:$0xff]
    %v8604 = vld [vmem:[#allocation15 + $0x6a8] sm:$0xff]
    %v8605 = vld [vmem:[#allocation15 + $0x6b0] sm:$0xff]
    %v8606 = vld [vmem:[#allocation15 + $0x6b8] sm:$0xff]
    %v8607 = vld [vmem:[#allocation15 + $0x6c0] sm:$0xff]
    %v8608 = vld [vmem:[#allocation15 + $0x6c8] sm:$0xff]
    %v8609 = vld [vmem:[#allocation15 + $0x6d0] sm:$0xff]
    %v8610 = vld [vmem:[#allocation15 + $0x6d8] sm:$0xff]
    %v8611 = vld [vmem:[#allocation15 + $0x6e0] sm:$0xff]
    %v8612 = vld [vmem:[#allocation15 + $0x6e8] sm:$0xff]
    %v8613 = vld [vmem:[#allocation15 + $0x6f0] sm:$0xff]
    %v8614 = vld [vmem:[#allocation15 + $0x6f8] sm:$0xff]
    %v8615 = vld [vmem:[#allocation15 + $0x700] sm:$0xff]
    %v8616 = vld [vmem:[#allocation15 + $0x708] sm:$0xff]
    %v8617 = vld [vmem:[#allocation15 + $0x710] sm:$0xff]
    %v8618 = vld [vmem:[#allocation15 + $0x718] sm:$0xff]
    %v8619 = vld [vmem:[#allocation15 + $0x720] sm:$0xff]
    %v8620 = vld [vmem:[#allocation15 + $0x728] sm:$0xff]
    %v8621 = vld [vmem:[#allocation15 + $0x730] sm:$0xff]
    %v8622 = vld [vmem:[#allocation15 + $0x738] sm:$0xff]
    %v8623 = vld [vmem:[#allocation15 + $0x740] sm:$0xff]
    %v8624 = vld [vmem:[#allocation15 + $0x748] sm:$0xff]
    %v8625 = vld [vmem:[#allocation15 + $0x750] sm:$0xff]
    %v8626 = vld [vmem:[#allocation15 + $0x758] sm:$0xff]
    %v8627 = vld [vmem:[#allocation15 + $0x760] sm:$0xff]
    %v8628 = vld [vmem:[#allocation15 + $0x768] sm:$0xff]
    %v8629 = vld [vmem:[#allocation15 + $0x770] sm:$0xff]
    %v8630 = vld [vmem:[#allocation15 + $0x778] sm:$0xff]
    %v8631 = vld [vmem:[#allocation15 + $0x780] sm:$0xff]
    %v8632 = vld [vmem:[#allocation15 + $0x788] sm:$0xff]
    %v8633 = vld [vmem:[#allocation15 + $0x790] sm:$0xff]
    %v8634 = vld [vmem:[#allocation15 + $0x798] sm:$0xff]
    %v8635 = vld [vmem:[#allocation15 + $0x7a0] sm:$0xff]
    %v8636 = vld [vmem:[#allocation15 + $0x7a8] sm:$0xff]
    %v8637 = vld [vmem:[#allocation15 + $0x7b0] sm:$0xff]
    %v8638 = vld [vmem:[#allocation15 + $0x7b8] sm:$0xff]
    %v8639 = vld [vmem:[#allocation15 + $0x7c0] sm:$0xff]
    %v8640 = vld [vmem:[#allocation15 + $0x7c8] sm:$0xff]
    %v8641 = vld [vmem:[#allocation15 + $0x7d0] sm:$0xff]
    %v8642 = vld [vmem:[#allocation15 + $0x7d8] sm:$0xff]
    %v8643 = vld [vmem:[#allocation15 + $0x7e0] sm:$0xff]
    %v8644 = vld [vmem:[#allocation15 + $0x7e8] sm:$0xff]
    %v8645 = vld [vmem:[#allocation15 + $0x7f0] sm:$0xff]
    %v8646 = vld [vmem:[#allocation15 + $0x7f8] sm:$0xff]
    %v8647 = vld [vmem:[#allocation15 + $0x800] sm:$0xff]
    %v8648 = vld [vmem:[#allocation15 + $0x808] sm:$0xff]
    %v8649 = vld [vmem:[#allocation15 + $0x810] sm:$0xff]
    %v8650 = vld [vmem:[#allocation15 + $0x818] sm:$0xff]
    %v8651 = vld [vmem:[#allocation15 + $0x820] sm:$0xff]
    %v8652 = vld [vmem:[#allocation15 + $0x828] sm:$0xff]
    %v8653 = vld [vmem:[#allocation15 + $0x830] sm:$0xff]
    %v8654 = vld [vmem:[#allocation15 + $0x838] sm:$0xff]
    %v8655 = vld [vmem:[#allocation15 + $0x840] sm:$0xff]
    %v8656 = vld [vmem:[#allocation15 + $0x848] sm:$0xff]
    %v8657 = vld [vmem:[#allocation15 + $0x850] sm:$0xff]
    %v8658 = vld [vmem:[#allocation15 + $0x858] sm:$0xff]
    %v8659 = vld [vmem:[#allocation15 + $0x860] sm:$0xff]
    %v8660 = vld [vmem:[#allocation15 + $0x868] sm:$0xff]
    %v8661 = vld [vmem:[#allocation15 + $0x870] sm:$0xff]
    %v8662 = vld [vmem:[#allocation15 + $0x878] sm:$0xff]
    %v8663 = vld [vmem:[#allocation15 + $0x880] sm:$0xff]
    %v8664 = vld [vmem:[#allocation15 + $0x888] sm:$0xff]
    %v8665 = vld [vmem:[#allocation15 + $0x890] sm:$0xff]
    %v8666 = vld [vmem:[#allocation15 + $0x898] sm:$0xff]
    %v8667 = vld [vmem:[#allocation15 + $0x8a0] sm:$0xff]
    %v8668 = vld [vmem:[#allocation15 + $0x8a8] sm:$0xff]
    %v8669 = vld [vmem:[#allocation15 + $0x8b0] sm:$0xff]
    %v8670 = vld [vmem:[#allocation15 + $0x8b8] sm:$0xff]
    %v8671 = vld [vmem:[#allocation15 + $0x8c0] sm:$0xff]
    %v8672 = vld [vmem:[#allocation15 + $0x8c8] sm:$0xff]
    %v8673 = vld [vmem:[#allocation15 + $0x8d0] sm:$0xff]
    %v8674 = vld [vmem:[#allocation15 + $0x8d8] sm:$0xff]
    %v8675 = vld [vmem:[#allocation15 + $0x8e0] sm:$0xff]
    %v8676 = vld [vmem:[#allocation15 + $0x8e8] sm:$0xff]
    %v8677 = vld [vmem:[#allocation15 + $0x8f0] sm:$0xff]
    %v8678 = vld [vmem:[#allocation15 + $0x8f8] sm:$0xff]
    %v8679 = vld [vmem:[#allocation15 + $0x900] sm:$0xff]
    %v8680 = vld [vmem:[#allocation15 + $0x908] sm:$0xff]
    %v8681 = vld [vmem:[#allocation15 + $0x910] sm:$0xff]
    %v8682 = vld [vmem:[#allocation15 + $0x918] sm:$0xff]
    %v8683 = vld [vmem:[#allocation15 + $0x920] sm:$0xff]
    %v8684 = vld [vmem:[#allocation15 + $0x928] sm:$0xff]
    %v8685 = vld [vmem:[#allocation15 + $0x930] sm:$0xff]
    %v8686 = vld [vmem:[#allocation15 + $0x938] sm:$0xff]
    %v8687 = vld [vmem:[#allocation15 + $0x940] sm:$0xff]
    %v8688 = vld [vmem:[#allocation15 + $0x948] sm:$0xff]
    %v8689 = vld [vmem:[#allocation15 + $0x950] sm:$0xff]
    %v8690 = vld [vmem:[#allocation15 + $0x958] sm:$0xff]
    %v8691 = vld [vmem:[#allocation15 + $0x960] sm:$0xff]
    %v8692 = vld [vmem:[#allocation15 + $0x968] sm:$0xff]
    %v8693 = vld [vmem:[#allocation15 + $0x970] sm:$0xff]
    %v8694 = vld [vmem:[#allocation15 + $0x978] sm:$0xff]
    %v8695 = vld [vmem:[#allocation15 + $0x980] sm:$0xff]
    %v8696 = vld [vmem:[#allocation15 + $0x988] sm:$0xff]
    %v8697 = vld [vmem:[#allocation15 + $0x990] sm:$0xff]
    %v8698 = vld [vmem:[#allocation15 + $0x998] sm:$0xff]
    %v8699 = vld [vmem:[#allocation15 + $0x9a0] sm:$0xff]
    %v8700 = vld [vmem:[#allocation15 + $0x9a8] sm:$0xff]
    %v8701 = vld [vmem:[#allocation15 + $0x9b0] sm:$0xff]
    %v8702 = vld [vmem:[#allocation15 + $0x9b8] sm:$0xff]
    %v8703 = vld [vmem:[#allocation15 + $0x9c0] sm:$0xff]
    %v8704 = vld [vmem:[#allocation15 + $0x9c8] sm:$0xff]
    %v8705 = vld [vmem:[#allocation15 + $0x9d0] sm:$0xff]
    %v8706 = vld [vmem:[#allocation15 + $0x9d8] sm:$0xff]
    %v8707 = vld [vmem:[#allocation15 + $0x9e0] sm:$0xff]
    %v8708 = vld [vmem:[#allocation15 + $0x9e8] sm:$0xff]
    %v8709 = vld [vmem:[#allocation15 + $0x9f0] sm:$0xff]
    %v8710 = vld [vmem:[#allocation15 + $0x9f8] sm:$0xff]
    %v8711 = vld [vmem:[#allocation15 + $0xa00] sm:$0xff]
    %v8712 = vld [vmem:[#allocation15 + $0xa08] sm:$0xff]
    %v8713 = vld [vmem:[#allocation15 + $0xa10] sm:$0xff]
    %v8714 = vld [vmem:[#allocation15 + $0xa18] sm:$0xff]
    %v8715 = vld [vmem:[#allocation15 + $0xa20] sm:$0xff]
    %v8716 = vld [vmem:[#allocation15 + $0xa28] sm:$0xff]
    %v8717 = vld [vmem:[#allocation15 + $0xa30] sm:$0xff]
    %v8718 = vld [vmem:[#allocation15 + $0xa38] sm:$0xff]
    %v8719 = vld [vmem:[#allocation15 + $0xa40] sm:$0xff]
    %v8720 = vld [vmem:[#allocation15 + $0xa48] sm:$0xff]
    %v8721 = vld [vmem:[#allocation15 + $0xa50] sm:$0xff]
    %v8722 = vld [vmem:[#allocation15 + $0xa58] sm:$0xff]
    %v8723 = vld [vmem:[#allocation15 + $0xa60] sm:$0xff]
    %v8724 = vld [vmem:[#allocation15 + $0xa68] sm:$0xff]
    %v8725 = vld [vmem:[#allocation15 + $0xa70] sm:$0xff]
    %v8726 = vld [vmem:[#allocation15 + $0xa78] sm:$0xff]
    %v8727 = vld [vmem:[#allocation15 + $0xa80] sm:$0xff]
    %v8728 = vld [vmem:[#allocation15 + $0xa88] sm:$0xff]
    %v8729 = vld [vmem:[#allocation15 + $0xa90] sm:$0xff]
    %v8730 = vld [vmem:[#allocation15 + $0xa98] sm:$0xff]
    %v8731 = vld [vmem:[#allocation15 + $0xaa0] sm:$0xff]
    %v8732 = vld [vmem:[#allocation15 + $0xaa8] sm:$0xff]
    %v8733 = vld [vmem:[#allocation15 + $0xab0] sm:$0xff]
    %v8734 = vld [vmem:[#allocation15 + $0xab8] sm:$0xff]
    %v8735 = vld [vmem:[#allocation15 + $0xac0] sm:$0xff]
    %v8736 = vld [vmem:[#allocation15 + $0xac8] sm:$0xff]
    %v8737 = vld [vmem:[#allocation15 + $0xad0] sm:$0xff]
    %v8738 = vld [vmem:[#allocation15 + $0xad8] sm:$0xff]
    %v8739 = vld [vmem:[#allocation15 + $0xae0] sm:$0xff]
    %v8740 = vld [vmem:[#allocation15 + $0xae8] sm:$0xff]
    %v8741 = vld [vmem:[#allocation15 + $0xaf0] sm:$0xff]
    %v8742 = vld [vmem:[#allocation15 + $0xaf8] sm:$0xff]
    %v8743 = vld [vmem:[#allocation15 + $0xb00] sm:$0xff]
    %v8744 = vld [vmem:[#allocation15 + $0xb08] sm:$0xff]
    %v8745 = vld [vmem:[#allocation15 + $0xb10] sm:$0xff]
    %v8746 = vld [vmem:[#allocation15 + $0xb18] sm:$0xff]
    %v8747 = vld [vmem:[#allocation15 + $0xb20] sm:$0xff]
    %v8748 = vld [vmem:[#allocation15 + $0xb28] sm:$0xff]
    %v8749 = vld [vmem:[#allocation15 + $0xb30] sm:$0xff]
    %v8750 = vld [vmem:[#allocation15 + $0xb38] sm:$0xff]
    %v8751 = vld [vmem:[#allocation15 + $0xb40] sm:$0xff]
    %v8752 = vld [vmem:[#allocation15 + $0xb48] sm:$0xff]
    %v8753 = vld [vmem:[#allocation15 + $0xb50] sm:$0xff]
    %v8754 = vld [vmem:[#allocation15 + $0xb58] sm:$0xff]
    %v8755 = vld [vmem:[#allocation15 + $0xb60] sm:$0xff]
    %v8756 = vld [vmem:[#allocation15 + $0xb68] sm:$0xff]
    %v8757 = vld [vmem:[#allocation15 + $0xb70] sm:$0xff]
    %v8758 = vld [vmem:[#allocation15 + $0xb78] sm:$0xff]
    %v8759 = vld [vmem:[#allocation15 + $0xb80] sm:$0xff]
    %v8760 = vld [vmem:[#allocation15 + $0xb88] sm:$0xff]
    %v8761 = vld [vmem:[#allocation15 + $0xb90] sm:$0xff]
    %v8762 = vld [vmem:[#allocation15 + $0xb98] sm:$0xff]
    %v8763 = vld [vmem:[#allocation15 + $0xba0] sm:$0xff]
    %v8764 = vld [vmem:[#allocation15 + $0xba8] sm:$0xff]
    %v8765 = vld [vmem:[#allocation15 + $0xbb0] sm:$0xff]
    %v8766 = vld [vmem:[#allocation15 + $0xbb8] sm:$0xff]
    %v8767 = vld [vmem:[#allocation15 + $0xbc0] sm:$0xff]
    %v8768 = vld [vmem:[#allocation15 + $0xbc8] sm:$0xff]
    %v8769 = vld [vmem:[#allocation15 + $0xbd0] sm:$0xff]
    %v8770 = vld [vmem:[#allocation15 + $0xbd8] sm:$0xff]
    %v8771 = vld [vmem:[#allocation15 + $0xbe0] sm:$0xff]
    %v8772 = vld [vmem:[#allocation15 + $0xbe8] sm:$0xff]
    %v8773 = vld [vmem:[#allocation15 + $0xbf0] sm:$0xff]
    %v8774 = vld [vmem:[#allocation15 + $0xbf8] sm:$0xff]
    %v8775 = vld [vmem:[#allocation15 + $0xc00] sm:$0xff]
    %v8776 = vld [vmem:[#allocation15 + $0xc08] sm:$0xff]
    %v8777 = vld [vmem:[#allocation15 + $0xc10] sm:$0xff]
    %v8778 = vld [vmem:[#allocation15 + $0xc18] sm:$0xff]
    %v8779 = vld [vmem:[#allocation15 + $0xc20] sm:$0xff]
    %v8780 = vld [vmem:[#allocation15 + $0xc28] sm:$0xff]
    %v8781 = vld [vmem:[#allocation15 + $0xc30] sm:$0xff]
    %v8782 = vld [vmem:[#allocation15 + $0xc38] sm:$0xff]
    %v8783 = vld [vmem:[#allocation15 + $0xc40] sm:$0xff]
    %v8784 = vld [vmem:[#allocation15 + $0xc48] sm:$0xff]
    %v8785 = vld [vmem:[#allocation15 + $0xc50] sm:$0xff]
    %v8786 = vld [vmem:[#allocation15 + $0xc58] sm:$0xff]
    %v8787 = vld [vmem:[#allocation15 + $0xc60] sm:$0xff]
    %v8788 = vld [vmem:[#allocation15 + $0xc68] sm:$0xff]
    %v8789 = vld [vmem:[#allocation15 + $0xc70] sm:$0xff]
    %v8790 = vld [vmem:[#allocation15 + $0xc78] sm:$0xff]
    %v8791 = vld [vmem:[#allocation15 + $0xc80] sm:$0xff]
    %v8792 = vld [vmem:[#allocation15 + $0xc88] sm:$0xff]
    %v8793 = vld [vmem:[#allocation15 + $0xc90] sm:$0xff]
    %v8794 = vld [vmem:[#allocation15 + $0xc98] sm:$0xff]
    %v8795 = vld [vmem:[#allocation15 + $0xca0] sm:$0xff]
    %v8796 = vld [vmem:[#allocation15 + $0xca8] sm:$0xff]
    %v8797 = vld [vmem:[#allocation15 + $0xcb0] sm:$0xff]
    %v8798 = vld [vmem:[#allocation15 + $0xcb8] sm:$0xff]
    %v8799 = vld [vmem:[#allocation15 + $0xcc0] sm:$0xff]
    %v8800 = vld [vmem:[#allocation15 + $0xcc8] sm:$0xff]
    %v8801 = vld [vmem:[#allocation15 + $0xcd0] sm:$0xff]
    %v8802 = vld [vmem:[#allocation15 + $0xcd8] sm:$0xff]
    %v8803 = vld [vmem:[#allocation15 + $0xce0] sm:$0xff]
    %v8804 = vld [vmem:[#allocation15 + $0xce8] sm:$0xff]
    %v8805 = vld [vmem:[#allocation15 + $0xcf0] sm:$0xff]
    %v8806 = vld [vmem:[#allocation15 + $0xcf8] sm:$0xff]
    %v8807 = vld [vmem:[#allocation15 + $0xd00] sm:$0xff]
    %v8808 = vld [vmem:[#allocation15 + $0xd08] sm:$0xff]
    %v8809 = vld [vmem:[#allocation15 + $0xd10] sm:$0xff]
    %v8810 = vld [vmem:[#allocation15 + $0xd18] sm:$0xff]
    %v8811 = vld [vmem:[#allocation15 + $0xd20] sm:$0xff]
    %v8812 = vld [vmem:[#allocation15 + $0xd28] sm:$0xff]
    %v8813 = vld [vmem:[#allocation15 + $0xd30] sm:$0xff]
    %v8814 = vld [vmem:[#allocation15 + $0xd38] sm:$0xff]
    %v8815 = vld [vmem:[#allocation15 + $0xd40] sm:$0xff]
    %v8816 = vld [vmem:[#allocation15 + $0xd48] sm:$0xff]
    %v8817 = vld [vmem:[#allocation15 + $0xd50] sm:$0xff]
    %v8818 = vld [vmem:[#allocation15 + $0xd58] sm:$0xff]
    %v8819 = vld [vmem:[#allocation15 + $0xd60] sm:$0xff]
    %v8820 = vld [vmem:[#allocation15 + $0xd68] sm:$0xff]
    %v8821 = vld [vmem:[#allocation15 + $0xd70] sm:$0xff]
    %v8822 = vld [vmem:[#allocation15 + $0xd78] sm:$0xff]
    %v8823 = vld [vmem:[#allocation15 + $0xd80] sm:$0xff]
    %v8824 = vld [vmem:[#allocation15 + $0xd88] sm:$0xff]
    %v8825 = vld [vmem:[#allocation15 + $0xd90] sm:$0xff]
    %v8826 = vld [vmem:[#allocation15 + $0xd98] sm:$0xff]
    %v8827 = vld [vmem:[#allocation15 + $0xda0] sm:$0xff]
    %v8828 = vld [vmem:[#allocation15 + $0xda8] sm:$0xff]
    %v8829 = vld [vmem:[#allocation15 + $0xdb0] sm:$0xff]
    %v8830 = vld [vmem:[#allocation15 + $0xdb8] sm:$0xff]
    %v8831 = vld [vmem:[#allocation15 + $0xdc0] sm:$0xff]
    %v8832 = vld [vmem:[#allocation15 + $0xdc8] sm:$0xff]
    %v8833 = vld [vmem:[#allocation15 + $0xdd0] sm:$0xff]
    %v8834 = vld [vmem:[#allocation15 + $0xdd8] sm:$0xff]
    %v8835 = vld [vmem:[#allocation15 + $0xde0] sm:$0xff]
    %v8836 = vld [vmem:[#allocation15 + $0xde8] sm:$0xff]
    %v8837 = vld [vmem:[#allocation15 + $0xdf0] sm:$0xff]
    %v8838 = vld [vmem:[#allocation15 + $0xdf8] sm:$0xff]
    %v8839 = vld [vmem:[#allocation15 + $0xe00] sm:$0xff]
    %v8840 = vld [vmem:[#allocation15 + $0xe08] sm:$0xff]
    %v8841 = vld [vmem:[#allocation15 + $0xe10] sm:$0xff]
    %v8842 = vld [vmem:[#allocation15 + $0xe18] sm:$0xff]
    %v8843 = vld [vmem:[#allocation15 + $0xe20] sm:$0xff]
    %v8844 = vld [vmem:[#allocation15 + $0xe28] sm:$0xff]
    %v8845 = vld [vmem:[#allocation15 + $0xe30] sm:$0xff]
    %v8846 = vld [vmem:[#allocation15 + $0xe38] sm:$0xff]
    %v8847 = vld [vmem:[#allocation15 + $0xe40] sm:$0xff]
    %v8848 = vld [vmem:[#allocation15 + $0xe48] sm:$0xff]
    %v8849 = vld [vmem:[#allocation15 + $0xe50] sm:$0xff]
    %v8850 = vld [vmem:[#allocation15 + $0xe58] sm:$0xff]
    %v8851 = vld [vmem:[#allocation15 + $0xe60] sm:$0xff]
    %v8852 = vld [vmem:[#allocation15 + $0xe68] sm:$0xff]
    %v8853 = vld [vmem:[#allocation15 + $0xe70] sm:$0xff]
    %v8854 = vld [vmem:[#allocation15 + $0xe78] sm:$0xff]
    %v8855 = vld [vmem:[#allocation15 + $0xe80] sm:$0xff]
    %v8856 = vld [vmem:[#allocation15 + $0xe88] sm:$0xff]
    %v8857 = vld [vmem:[#allocation15 + $0xe90] sm:$0xff]
    %v8858 = vld [vmem:[#allocation15 + $0xe98] sm:$0xff]
    %v8859 = vld [vmem:[#allocation15 + $0xea0] sm:$0xff]
    %v8860 = vld [vmem:[#allocation15 + $0xea8] sm:$0xff]
    %v8861 = vld [vmem:[#allocation15 + $0xeb0] sm:$0xff]
    %v8862 = vld [vmem:[#allocation15 + $0xeb8] sm:$0xff]
    %v8863 = vld [vmem:[#allocation15 + $0xec0] sm:$0xff]
    %v8864 = vld [vmem:[#allocation15 + $0xec8] sm:$0xff]
    %v8865 = vld [vmem:[#allocation15 + $0xed0] sm:$0xff]
    %v8866 = vld [vmem:[#allocation15 + $0xed8] sm:$0xff]
    %v8867 = vld [vmem:[#allocation15 + $0xee0] sm:$0xff]
    %v8868 = vld [vmem:[#allocation15 + $0xee8] sm:$0xff]
    %v8869 = vld [vmem:[#allocation15 + $0xef0] sm:$0xff]
    %v8870 = vld [vmem:[#allocation15 + $0xef8] sm:$0xff]
    %v8871 = vld [vmem:[#allocation15 + $0xf00] sm:$0xff]
    %v8872 = vld [vmem:[#allocation15 + $0xf08] sm:$0xff]
    %v8873 = vld [vmem:[#allocation15 + $0xf10] sm:$0xff]
    %v8874 = vld [vmem:[#allocation15 + $0xf18] sm:$0xff]
    %v8875 = vld [vmem:[#allocation15 + $0xf20] sm:$0xff]
    %v8876 = vld [vmem:[#allocation15 + $0xf28] sm:$0xff]
    %v8877 = vld [vmem:[#allocation15 + $0xf30] sm:$0xff]
    %v8878 = vld [vmem:[#allocation15 + $0xf38] sm:$0xff]
    %v8879 = vld [vmem:[#allocation15 + $0xf40] sm:$0xff]
    %v8880 = vld [vmem:[#allocation15 + $0xf48] sm:$0xff]
    %v8881 = vld [vmem:[#allocation15 + $0xf50] sm:$0xff]
    %v8882 = vld [vmem:[#allocation15 + $0xf58] sm:$0xff]
    %v8883 = vld [vmem:[#allocation15 + $0xf60] sm:$0xff]
    %v8884 = vld [vmem:[#allocation15 + $0xf68] sm:$0xff]
    %v8885 = vld [vmem:[#allocation15 + $0xf70] sm:$0xff]
    %v8886 = vld [vmem:[#allocation15 + $0xf78] sm:$0xff]
    %v8887 = vld [vmem:[#allocation15 + $0xf80] sm:$0xff]
    %v8888 = vld [vmem:[#allocation15 + $0xf88] sm:$0xff]
    %v8889 = vld [vmem:[#allocation15 + $0xf90] sm:$0xff]
    %v8890 = vld [vmem:[#allocation15 + $0xf98] sm:$0xff]
    %v8891 = vld [vmem:[#allocation15 + $0xfa0] sm:$0xff]
    %v8892 = vld [vmem:[#allocation15 + $0xfa8] sm:$0xff]
    %v8893 = vld [vmem:[#allocation15 + $0xfb0] sm:$0xff]
    %v8894 = vld [vmem:[#allocation15 + $0xfb8] sm:$0xff]
    %v8895 = vld [vmem:[#allocation15 + $0xfc0] sm:$0xff]
    %v8896 = vld [vmem:[#allocation15 + $0xfc8] sm:$0xff]
    %v8897 = vld [vmem:[#allocation15 + $0xfd0] sm:$0xff]
    %v8898 = vld [vmem:[#allocation15 + $0xfd8] sm:$0xff]
    %v8899 = vld [vmem:[#allocation15 + $0xfe0] sm:$0xff]
    %v8900 = vld [vmem:[#allocation15 + $0xfe8] sm:$0xff]
    %v8901 = vld [vmem:[#allocation15 + $0xff0] sm:$0xff]
    %v8902 = vld [vmem:[#allocation15 + $0xff8] sm:$0xff]
    %v8903 = vld [vmem:[#allocation15 + $0x1000] sm:$0xff]
    %v8904 = vld [vmem:[#allocation15 + $0x1008] sm:$0xff]
    %v8905 = vld [vmem:[#allocation15 + $0x1010] sm:$0xff]
    %v8906 = vld [vmem:[#allocation15 + $0x1018] sm:$0xff]
    %v8907 = vld [vmem:[#allocation15 + $0x1020] sm:$0xff]
    %v8908 = vld [vmem:[#allocation15 + $0x1028] sm:$0xff]
    %v8909 = vld [vmem:[#allocation15 + $0x1030] sm:$0xff]
    %v8910 = vld [vmem:[#allocation15 + $0x1038] sm:$0xff]
    %v8911 = vld [vmem:[#allocation15 + $0x1040] sm:$0xff]
    %v8912 = vld [vmem:[#allocation15 + $0x1048] sm:$0xff]
    %v8913 = vld [vmem:[#allocation15 + $0x1050] sm:$0xff]
    %v8914 = vld [vmem:[#allocation15 + $0x1058] sm:$0xff]
    %v8915 = vld [vmem:[#allocation15 + $0x1060] sm:$0xff]
    %v8916 = vld [vmem:[#allocation15 + $0x1068] sm:$0xff]
    %v8917 = vld [vmem:[#allocation15 + $0x1070] sm:$0xff]
    %v8918 = vld [vmem:[#allocation15 + $0x1078] sm:$0xff]
    %v8919 = vld [vmem:[#allocation15 + $0x1080] sm:$0xff]
    %v8920 = vld [vmem:[#allocation15 + $0x1088] sm:$0xff]
    %v8921 = vld [vmem:[#allocation15 + $0x1090] sm:$0xff]
    %v8922 = vld [vmem:[#allocation15 + $0x1098] sm:$0xff]
    %v8923 = vld [vmem:[#allocation15 + $0x10a0] sm:$0xff]
    %v8924 = vld [vmem:[#allocation15 + $0x10a8] sm:$0xff]
    %v8925 = vld [vmem:[#allocation15 + $0x10b0] sm:$0xff]
    %v8926 = vld [vmem:[#allocation15 + $0x10b8] sm:$0xff]
    %v8927 = vld [vmem:[#allocation15 + $0x10c0] sm:$0xff]
    %v8928 = vld [vmem:[#allocation15 + $0x10c8] sm:$0xff]
    %v8929 = vld [vmem:[#allocation15 + $0x10d0] sm:$0xff]
    %v8930 = vld [vmem:[#allocation15 + $0x10d8] sm:$0xff]
    %v8931 = vld [vmem:[#allocation15 + $0x10e0] sm:$0xff]
    %v8932 = vld [vmem:[#allocation15 + $0x10e8] sm:$0xff]
    %v8933 = vld [vmem:[#allocation15 + $0x10f0] sm:$0xff]
    %v8934 = vld [vmem:[#allocation15 + $0x10f8] sm:$0xff]
    %v8935 = vld [vmem:[#allocation15 + $0x1100] sm:$0xff]
    %v8936 = vld [vmem:[#allocation15 + $0x1108] sm:$0xff]
    %v8937 = vld [vmem:[#allocation15 + $0x1110] sm:$0xff]
    %v8938 = vld [vmem:[#allocation15 + $0x1118] sm:$0xff]
    %v8939 = vld [vmem:[#allocation15 + $0x1120] sm:$0xff]
    %v8940 = vld [vmem:[#allocation15 + $0x1128] sm:$0xff]
    %v8941 = vld [vmem:[#allocation15 + $0x1130] sm:$0xff]
    %v8942 = vld [vmem:[#allocation15 + $0x1138] sm:$0xff]
    %v8943 = vld [vmem:[#allocation15 + $0x1140] sm:$0xff]
    %v8944 = vld [vmem:[#allocation15 + $0x1148] sm:$0xff]
    %v8945 = vld [vmem:[#allocation15 + $0x1150] sm:$0xff]
    %v8946 = vld [vmem:[#allocation15 + $0x1158] sm:$0xff]
    %v8947 = vld [vmem:[#allocation15 + $0x1160] sm:$0xff]
    %v8948 = vld [vmem:[#allocation15 + $0x1168] sm:$0xff]
    %v8949 = vld [vmem:[#allocation15 + $0x1170] sm:$0xff]
    %v8950 = vld [vmem:[#allocation15 + $0x1178] sm:$0xff]
    %v8951 = vld [vmem:[#allocation15 + $0x1180] sm:$0xff]
    %v8952 = vld [vmem:[#allocation15 + $0x1188] sm:$0xff]
    %v8953 = vld [vmem:[#allocation15 + $0x1190] sm:$0xff]
    %v8954 = vld [vmem:[#allocation15 + $0x1198] sm:$0xff]
    %v8955 = vld [vmem:[#allocation15 + $0x11a0] sm:$0xff]
    %v8956 = vld [vmem:[#allocation15 + $0x11a8] sm:$0xff]
    %v8957 = vld [vmem:[#allocation15 + $0x11b0] sm:$0xff]
    %v8958 = vld [vmem:[#allocation15 + $0x11b8] sm:$0xff]
    %v8959 = vld [vmem:[#allocation15 + $0x11c0] sm:$0xff]
    %v8960 = vld [vmem:[#allocation15 + $0x11c8] sm:$0xff]
    %v8961 = vld [vmem:[#allocation15 + $0x11d0] sm:$0xff]
    %v8962 = vld [vmem:[#allocation15 + $0x11d8] sm:$0xff]
    %v8963 = vld [vmem:[#allocation15 + $0x11e0] sm:$0xff]
    %v8964 = vld [vmem:[#allocation15 + $0x11e8] sm:$0xff]
    %v8965 = vld [vmem:[#allocation15 + $0x11f0] sm:$0xff]
    %v8966 = vld [vmem:[#allocation15 + $0x11f8] sm:$0xff]
    %v8967 = vld [vmem:[#allocation15 + $0x1200] sm:$0xff]
    %v8968 = vld [vmem:[#allocation15 + $0x1208] sm:$0xff]
    %v8969 = vld [vmem:[#allocation15 + $0x1210] sm:$0xff]
    %v8970 = vld [vmem:[#allocation15 + $0x1218] sm:$0xff]
    %v8971 = vld [vmem:[#allocation15 + $0x1220] sm:$0xff]
    %v8972 = vld [vmem:[#allocation15 + $0x1228] sm:$0xff]
    %v8973 = vld [vmem:[#allocation15 + $0x1230] sm:$0xff]
    %v8974 = vld [vmem:[#allocation15 + $0x1238] sm:$0xff]
    %v8975 = vld [vmem:[#allocation15 + $0x1240] sm:$0xff]
    %v8976 = vld [vmem:[#allocation15 + $0x1248] sm:$0xff]
    %v8977 = vld [vmem:[#allocation15 + $0x1250] sm:$0xff]
    %v8978 = vld [vmem:[#allocation15 + $0x1258] sm:$0xff]
    %v8979 = vld [vmem:[#allocation15 + $0x1260] sm:$0xff]
    %v8980 = vld [vmem:[#allocation15 + $0x1268] sm:$0xff]
    %v8981 = vld [vmem:[#allocation15 + $0x1270] sm:$0xff]
    %v8982 = vld [vmem:[#allocation15 + $0x1278] sm:$0xff]
    %v8983 = vld [vmem:[#allocation15 + $0x1280] sm:$0xff]
    %v8984 = vld [vmem:[#allocation15 + $0x1288] sm:$0xff]
    %v8985 = vld [vmem:[#allocation15 + $0x1290] sm:$0xff]
    %v8986 = vld [vmem:[#allocation15 + $0x1298] sm:$0xff]
    %v8987 = vld [vmem:[#allocation15 + $0x12a0] sm:$0xff]
    %v8988 = vld [vmem:[#allocation15 + $0x12a8] sm:$0xff]
    %v8989 = vld [vmem:[#allocation15 + $0x12b0] sm:$0xff]
    %v8990 = vld [vmem:[#allocation15 + $0x12b8] sm:$0xff]
    %v8991 = vld [vmem:[#allocation15 + $0x12c0] sm:$0xff]
    %v8992 = vld [vmem:[#allocation15 + $0x12c8] sm:$0xff]
    %v8993 = vld [vmem:[#allocation15 + $0x12d0] sm:$0xff]
    %v8994 = vld [vmem:[#allocation15 + $0x12d8] sm:$0xff]
    %v8995 = vld [vmem:[#allocation15 + $0x12e0] sm:$0xff]
    %v8996 = vld [vmem:[#allocation15 + $0x12e8] sm:$0xff]
    %v8997 = vld [vmem:[#allocation15 + $0x12f0] sm:$0xff]
    %v8998 = vld [vmem:[#allocation15 + $0x12f8] sm:$0xff]
    %v8999 = vld [vmem:[#allocation15 + $0x1300] sm:$0xff]
    %v9000 = vld [vmem:[#allocation15 + $0x1308] sm:$0xff]
    %v9001 = vld [vmem:[#allocation15 + $0x1310] sm:$0xff]
    %v9002 = vld [vmem:[#allocation15 + $0x1318] sm:$0xff]
    %v9003 = vld [vmem:[#allocation15 + $0x1320] sm:$0xff]
    %v9004 = vld [vmem:[#allocation15 + $0x1328] sm:$0xff]
    %v9005 = vld [vmem:[#allocation15 + $0x1330] sm:$0xff]
    %v9006 = vld [vmem:[#allocation15 + $0x1338] sm:$0xff]
    %v9007 = vld [vmem:[#allocation15 + $0x1340] sm:$0xff]
    %v9008 = vld [vmem:[#allocation15 + $0x1348] sm:$0xff]
    %v9009 = vld [vmem:[#allocation15 + $0x1350] sm:$0xff]
    %v9010 = vld [vmem:[#allocation15 + $0x1358] sm:$0xff]
    %v9011 = vld [vmem:[#allocation15 + $0x1360] sm:$0xff]
    %v9012 = vld [vmem:[#allocation15 + $0x1368] sm:$0xff]
    %v9013 = vld [vmem:[#allocation15 + $0x1370] sm:$0xff]
    %v9014 = vld [vmem:[#allocation15 + $0x1378] sm:$0xff]
    %v9015 = vld [vmem:[#allocation15 + $0x1380] sm:$0xff]
    %v9016 = vld [vmem:[#allocation15 + $0x1388] sm:$0xff]
    %v9017 = vld [vmem:[#allocation15 + $0x1390] sm:$0xff]
    %v9018 = vld [vmem:[#allocation15 + $0x1398] sm:$0xff]
    %v9019 = vld [vmem:[#allocation15 + $0x13a0] sm:$0xff]
    %v9020 = vld [vmem:[#allocation15 + $0x13a8] sm:$0xff]
    %v9021 = vld [vmem:[#allocation15 + $0x13b0] sm:$0xff]
    %v9022 = vld [vmem:[#allocation15 + $0x13b8] sm:$0xff]
    %v9023 = vld [vmem:[#allocation15 + $0x13c0] sm:$0xff]
    %v9024 = vld [vmem:[#allocation15 + $0x13c8] sm:$0xff]
    %v9025 = vld [vmem:[#allocation15 + $0x13d0] sm:$0xff]
    %v9026 = vld [vmem:[#allocation15 + $0x13d8] sm:$0xff]
    %v9027 = vld [vmem:[#allocation15 + $0x13e0] sm:$0xff]
    %v9028 = vld [vmem:[#allocation15 + $0x13e8] sm:$0xff]
    %v9029 = vld [vmem:[#allocation15 + $0x13f0] sm:$0xff]
    %v9030 = vld [vmem:[#allocation15 + $0x13f8] sm:$0xff]
    %v9031 = vld [vmem:[#allocation15 + $0x1400] sm:$0xff]
    %v9032 = vld [vmem:[#allocation15 + $0x1408] sm:$0xff]
    %v9033 = vld [vmem:[#allocation15 + $0x1410] sm:$0xff]
    %v9034 = vld [vmem:[#allocation15 + $0x1418] sm:$0xff]
    %v9035 = vld [vmem:[#allocation15 + $0x1420] sm:$0xff]
    %v9036 = vld [vmem:[#allocation15 + $0x1428] sm:$0xff]
    %v9037 = vld [vmem:[#allocation15 + $0x1430] sm:$0xff]
    %v9038 = vld [vmem:[#allocation15 + $0x1438] sm:$0xff]
    %v9039 = vld [vmem:[#allocation15 + $0x1440] sm:$0xff]
    %v9040 = vld [vmem:[#allocation15 + $0x1448] sm:$0xff]
    %v9041 = vld [vmem:[#allocation15 + $0x1450] sm:$0xff]
    %v9042 = vld [vmem:[#allocation15 + $0x1458] sm:$0xff]
    %v9043 = vld [vmem:[#allocation15 + $0x1460] sm:$0xff]
    %v9044 = vld [vmem:[#allocation15 + $0x1468] sm:$0xff]
    %v9045 = vld [vmem:[#allocation15 + $0x1470] sm:$0xff]
    %v9046 = vld [vmem:[#allocation15 + $0x1478] sm:$0xff]
    %v9047 = vld [vmem:[#allocation15 + $0x1480] sm:$0xff]
    %v9048 = vld [vmem:[#allocation15 + $0x1488] sm:$0xff]
    %v9049 = vld [vmem:[#allocation15 + $0x1490] sm:$0xff]
    %v9050 = vld [vmem:[#allocation15 + $0x1498] sm:$0xff]
    %v9051 = vld [vmem:[#allocation15 + $0x14a0] sm:$0xff]
    %v9052 = vld [vmem:[#allocation15 + $0x14a8] sm:$0xff]
    %v9053 = vld [vmem:[#allocation15 + $0x14b0] sm:$0xff]
    %v9054 = vld [vmem:[#allocation15 + $0x14b8] sm:$0xff]
    %v9055 = vld [vmem:[#allocation15 + $0x14c0] sm:$0xff]
    %v9056 = vld [vmem:[#allocation15 + $0x14c8] sm:$0xff]
    %v9057 = vld [vmem:[#allocation15 + $0x14d0] sm:$0xff]
    %v9058 = vld [vmem:[#allocation15 + $0x14d8] sm:$0xff]
    %v9059 = vld [vmem:[#allocation15 + $0x14e0] sm:$0xff]
    %v9060 = vld [vmem:[#allocation15 + $0x14e8] sm:$0xff]
    %v9061 = vld [vmem:[#allocation15 + $0x14f0] sm:$0xff]
    %v9062 = vld [vmem:[#allocation15 + $0x14f8] sm:$0xff]
    %v9063 = vld [vmem:[#allocation15 + $0x1500] sm:$0xff]
    %v9064 = vld [vmem:[#allocation15 + $0x1508] sm:$0xff]
    %v9065 = vld [vmem:[#allocation15 + $0x1510] sm:$0xff]
    %v9066 = vld [vmem:[#allocation15 + $0x1518] sm:$0xff]
    %v9067 = vld [vmem:[#allocation15 + $0x1520] sm:$0xff]
    %v9068 = vld [vmem:[#allocation15 + $0x1528] sm:$0xff]
    %v9069 = vld [vmem:[#allocation15 + $0x1530] sm:$0xff]
    %v9070 = vld [vmem:[#allocation15 + $0x1538] sm:$0xff]
    %v9071 = vld [vmem:[#allocation15 + $0x1540] sm:$0xff]
    %v9072 = vld [vmem:[#allocation15 + $0x1548] sm:$0xff]
    %v9073 = vld [vmem:[#allocation15 + $0x1550] sm:$0xff]
    %v9074 = vld [vmem:[#allocation15 + $0x1558] sm:$0xff]
    %v9075 = vld [vmem:[#allocation15 + $0x1560] sm:$0xff]
    %v9076 = vld [vmem:[#allocation15 + $0x1568] sm:$0xff]
    %v9077 = vld [vmem:[#allocation15 + $0x1570] sm:$0xff]
    %v9078 = vld [vmem:[#allocation15 + $0x1578] sm:$0xff]
    %v9079 = vld [vmem:[#allocation15 + $0x1580] sm:$0xff]
    %v9080 = vld [vmem:[#allocation15 + $0x1588] sm:$0xff]
    %v9081 = vld [vmem:[#allocation15 + $0x1590] sm:$0xff]
    %v9082 = vld [vmem:[#allocation15 + $0x1598] sm:$0xff]
    %v9083 = vld [vmem:[#allocation15 + $0x15a0] sm:$0xff]
    %v9084 = vld [vmem:[#allocation15 + $0x15a8] sm:$0xff]
    %v9085 = vld [vmem:[#allocation15 + $0x15b0] sm:$0xff]
    %v9086 = vld [vmem:[#allocation15 + $0x15b8] sm:$0xff]
    %v9087 = vld [vmem:[#allocation15 + $0x15c0] sm:$0xff]
    %v9088 = vld [vmem:[#allocation15 + $0x15c8] sm:$0xff]
    %v9089 = vld [vmem:[#allocation15 + $0x15d0] sm:$0xff]
    %v9090 = vld [vmem:[#allocation15 + $0x15d8] sm:$0xff]
    %v9091 = vld [vmem:[#allocation15 + $0x15e0] sm:$0xff]
    %v9092 = vld [vmem:[#allocation15 + $0x15e8] sm:$0xff]
    %v9093 = vld [vmem:[#allocation15 + $0x15f0] sm:$0xff]
    %v9094 = vld [vmem:[#allocation15 + $0x15f8] sm:$0xff]
    %v9095 = vld [vmem:[#allocation15 + $0x1600] sm:$0xff]
    %v9096 = vld [vmem:[#allocation15 + $0x1608] sm:$0xff]
    %v9097 = vld [vmem:[#allocation15 + $0x1610] sm:$0xff]
    %v9098 = vld [vmem:[#allocation15 + $0x1618] sm:$0xff]
    %v9099 = vld [vmem:[#allocation15 + $0x1620] sm:$0xff]
    %v9100 = vld [vmem:[#allocation15 + $0x1628] sm:$0xff]
    %v9101 = vld [vmem:[#allocation15 + $0x1630] sm:$0xff]
    %v9102 = vld [vmem:[#allocation15 + $0x1638] sm:$0xff]
    %v9103 = vld [vmem:[#allocation15 + $0x1640] sm:$0xff]
    %v9104 = vld [vmem:[#allocation15 + $0x1648] sm:$0xff]
    %v9105 = vld [vmem:[#allocation15 + $0x1650] sm:$0xff]
    %v9106 = vld [vmem:[#allocation15 + $0x1658] sm:$0xff]
    %v9107 = vld [vmem:[#allocation15 + $0x1660] sm:$0xff]
    %v9108 = vld [vmem:[#allocation15 + $0x1668] sm:$0xff]
    %v9109 = vld [vmem:[#allocation15 + $0x1670] sm:$0xff]
    %v9110 = vld [vmem:[#allocation15 + $0x1678] sm:$0xff]
    %v9111 = vld [vmem:[#allocation15 + $0x1680] sm:$0xff]
    %v9112 = vld [vmem:[#allocation15 + $0x1688] sm:$0xff]
    %v9113 = vld [vmem:[#allocation15 + $0x1690] sm:$0xff]
    %v9114 = vld [vmem:[#allocation15 + $0x1698] sm:$0xff]
    %v9115 = vld [vmem:[#allocation15 + $0x16a0] sm:$0xff]
    %v9116 = vld [vmem:[#allocation15 + $0x16a8] sm:$0xff]
    %v9117 = vld [vmem:[#allocation15 + $0x16b0] sm:$0xff]
    %v9118 = vld [vmem:[#allocation15 + $0x16b8] sm:$0xff]
    %v9119 = vld [vmem:[#allocation15 + $0x16c0] sm:$0xff]
    %v9120 = vld [vmem:[#allocation15 + $0x16c8] sm:$0xff]
    %v9121 = vld [vmem:[#allocation15 + $0x16d0] sm:$0xff]
    %v9122 = vld [vmem:[#allocation15 + $0x16d8] sm:$0xff]
    %v9123 = vld [vmem:[#allocation15 + $0x16e0] sm:$0xff]
    %v9124 = vld [vmem:[#allocation15 + $0x16e8] sm:$0xff]
    %v9125 = vld [vmem:[#allocation15 + $0x16f0] sm:$0xff]
    %v9126 = vld [vmem:[#allocation15 + $0x16f8] sm:$0xff]
    %v9127 = vld [vmem:[#allocation15 + $0x1700] sm:$0xff]
    %v9128 = vld [vmem:[#allocation15 + $0x1708] sm:$0xff]
    %v9129 = vld [vmem:[#allocation15 + $0x1710] sm:$0xff]
    %v9130 = vld [vmem:[#allocation15 + $0x1718] sm:$0xff]
    %v9131 = vld [vmem:[#allocation15 + $0x1720] sm:$0xff]
    %v9132 = vld [vmem:[#allocation15 + $0x1728] sm:$0xff]
    %v9133 = vld [vmem:[#allocation15 + $0x1730] sm:$0xff]
    %v9134 = vld [vmem:[#allocation15 + $0x1738] sm:$0xff]
    %v9135 = vld [vmem:[#allocation15 + $0x1740] sm:$0xff]
    %v9136 = vld [vmem:[#allocation15 + $0x1748] sm:$0xff]
    %v9137 = vld [vmem:[#allocation15 + $0x1750] sm:$0xff]
    %v9138 = vld [vmem:[#allocation15 + $0x1758] sm:$0xff]
    %v9139 = vld [vmem:[#allocation15 + $0x1760] sm:$0xff]
    %v9140 = vld [vmem:[#allocation15 + $0x1768] sm:$0xff]
    %v9141 = vld [vmem:[#allocation15 + $0x1770] sm:$0xff]
    %v9142 = vld [vmem:[#allocation15 + $0x1778] sm:$0xff]
    %v9143 = vld [vmem:[#allocation15 + $0x1780] sm:$0xff]
    %v9144 = vld [vmem:[#allocation15 + $0x1788] sm:$0xff]
    %v9145 = vld [vmem:[#allocation15 + $0x1790] sm:$0xff]
    %v9146 = vld [vmem:[#allocation15 + $0x1798] sm:$0xff]
    %v9147 = vld [vmem:[#allocation15 + $0x17a0] sm:$0xff]
    %v9148 = vld [vmem:[#allocation15 + $0x17a8] sm:$0xff]
    %v9149 = vld [vmem:[#allocation15 + $0x17b0] sm:$0xff]
    %v9150 = vld [vmem:[#allocation15 + $0x17b8] sm:$0xff]
    %v9151 = vld [vmem:[#allocation15 + $0x17c0] sm:$0xff]
    %v9152 = vld [vmem:[#allocation15 + $0x17c8] sm:$0xff]
    %v9153 = vld [vmem:[#allocation15 + $0x17d0] sm:$0xff]
    %v9154 = vld [vmem:[#allocation15 + $0x17d8] sm:$0xff]
    %v9155 = vld [vmem:[#allocation15 + $0x17e0] sm:$0xff]
    %v9156 = vld [vmem:[#allocation15 + $0x17e8] sm:$0xff]
    %v9157 = vld [vmem:[#allocation15 + $0x17f0] sm:$0xff]
    %v9158 = vld [vmem:[#allocation15 + $0x17f8] sm:$0xff]
    %v9159 = vld [vmem:[#allocation15 + $0x1800] sm:$0xff]
    %v9160 = vld [vmem:[#allocation15 + $0x1808] sm:$0xff]
    %v9161 = vld [vmem:[#allocation15 + $0x1810] sm:$0xff]
    %v9162 = vld [vmem:[#allocation15 + $0x1818] sm:$0xff]
    %v9163 = vld [vmem:[#allocation15 + $0x1820] sm:$0xff]
    %v9164 = vld [vmem:[#allocation15 + $0x1828] sm:$0xff]
    %v9165 = vld [vmem:[#allocation15 + $0x1830] sm:$0xff]
    %v9166 = vld [vmem:[#allocation15 + $0x1838] sm:$0xff]
    %v9167 = vld [vmem:[#allocation15 + $0x1840] sm:$0xff]
    %v9168 = vld [vmem:[#allocation15 + $0x1848] sm:$0xff]
    %v9169 = vld [vmem:[#allocation15 + $0x1850] sm:$0xff]
    %v9170 = vld [vmem:[#allocation15 + $0x1858] sm:$0xff]
    %v9171 = vld [vmem:[#allocation15 + $0x1860] sm:$0xff]
    %v9172 = vld [vmem:[#allocation15 + $0x1868] sm:$0xff]
    %v9173 = vld [vmem:[#allocation15 + $0x1870] sm:$0xff]
    %v9174 = vld [vmem:[#allocation15 + $0x1878] sm:$0xff]
    %v9175 = vld [vmem:[#allocation15 + $0x1880] sm:$0xff]
    %v9176 = vld [vmem:[#allocation15 + $0x1888] sm:$0xff]
    %v9177 = vld [vmem:[#allocation15 + $0x1890] sm:$0xff]
    %v9178 = vld [vmem:[#allocation15 + $0x1898] sm:$0xff]
    %v9179 = vld [vmem:[#allocation15 + $0x18a0] sm:$0xff]
    %v9180 = vld [vmem:[#allocation15 + $0x18a8] sm:$0xff]
    %v9181 = vld [vmem:[#allocation15 + $0x18b0] sm:$0xff]
    %v9182 = vld [vmem:[#allocation15 + $0x18b8] sm:$0xff]
    %v9183 = vld [vmem:[#allocation15 + $0x18c0] sm:$0xff]
    %v9184 = vld [vmem:[#allocation15 + $0x18c8] sm:$0xff]
    %v9185 = vld [vmem:[#allocation15 + $0x18d0] sm:$0xff]
    %v9186 = vld [vmem:[#allocation15 + $0x18d8] sm:$0xff]
    %v9187 = vld [vmem:[#allocation15 + $0x18e0] sm:$0xff]
    %v9188 = vld [vmem:[#allocation15 + $0x18e8] sm:$0xff]
    %v9189 = vld [vmem:[#allocation15 + $0x18f0] sm:$0xff]
    %v9190 = vld [vmem:[#allocation15 + $0x18f8] sm:$0xff]
    %v9191 = vld [vmem:[#allocation15 + $0x1900] sm:$0xff]
    %v9192 = vld [vmem:[#allocation15 + $0x1908] sm:$0xff]
    %v9193 = vld [vmem:[#allocation15 + $0x1910] sm:$0xff]
    %v9194 = vld [vmem:[#allocation15 + $0x1918] sm:$0xff]
    %v9195 = vld [vmem:[#allocation15 + $0x1920] sm:$0xff]
    %v9196 = vld [vmem:[#allocation15 + $0x1928] sm:$0xff]
    %v9197 = vld [vmem:[#allocation15 + $0x1930] sm:$0xff]
    %v9198 = vld [vmem:[#allocation15 + $0x1938] sm:$0xff]
    %v9199 = vld [vmem:[#allocation15 + $0x1940] sm:$0xff]
    %v9200 = vld [vmem:[#allocation15 + $0x1948] sm:$0xff]
    %v9201 = vld [vmem:[#allocation15 + $0x1950] sm:$0xff]
    %v9202 = vld [vmem:[#allocation15 + $0x1958] sm:$0xff]
    %v9203 = vld [vmem:[#allocation15 + $0x1960] sm:$0xff]
    %v9204 = vld [vmem:[#allocation15 + $0x1968] sm:$0xff]
    %v9205 = vld [vmem:[#allocation15 + $0x1970] sm:$0xff]
    %v9206 = vld [vmem:[#allocation15 + $0x1978] sm:$0xff]
    %v9207 = vld [vmem:[#allocation15 + $0x1980] sm:$0xff]
    %v9208 = vld [vmem:[#allocation15 + $0x1988] sm:$0xff]
    %v9209 = vld [vmem:[#allocation15 + $0x1990] sm:$0xff]
    %v9210 = vld [vmem:[#allocation15 + $0x1998] sm:$0xff]
    %v9211 = vld [vmem:[#allocation15 + $0x19a0] sm:$0xff]
    %v9212 = vld [vmem:[#allocation15 + $0x19a8] sm:$0xff]
    %v9213 = vld [vmem:[#allocation15 + $0x19b0] sm:$0xff]
    %v9214 = vld [vmem:[#allocation15 + $0x19b8] sm:$0xff]
    %v9215 = vld [vmem:[#allocation15 + $0x19c0] sm:$0xff]
    %v9216 = vld [vmem:[#allocation15 + $0x19c8] sm:$0xff]
    %v9217 = vld [vmem:[#allocation15 + $0x19d0] sm:$0xff]
    %v9218 = vld [vmem:[#allocation15 + $0x19d8] sm:$0xff]
    %v9219 = vld [vmem:[#allocation15 + $0x19e0] sm:$0xff]
    %v9220 = vld [vmem:[#allocation15 + $0x19e8] sm:$0xff]
    %v9221 = vld [vmem:[#allocation15 + $0x19f0] sm:$0xff]
    %v9222 = vld [vmem:[#allocation15 + $0x19f8] sm:$0xff]
    %v9223 = vld [vmem:[#allocation15 + $0x1a00] sm:$0xff]
    %v9224 = vld [vmem:[#allocation15 + $0x1a08] sm:$0xff]
    %v9225 = vld [vmem:[#allocation15 + $0x1a10] sm:$0xff]
    %v9226 = vld [vmem:[#allocation15 + $0x1a18] sm:$0xff]
    %v9227 = vld [vmem:[#allocation15 + $0x1a20] sm:$0xff]
    %v9228 = vld [vmem:[#allocation15 + $0x1a28] sm:$0xff]
    %v9229 = vld [vmem:[#allocation15 + $0x1a30] sm:$0xff]
    %v9230 = vld [vmem:[#allocation15 + $0x1a38] sm:$0xff]
    %v9231 = vld [vmem:[#allocation15 + $0x1a40] sm:$0xff]
    %v9232 = vld [vmem:[#allocation15 + $0x1a48] sm:$0xff]
    %v9233 = vld [vmem:[#allocation15 + $0x1a50] sm:$0xff]
    %v9234 = vld [vmem:[#allocation15 + $0x1a58] sm:$0xff]
    %v9235 = vld [vmem:[#allocation15 + $0x1a60] sm:$0xff]
    %v9236 = vld [vmem:[#allocation15 + $0x1a68] sm:$0xff]
    %v9237 = vld [vmem:[#allocation15 + $0x1a70] sm:$0xff]
    %v9238 = vld [vmem:[#allocation15 + $0x1a78] sm:$0xff]
    %v9239 = vld [vmem:[#allocation15 + $0x1a80] sm:$0xff]
    %v9240 = vld [vmem:[#allocation15 + $0x1a88] sm:$0xff]
    %v9241 = vld [vmem:[#allocation15 + $0x1a90] sm:$0xff]
    %v9242 = vld [vmem:[#allocation15 + $0x1a98] sm:$0xff]
    %v9243 = vld [vmem:[#allocation15 + $0x1aa0] sm:$0xff]
    %v9244 = vld [vmem:[#allocation15 + $0x1aa8] sm:$0xff]
    %v9245 = vld [vmem:[#allocation15 + $0x1ab0] sm:$0xff]
    %v9246 = vld [vmem:[#allocation15 + $0x1ab8] sm:$0xff]
    %v9247 = vld [vmem:[#allocation15 + $0x1ac0] sm:$0xff]
    %v9248 = vld [vmem:[#allocation15 + $0x1ac8] sm:$0xff]
    %v9249 = vld [vmem:[#allocation15 + $0x1ad0] sm:$0xff]
    %v9250 = vld [vmem:[#allocation15 + $0x1ad8] sm:$0xff]
    %v9251 = vld [vmem:[#allocation15 + $0x1ae0] sm:$0xff]
    %v9252 = vld [vmem:[#allocation15 + $0x1ae8] sm:$0xff]
    %v9253 = vld [vmem:[#allocation15 + $0x1af0] sm:$0xff]
    %v9254 = vld [vmem:[#allocation15 + $0x1af8] sm:$0xff]
    %v9255 = vld [vmem:[#allocation15 + $0x1b00] sm:$0xff]
    %v9256 = vld [vmem:[#allocation15 + $0x1b08] sm:$0xff]
    %v9257 = vld [vmem:[#allocation15 + $0x1b10] sm:$0xff]
    %v9258 = vld [vmem:[#allocation15 + $0x1b18] sm:$0xff]
    %v9259 = vld [vmem:[#allocation15 + $0x1b20] sm:$0xff]
    %v9260 = vld [vmem:[#allocation15 + $0x1b28] sm:$0xff]
    %v9261 = vld [vmem:[#allocation15 + $0x1b30] sm:$0xff]
    %v9262 = vld [vmem:[#allocation15 + $0x1b38] sm:$0xff]
    %v9263 = vld [vmem:[#allocation15 + $0x1b40] sm:$0xff]
    %v9264 = vld [vmem:[#allocation15 + $0x1b48] sm:$0xff]
    %v9265 = vld [vmem:[#allocation15 + $0x1b50] sm:$0xff]
    %v9266 = vld [vmem:[#allocation15 + $0x1b58] sm:$0xff]
    %v9267 = vld [vmem:[#allocation15 + $0x1b60] sm:$0xff]
    %v9268 = vld [vmem:[#allocation15 + $0x1b68] sm:$0xff]
    %v9269 = vld [vmem:[#allocation15 + $0x1b70] sm:$0xff]
    %v9270 = vld [vmem:[#allocation15 + $0x1b78] sm:$0xff]
    %v9271 = vld [vmem:[#allocation15 + $0x1b80] sm:$0xff]
    %v9272 = vld [vmem:[#allocation15 + $0x1b88] sm:$0xff]
    %v9273 = vld [vmem:[#allocation15 + $0x1b90] sm:$0xff]
    %v9274 = vld [vmem:[#allocation15 + $0x1b98] sm:$0xff]
    %v9275 = vld [vmem:[#allocation15 + $0x1ba0] sm:$0xff]
    %v9276 = vld [vmem:[#allocation15 + $0x1ba8] sm:$0xff]
    %v9277 = vld [vmem:[#allocation15 + $0x1bb0] sm:$0xff]
    %v9278 = vld [vmem:[#allocation15 + $0x1bb8] sm:$0xff]
    %v9279 = vld [vmem:[#allocation15 + $0x1bc0] sm:$0xff]
    %v9280 = vld [vmem:[#allocation15 + $0x1bc8] sm:$0xff]
    %v9281 = vld [vmem:[#allocation15 + $0x1bd0] sm:$0xff]
    %v9282 = vld [vmem:[#allocation15 + $0x1bd8] sm:$0xff]
    %v9283 = vld [vmem:[#allocation15 + $0x1be0] sm:$0xff]
    %v9284 = vld [vmem:[#allocation15 + $0x1be8] sm:$0xff]
    %v9285 = vld [vmem:[#allocation15 + $0x1bf0] sm:$0xff]
    %v9286 = vld [vmem:[#allocation15 + $0x1bf8] sm:$0xff]
    %v9287 = vld [vmem:[#allocation15 + $0x1c00] sm:$0xff]
    %v9288 = vld [vmem:[#allocation15 + $0x1c08] sm:$0xff]
    %v9289 = vld [vmem:[#allocation15 + $0x1c10] sm:$0xff]
    %v9290 = vld [vmem:[#allocation15 + $0x1c18] sm:$0xff]
    %v9291 = vld [vmem:[#allocation15 + $0x1c20] sm:$0xff]
    %v9292 = vld [vmem:[#allocation15 + $0x1c28] sm:$0xff]
    %v9293 = vld [vmem:[#allocation15 + $0x1c30] sm:$0xff]
    %v9294 = vld [vmem:[#allocation15 + $0x1c38] sm:$0xff]
    %v9295 = vld [vmem:[#allocation15 + $0x1c40] sm:$0xff]
    %v9296 = vld [vmem:[#allocation15 + $0x1c48] sm:$0xff]
    %v9297 = vld [vmem:[#allocation15 + $0x1c50] sm:$0xff]
    %v9298 = vld [vmem:[#allocation15 + $0x1c58] sm:$0xff]
    %v9299 = vld [vmem:[#allocation15 + $0x1c60] sm:$0xff]
    %v9300 = vld [vmem:[#allocation15 + $0x1c68] sm:$0xff]
    %v9301 = vld [vmem:[#allocation15 + $0x1c70] sm:$0xff]
    %v9302 = vld [vmem:[#allocation15 + $0x1c78] sm:$0xff]
    %v9303 = vld [vmem:[#allocation15 + $0x1c80] sm:$0xff]
    %v9304 = vld [vmem:[#allocation15 + $0x1c88] sm:$0xff]
    %v9305 = vld [vmem:[#allocation15 + $0x1c90] sm:$0xff]
    %v9306 = vld [vmem:[#allocation15 + $0x1c98] sm:$0xff]
    %v9307 = vld [vmem:[#allocation15 + $0x1ca0] sm:$0xff]
    %v9308 = vld [vmem:[#allocation15 + $0x1ca8] sm:$0xff]
    %v9309 = vld [vmem:[#allocation15 + $0x1cb0] sm:$0xff]
    %v9310 = vld [vmem:[#allocation15 + $0x1cb8] sm:$0xff]
    %v9311 = vld [vmem:[#allocation15 + $0x1cc0] sm:$0xff]
    %v9312 = vld [vmem:[#allocation15 + $0x1cc8] sm:$0xff]
    %v9313 = vld [vmem:[#allocation15 + $0x1cd0] sm:$0xff]
    %v9314 = vld [vmem:[#allocation15 + $0x1cd8] sm:$0xff]
    %v9315 = vld [vmem:[#allocation15 + $0x1ce0] sm:$0xff]
    %v9316 = vld [vmem:[#allocation15 + $0x1ce8] sm:$0xff]
    %v9317 = vld [vmem:[#allocation15 + $0x1cf0] sm:$0xff]
    %v9318 = vld [vmem:[#allocation15 + $0x1cf8] sm:$0xff]
    %v9319 = vld [vmem:[#allocation15 + $0x1d00] sm:$0xff]
    %v9320 = vld [vmem:[#allocation15 + $0x1d08] sm:$0xff]
    %v9321 = vld [vmem:[#allocation15 + $0x1d10] sm:$0xff]
    %v9322 = vld [vmem:[#allocation15 + $0x1d18] sm:$0xff]
    %v9323 = vld [vmem:[#allocation15 + $0x1d20] sm:$0xff]
    %v9324 = vld [vmem:[#allocation15 + $0x1d28] sm:$0xff]
    %v9325 = vld [vmem:[#allocation15 + $0x1d30] sm:$0xff]
    %v9326 = vld [vmem:[#allocation15 + $0x1d38] sm:$0xff]
    %v9327 = vld [vmem:[#allocation15 + $0x1d40] sm:$0xff]
    %v9328 = vld [vmem:[#allocation15 + $0x1d48] sm:$0xff]
    %v9329 = vld [vmem:[#allocation15 + $0x1d50] sm:$0xff]
    %v9330 = vld [vmem:[#allocation15 + $0x1d58] sm:$0xff]
    %v9331 = vld [vmem:[#allocation15 + $0x1d60] sm:$0xff]
    %v9332 = vld [vmem:[#allocation15 + $0x1d68] sm:$0xff]
    %v9333 = vld [vmem:[#allocation15 + $0x1d70] sm:$0xff]
    %v9334 = vld [vmem:[#allocation15 + $0x1d78] sm:$0xff]
    %v9335 = vld [vmem:[#allocation15 + $0x1d80] sm:$0xff]
    %v9336 = vld [vmem:[#allocation15 + $0x1d88] sm:$0xff]
    %v9337 = vld [vmem:[#allocation15 + $0x1d90] sm:$0xff]
    %v9338 = vld [vmem:[#allocation15 + $0x1d98] sm:$0xff]
    %v9339 = vld [vmem:[#allocation15 + $0x1da0] sm:$0xff]
    %v9340 = vld [vmem:[#allocation15 + $0x1da8] sm:$0xff]
    %v9341 = vld [vmem:[#allocation15 + $0x1db0] sm:$0xff]
    %v9342 = vld [vmem:[#allocation15 + $0x1db8] sm:$0xff]
    %v9343 = vld [vmem:[#allocation15 + $0x1dc0] sm:$0xff]
    %v9344 = vld [vmem:[#allocation15 + $0x1dc8] sm:$0xff]
    %v9345 = vld [vmem:[#allocation15 + $0x1dd0] sm:$0xff]
    %v9346 = vld [vmem:[#allocation15 + $0x1dd8] sm:$0xff]
    %v9347 = vld [vmem:[#allocation15 + $0x1de0] sm:$0xff]
    %v9348 = vld [vmem:[#allocation15 + $0x1de8] sm:$0xff]
    %v9349 = vld [vmem:[#allocation15 + $0x1df0] sm:$0xff]
    %v9350 = vld [vmem:[#allocation15 + $0x1df8] sm:$0xff]
    %v9351 = vld [vmem:[#allocation15 + $0x1e00] sm:$0xff]
    %v9352 = vld [vmem:[#allocation15 + $0x1e08] sm:$0xff]
    %v9353 = vld [vmem:[#allocation15 + $0x1e10] sm:$0xff]
    %v9354 = vld [vmem:[#allocation15 + $0x1e18] sm:$0xff]
    %v9355 = vld [vmem:[#allocation15 + $0x1e20] sm:$0xff]
    %v9356 = vld [vmem:[#allocation15 + $0x1e28] sm:$0xff]
    %v9357 = vld [vmem:[#allocation15 + $0x1e30] sm:$0xff]
    %v9358 = vld [vmem:[#allocation15 + $0x1e38] sm:$0xff]
    %v9359 = vld [vmem:[#allocation15 + $0x1e40] sm:$0xff]
    %v9360 = vld [vmem:[#allocation15 + $0x1e48] sm:$0xff]
    %v9361 = vld [vmem:[#allocation15 + $0x1e50] sm:$0xff]
    %v9362 = vld [vmem:[#allocation15 + $0x1e58] sm:$0xff]
    %v9363 = vld [vmem:[#allocation15 + $0x1e60] sm:$0xff]
    %v9364 = vld [vmem:[#allocation15 + $0x1e68] sm:$0xff]
    %v9365 = vld [vmem:[#allocation15 + $0x1e70] sm:$0xff]
    %v9366 = vld [vmem:[#allocation15 + $0x1e78] sm:$0xff]
    %v9367 = vld [vmem:[#allocation15 + $0x1e80] sm:$0xff]
    %v9368 = vld [vmem:[#allocation15 + $0x1e88] sm:$0xff]
    %v9369 = vld [vmem:[#allocation15 + $0x1e90] sm:$0xff]
    %v9370 = vld [vmem:[#allocation15 + $0x1e98] sm:$0xff]
    %v9371 = vld [vmem:[#allocation15 + $0x1ea0] sm:$0xff]
    %v9372 = vld [vmem:[#allocation15 + $0x1ea8] sm:$0xff]
    %v9373 = vld [vmem:[#allocation15 + $0x1eb0] sm:$0xff]
    %v9374 = vld [vmem:[#allocation15 + $0x1eb8] sm:$0xff]
    %v9375 = vld [vmem:[#allocation15 + $0x1ec0] sm:$0xff]
    %v9376 = vld [vmem:[#allocation15 + $0x1ec8] sm:$0xff]
    %v9377 = vld [vmem:[#allocation15 + $0x1ed0] sm:$0xff]
    %v9378 = vld [vmem:[#allocation15 + $0x1ed8] sm:$0xff]
    %v9379 = vld [vmem:[#allocation15 + $0x1ee0] sm:$0xff]
    %v9380 = vld [vmem:[#allocation15 + $0x1ee8] sm:$0xff]
    %v9381 = vld [vmem:[#allocation15 + $0x1ef0] sm:$0xff]
    %v9382 = vld [vmem:[#allocation15 + $0x1ef8] sm:$0xff]
    %v9383 = vld [vmem:[#allocation15 + $0x1f00] sm:$0xff]
    %v9384 = vld [vmem:[#allocation15 + $0x1f08] sm:$0xff]
    %v9385 = vld [vmem:[#allocation15 + $0x1f10] sm:$0xff]
    %v9386 = vld [vmem:[#allocation15 + $0x1f18] sm:$0xff]
    %v9387 = vld [vmem:[#allocation15 + $0x1f20] sm:$0xff]
    %v9388 = vld [vmem:[#allocation15 + $0x1f28] sm:$0xff]
    %v9389 = vld [vmem:[#allocation15 + $0x1f30] sm:$0xff]
    %v9390 = vld [vmem:[#allocation15 + $0x1f38] sm:$0xff]
    %v9391 = vld [vmem:[#allocation15 + $0x1f40] sm:$0xff]
    %v9392 = vld [vmem:[#allocation15 + $0x1f48] sm:$0xff]
    %v9393 = vld [vmem:[#allocation15 + $0x1f50] sm:$0xff]
    %v9394 = vld [vmem:[#allocation15 + $0x1f58] sm:$0xff]
    %v9395 = vld [vmem:[#allocation15 + $0x1f60] sm:$0xff]
    %v9396 = vld [vmem:[#allocation15 + $0x1f68] sm:$0xff]
    %v9397 = vld [vmem:[#allocation15 + $0x1f70] sm:$0xff]
    %v9398 = vld [vmem:[#allocation15 + $0x1f78] sm:$0xff]
    %v9399 = vld [vmem:[#allocation15 + $0x1f80] sm:$0xff]
    %v9400 = vld [vmem:[#allocation15 + $0x1f88] sm:$0xff]
    %v9401 = vld [vmem:[#allocation15 + $0x1f90] sm:$0xff]
    %v9402 = vld [vmem:[#allocation15 + $0x1f98] sm:$0xff]
    %v9403 = vld [vmem:[#allocation15 + $0x1fa0] sm:$0xff]
    %v9404 = vld [vmem:[#allocation15 + $0x1fa8] sm:$0xff]
    %v9405 = vld [vmem:[#allocation15 + $0x1fb0] sm:$0xff]
    %v9406 = vld [vmem:[#allocation15 + $0x1fb8] sm:$0xff]
    %v9407 = vld [vmem:[#allocation15 + $0x1fc0] sm:$0xff]
    %v9408 = vld [vmem:[#allocation15 + $0x1fc8] sm:$0xff]
    %v9409 = vld [vmem:[#allocation15 + $0x1fd0] sm:$0xff]
    %v9410 = vld [vmem:[#allocation15 + $0x1fd8] sm:$0xff]
    %v9411 = vld [vmem:[#allocation15 + $0x1fe0] sm:$0xff]
    %v9412 = vld [vmem:[#allocation15 + $0x1fe8] sm:$0xff]
    %v9413 = vld [vmem:[#allocation15 + $0x1ff0] sm:$0xff]
    %v9414 = vld [vmem:[#allocation15 + $0x1ff8] sm:$0xff]
    %v9415 = vld [vmem:[#allocation15 + $0x2000] sm:$0xff]
    %v9416 = vld [vmem:[#allocation15 + $0x2008] sm:$0xff]
    %v9417 = vld [vmem:[#allocation15 + $0x2010] sm:$0xff]
    %v9418 = vld [vmem:[#allocation15 + $0x2018] sm:$0xff]
    %v9419 = vld [vmem:[#allocation15 + $0x2020] sm:$0xff]
    %v9420 = vld [vmem:[#allocation15 + $0x2028] sm:$0xff]
    %v9421 = vld [vmem:[#allocation15 + $0x2030] sm:$0xff]
    %v9422 = vld [vmem:[#allocation15 + $0x2038] sm:$0xff]
    %v9423 = vld [vmem:[#allocation15 + $0x2040] sm:$0xff]
    %v9424 = vld [vmem:[#allocation15 + $0x2048] sm:$0xff]
    %v9425 = vld [vmem:[#allocation15 + $0x2050] sm:$0xff]
    %v9426 = vld [vmem:[#allocation15 + $0x2058] sm:$0xff]
    %v9427 = vld [vmem:[#allocation15 + $0x2060] sm:$0xff]
    %v9428 = vld [vmem:[#allocation15 + $0x2068] sm:$0xff]
    %v9429 = vld [vmem:[#allocation15 + $0x2070] sm:$0xff]
    %v9430 = vld [vmem:[#allocation15 + $0x2078] sm:$0xff]
    %v9431 = vld [vmem:[#allocation15 + $0x2080] sm:$0xff]
    %v9432 = vld [vmem:[#allocation15 + $0x2088] sm:$0xff]
    %v9433 = vld [vmem:[#allocation15 + $0x2090] sm:$0xff]
    %v9434 = vld [vmem:[#allocation15 + $0x2098] sm:$0xff]
    %v9435 = vld [vmem:[#allocation15 + $0x20a0] sm:$0xff]
    %v9436 = vld [vmem:[#allocation15 + $0x20a8] sm:$0xff]
    %v9437 = vld [vmem:[#allocation15 + $0x20b0] sm:$0xff]
    %v9438 = vld [vmem:[#allocation15 + $0x20b8] sm:$0xff]
    %v9439 = vld [vmem:[#allocation15 + $0x20c0] sm:$0xff]
    %v9440 = vld [vmem:[#allocation15 + $0x20c8] sm:$0xff]
    %v9441 = vld [vmem:[#allocation15 + $0x20d0] sm:$0xff]
    %v9442 = vld [vmem:[#allocation15 + $0x20d8] sm:$0xff]
    %v9443 = vld [vmem:[#allocation15 + $0x20e0] sm:$0xff]
    %v9444 = vld [vmem:[#allocation15 + $0x20e8] sm:$0xff]
    %v9445 = vld [vmem:[#allocation15 + $0x20f0] sm:$0xff]
    %v9446 = vld [vmem:[#allocation15 + $0x20f8] sm:$0xff]
    %v9447 = vld [vmem:[#allocation15 + $0x2100] sm:$0xff]
    %v9448 = vld [vmem:[#allocation15 + $0x2108] sm:$0xff]
    %v9449 = vld [vmem:[#allocation15 + $0x2110] sm:$0xff]
    %v9450 = vld [vmem:[#allocation15 + $0x2118] sm:$0xff]
    %v9451 = vld [vmem:[#allocation15 + $0x2120] sm:$0xff]
    %v9452 = vld [vmem:[#allocation15 + $0x2128] sm:$0xff]
    %v9453 = vld [vmem:[#allocation15 + $0x2130] sm:$0xff]
    %v9454 = vld [vmem:[#allocation15 + $0x2138] sm:$0xff]
    %v9455 = vld [vmem:[#allocation15 + $0x2140] sm:$0xff]
    %v9456 = vld [vmem:[#allocation15 + $0x2148] sm:$0xff]
    %v9457 = vld [vmem:[#allocation15 + $0x2150] sm:$0xff]
    %v9458 = vld [vmem:[#allocation15 + $0x2158] sm:$0xff]
    %v9459 = vld [vmem:[#allocation15 + $0x2160] sm:$0xff]
    %v9460 = vld [vmem:[#allocation15 + $0x2168] sm:$0xff]
    %v9461 = vld [vmem:[#allocation15 + $0x2170] sm:$0xff]
    %v9462 = vld [vmem:[#allocation15 + $0x2178] sm:$0xff]
    %v9463 = vld [vmem:[#allocation15 + $0x2180] sm:$0xff]
    %v9464 = vld [vmem:[#allocation15 + $0x2188] sm:$0xff]
    %v9465 = vld [vmem:[#allocation15 + $0x2190] sm:$0xff]
    %v9466 = vld [vmem:[#allocation15 + $0x2198] sm:$0xff]
    %v9467 = vld [vmem:[#allocation15 + $0x21a0] sm:$0xff]
    %v9468 = vld [vmem:[#allocation15 + $0x21a8] sm:$0xff]
    %v9469 = vld [vmem:[#allocation15 + $0x21b0] sm:$0xff]
    %v9470 = vld [vmem:[#allocation15 + $0x21b8] sm:$0xff]
    %v9471 = vld [vmem:[#allocation15 + $0x21c0] sm:$0xff]
    %v9472 = vld [vmem:[#allocation15 + $0x21c8] sm:$0xff]
    %v9473 = vld [vmem:[#allocation15 + $0x21d0] sm:$0xff]
    %v9474 = vld [vmem:[#allocation15 + $0x21d8] sm:$0xff]
    %v9475 = vld [vmem:[#allocation15 + $0x21e0] sm:$0xff]
    %v9476 = vld [vmem:[#allocation15 + $0x21e8] sm:$0xff]
    %v9477 = vld [vmem:[#allocation15 + $0x21f0] sm:$0xff]
    %v9478 = vld [vmem:[#allocation15 + $0x21f8] sm:$0xff]
    %v9479 = vld [vmem:[#allocation15 + $0x2200] sm:$0xff]
    %v9480 = vld [vmem:[#allocation15 + $0x2208] sm:$0xff]
    %v9481 = vld [vmem:[#allocation15 + $0x2210] sm:$0xff]
    %v9482 = vld [vmem:[#allocation15 + $0x2218] sm:$0xff]
    %v9483 = vld [vmem:[#allocation15 + $0x2220] sm:$0xff]
    %v9484 = vld [vmem:[#allocation15 + $0x2228] sm:$0xff]
    %v9485 = vld [vmem:[#allocation15 + $0x2230] sm:$0xff]
    %v9486 = vld [vmem:[#allocation15 + $0x2238] sm:$0xff]
    %v9487 = vld [vmem:[#allocation15 + $0x2240] sm:$0xff]
    %v9488 = vld [vmem:[#allocation15 + $0x2248] sm:$0xff]
    %v9489 = vld [vmem:[#allocation15 + $0x2250] sm:$0xff]
    %v9490 = vld [vmem:[#allocation15 + $0x2258] sm:$0xff]
    %v9491 = vld [vmem:[#allocation15 + $0x2260] sm:$0xff]
    %v9492 = vld [vmem:[#allocation15 + $0x2268] sm:$0xff]
    %v9493 = vld [vmem:[#allocation15 + $0x2270] sm:$0xff]
    %v9494 = vld [vmem:[#allocation15 + $0x2278] sm:$0xff]
    %v9495 = vld [vmem:[#allocation15 + $0x2280] sm:$0xff]
    %v9496 = vld [vmem:[#allocation15 + $0x2288] sm:$0xff]
    %v9497 = vld [vmem:[#allocation15 + $0x2290] sm:$0xff]
    %v9498 = vld [vmem:[#allocation15 + $0x2298] sm:$0xff]
    %v9499 = vld [vmem:[#allocation15 + $0x22a0] sm:$0xff]
    %v9500 = vld [vmem:[#allocation15 + $0x22a8] sm:$0xff]
    %v9501 = vld [vmem:[#allocation15 + $0x22b0] sm:$0xff]
    %v9502 = vld [vmem:[#allocation15 + $0x22b8] sm:$0xff]
    %v9503 = vld [vmem:[#allocation15 + $0x22c0] sm:$0xff]
    %v9504 = vld [vmem:[#allocation15 + $0x22c8] sm:$0xff]
    %v9505 = vld [vmem:[#allocation15 + $0x22d0] sm:$0xff]
    %v9506 = vld [vmem:[#allocation15 + $0x22d8] sm:$0xff]
    %v9507 = vld [vmem:[#allocation15 + $0x22e0] sm:$0xff]
    %v9508 = vld [vmem:[#allocation15 + $0x22e8] sm:$0xff]
    %v9509 = vld [vmem:[#allocation15 + $0x22f0] sm:$0xff]
    %v9510 = vld [vmem:[#allocation15 + $0x22f8] sm:$0xff]
    %v9511 = vld [vmem:[#allocation15 + $0x2300] sm:$0xff]
    %v9512 = vld [vmem:[#allocation15 + $0x2308] sm:$0xff]
    %v9513 = vld [vmem:[#allocation15 + $0x2310] sm:$0xff]
    %v9514 = vld [vmem:[#allocation15 + $0x2318] sm:$0xff]
    %v9515 = vld [vmem:[#allocation15 + $0x2320] sm:$0xff]
    %v9516 = vld [vmem:[#allocation15 + $0x2328] sm:$0xff]
    %v9517 = vld [vmem:[#allocation15 + $0x2330] sm:$0xff]
    %v9518 = vld [vmem:[#allocation15 + $0x2338] sm:$0xff]
    %v9519 = vld [vmem:[#allocation15 + $0x2340] sm:$0xff]
    %v9520 = vld [vmem:[#allocation15 + $0x2348] sm:$0xff]
    %v9521 = vld [vmem:[#allocation15 + $0x2350] sm:$0xff]
    %v9522 = vld [vmem:[#allocation15 + $0x2358] sm:$0xff]
    %v9523 = vld [vmem:[#allocation15 + $0x2360] sm:$0xff]
    %v9524 = vld [vmem:[#allocation15 + $0x2368] sm:$0xff]
    %v9525 = vld [vmem:[#allocation15 + $0x2370] sm:$0xff]
    %v9526 = vld [vmem:[#allocation15 + $0x2378] sm:$0xff]
    %v9527 = vld [vmem:[#allocation15 + $0x2380] sm:$0xff]
    %v9528 = vld [vmem:[#allocation15 + $0x2388] sm:$0xff]
    %v9529 = vld [vmem:[#allocation15 + $0x2390] sm:$0xff]
    %v9530 = vld [vmem:[#allocation15 + $0x2398] sm:$0xff]
    %v9531 = vld [vmem:[#allocation15 + $0x23a0] sm:$0xff]
    %v9532 = vld [vmem:[#allocation15 + $0x23a8] sm:$0xff]
    %v9533 = vld [vmem:[#allocation15 + $0x23b0] sm:$0xff]
    %v9534 = vld [vmem:[#allocation15 + $0x23b8] sm:$0xff]
    %v9535 = vld [vmem:[#allocation15 + $0x23c0] sm:$0xff]
    %v9536 = vld [vmem:[#allocation15 + $0x23c8] sm:$0xff]
    %v9537 = vld [vmem:[#allocation15 + $0x23d0] sm:$0xff]
    %v9538 = vld [vmem:[#allocation15 + $0x23d8] sm:$0xff]
    %v9539 = vld [vmem:[#allocation15 + $0x23e0] sm:$0xff]
    %v9540 = vld [vmem:[#allocation15 + $0x23e8] sm:$0xff]
    %v9541 = vld [vmem:[#allocation15 + $0x23f0] sm:$0xff]
    %v9542 = vld [vmem:[#allocation15 + $0x23f8] sm:$0xff]
    %v9543 = vld [vmem:[#allocation16] sm:$0x3]
    %v9545 = vlaneseq
    %v9546 = vshrl.u32 %v9545, 7
    %v9547 = vsub.s32 0, %v9546
    %v9548 = vrot.slane %v9543, %v9547
    %v9549 = vlaneseq
    %v9550 = vshrl.u32 %v9549, 7
    %v9551 = vsub.s32 1, %v9550
    %v9552 = vrot.slane %v9543, %v9551
    %9555 = vmatprep.subr.mxu0 %v8422
    %9556 = vmatpush1.msra.mxu0 %v8421
    %9557 = vmatprep.subr.mxu0 %v8420
    %9558 = vmatpush1.msra.mxu0 %v8419
    %9559 = vmatprep.subr.mxu0 %v8418
    %9560 = vmatpush1.msra.mxu0 %v8417
    %9561 = vmatprep.subr.mxu0 %v8416
    %9562 = vmatpush1.msra.mxu0 %v8415
    %9563 = vmatprep.subr.mxu0 %v8414
    %9564 = vmatpush1.msra.mxu0 %v8413
    %9565 = vmatprep.subr.mxu0 %v8412
    %9566 = vmatpush1.msra.mxu0 %v8411
    %9567 = vmatprep.subr.mxu0 %v8410
    %9568 = vmatpush1.msra.mxu0 %v8409
    %9569 = vmatprep.subr.mxu0 %v8408
    %9570 = vmatpush1.msra.mxu0 %v8407
    %9571 = vmatprep.subr.mxu0 %v8406
    %9572 = vmatpush1.msra.mxu0 %v8405
    %9573 = vmatprep.subr.mxu0 %v8404
    %9574 = vmatpush1.msra.mxu0 %v8403
    %9575 = vmatprep.subr.mxu0 %v8402
    %9576 = vmatpush1.msra.mxu0 %v8401
    %9577 = vmatprep.subr.mxu0 %v8400
    %9578 = vmatpush1.msra.mxu0 %v8399
    %9579 = vmatprep.subr.mxu0 %v8398
    %9580 = vmatpush1.msra.mxu0 %v8397
    %9581 = vmatprep.subr.mxu0 %v8396
    %9582 = vmatpush1.msra.mxu0 %v8395
    %9583 = vmatprep.subr.mxu0 %v8394
    %9584 = vmatpush1.msra.mxu0 %v8393
    %9585 = vmatprep.subr.mxu0 %v8392
    %9586 = vmatpush1.msra.mxu0 %v8391
    %9587 = vmatprep.subr.mxu0 %v8454
    %9588 = vmatpush2.msra.mxu0 %v8453
    %9589 = vmatprep.subr.mxu0 %v8452
    %9590 = vmatpush2.msra.mxu0 %v8451
    %9591 = vmatprep.subr.mxu0 %v8450
    %9592 = vmatpush2.msra.mxu0 %v8449
    %9593 = vmatprep.subr.mxu0 %v8448
    %9594 = vmatpush2.msra.mxu0 %v8447
    %9595 = vmatprep.subr.mxu0 %v8446
    %9596 = vmatpush2.msra.mxu0 %v8445
    %9597 = vmatprep.subr.mxu0 %v8444
    %9598 = vmatpush2.msra.mxu0 %v8443
    %9599 = vmatprep.subr.mxu0 %v8442
    %9600 = vmatpush2.msra.mxu0 %v8441
    %9601 = vmatprep.subr.mxu0 %v8440
    %9602 = vmatpush2.msra.mxu0 %v8439
    %9603 = vmatprep.subr.mxu0 %v8438
    %9604 = vmatpush2.msra.mxu0 %v8437
    %9605 = vmatprep.subr.mxu0 %v8436
    %9606 = vmatpush2.msra.mxu0 %v8435
    %9607 = vmatprep.subr.mxu0 %v8434
    %9608 = vmatpush2.msra.mxu0 %v8433
    %9609 = vmatprep.subr.mxu0 %v8432
    %9610 = vmatpush2.msra.mxu0 %v8431
    %9611 = vmatprep.subr.mxu0 %v8430
    %9612 = vmatpush2.msra.mxu0 %v8429
    %9613 = vmatprep.subr.mxu0 %v8428
    %9614 = vmatpush2.msra.mxu0 %v8427
    %9615 = vmatprep.subr.mxu0 %v8426
    %9616 = vmatpush2.msra.mxu0 %v8425
    %9617 = vmatprep.subr.mxu0 %v8424
    %9618 = vmatpush2.msra.mxu0 %v8423
    %9619 = vmatprep.mubr.f32.mxu0 %v8263
    %9620 = vmatmul.mubr.f32.gmra.mxu0 %v8259
    %v9621 = vpop.f32.mrf.mxu0
    %v9622 = vadd.f32 %v9548, %v9621
    %v9623 = vpop.f32.mrf.mxu0
    %v9624 = vadd.f32 %v9552, %v9623
    %9625 = vdwg.mxu0
    %9626 = vmatprep.subr.mxu0 %v8486
    %9627 = vmatpush1.msra.mxu0 %v8485
    %9628 = vmatprep.subr.mxu0 %v8484
    %9629 = vmatpush1.msra.mxu0 %v8483
    %9630 = vmatprep.subr.mxu0 %v8482
    %9631 = vmatpush1.msra.mxu0 %v8481
    %9632 = vmatprep.subr.mxu0 %v8480
    %9633 = vmatpush1.msra.mxu0 %v8479
    %9634 = vmatprep.subr.mxu0 %v8478
    %9635 = vmatpush1.msra.mxu0 %v8477
    %9636 = vmatprep.subr.mxu0 %v8476
    %9637 = vmatpush1.msra.mxu0 %v8475
    %9638 = vmatprep.subr.mxu0 %v8474
    %9639 = vmatpush1.msra.mxu0 %v8473
    %9640 = vmatprep.subr.mxu0 %v8472
    %9641 = vmatpush1.msra.mxu0 %v8471
    %9642 = vmatprep.subr.mxu0 %v8470
    %9643 = vmatpush1.msra.mxu0 %v8469
    %9644 = vmatprep.subr.mxu0 %v8468
    %9645 = vmatpush1.msra.mxu0 %v8467
    %9646 = vmatprep.subr.mxu0 %v8466
    %9647 = vmatpush1.msra.mxu0 %v8465
    %9648 = vmatprep.subr.mxu0 %v8464
    %9649 = vmatpush1.msra.mxu0 %v8463
    %9650 = vmatprep.subr.mxu0 %v8462
    %9651 = vmatpush1.msra.mxu0 %v8461
    %9652 = vmatprep.subr.mxu0 %v8460
    %9653 = vmatpush1.msra.mxu0 %v8459
    %9654 = vmatprep.subr.mxu0 %v8458
    %9655 = vmatpush1.msra.mxu0 %v8457
    %9656 = vmatprep.subr.mxu0 %v8456
    %9657 = vmatpush1.msra.mxu0 %v8455
    %9658 = vmatprep.subr.mxu0 %v8518
    %9659 = vmatpush2.msra.mxu0 %v8517
    %9660 = vmatprep.subr.mxu0 %v8516
    %9661 = vmatpush2.msra.mxu0 %v8515
    %9662 = vmatprep.subr.mxu0 %v8514
    %9663 = vmatpush2.msra.mxu0 %v8513
    %9664 = vmatprep.subr.mxu0 %v8512
    %9665 = vmatpush2.msra.mxu0 %v8511
    %9666 = vmatprep.subr.mxu0 %v8510
    %9667 = vmatpush2.msra.mxu0 %v8509
    %9668 = vmatprep.subr.mxu0 %v8508
    %9669 = vmatpush2.msra.mxu0 %v8507
    %9670 = vmatprep.subr.mxu0 %v8506
    %9671 = vmatpush2.msra.mxu0 %v8505
    %9672 = vmatprep.subr.mxu0 %v8504
    %9673 = vmatpush2.msra.mxu0 %v8503
    %9674 = vmatprep.subr.mxu0 %v8502
    %9675 = vmatpush2.msra.mxu0 %v8501
    %9676 = vmatprep.subr.mxu0 %v8500
    %9677 = vmatpush2.msra.mxu0 %v8499
    %9678 = vmatprep.subr.mxu0 %v8498
    %9679 = vmatpush2.msra.mxu0 %v8497
    %9680 = vmatprep.subr.mxu0 %v8496
    %9681 = vmatpush2.msra.mxu0 %v8495
    %9682 = vmatprep.subr.mxu0 %v8494
    %9683 = vmatpush2.msra.mxu0 %v8493
    %9684 = vmatprep.subr.mxu0 %v8492
    %9685 = vmatpush2.msra.mxu0 %v8491
    %9686 = vmatprep.subr.mxu0 %v8490
    %9687 = vmatpush2.msra.mxu0 %v8489
    %9688 = vmatprep.subr.mxu0 %v8488
    %9689 = vmatpush2.msra.mxu0 %v8487
    %9690 = vmatprep.mubr.f32.mxu0 %v8271
    %9691 = vmatmul.mubr.f32.gmra.mxu0 %v8267
    %v9692 = vpop.f32.mrf.mxu0
    %v9693 = vadd.f32 %v9622, %v9692
    %v9694 = vpop.f32.mrf.mxu0
    %v9695 = vadd.f32 %v9624, %v9694
    %9696 = vdwg.mxu0
    %9697 = vmatprep.subr.mxu0 %v8550
    %9698 = vmatpush1.msra.mxu0 %v8549
    %9699 = vmatprep.subr.mxu0 %v8548
    %9700 = vmatpush1.msra.mxu0 %v8547
    %9701 = vmatprep.subr.mxu0 %v8546
    %9702 = vmatpush1.msra.mxu0 %v8545
    %9703 = vmatprep.subr.mxu0 %v8544
    %9704 = vmatpush1.msra.mxu0 %v8543
    %9705 = vmatprep.subr.mxu0 %v8542
    %9706 = vmatpush1.msra.mxu0 %v8541
    %9707 = vmatprep.subr.mxu0 %v8540
    %9708 = vmatpush1.msra.mxu0 %v8539
    %9709 = vmatprep.subr.mxu0 %v8538
    %9710 = vmatpush1.msra.mxu0 %v8537
    %9711 = vmatprep.subr.mxu0 %v8536
    %9712 = vmatpush1.msra.mxu0 %v8535
    %9713 = vmatprep.subr.mxu0 %v8534
    %9714 = vmatpush1.msra.mxu0 %v8533
    %9715 = vmatprep.subr.mxu0 %v8532
    %9716 = vmatpush1.msra.mxu0 %v8531
    %9717 = vmatprep.subr.mxu0 %v8530
    %9718 = vmatpush1.msra.mxu0 %v8529
    %9719 = vmatprep.subr.mxu0 %v8528
    %9720 = vmatpush1.msra.mxu0 %v8527
    %9721 = vmatprep.subr.mxu0 %v8526
    %9722 = vmatpush1.msra.mxu0 %v8525
    %9723 = vmatprep.subr.mxu0 %v8524
    %9724 = vmatpush1.msra.mxu0 %v8523
    %9725 = vmatprep.subr.mxu0 %v8522
    %9726 = vmatpush1.msra.mxu0 %v8521
    %9727 = vmatprep.subr.mxu0 %v8520
    %9728 = vmatpush1.msra.mxu0 %v8519
    %9729 = vmatprep.subr.mxu0 %v8582
    %9730 = vmatpush2.msra.mxu0 %v8581
    %9731 = vmatprep.subr.mxu0 %v8580
    %9732 = vmatpush2.msra.mxu0 %v8579
    %9733 = vmatprep.subr.mxu0 %v8578
    %9734 = vmatpush2.msra.mxu0 %v8577
    %9735 = vmatprep.subr.mxu0 %v8576
    %9736 = vmatpush2.msra.mxu0 %v8575
    %9737 = vmatprep.subr.mxu0 %v8574
    %9738 = vmatpush2.msra.mxu0 %v8573
    %9739 = vmatprep.subr.mxu0 %v8572
    %9740 = vmatpush2.msra.mxu0 %v8571
    %9741 = vmatprep.subr.mxu0 %v8570
    %9742 = vmatpush2.msra.mxu0 %v8569
    %9743 = vmatprep.subr.mxu0 %v8568
    %9744 = vmatpush2.msra.mxu0 %v8567
    %9745 = vmatprep.subr.mxu0 %v8566
    %9746 = vmatpush2.msra.mxu0 %v8565
    %9747 = vmatprep.subr.mxu0 %v8564
    %9748 = vmatpush2.msra.mxu0 %v8563
    %9749 = vmatprep.subr.mxu0 %v8562
    %9750 = vmatpush2.msra.mxu0 %v8561
    %9751 = vmatprep.subr.mxu0 %v8560
    %9752 = vmatpush2.msra.mxu0 %v8559
    %9753 = vmatprep.subr.mxu0 %v8558
    %9754 = vmatpush2.msra.mxu0 %v8557
    %9755 = vmatprep.subr.mxu0 %v8556
    %9756 = vmatpush2.msra.mxu0 %v8555
    %9757 = vmatprep.subr.mxu0 %v8554
    %9758 = vmatpush2.msra.mxu0 %v8553
    %9759 = vmatprep.subr.mxu0 %v8552
    %9760 = vmatpush2.msra.mxu0 %v8551
    %9761 = vmatprep.mubr.f32.mxu0 %v8278
    %9762 = vmatmul.mubr.f32.gmra.mxu0 %v8275
    %v9763 = vpop.f32.mrf.mxu0
    %v9764 = vadd.f32 %v9693, %v9763
    %v9765 = vpop.f32.mrf.mxu0
    %v9766 = vadd.f32 %v9695, %v9765
    %9767 = vdwg.mxu0
    %9768 = vmatprep.subr.mxu0 %v8614
    %9769 = vmatpush1.msra.mxu0 %v8613
    %9770 = vmatprep.subr.mxu0 %v8612
    %9771 = vmatpush1.msra.mxu0 %v8611
    %9772 = vmatprep.subr.mxu0 %v8610
    %9773 = vmatpush1.msra.mxu0 %v8609
    %9774 = vmatprep.subr.mxu0 %v8608
    %9775 = vmatpush1.msra.mxu0 %v8607
    %9776 = vmatprep.subr.mxu0 %v8606
    %9777 = vmatpush1.msra.mxu0 %v8605
    %9778 = vmatprep.subr.mxu0 %v8604
    %9779 = vmatpush1.msra.mxu0 %v8603
    %9780 = vmatprep.subr.mxu0 %v8602
    %9781 = vmatpush1.msra.mxu0 %v8601
    %9782 = vmatprep.subr.mxu0 %v8600
    %9783 = vmatpush1.msra.mxu0 %v8599
    %9784 = vmatprep.subr.mxu0 %v8598
    %9785 = vmatpush1.msra.mxu0 %v8597
    %9786 = vmatprep.subr.mxu0 %v8596
    %9787 = vmatpush1.msra.mxu0 %v8595
    %9788 = vmatprep.subr.mxu0 %v8594
    %9789 = vmatpush1.msra.mxu0 %v8593
    %9790 = vmatprep.subr.mxu0 %v8592
    %9791 = vmatpush1.msra.mxu0 %v8591
    %9792 = vmatprep.subr.mxu0 %v8590
    %9793 = vmatpush1.msra.mxu0 %v8589
    %9794 = vmatprep.subr.mxu0 %v8588
    %9795 = vmatpush1.msra.mxu0 %v8587
    %9796 = vmatprep.subr.mxu0 %v8586
    %9797 = vmatpush1.msra.mxu0 %v8585
    %9798 = vmatprep.subr.mxu0 %v8584
    %9799 = vmatpush1.msra.mxu0 %v8583
    %9800 = vmatprep.subr.mxu0 %v8646
    %9801 = vmatpush2.msra.mxu0 %v8645
    %9802 = vmatprep.subr.mxu0 %v8644
    %9803 = vmatpush2.msra.mxu0 %v8643
    %9804 = vmatprep.subr.mxu0 %v8642
    %9805 = vmatpush2.msra.mxu0 %v8641
    %9806 = vmatprep.subr.mxu0 %v8640
    %9807 = vmatpush2.msra.mxu0 %v8639
    %9808 = vmatprep.subr.mxu0 %v8638
    %9809 = vmatpush2.msra.mxu0 %v8637
    %9810 = vmatprep.subr.mxu0 %v8636
    %9811 = vmatpush2.msra.mxu0 %v8635
    %9812 = vmatprep.subr.mxu0 %v8634
    %9813 = vmatpush2.msra.mxu0 %v8633
    %9814 = vmatprep.subr.mxu0 %v8632
    %9815 = vmatpush2.msra.mxu0 %v8631
    %9816 = vmatprep.subr.mxu0 %v8630
    %9817 = vmatpush2.msra.mxu0 %v8629
    %9818 = vmatprep.subr.mxu0 %v8628
    %9819 = vmatpush2.msra.mxu0 %v8627
    %9820 = vmatprep.subr.mxu0 %v8626
    %9821 = vmatpush2.msra.mxu0 %v8625
    %9822 = vmatprep.subr.mxu0 %v8624
    %9823 = vmatpush2.msra.mxu0 %v8623
    %9824 = vmatprep.subr.mxu0 %v8622
    %9825 = vmatpush2.msra.mxu0 %v8621
    %9826 = vmatprep.subr.mxu0 %v8620
    %9827 = vmatpush2.msra.mxu0 %v8619
    %9828 = vmatprep.subr.mxu0 %v8618
    %9829 = vmatpush2.msra.mxu0 %v8617
    %9830 = vmatprep.subr.mxu0 %v8616
    %9831 = vmatpush2.msra.mxu0 %v8615
    %9832 = vmatprep.mubr.f32.mxu0 %v8286
    %9833 = vmatmul.mubr.f32.gmra.mxu0 %v8282
    %v9834 = vpop.f32.mrf.mxu0
    %v9835 = vadd.f32 %v9764, %v9834
    %v9836 = vpop.f32.mrf.mxu0
    %v9837 = vadd.f32 %v9766, %v9836
    %9838 = vdwg.mxu0
    %9839 = vmatprep.subr.mxu0 %v8678
    %9840 = vmatpush1.msra.mxu0 %v8677
    %9841 = vmatprep.subr.mxu0 %v8676
    %9842 = vmatpush1.msra.mxu0 %v8675
    %9843 = vmatprep.subr.mxu0 %v8674
    %9844 = vmatpush1.msra.mxu0 %v8673
    %9845 = vmatprep.subr.mxu0 %v8672
    %9846 = vmatpush1.msra.mxu0 %v8671
    %9847 = vmatprep.subr.mxu0 %v8670
    %9848 = vmatpush1.msra.mxu0 %v8669
    %9849 = vmatprep.subr.mxu0 %v8668
    %9850 = vmatpush1.msra.mxu0 %v8667
    %9851 = vmatprep.subr.mxu0 %v8666
    %9852 = vmatpush1.msra.mxu0 %v8665
    %9853 = vmatprep.subr.mxu0 %v8664
    %9854 = vmatpush1.msra.mxu0 %v8663
    %9855 = vmatprep.subr.mxu0 %v8662
    %9856 = vmatpush1.msra.mxu0 %v8661
    %9857 = vmatprep.subr.mxu0 %v8660
    %9858 = vmatpush1.msra.mxu0 %v8659
    %9859 = vmatprep.subr.mxu0 %v8658
    %9860 = vmatpush1.msra.mxu0 %v8657
    %9861 = vmatprep.subr.mxu0 %v8656
    %9862 = vmatpush1.msra.mxu0 %v8655
    %9863 = vmatprep.subr.mxu0 %v8654
    %9864 = vmatpush1.msra.mxu0 %v8653
    %9865 = vmatprep.subr.mxu0 %v8652
    %9866 = vmatpush1.msra.mxu0 %v8651
    %9867 = vmatprep.subr.mxu0 %v8650
    %9868 = vmatpush1.msra.mxu0 %v8649
    %9869 = vmatprep.subr.mxu0 %v8648
    %9870 = vmatpush1.msra.mxu0 %v8647
    %9871 = vmatprep.subr.mxu0 %v8710
    %9872 = vmatpush2.msra.mxu0 %v8709
    %9873 = vmatprep.subr.mxu0 %v8708
    %9874 = vmatpush2.msra.mxu0 %v8707
    %9875 = vmatprep.subr.mxu0 %v8706
    %9876 = vmatpush2.msra.mxu0 %v8705
    %9877 = vmatprep.subr.mxu0 %v8704
    %9878 = vmatpush2.msra.mxu0 %v8703
    %9879 = vmatprep.subr.mxu0 %v8702
    %9880 = vmatpush2.msra.mxu0 %v8701
    %9881 = vmatprep.subr.mxu0 %v8700
    %9882 = vmatpush2.msra.mxu0 %v8699
    %9883 = vmatprep.subr.mxu0 %v8698
    %9884 = vmatpush2.msra.mxu0 %v8697
    %9885 = vmatprep.subr.mxu0 %v8696
    %9886 = vmatpush2.msra.mxu0 %v8695
    %9887 = vmatprep.subr.mxu0 %v8694
    %9888 = vmatpush2.msra.mxu0 %v8693
    %9889 = vmatprep.subr.mxu0 %v8692
    %9890 = vmatpush2.msra.mxu0 %v8691
    %9891 = vmatprep.subr.mxu0 %v8690
    %9892 = vmatpush2.msra.mxu0 %v8689
    %9893 = vmatprep.subr.mxu0 %v8688
    %9894 = vmatpush2.msra.mxu0 %v8687
    %9895 = vmatprep.subr.mxu0 %v8686
    %9896 = vmatpush2.msra.mxu0 %v8685
    %9897 = vmatprep.subr.mxu0 %v8684
    %9898 = vmatpush2.msra.mxu0 %v8683
    %9899 = vmatprep.subr.mxu0 %v8682
    %9900 = vmatpush2.msra.mxu0 %v8681
    %9901 = vmatprep.subr.mxu0 %v8680
    %9902 = vmatpush2.msra.mxu0 %v8679
    %9903 = vmatprep.mubr.f32.mxu0 %v8293
    %9904 = vmatmul.mubr.f32.gmra.mxu0 %v8289
    %v9905 = vpop.f32.mrf.mxu0
    %v9906 = vadd.f32 %v9835, %v9905
    %v9907 = vpop.f32.mrf.mxu0
    %v9908 = vadd.f32 %v9837, %v9907
    %9909 = vdwg.mxu0
    %9910 = vmatprep.subr.mxu0 %v8742
    %9911 = vmatpush1.msra.mxu0 %v8741
    %9912 = vmatprep.subr.mxu0 %v8740
    %9913 = vmatpush1.msra.mxu0 %v8739
    %9914 = vmatprep.subr.mxu0 %v8738
    %9915 = vmatpush1.msra.mxu0 %v8737
    %9916 = vmatprep.subr.mxu0 %v8736
    %9917 = vmatpush1.msra.mxu0 %v8735
    %9918 = vmatprep.subr.mxu0 %v8734
    %9919 = vmatpush1.msra.mxu0 %v8733
    %9920 = vmatprep.subr.mxu0 %v8732
    %9921 = vmatpush1.msra.mxu0 %v8731
    %9922 = vmatprep.subr.mxu0 %v8730
    %9923 = vmatpush1.msra.mxu0 %v8729
    %9924 = vmatprep.subr.mxu0 %v8728
    %9925 = vmatpush1.msra.mxu0 %v8727
    %9926 = vmatprep.subr.mxu0 %v8726
    %9927 = vmatpush1.msra.mxu0 %v8725
    %9928 = vmatprep.subr.mxu0 %v8724
    %9929 = vmatpush1.msra.mxu0 %v8723
    %9930 = vmatprep.subr.mxu0 %v8722
    %9931 = vmatpush1.msra.mxu0 %v8721
    %9932 = vmatprep.subr.mxu0 %v8720
    %9933 = vmatpush1.msra.mxu0 %v8719
    %9934 = vmatprep.subr.mxu0 %v8718
    %9935 = vmatpush1.msra.mxu0 %v8717
    %9936 = vmatprep.subr.mxu0 %v8716
    %9937 = vmatpush1.msra.mxu0 %v8715
    %9938 = vmatprep.subr.mxu0 %v8714
    %9939 = vmatpush1.msra.mxu0 %v8713
    %9940 = vmatprep.subr.mxu0 %v8712
    %9941 = vmatpush1.msra.mxu0 %v8711
    %9942 = vmatprep.subr.mxu0 %v8774
    %9943 = vmatpush2.msra.mxu0 %v8773
    %9944 = vmatprep.subr.mxu0 %v8772
    %9945 = vmatpush2.msra.mxu0 %v8771
    %9946 = vmatprep.subr.mxu0 %v8770
    %9947 = vmatpush2.msra.mxu0 %v8769
    %9948 = vmatprep.subr.mxu0 %v8768
    %9949 = vmatpush2.msra.mxu0 %v8767
    %9950 = vmatprep.subr.mxu0 %v8766
    %9951 = vmatpush2.msra.mxu0 %v8765
    %9952 = vmatprep.subr.mxu0 %v8764
    %9953 = vmatpush2.msra.mxu0 %v8763
    %9954 = vmatprep.subr.mxu0 %v8762
    %9955 = vmatpush2.msra.mxu0 %v8761
    %9956 = vmatprep.subr.mxu0 %v8760
    %9957 = vmatpush2.msra.mxu0 %v8759
    %9958 = vmatprep.subr.mxu0 %v8758
    %9959 = vmatpush2.msra.mxu0 %v8757
    %9960 = vmatprep.subr.mxu0 %v8756
    %9961 = vmatpush2.msra.mxu0 %v8755
    %9962 = vmatprep.subr.mxu0 %v8754
    %9963 = vmatpush2.msra.mxu0 %v8753
    %9964 = vmatprep.subr.mxu0 %v8752
    %9965 = vmatpush2.msra.mxu0 %v8751
    %9966 = vmatprep.subr.mxu0 %v8750
    %9967 = vmatpush2.msra.mxu0 %v8749
    %9968 = vmatprep.subr.mxu0 %v8748
    %9969 = vmatpush2.msra.mxu0 %v8747
    %9970 = vmatprep.subr.mxu0 %v8746
    %9971 = vmatpush2.msra.mxu0 %v8745
    %9972 = vmatprep.subr.mxu0 %v8744
    %9973 = vmatpush2.msra.mxu0 %v8743
    %9974 = vmatprep.mubr.f32.mxu0 %v8301
    %9975 = vmatmul.mubr.f32.gmra.mxu0 %v8297
    %v9976 = vpop.f32.mrf.mxu0
    %v9977 = vadd.f32 %v9906, %v9976
    %v9978 = vpop.f32.mrf.mxu0
    %v9979 = vadd.f32 %v9908, %v9978
    %9980 = vdwg.mxu0
    %9981 = vmatprep.subr.mxu0 %v8806
    %9982 = vmatpush1.msra.mxu0 %v8805
    %9983 = vmatprep.subr.mxu0 %v8804
    %9984 = vmatpush1.msra.mxu0 %v8803
    %9985 = vmatprep.subr.mxu0 %v8802
    %9986 = vmatpush1.msra.mxu0 %v8801
    %9987 = vmatprep.subr.mxu0 %v8800
    %9988 = vmatpush1.msra.mxu0 %v8799
    %9989 = vmatprep.subr.mxu0 %v8798
    %9990 = vmatpush1.msra.mxu0 %v8797
    %9991 = vmatprep.subr.mxu0 %v8796
    %9992 = vmatpush1.msra.mxu0 %v8795
    %9993 = vmatprep.subr.mxu0 %v8794
    %9994 = vmatpush1.msra.mxu0 %v8793
    %9995 = vmatprep.subr.mxu0 %v8792
    %9996 = vmatpush1.msra.mxu0 %v8791
    %9997 = vmatprep.subr.mxu0 %v8790
    %9998 = vmatpush1.msra.mxu0 %v8789
    %9999 = vmatprep.subr.mxu0 %v8788
    %10000 = vmatpush1.msra.mxu0 %v8787
    %10001 = vmatprep.subr.mxu0 %v8786
    %10002 = vmatpush1.msra.mxu0 %v8785
    %10003 = vmatprep.subr.mxu0 %v8784
    %10004 = vmatpush1.msra.mxu0 %v8783
    %10005 = vmatprep.subr.mxu0 %v8782
    %10006 = vmatpush1.msra.mxu0 %v8781
    %10007 = vmatprep.subr.mxu0 %v8780
    %10008 = vmatpush1.msra.mxu0 %v8779
    %10009 = vmatprep.subr.mxu0 %v8778
    %10010 = vmatpush1.msra.mxu0 %v8777
    %10011 = vmatprep.subr.mxu0 %v8776
    %10012 = vmatpush1.msra.mxu0 %v8775
    %10013 = vmatprep.subr.mxu0 %v8838
    %10014 = vmatpush2.msra.mxu0 %v8837
    %10015 = vmatprep.subr.mxu0 %v8836
    %10016 = vmatpush2.msra.mxu0 %v8835
    %10017 = vmatprep.subr.mxu0 %v8834
    %10018 = vmatpush2.msra.mxu0 %v8833
    %10019 = vmatprep.subr.mxu0 %v8832
    %10020 = vmatpush2.msra.mxu0 %v8831
    %10021 = vmatprep.subr.mxu0 %v8830
    %10022 = vmatpush2.msra.mxu0 %v8829
    %10023 = vmatprep.subr.mxu0 %v8828
    %10024 = vmatpush2.msra.mxu0 %v8827
    %10025 = vmatprep.subr.mxu0 %v8826
    %10026 = vmatpush2.msra.mxu0 %v8825
    %10027 = vmatprep.subr.mxu0 %v8824
    %10028 = vmatpush2.msra.mxu0 %v8823
    %10029 = vmatprep.subr.mxu0 %v8822
    %10030 = vmatpush2.msra.mxu0 %v8821
    %10031 = vmatprep.subr.mxu0 %v8820
    %10032 = vmatpush2.msra.mxu0 %v8819
    %10033 = vmatprep.subr.mxu0 %v8818
    %10034 = vmatpush2.msra.mxu0 %v8817
    %10035 = vmatprep.subr.mxu0 %v8816
    %10036 = vmatpush2.msra.mxu0 %v8815
    %10037 = vmatprep.subr.mxu0 %v8814
    %10038 = vmatpush2.msra.mxu0 %v8813
    %10039 = vmatprep.subr.mxu0 %v8812
    %10040 = vmatpush2.msra.mxu0 %v8811
    %10041 = vmatprep.subr.mxu0 %v8810
    %10042 = vmatpush2.msra.mxu0 %v8809
    %10043 = vmatprep.subr.mxu0 %v8808
    %10044 = vmatpush2.msra.mxu0 %v8807
    %10045 = vmatprep.mubr.f32.mxu0 %v8308
    %10046 = vmatmul.mubr.f32.gmra.mxu0 %v8305
    %v10047 = vpop.f32.mrf.mxu0
    %v10048 = vadd.f32 %v9977, %v10047
    %v10049 = vpop.f32.mrf.mxu0
    %v10050 = vadd.f32 %v9979, %v10049
    %10051 = vdwg.mxu0
    %10052 = vmatprep.subr.mxu0 %v8870
    %10053 = vmatpush1.msra.mxu0 %v8869
    %10054 = vmatprep.subr.mxu0 %v8868
    %10055 = vmatpush1.msra.mxu0 %v8867
    %10056 = vmatprep.subr.mxu0 %v8866
    %10057 = vmatpush1.msra.mxu0 %v8865
    %10058 = vmatprep.subr.mxu0 %v8864
    %10059 = vmatpush1.msra.mxu0 %v8863
    %10060 = vmatprep.subr.mxu0 %v8862
    %10061 = vmatpush1.msra.mxu0 %v8861
    %10062 = vmatprep.subr.mxu0 %v8860
    %10063 = vmatpush1.msra.mxu0 %v8859
    %10064 = vmatprep.subr.mxu0 %v8858
    %10065 = vmatpush1.msra.mxu0 %v8857
    %10066 = vmatprep.subr.mxu0 %v8856
    %10067 = vmatpush1.msra.mxu0 %v8855
    %10068 = vmatprep.subr.mxu0 %v8854
    %10069 = vmatpush1.msra.mxu0 %v8853
    %10070 = vmatprep.subr.mxu0 %v8852
    %10071 = vmatpush1.msra.mxu0 %v8851
    %10072 = vmatprep.subr.mxu0 %v8850
    %10073 = vmatpush1.msra.mxu0 %v8849
    %10074 = vmatprep.subr.mxu0 %v8848
    %10075 = vmatpush1.msra.mxu0 %v8847
    %10076 = vmatprep.subr.mxu0 %v8846
    %10077 = vmatpush1.msra.mxu0 %v8845
    %10078 = vmatprep.subr.mxu0 %v8844
    %10079 = vmatpush1.msra.mxu0 %v8843
    %10080 = vmatprep.subr.mxu0 %v8842
    %10081 = vmatpush1.msra.mxu0 %v8841
    %10082 = vmatprep.subr.mxu0 %v8840
    %10083 = vmatpush1.msra.mxu0 %v8839
    %10084 = vmatprep.subr.mxu0 %v8902
    %10085 = vmatpush2.msra.mxu0 %v8901
    %10086 = vmatprep.subr.mxu0 %v8900
    %10087 = vmatpush2.msra.mxu0 %v8899
    %10088 = vmatprep.subr.mxu0 %v8898
    %10089 = vmatpush2.msra.mxu0 %v8897
    %10090 = vmatprep.subr.mxu0 %v8896
    %10091 = vmatpush2.msra.mxu0 %v8895
    %10092 = vmatprep.subr.mxu0 %v8894
    %10093 = vmatpush2.msra.mxu0 %v8893
    %10094 = vmatprep.subr.mxu0 %v8892
    %10095 = vmatpush2.msra.mxu0 %v8891
    %10096 = vmatprep.subr.mxu0 %v8890
    %10097 = vmatpush2.msra.mxu0 %v8889
    %10098 = vmatprep.subr.mxu0 %v8888
    %10099 = vmatpush2.msra.mxu0 %v8887
    %10100 = vmatprep.subr.mxu0 %v8886
    %10101 = vmatpush2.msra.mxu0 %v8885
    %10102 = vmatprep.subr.mxu0 %v8884
    %10103 = vmatpush2.msra.mxu0 %v8883
    %10104 = vmatprep.subr.mxu0 %v8882
    %10105 = vmatpush2.msra.mxu0 %v8881
    %10106 = vmatprep.subr.mxu0 %v8880
    %10107 = vmatpush2.msra.mxu0 %v8879
    %10108 = vmatprep.subr.mxu0 %v8878
    %10109 = vmatpush2.msra.mxu0 %v8877
    %10110 = vmatprep.subr.mxu0 %v8876
    %10111 = vmatpush2.msra.mxu0 %v8875
    %10112 = vmatprep.subr.mxu0 %v8874
    %10113 = vmatpush2.msra.mxu0 %v8873
    %10114 = vmatprep.subr.mxu0 %v8872
    %10115 = vmatpush2.msra.mxu0 %v8871
    %10116 = vmatprep.mubr.f32.mxu0 %v8316
    %10117 = vmatmul.mubr.f32.gmra.mxu0 %v8312
    %v10118 = vpop.f32.mrf.mxu0
    %v10119 = vadd.f32 %v10048, %v10118
    %v10120 = vpop.f32.mrf.mxu0
    %v10121 = vadd.f32 %v10050, %v10120
    %10122 = vdwg.mxu0
    %10123 = vmatprep.subr.mxu0 %v8934
    %10124 = vmatpush1.msra.mxu0 %v8933
    %10125 = vmatprep.subr.mxu0 %v8932
    %10126 = vmatpush1.msra.mxu0 %v8931
    %10127 = vmatprep.subr.mxu0 %v8930
    %10128 = vmatpush1.msra.mxu0 %v8929
    %10129 = vmatprep.subr.mxu0 %v8928
    %10130 = vmatpush1.msra.mxu0 %v8927
    %10131 = vmatprep.subr.mxu0 %v8926
    %10132 = vmatpush1.msra.mxu0 %v8925
    %10133 = vmatprep.subr.mxu0 %v8924
    %10134 = vmatpush1.msra.mxu0 %v8923
    %10135 = vmatprep.subr.mxu0 %v8922
    %10136 = vmatpush1.msra.mxu0 %v8921
    %10137 = vmatprep.subr.mxu0 %v8920
    %10138 = vmatpush1.msra.mxu0 %v8919
    %10139 = vmatprep.subr.mxu0 %v8918
    %10140 = vmatpush1.msra.mxu0 %v8917
    %10141 = vmatprep.subr.mxu0 %v8916
    %10142 = vmatpush1.msra.mxu0 %v8915
    %10143 = vmatprep.subr.mxu0 %v8914
    %10144 = vmatpush1.msra.mxu0 %v8913
    %10145 = vmatprep.subr.mxu0 %v8912
    %10146 = vmatpush1.msra.mxu0 %v8911
    %10147 = vmatprep.subr.mxu0 %v8910
    %10148 = vmatpush1.msra.mxu0 %v8909
    %10149 = vmatprep.subr.mxu0 %v8908
    %10150 = vmatpush1.msra.mxu0 %v8907
    %10151 = vmatprep.subr.mxu0 %v8906
    %10152 = vmatpush1.msra.mxu0 %v8905
    %10153 = vmatprep.subr.mxu0 %v8904
    %10154 = vmatpush1.msra.mxu0 %v8903
    %10155 = vmatprep.subr.mxu0 %v8966
    %10156 = vmatpush2.msra.mxu0 %v8965
    %10157 = vmatprep.subr.mxu0 %v8964
    %10158 = vmatpush2.msra.mxu0 %v8963
    %10159 = vmatprep.subr.mxu0 %v8962
    %10160 = vmatpush2.msra.mxu0 %v8961
    %10161 = vmatprep.subr.mxu0 %v8960
    %10162 = vmatpush2.msra.mxu0 %v8959
    %10163 = vmatprep.subr.mxu0 %v8958
    %10164 = vmatpush2.msra.mxu0 %v8957
    %10165 = vmatprep.subr.mxu0 %v8956
    %10166 = vmatpush2.msra.mxu0 %v8955
    %10167 = vmatprep.subr.mxu0 %v8954
    %10168 = vmatpush2.msra.mxu0 %v8953
    %10169 = vmatprep.subr.mxu0 %v8952
    %10170 = vmatpush2.msra.mxu0 %v8951
    %10171 = vmatprep.subr.mxu0 %v8950
    %10172 = vmatpush2.msra.mxu0 %v8949
    %10173 = vmatprep.subr.mxu0 %v8948
    %10174 = vmatpush2.msra.mxu0 %v8947
    %10175 = vmatprep.subr.mxu0 %v8946
    %10176 = vmatpush2.msra.mxu0 %v8945
    %10177 = vmatprep.subr.mxu0 %v8944
    %10178 = vmatpush2.msra.mxu0 %v8943
    %10179 = vmatprep.subr.mxu0 %v8942
    %10180 = vmatpush2.msra.mxu0 %v8941
    %10181 = vmatprep.subr.mxu0 %v8940
    %10182 = vmatpush2.msra.mxu0 %v8939
    %10183 = vmatprep.subr.mxu0 %v8938
    %10184 = vmatpush2.msra.mxu0 %v8937
    %10185 = vmatprep.subr.mxu0 %v8936
    %10186 = vmatpush2.msra.mxu0 %v8935
    %10187 = vmatprep.mubr.f32.mxu0 %v8323
    %10188 = vmatmul.mubr.f32.gmra.mxu0 %v8319
    %v10189 = vpop.f32.mrf.mxu0
    %v10190 = vadd.f32 %v10119, %v10189
    %v10191 = vpop.f32.mrf.mxu0
    %v10192 = vadd.f32 %v10121, %v10191
    %10193 = vdwg.mxu0
    %10194 = vmatprep.subr.mxu0 %v8998
    %10195 = vmatpush1.msra.mxu0 %v8997
    %10196 = vmatprep.subr.mxu0 %v8996
    %10197 = vmatpush1.msra.mxu0 %v8995
    %10198 = vmatprep.subr.mxu0 %v8994
    %10199 = vmatpush1.msra.mxu0 %v8993
    %10200 = vmatprep.subr.mxu0 %v8992
    %10201 = vmatpush1.msra.mxu0 %v8991
    %10202 = vmatprep.subr.mxu0 %v8990
    %10203 = vmatpush1.msra.mxu0 %v8989
    %10204 = vmatprep.subr.mxu0 %v8988
    %10205 = vmatpush1.msra.mxu0 %v8987
    %10206 = vmatprep.subr.mxu0 %v8986
    %10207 = vmatpush1.msra.mxu0 %v8985
    %10208 = vmatprep.subr.mxu0 %v8984
    %10209 = vmatpush1.msra.mxu0 %v8983
    %10210 = vmatprep.subr.mxu0 %v8982
    %10211 = vmatpush1.msra.mxu0 %v8981
    %10212 = vmatprep.subr.mxu0 %v8980
    %10213 = vmatpush1.msra.mxu0 %v8979
    %10214 = vmatprep.subr.mxu0 %v8978
    %10215 = vmatpush1.msra.mxu0 %v8977
    %10216 = vmatprep.subr.mxu0 %v8976
    %10217 = vmatpush1.msra.mxu0 %v8975
    %10218 = vmatprep.subr.mxu0 %v8974
    %10219 = vmatpush1.msra.mxu0 %v8973
    %10220 = vmatprep.subr.mxu0 %v8972
    %10221 = vmatpush1.msra.mxu0 %v8971
    %10222 = vmatprep.subr.mxu0 %v8970
    %10223 = vmatpush1.msra.mxu0 %v8969
    %10224 = vmatprep.subr.mxu0 %v8968
    %10225 = vmatpush1.msra.mxu0 %v8967
    %10226 = vmatprep.subr.mxu0 %v9030
    %10227 = vmatpush2.msra.mxu0 %v9029
    %10228 = vmatprep.subr.mxu0 %v9028
    %10229 = vmatpush2.msra.mxu0 %v9027
    %10230 = vmatprep.subr.mxu0 %v9026
    %10231 = vmatpush2.msra.mxu0 %v9025
    %10232 = vmatprep.subr.mxu0 %v9024
    %10233 = vmatpush2.msra.mxu0 %v9023
    %10234 = vmatprep.subr.mxu0 %v9022
    %10235 = vmatpush2.msra.mxu0 %v9021
    %10236 = vmatprep.subr.mxu0 %v9020
    %10237 = vmatpush2.msra.mxu0 %v9019
    %10238 = vmatprep.subr.mxu0 %v9018
    %10239 = vmatpush2.msra.mxu0 %v9017
    %10240 = vmatprep.subr.mxu0 %v9016
    %10241 = vmatpush2.msra.mxu0 %v9015
    %10242 = vmatprep.subr.mxu0 %v9014
    %10243 = vmatpush2.msra.mxu0 %v9013
    %10244 = vmatprep.subr.mxu0 %v9012
    %10245 = vmatpush2.msra.mxu0 %v9011
    %10246 = vmatprep.subr.mxu0 %v9010
    %10247 = vmatpush2.msra.mxu0 %v9009
    %10248 = vmatprep.subr.mxu0 %v9008
    %10249 = vmatpush2.msra.mxu0 %v9007
    %10250 = vmatprep.subr.mxu0 %v9006
    %10251 = vmatpush2.msra.mxu0 %v9005
    %10252 = vmatprep.subr.mxu0 %v9004
    %10253 = vmatpush2.msra.mxu0 %v9003
    %10254 = vmatprep.subr.mxu0 %v9002
    %10255 = vmatpush2.msra.mxu0 %v9001
    %10256 = vmatprep.subr.mxu0 %v9000
    %10257 = vmatpush2.msra.mxu0 %v8999
    %10258 = vmatprep.mubr.f32.mxu0 %v8331
    %10259 = vmatmul.mubr.f32.gmra.mxu0 %v8327
    %v10260 = vpop.f32.mrf.mxu0
    %v10261 = vadd.f32 %v10190, %v10260
    %v10262 = vpop.f32.mrf.mxu0
    %v10263 = vadd.f32 %v10192, %v10262
    %10264 = vdwg.mxu0
    %10265 = vmatprep.subr.mxu0 %v9062
    %10266 = vmatpush1.msra.mxu0 %v9061
    %10267 = vmatprep.subr.mxu0 %v9060
    %10268 = vmatpush1.msra.mxu0 %v9059
    %10269 = vmatprep.subr.mxu0 %v9058
    %10270 = vmatpush1.msra.mxu0 %v9057
    %10271 = vmatprep.subr.mxu0 %v9056
    %10272 = vmatpush1.msra.mxu0 %v9055
    %10273 = vmatprep.subr.mxu0 %v9054
    %10274 = vmatpush1.msra.mxu0 %v9053
    %10275 = vmatprep.subr.mxu0 %v9052
    %10276 = vmatpush1.msra.mxu0 %v9051
    %10277 = vmatprep.subr.mxu0 %v9050
    %10278 = vmatpush1.msra.mxu0 %v9049
    %10279 = vmatprep.subr.mxu0 %v9048
    %10280 = vmatpush1.msra.mxu0 %v9047
    %10281 = vmatprep.subr.mxu0 %v9046
    %10282 = vmatpush1.msra.mxu0 %v9045
    %10283 = vmatprep.subr.mxu0 %v9044
    %10284 = vmatpush1.msra.mxu0 %v9043
    %10285 = vmatprep.subr.mxu0 %v9042
    %10286 = vmatpush1.msra.mxu0 %v9041
    %10287 = vmatprep.subr.mxu0 %v9040
    %10288 = vmatpush1.msra.mxu0 %v9039
    %10289 = vmatprep.subr.mxu0 %v9038
    %10290 = vmatpush1.msra.mxu0 %v9037
    %10291 = vmatprep.subr.mxu0 %v9036
    %10292 = vmatpush1.msra.mxu0 %v9035
    %10293 = vmatprep.subr.mxu0 %v9034
    %10294 = vmatpush1.msra.mxu0 %v9033
    %10295 = vmatprep.subr.mxu0 %v9032
    %10296 = vmatpush1.msra.mxu0 %v9031
    %10297 = vmatprep.subr.mxu0 %v9094
    %10298 = vmatpush2.msra.mxu0 %v9093
    %10299 = vmatprep.subr.mxu0 %v9092
    %10300 = vmatpush2.msra.mxu0 %v9091
    %10301 = vmatprep.subr.mxu0 %v9090
    %10302 = vmatpush2.msra.mxu0 %v9089
    %10303 = vmatprep.subr.mxu0 %v9088
    %10304 = vmatpush2.msra.mxu0 %v9087
    %10305 = vmatprep.subr.mxu0 %v9086
    %10306 = vmatpush2.msra.mxu0 %v9085
    %10307 = vmatprep.subr.mxu0 %v9084
    %10308 = vmatpush2.msra.mxu0 %v9083
    %10309 = vmatprep.subr.mxu0 %v9082
    %10310 = vmatpush2.msra.mxu0 %v9081
    %10311 = vmatprep.subr.mxu0 %v9080
    %10312 = vmatpush2.msra.mxu0 %v9079
    %10313 = vmatprep.subr.mxu0 %v9078
    %10314 = vmatpush2.msra.mxu0 %v9077
    %10315 = vmatprep.subr.mxu0 %v9076
    %10316 = vmatpush2.msra.mxu0 %v9075
    %10317 = vmatprep.subr.mxu0 %v9074
    %10318 = vmatpush2.msra.mxu0 %v9073
    %10319 = vmatprep.subr.mxu0 %v9072
    %10320 = vmatpush2.msra.mxu0 %v9071
    %10321 = vmatprep.subr.mxu0 %v9070
    %10322 = vmatpush2.msra.mxu0 %v9069
    %10323 = vmatprep.subr.mxu0 %v9068
    %10324 = vmatpush2.msra.mxu0 %v9067
    %10325 = vmatprep.subr.mxu0 %v9066
    %10326 = vmatpush2.msra.mxu0 %v9065
    %10327 = vmatprep.subr.mxu0 %v9064
    %10328 = vmatpush2.msra.mxu0 %v9063
    %10329 = vmatprep.mubr.f32.mxu0 %v8338
    %10330 = vmatmul.mubr.f32.gmra.mxu0 %v8335
    %v10331 = vpop.f32.mrf.mxu0
    %v10332 = vadd.f32 %v10261, %v10331
    %v10333 = vpop.f32.mrf.mxu0
    %v10334 = vadd.f32 %v10263, %v10333
    %10335 = vdwg.mxu0
    %10336 = vmatprep.subr.mxu0 %v9126
    %10337 = vmatpush1.msra.mxu0 %v9125
    %10338 = vmatprep.subr.mxu0 %v9124
    %10339 = vmatpush1.msra.mxu0 %v9123
    %10340 = vmatprep.subr.mxu0 %v9122
    %10341 = vmatpush1.msra.mxu0 %v9121
    %10342 = vmatprep.subr.mxu0 %v9120
    %10343 = vmatpush1.msra.mxu0 %v9119
    %10344 = vmatprep.subr.mxu0 %v9118
    %10345 = vmatpush1.msra.mxu0 %v9117
    %10346 = vmatprep.subr.mxu0 %v9116
    %10347 = vmatpush1.msra.mxu0 %v9115
    %10348 = vmatprep.subr.mxu0 %v9114
    %10349 = vmatpush1.msra.mxu0 %v9113
    %10350 = vmatprep.subr.mxu0 %v9112
    %10351 = vmatpush1.msra.mxu0 %v9111
    %10352 = vmatprep.subr.mxu0 %v9110
    %10353 = vmatpush1.msra.mxu0 %v9109
    %10354 = vmatprep.subr.mxu0 %v9108
    %10355 = vmatpush1.msra.mxu0 %v9107
    %10356 = vmatprep.subr.mxu0 %v9106
    %10357 = vmatpush1.msra.mxu0 %v9105
    %10358 = vmatprep.subr.mxu0 %v9104
    %10359 = vmatpush1.msra.mxu0 %v9103
    %10360 = vmatprep.subr.mxu0 %v9102
    %10361 = vmatpush1.msra.mxu0 %v9101
    %10362 = vmatprep.subr.mxu0 %v9100
    %10363 = vmatpush1.msra.mxu0 %v9099
    %10364 = vmatprep.subr.mxu0 %v9098
    %10365 = vmatpush1.msra.mxu0 %v9097
    %10366 = vmatprep.subr.mxu0 %v9096
    %10367 = vmatpush1.msra.mxu0 %v9095
    %10368 = vmatprep.subr.mxu0 %v9158
    %10369 = vmatpush2.msra.mxu0 %v9157
    %10370 = vmatprep.subr.mxu0 %v9156
    %10371 = vmatpush2.msra.mxu0 %v9155
    %10372 = vmatprep.subr.mxu0 %v9154
    %10373 = vmatpush2.msra.mxu0 %v9153
    %10374 = vmatprep.subr.mxu0 %v9152
    %10375 = vmatpush2.msra.mxu0 %v9151
    %10376 = vmatprep.subr.mxu0 %v9150
    %10377 = vmatpush2.msra.mxu0 %v9149
    %10378 = vmatprep.subr.mxu0 %v9148
    %10379 = vmatpush2.msra.mxu0 %v9147
    %10380 = vmatprep.subr.mxu0 %v9146
    %10381 = vmatpush2.msra.mxu0 %v9145
    %10382 = vmatprep.subr.mxu0 %v9144
    %10383 = vmatpush2.msra.mxu0 %v9143
    %10384 = vmatprep.subr.mxu0 %v9142
    %10385 = vmatpush2.msra.mxu0 %v9141
    %10386 = vmatprep.subr.mxu0 %v9140
    %10387 = vmatpush2.msra.mxu0 %v9139
    %10388 = vmatprep.subr.mxu0 %v9138
    %10389 = vmatpush2.msra.mxu0 %v9137
    %10390 = vmatprep.subr.mxu0 %v9136
    %10391 = vmatpush2.msra.mxu0 %v9135
    %10392 = vmatprep.subr.mxu0 %v9134
    %10393 = vmatpush2.msra.mxu0 %v9133
    %10394 = vmatprep.subr.mxu0 %v9132
    %10395 = vmatpush2.msra.mxu0 %v9131
    %10396 = vmatprep.subr.mxu0 %v9130
    %10397 = vmatpush2.msra.mxu0 %v9129
    %10398 = vmatprep.subr.mxu0 %v9128
    %10399 = vmatpush2.msra.mxu0 %v9127
    %10400 = vmatprep.mubr.f32.mxu0 %v8346
    %10401 = vmatmul.mubr.f32.gmra.mxu0 %v8342
    %v10402 = vpop.f32.mrf.mxu0
    %v10403 = vadd.f32 %v10332, %v10402
    %v10404 = vpop.f32.mrf.mxu0
    %v10405 = vadd.f32 %v10334, %v10404
    %10406 = vdwg.mxu0
    %10407 = vmatprep.subr.mxu0 %v9190
    %10408 = vmatpush1.msra.mxu0 %v9189
    %10409 = vmatprep.subr.mxu0 %v9188
    %10410 = vmatpush1.msra.mxu0 %v9187
    %10411 = vmatprep.subr.mxu0 %v9186
    %10412 = vmatpush1.msra.mxu0 %v9185
    %10413 = vmatprep.subr.mxu0 %v9184
    %10414 = vmatpush1.msra.mxu0 %v9183
    %10415 = vmatprep.subr.mxu0 %v9182
    %10416 = vmatpush1.msra.mxu0 %v9181
    %10417 = vmatprep.subr.mxu0 %v9180
    %10418 = vmatpush1.msra.mxu0 %v9179
    %10419 = vmatprep.subr.mxu0 %v9178
    %10420 = vmatpush1.msra.mxu0 %v9177
    %10421 = vmatprep.subr.mxu0 %v9176
    %10422 = vmatpush1.msra.mxu0 %v9175
    %10423 = vmatprep.subr.mxu0 %v9174
    %10424 = vmatpush1.msra.mxu0 %v9173
    %10425 = vmatprep.subr.mxu0 %v9172
    %10426 = vmatpush1.msra.mxu0 %v9171
    %10427 = vmatprep.subr.mxu0 %v9170
    %10428 = vmatpush1.msra.mxu0 %v9169
    %10429 = vmatprep.subr.mxu0 %v9168
    %10430 = vmatpush1.msra.mxu0 %v9167
    %10431 = vmatprep.subr.mxu0 %v9166
    %10432 = vmatpush1.msra.mxu0 %v9165
    %10433 = vmatprep.subr.mxu0 %v9164
    %10434 = vmatpush1.msra.mxu0 %v9163
    %10435 = vmatprep.subr.mxu0 %v9162
    %10436 = vmatpush1.msra.mxu0 %v9161
    %10437 = vmatprep.subr.mxu0 %v9160
    %10438 = vmatpush1.msra.mxu0 %v9159
    %10439 = vmatprep.subr.mxu0 %v9222
    %10440 = vmatpush2.msra.mxu0 %v9221
    %10441 = vmatprep.subr.mxu0 %v9220
    %10442 = vmatpush2.msra.mxu0 %v9219
    %10443 = vmatprep.subr.mxu0 %v9218
    %10444 = vmatpush2.msra.mxu0 %v9217
    %10445 = vmatprep.subr.mxu0 %v9216
    %10446 = vmatpush2.msra.mxu0 %v9215
    %10447 = vmatprep.subr.mxu0 %v9214
    %10448 = vmatpush2.msra.mxu0 %v9213
    %10449 = vmatprep.subr.mxu0 %v9212
    %10450 = vmatpush2.msra.mxu0 %v9211
    %10451 = vmatprep.subr.mxu0 %v9210
    %10452 = vmatpush2.msra.mxu0 %v9209
    %10453 = vmatprep.subr.mxu0 %v9208
    %10454 = vmatpush2.msra.mxu0 %v9207
    %10455 = vmatprep.subr.mxu0 %v9206
    %10456 = vmatpush2.msra.mxu0 %v9205
    %10457 = vmatprep.subr.mxu0 %v9204
    %10458 = vmatpush2.msra.mxu0 %v9203
    %10459 = vmatprep.subr.mxu0 %v9202
    %10460 = vmatpush2.msra.mxu0 %v9201
    %10461 = vmatprep.subr.mxu0 %v9200
    %10462 = vmatpush2.msra.mxu0 %v9199
    %10463 = vmatprep.subr.mxu0 %v9198
    %10464 = vmatpush2.msra.mxu0 %v9197
    %10465 = vmatprep.subr.mxu0 %v9196
    %10466 = vmatpush2.msra.mxu0 %v9195
    %10467 = vmatprep.subr.mxu0 %v9194
    %10468 = vmatpush2.msra.mxu0 %v9193
    %10469 = vmatprep.subr.mxu0 %v9192
    %10470 = vmatpush2.msra.mxu0 %v9191
    %10471 = vmatprep.mubr.f32.mxu0 %v8353
    %10472 = vmatmul.mubr.f32.gmra.mxu0 %v8349
    %v10473 = vpop.f32.mrf.mxu0
    %v10474 = vadd.f32 %v10403, %v10473
    %v10475 = vpop.f32.mrf.mxu0
    %v10476 = vadd.f32 %v10405, %v10475
    %10477 = vdwg.mxu0
    %10478 = vmatprep.subr.mxu0 %v9254
    %10479 = vmatpush1.msra.mxu0 %v9253
    %10480 = vmatprep.subr.mxu0 %v9252
    %10481 = vmatpush1.msra.mxu0 %v9251
    %10482 = vmatprep.subr.mxu0 %v9250
    %10483 = vmatpush1.msra.mxu0 %v9249
    %10484 = vmatprep.subr.mxu0 %v9248
    %10485 = vmatpush1.msra.mxu0 %v9247
    %10486 = vmatprep.subr.mxu0 %v9246
    %10487 = vmatpush1.msra.mxu0 %v9245
    %10488 = vmatprep.subr.mxu0 %v9244
    %10489 = vmatpush1.msra.mxu0 %v9243
    %10490 = vmatprep.subr.mxu0 %v9242
    %10491 = vmatpush1.msra.mxu0 %v9241
    %10492 = vmatprep.subr.mxu0 %v9240
    %10493 = vmatpush1.msra.mxu0 %v9239
    %10494 = vmatprep.subr.mxu0 %v9238
    %10495 = vmatpush1.msra.mxu0 %v9237
    %10496 = vmatprep.subr.mxu0 %v9236
    %10497 = vmatpush1.msra.mxu0 %v9235
    %10498 = vmatprep.subr.mxu0 %v9234
    %10499 = vmatpush1.msra.mxu0 %v9233
    %10500 = vmatprep.subr.mxu0 %v9232
    %10501 = vmatpush1.msra.mxu0 %v9231
    %10502 = vmatprep.subr.mxu0 %v9230
    %10503 = vmatpush1.msra.mxu0 %v9229
    %10504 = vmatprep.subr.mxu0 %v9228
    %10505 = vmatpush1.msra.mxu0 %v9227
    %10506 = vmatprep.subr.mxu0 %v9226
    %10507 = vmatpush1.msra.mxu0 %v9225
    %10508 = vmatprep.subr.mxu0 %v9224
    %10509 = vmatpush1.msra.mxu0 %v9223
    %10510 = vmatprep.subr.mxu0 %v9286
    %10511 = vmatpush2.msra.mxu0 %v9285
    %10512 = vmatprep.subr.mxu0 %v9284
    %10513 = vmatpush2.msra.mxu0 %v9283
    %10514 = vmatprep.subr.mxu0 %v9282
    %10515 = vmatpush2.msra.mxu0 %v9281
    %10516 = vmatprep.subr.mxu0 %v9280
    %10517 = vmatpush2.msra.mxu0 %v9279
    %10518 = vmatprep.subr.mxu0 %v9278
    %10519 = vmatpush2.msra.mxu0 %v9277
    %10520 = vmatprep.subr.mxu0 %v9276
    %10521 = vmatpush2.msra.mxu0 %v9275
    %10522 = vmatprep.subr.mxu0 %v9274
    %10523 = vmatpush2.msra.mxu0 %v9273
    %10524 = vmatprep.subr.mxu0 %v9272
    %10525 = vmatpush2.msra.mxu0 %v9271
    %10526 = vmatprep.subr.mxu0 %v9270
    %10527 = vmatpush2.msra.mxu0 %v9269
    %10528 = vmatprep.subr.mxu0 %v9268
    %10529 = vmatpush2.msra.mxu0 %v9267
    %10530 = vmatprep.subr.mxu0 %v9266
    %10531 = vmatpush2.msra.mxu0 %v9265
    %10532 = vmatprep.subr.mxu0 %v9264
    %10533 = vmatpush2.msra.mxu0 %v9263
    %10534 = vmatprep.subr.mxu0 %v9262
    %10535 = vmatpush2.msra.mxu0 %v9261
    %10536 = vmatprep.subr.mxu0 %v9260
    %10537 = vmatpush2.msra.mxu0 %v9259
    %10538 = vmatprep.subr.mxu0 %v9258
    %10539 = vmatpush2.msra.mxu0 %v9257
    %10540 = vmatprep.subr.mxu0 %v9256
    %10541 = vmatpush2.msra.mxu0 %v9255
    %10542 = vmatprep.mubr.f32.mxu0 %v8361
    %10543 = vmatmul.mubr.f32.gmra.mxu0 %v8357
    %v10544 = vpop.f32.mrf.mxu0
    %v10545 = vadd.f32 %v10474, %v10544
    %v10546 = vpop.f32.mrf.mxu0
    %v10547 = vadd.f32 %v10476, %v10546
    %10548 = vdwg.mxu0
    %10549 = vmatprep.subr.mxu0 %v9318
    %10550 = vmatpush1.msra.mxu0 %v9317
    %10551 = vmatprep.subr.mxu0 %v9316
    %10552 = vmatpush1.msra.mxu0 %v9315
    %10553 = vmatprep.subr.mxu0 %v9314
    %10554 = vmatpush1.msra.mxu0 %v9313
    %10555 = vmatprep.subr.mxu0 %v9312
    %10556 = vmatpush1.msra.mxu0 %v9311
    %10557 = vmatprep.subr.mxu0 %v9310
    %10558 = vmatpush1.msra.mxu0 %v9309
    %10559 = vmatprep.subr.mxu0 %v9308
    %10560 = vmatpush1.msra.mxu0 %v9307
    %10561 = vmatprep.subr.mxu0 %v9306
    %10562 = vmatpush1.msra.mxu0 %v9305
    %10563 = vmatprep.subr.mxu0 %v9304
    %10564 = vmatpush1.msra.mxu0 %v9303
    %10565 = vmatprep.subr.mxu0 %v9302
    %10566 = vmatpush1.msra.mxu0 %v9301
    %10567 = vmatprep.subr.mxu0 %v9300
    %10568 = vmatpush1.msra.mxu0 %v9299
    %10569 = vmatprep.subr.mxu0 %v9298
    %10570 = vmatpush1.msra.mxu0 %v9297
    %10571 = vmatprep.subr.mxu0 %v9296
    %10572 = vmatpush1.msra.mxu0 %v9295
    %10573 = vmatprep.subr.mxu0 %v9294
    %10574 = vmatpush1.msra.mxu0 %v9293
    %10575 = vmatprep.subr.mxu0 %v9292
    %10576 = vmatpush1.msra.mxu0 %v9291
    %10577 = vmatprep.subr.mxu0 %v9290
    %10578 = vmatpush1.msra.mxu0 %v9289
    %10579 = vmatprep.subr.mxu0 %v9288
    %10580 = vmatpush1.msra.mxu0 %v9287
    %10581 = vmatprep.subr.mxu0 %v9350
    %10582 = vmatpush2.msra.mxu0 %v9349
    %10583 = vmatprep.subr.mxu0 %v9348
    %10584 = vmatpush2.msra.mxu0 %v9347
    %10585 = vmatprep.subr.mxu0 %v9346
    %10586 = vmatpush2.msra.mxu0 %v9345
    %10587 = vmatprep.subr.mxu0 %v9344
    %10588 = vmatpush2.msra.mxu0 %v9343
    %10589 = vmatprep.subr.mxu0 %v9342
    %10590 = vmatpush2.msra.mxu0 %v9341
    %10591 = vmatprep.subr.mxu0 %v9340
    %10592 = vmatpush2.msra.mxu0 %v9339
    %10593 = vmatprep.subr.mxu0 %v9338
    %10594 = vmatpush2.msra.mxu0 %v9337
    %10595 = vmatprep.subr.mxu0 %v9336
    %10596 = vmatpush2.msra.mxu0 %v9335
    %10597 = vmatprep.subr.mxu0 %v9334
    %10598 = vmatpush2.msra.mxu0 %v9333
    %10599 = vmatprep.subr.mxu0 %v9332
    %10600 = vmatpush2.msra.mxu0 %v9331
    %10601 = vmatprep.subr.mxu0 %v9330
    %10602 = vmatpush2.msra.mxu0 %v9329
    %10603 = vmatprep.subr.mxu0 %v9328
    %10604 = vmatpush2.msra.mxu0 %v9327
    %10605 = vmatprep.subr.mxu0 %v9326
    %10606 = vmatpush2.msra.mxu0 %v9325
    %10607 = vmatprep.subr.mxu0 %v9324
    %10608 = vmatpush2.msra.mxu0 %v9323
    %10609 = vmatprep.subr.mxu0 %v9322
    %10610 = vmatpush2.msra.mxu0 %v9321
    %10611 = vmatprep.subr.mxu0 %v9320
    %10612 = vmatpush2.msra.mxu0 %v9319
    %10613 = vmatprep.mubr.f32.mxu0 %v8368
    %10614 = vmatmul.mubr.f32.gmra.mxu0 %v8365
    %v10615 = vpop.f32.mrf.mxu0
    %v10616 = vadd.f32 %v10545, %v10615
    %v10617 = vpop.f32.mrf.mxu0
    %v10618 = vadd.f32 %v10547, %v10617
    %10619 = vdwg.mxu0
    %10620 = vmatprep.subr.mxu0 %v9382
    %10621 = vmatpush1.msra.mxu0 %v9381
    %10622 = vmatprep.subr.mxu0 %v9380
    %10623 = vmatpush1.msra.mxu0 %v9379
    %10624 = vmatprep.subr.mxu0 %v9378
    %10625 = vmatpush1.msra.mxu0 %v9377
    %10626 = vmatprep.subr.mxu0 %v9376
    %10627 = vmatpush1.msra.mxu0 %v9375
    %10628 = vmatprep.subr.mxu0 %v9374
    %10629 = vmatpush1.msra.mxu0 %v9373
    %10630 = vmatprep.subr.mxu0 %v9372
    %10631 = vmatpush1.msra.mxu0 %v9371
    %10632 = vmatprep.subr.mxu0 %v9370
    %10633 = vmatpush1.msra.mxu0 %v9369
    %10634 = vmatprep.subr.mxu0 %v9368
    %10635 = vmatpush1.msra.mxu0 %v9367
    %10636 = vmatprep.subr.mxu0 %v9366
    %10637 = vmatpush1.msra.mxu0 %v9365
    %10638 = vmatprep.subr.mxu0 %v9364
    %10639 = vmatpush1.msra.mxu0 %v9363
    %10640 = vmatprep.subr.mxu0 %v9362
    %10641 = vmatpush1.msra.mxu0 %v9361
    %10642 = vmatprep.subr.mxu0 %v9360
    %10643 = vmatpush1.msra.mxu0 %v9359
    %10644 = vmatprep.subr.mxu0 %v9358
    %10645 = vmatpush1.msra.mxu0 %v9357
    %10646 = vmatprep.subr.mxu0 %v9356
    %10647 = vmatpush1.msra.mxu0 %v9355
    %10648 = vmatprep.subr.mxu0 %v9354
    %10649 = vmatpush1.msra.mxu0 %v9353
    %10650 = vmatprep.subr.mxu0 %v9352
    %10651 = vmatpush1.msra.mxu0 %v9351
    %10652 = vmatprep.subr.mxu0 %v9414
    %10653 = vmatpush2.msra.mxu0 %v9413
    %10654 = vmatprep.subr.mxu0 %v9412
    %10655 = vmatpush2.msra.mxu0 %v9411
    %10656 = vmatprep.subr.mxu0 %v9410
    %10657 = vmatpush2.msra.mxu0 %v9409
    %10658 = vmatprep.subr.mxu0 %v9408
    %10659 = vmatpush2.msra.mxu0 %v9407
    %10660 = vmatprep.subr.mxu0 %v9406
    %10661 = vmatpush2.msra.mxu0 %v9405
    %10662 = vmatprep.subr.mxu0 %v9404
    %10663 = vmatpush2.msra.mxu0 %v9403
    %10664 = vmatprep.subr.mxu0 %v9402
    %10665 = vmatpush2.msra.mxu0 %v9401
    %10666 = vmatprep.subr.mxu0 %v9400
    %10667 = vmatpush2.msra.mxu0 %v9399
    %10668 = vmatprep.subr.mxu0 %v9398
    %10669 = vmatpush2.msra.mxu0 %v9397
    %10670 = vmatprep.subr.mxu0 %v9396
    %10671 = vmatpush2.msra.mxu0 %v9395
    %10672 = vmatprep.subr.mxu0 %v9394
    %10673 = vmatpush2.msra.mxu0 %v9393
    %10674 = vmatprep.subr.mxu0 %v9392
    %10675 = vmatpush2.msra.mxu0 %v9391
    %10676 = vmatprep.subr.mxu0 %v9390
    %10677 = vmatpush2.msra.mxu0 %v9389
    %10678 = vmatprep.subr.mxu0 %v9388
    %10679 = vmatpush2.msra.mxu0 %v9387
    %10680 = vmatprep.subr.mxu0 %v9386
    %10681 = vmatpush2.msra.mxu0 %v9385
    %10682 = vmatprep.subr.mxu0 %v9384
    %10683 = vmatpush2.msra.mxu0 %v9383
    %10684 = vmatprep.mubr.f32.mxu0 %v8376
    %10685 = vmatmul.mubr.f32.gmra.mxu0 %v8372
    %v10686 = vpop.f32.mrf.mxu0
    %v10687 = vadd.f32 %v10616, %v10686
    %v10688 = vpop.f32.mrf.mxu0
    %v10689 = vadd.f32 %v10618, %v10688
    %10690 = vdwg.mxu0
    %10691 = vmatprep.subr.mxu0 %v9446
    %10692 = vmatpush1.msra.mxu0 %v9445
    %10693 = vmatprep.subr.mxu0 %v9444
    %10694 = vmatpush1.msra.mxu0 %v9443
    %10695 = vmatprep.subr.mxu0 %v9442
    %10696 = vmatpush1.msra.mxu0 %v9441
    %10697 = vmatprep.subr.mxu0 %v9440
    %10698 = vmatpush1.msra.mxu0 %v9439
    %10699 = vmatprep.subr.mxu0 %v9438
    %10700 = vmatpush1.msra.mxu0 %v9437
    %10701 = vmatprep.subr.mxu0 %v9436
    %10702 = vmatpush1.msra.mxu0 %v9435
    %10703 = vmatprep.subr.mxu0 %v9434
    %10704 = vmatpush1.msra.mxu0 %v9433
    %10705 = vmatprep.subr.mxu0 %v9432
    %10706 = vmatpush1.msra.mxu0 %v9431
    %10707 = vmatprep.subr.mxu0 %v9430
    %10708 = vmatpush1.msra.mxu0 %v9429
    %10709 = vmatprep.subr.mxu0 %v9428
    %10710 = vmatpush1.msra.mxu0 %v9427
    %10711 = vmatprep.subr.mxu0 %v9426
    %10712 = vmatpush1.msra.mxu0 %v9425
    %10713 = vmatprep.subr.mxu0 %v9424
    %10714 = vmatpush1.msra.mxu0 %v9423
    %10715 = vmatprep.subr.mxu0 %v9422
    %10716 = vmatpush1.msra.mxu0 %v9421
    %10717 = vmatprep.subr.mxu0 %v9420
    %10718 = vmatpush1.msra.mxu0 %v9419
    %10719 = vmatprep.subr.mxu0 %v9418
    %10720 = vmatpush1.msra.mxu0 %v9417
    %10721 = vmatprep.subr.mxu0 %v9416
    %10722 = vmatpush1.msra.mxu0 %v9415
    %10723 = vmatprep.subr.mxu0 %v9478
    %10724 = vmatpush2.msra.mxu0 %v9477
    %10725 = vmatprep.subr.mxu0 %v9476
    %10726 = vmatpush2.msra.mxu0 %v9475
    %10727 = vmatprep.subr.mxu0 %v9474
    %10728 = vmatpush2.msra.mxu0 %v9473
    %10729 = vmatprep.subr.mxu0 %v9472
    %10730 = vmatpush2.msra.mxu0 %v9471
    %10731 = vmatprep.subr.mxu0 %v9470
    %10732 = vmatpush2.msra.mxu0 %v9469
    %10733 = vmatprep.subr.mxu0 %v9468
    %10734 = vmatpush2.msra.mxu0 %v9467
    %10735 = vmatprep.subr.mxu0 %v9466
    %10736 = vmatpush2.msra.mxu0 %v9465
    %10737 = vmatprep.subr.mxu0 %v9464
    %10738 = vmatpush2.msra.mxu0 %v9463
    %10739 = vmatprep.subr.mxu0 %v9462
    %10740 = vmatpush2.msra.mxu0 %v9461
    %10741 = vmatprep.subr.mxu0 %v9460
    %10742 = vmatpush2.msra.mxu0 %v9459
    %10743 = vmatprep.subr.mxu0 %v9458
    %10744 = vmatpush2.msra.mxu0 %v9457
    %10745 = vmatprep.subr.mxu0 %v9456
    %10746 = vmatpush2.msra.mxu0 %v9455
    %10747 = vmatprep.subr.mxu0 %v9454
    %10748 = vmatpush2.msra.mxu0 %v9453
    %10749 = vmatprep.subr.mxu0 %v9452
    %10750 = vmatpush2.msra.mxu0 %v9451
    %10751 = vmatprep.subr.mxu0 %v9450
    %10752 = vmatpush2.msra.mxu0 %v9449
    %10753 = vmatprep.subr.mxu0 %v9448
    %10754 = vmatpush2.msra.mxu0 %v9447
    %10755 = vmatprep.mubr.f32.mxu0 %v8383
    %10756 = vmatmul.mubr.f32.gmra.mxu0 %v8379
    %v10757 = vpop.f32.mrf.mxu0
    %v10758 = vadd.f32 %v10687, %v10757
    %v10759 = vpop.f32.mrf.mxu0
    %v10760 = vadd.f32 %v10689, %v10759
    %10761 = vdwg.mxu0
    %10762 = vmatprep.subr.mxu0 %v9510
    %10763 = vmatpush1.msra.mxu0 %v9509
    %10764 = vmatprep.subr.mxu0 %v9508
    %10765 = vmatpush1.msra.mxu0 %v9507
    %10766 = vmatprep.subr.mxu0 %v9506
    %10767 = vmatpush1.msra.mxu0 %v9505
    %10768 = vmatprep.subr.mxu0 %v9504
    %10769 = vmatpush1.msra.mxu0 %v9503
    %10770 = vmatprep.subr.mxu0 %v9502
    %10771 = vmatpush1.msra.mxu0 %v9501
    %10772 = vmatprep.subr.mxu0 %v9500
    %10773 = vmatpush1.msra.mxu0 %v9499
    %10774 = vmatprep.subr.mxu0 %v9498
    %10775 = vmatpush1.msra.mxu0 %v9497
    %10776 = vmatprep.subr.mxu0 %v9496
    %10777 = vmatpush1.msra.mxu0 %v9495
    %10778 = vmatprep.subr.mxu0 %v9494
    %10779 = vmatpush1.msra.mxu0 %v9493
    %10780 = vmatprep.subr.mxu0 %v9492
    %10781 = vmatpush1.msra.mxu0 %v9491
    %10782 = vmatprep.subr.mxu0 %v9490
    %10783 = vmatpush1.msra.mxu0 %v9489
    %10784 = vmatprep.subr.mxu0 %v9488
    %10785 = vmatpush1.msra.mxu0 %v9487
    %10786 = vmatprep.subr.mxu0 %v9486
    %10787 = vmatpush1.msra.mxu0 %v9485
    %10788 = vmatprep.subr.mxu0 %v9484
    %10789 = vmatpush1.msra.mxu0 %v9483
    %10790 = vmatprep.subr.mxu0 %v9482
    %10791 = vmatpush1.msra.mxu0 %v9481
    %10792 = vmatprep.subr.mxu0 %v9480
    %10793 = vmatpush1.msra.mxu0 %v9479
    %10794 = vmatprep.subr.mxu0 %v9542
    %10795 = vmatpush2.msra.mxu0 %v9541
    %10796 = vmatprep.subr.mxu0 %v9540
    %10797 = vmatpush2.msra.mxu0 %v9539
    %10798 = vmatprep.subr.mxu0 %v9538
    %10799 = vmatpush2.msra.mxu0 %v9537
    %10800 = vmatprep.subr.mxu0 %v9536
    %10801 = vmatpush2.msra.mxu0 %v9535
    %10802 = vmatprep.subr.mxu0 %v9534
    %10803 = vmatpush2.msra.mxu0 %v9533
    %10804 = vmatprep.subr.mxu0 %v9532
    %10805 = vmatpush2.msra.mxu0 %v9531
    %10806 = vmatprep.subr.mxu0 %v9530
    %10807 = vmatpush2.msra.mxu0 %v9529
    %10808 = vmatprep.subr.mxu0 %v9528
    %10809 = vmatpush2.msra.mxu0 %v9527
    %10810 = vmatprep.subr.mxu0 %v9526
    %10811 = vmatpush2.msra.mxu0 %v9525
    %10812 = vmatprep.subr.mxu0 %v9524
    %10813 = vmatpush2.msra.mxu0 %v9523
    %10814 = vmatprep.subr.mxu0 %v9522
    %10815 = vmatpush2.msra.mxu0 %v9521
    %10816 = vmatprep.subr.mxu0 %v9520
    %10817 = vmatpush2.msra.mxu0 %v9519
    %10818 = vmatprep.subr.mxu0 %v9518
    %10819 = vmatpush2.msra.mxu0 %v9517
    %10820 = vmatprep.subr.mxu0 %v9516
    %10821 = vmatpush2.msra.mxu0 %v9515
    %10822 = vmatprep.subr.mxu0 %v9514
    %10823 = vmatpush2.msra.mxu0 %v9513
    %10824 = vmatprep.subr.mxu0 %v9512
    %10825 = vmatpush2.msra.mxu0 %v9511
    %10826 = vmatprep.mubr.f32.mxu0 %v8390
    %10827 = vmatmul.mubr.f32.gmra.mxu0 %v8387
    %v10828 = vpop.f32.mrf.mxu0
    %v10829 = vadd.f32 %v10758, %v10828
    %v10830 = vpop.f32.mrf.mxu0
    %v10831 = vadd.f32 %v10760, %v10830
    %10832 = vdwg.mxu0
    %v10833 = vmax.f32 %v10829, 0.0
    %v10834 = vmax.f32 %v10831, 0.0
    %v10835 = vld [vmem:[%s10] sm:$0xff]
    %v10836 = vld [vmem:[%s10 + $0x8] sm:$0xff]
    %v10837 = vld [vmem:[%s10 + $0x10] sm:$0xff]
    %v10838 = vld [vmem:[%s10 + $0x18] sm:$0xff]
    %v10839 = vld [vmem:[%s10 + $0x20] sm:$0xff]
    %v10840 = vld [vmem:[%s10 + $0x28] sm:$0xff]
    %v10841 = vld [vmem:[%s10 + $0x30] sm:$0xff]
    %v10842 = vld [vmem:[%s10 + $0x38] sm:$0xff]
    %v10843 = vld [vmem:[%s10 + $0x40] sm:$0xff]
    %v10844 = vld [vmem:[%s10 + $0x48] sm:$0xff]
    %v10845 = vld [vmem:[%s10 + $0x50] sm:$0xff]
    %v10846 = vld [vmem:[%s10 + $0x58] sm:$0xff]
    %v10847 = vld [vmem:[%s10 + $0x60] sm:$0xff]
    %v10848 = vld [vmem:[%s10 + $0x68] sm:$0xff]
    %v10849 = vld [vmem:[%s10 + $0x70] sm:$0xff]
    %v10850 = vld [vmem:[%s10 + $0x78] sm:$0xff]
    %v10851 = vld [vmem:[%s10 + $0x80] sm:$0xff]
    %v10852 = vld [vmem:[%s10 + $0x88] sm:$0xff]
    %v10853 = vld [vmem:[%s10 + $0x90] sm:$0xff]
    %v10854 = vld [vmem:[%s10 + $0x98] sm:$0xff]
    %v10855 = vld [vmem:[%s10 + $0xa0] sm:$0xff]
    %v10856 = vld [vmem:[%s10 + $0xa8] sm:$0xff]
    %v10857 = vld [vmem:[%s10 + $0xb0] sm:$0xff]
    %v10858 = vld [vmem:[%s10 + $0xb8] sm:$0xff]
    %v10859 = vld [vmem:[%s10 + $0xc0] sm:$0xff]
    %v10860 = vld [vmem:[%s10 + $0xc8] sm:$0xff]
    %v10861 = vld [vmem:[%s10 + $0xd0] sm:$0xff]
    %v10862 = vld [vmem:[%s10 + $0xd8] sm:$0xff]
    %v10863 = vld [vmem:[%s10 + $0xe0] sm:$0xff]
    %v10864 = vld [vmem:[%s10 + $0xe8] sm:$0xff]
    %v10865 = vld [vmem:[%s10 + $0xf0] sm:$0xff]
    %v10866 = vld [vmem:[%s10 + $0xf8] sm:$0xff]
    %v10867 = vld [vmem:[#allocation18] sm:$0x1]
    %v10869 = vlaneseq
    %v10870 = vshrl.u32 %v10869, 7
    %v10871 = vsub.s32 0, %v10870
    %v10872 = vrot.slane %v10867, %v10871
    %10874 = vmatprep.subr.mxu0 0.0
    %10875 = vmatpush1.msra.mxu0 %v10850
    %10876 = vmatprep.subr.mxu0 0.0
    %10877 = vmatpush1.msra.mxu0 %v10849
    %10878 = vmatprep.subr.mxu0 0.0
    %10879 = vmatpush1.msra.mxu0 %v10848
    %10880 = vmatprep.subr.mxu0 0.0
    %10881 = vmatpush1.msra.mxu0 %v10847
    %10882 = vmatprep.subr.mxu0 0.0
    %10883 = vmatpush1.msra.mxu0 %v10846
    %10884 = vmatprep.subr.mxu0 0.0
    %10885 = vmatpush1.msra.mxu0 %v10845
    %10886 = vmatprep.subr.mxu0 0.0
    %10887 = vmatpush1.msra.mxu0 %v10844
    %10888 = vmatprep.subr.mxu0 0.0
    %10889 = vmatpush1.msra.mxu0 %v10843
    %10890 = vmatprep.subr.mxu0 0.0
    %10891 = vmatpush1.msra.mxu0 %v10842
    %10892 = vmatprep.subr.mxu0 0.0
    %10893 = vmatpush1.msra.mxu0 %v10841
    %10894 = vmatprep.subr.mxu0 0.0
    %10895 = vmatpush1.msra.mxu0 %v10840
    %10896 = vmatprep.subr.mxu0 0.0
    %10897 = vmatpush1.msra.mxu0 %v10839
    %10898 = vmatprep.subr.mxu0 0.0
    %10899 = vmatpush1.msra.mxu0 %v10838
    %10900 = vmatprep.subr.mxu0 0.0
    %10901 = vmatpush1.msra.mxu0 %v10837
    %10902 = vmatprep.subr.mxu0 0.0
    %10903 = vmatpush1.msra.mxu0 %v10836
    %10904 = vmatprep.subr.mxu0 0.0
    %10905 = vmatpush1.msra.mxu0 %v10835
    %10906 = vmatprep.subr.mxu0 0.0
    %10907 = vmatpush2.msra.mxu0 %v10866
    %10908 = vmatprep.subr.mxu0 0.0
    %10909 = vmatpush2.msra.mxu0 %v10865
    %10910 = vmatprep.subr.mxu0 0.0
    %10911 = vmatpush2.msra.mxu0 %v10864
    %10912 = vmatprep.subr.mxu0 0.0
    %10913 = vmatpush2.msra.mxu0 %v10863
    %10914 = vmatprep.subr.mxu0 0.0
    %10915 = vmatpush2.msra.mxu0 %v10862
    %10916 = vmatprep.subr.mxu0 0.0
    %10917 = vmatpush2.msra.mxu0 %v10861
    %10918 = vmatprep.subr.mxu0 0.0
    %10919 = vmatpush2.msra.mxu0 %v10860
    %10920 = vmatprep.subr.mxu0 0.0
    %10921 = vmatpush2.msra.mxu0 %v10859
    %10922 = vmatprep.subr.mxu0 0.0
    %10923 = vmatpush2.msra.mxu0 %v10858
    %10924 = vmatprep.subr.mxu0 0.0
    %10925 = vmatpush2.msra.mxu0 %v10857
    %10926 = vmatprep.subr.mxu0 0.0
    %10927 = vmatpush2.msra.mxu0 %v10856
    %10928 = vmatprep.subr.mxu0 0.0
    %10929 = vmatpush2.msra.mxu0 %v10855
    %10930 = vmatprep.subr.mxu0 0.0
    %10931 = vmatpush2.msra.mxu0 %v10854
    %10932 = vmatprep.subr.mxu0 0.0
    %10933 = vmatpush2.msra.mxu0 %v10853
    %10934 = vmatprep.subr.mxu0 0.0
    %10935 = vmatpush2.msra.mxu0 %v10852
    %10936 = vmatprep.subr.mxu0 0.0
    %10937 = vmatpush2.msra.mxu0 %v10851
    %10938 = vmatprep.mubr.f32.mxu0 %v10834
    %10939 = vmatmul.mubr.f32.gmra.mxu0 %v10833
    %v10940 = vpop.f32.mrf.mxu0
    %v10941 = vadd.f32 %v10872, %v10940
    %v10942 = vpop.f32.mrf.mxu0
    %10943 = vdwg.mxu0
    %vm10944 = vcmask 25600
    %10945 = vst.msk [vmem:[#allocation19] sm:$0x3] %vm10944, %v10941
    // Predicated region
    $region86: #{tpu_custom_call.1} parent=1 // pred_check
      _
    $region87: #{tpu_custom_call.1} parent=1 // pred_check_branch
      %10947 = sbr.rel (0) target = $region89
    $region88: #{tpu_custom_call.1} parent=1 // pred_region
      %s10949 = ssub.s32 32, 32
      %10950 = vsyncadd [#allocation6], %s10949
      %s10952 = sshll.u32 [#allocation19], 4
      %s10953 = int_to_ptr.vmem [resolvable:$true] %s10952
      %10955 = dma.vmem_to_hbm [thread:$0]  %s10953, 32, %s12, [#allocation6]
    $region89: #{tpu_custom_call.1} parent=1 // pred_fallthru
      _
    // Predicated region
    $region90: #{tpu_custom_call.1} parent=1 // pred_check
      _
    $region91: #{tpu_custom_call.1} parent=1 // pred_check_branch
      %10957 = sbr.rel (0) target = $region93
    $region92: #{tpu_custom_call.1} parent=1 // pred_region
      %10958 = dma.done [#allocation6], 32
    $region93: #{tpu_custom_call.1} parent=1 // pred_fallthru
      _
    %10959 = vsyncpa [#allocation5], 1
    %10960 = vsyncpa [#allocation8], 1
    %10961 = vsyncpa [#allocation11], 1
    %10962 = vsyncpa [#allocation14], 1
    %10963 = vsyncpa [#allocation17], 1
    %10964 = vsyncpa [#allocation6], 1

</llo_original>
